<compile_context>
chip_gen: v6e
topology: v6e:2x2x1
jax: 0.10.0
libtpu: 0.0.40
codegen_flags: <defaults>
</compile_context>

<pallas_src>
import functools

import jax
import jax.numpy as jnp
from jax import lax
from jax.experimental import pallas as pl
from jax.experimental.pallas import tpu as pltpu


def _encoder_layer_kernel(src_ref, pos_ref,
                          wq_ref, wk_ref, wv_ref, wo_ref,
                          w1_ref, w2_ref,
                          b1_ref, vec_ref,
                          out_ref, *, nhead, head_dim, eps, ff_chunk):
    Bt, S, D = src_ref.shape
    N = Bt * S
    FF = w1_ref.shape[1]
    cd = wq_ref.dtype                                    # bf16 compute dtype (MXU inputs)
    f32 = jnp.float32

    # Packed constant vectors (one (9, D) block instead of nine tiny blocks).
    bq, bk, bv = vec_ref[0:1, :], vec_ref[1:2, :], vec_ref[2:3, :]
    bo, b2 = vec_ref[3:4, :], vec_ref[4:5, :]
    g1, be1 = vec_ref[5:6, :], vec_ref[6:7, :]
    g2, be2 = vec_ref[7:8, :], vec_ref[8:9, :]

    # Rows ordered (batch, seq): (Bt, S, D) -> (N, D) is a layout-preserving major merge
    # (S is a multiple of 8 sublanes, D a multiple of 128 lanes).
    src2 = src_ref[...].astype(f32).reshape(N, D)
    qk2 = src2 + pos_ref[...].astype(f32).reshape(N, D)          # with_pos_embed(src, pos)

    # Hoisted bf16 copies of the activations feeding the MXU (used 2x / 1x below).
    qk_b = qk2.astype(cd)
    src_b = src2.astype(cd)

    # ---- self-attention in-projection, batched over all Bt*S rows ----
    # (1/sqrt(head_dim) already folded into wq / bq at parameter-prep time.)
    q2 = jnp.dot(qk_b, wq_ref[...], preferred_element_type=f32) + bq
    k2 = jnp.dot(qk_b, wk_ref[...], preferred_element_type=f32) + bk
    v2 = jnp.dot(src_b, wv_ref[...], preferred_element_type=f32) + bv

    qb = q2.astype(cd).reshape(Bt, S, D)
    kb = k2.astype(cd).reshape(Bt, S, D)
    vb = v2.astype(cd).reshape(Bt, S, D)

    # ---- attention: per head, one batched QK^T, one softmax, one batched P@V, and the
    #      head's output-projection row-block accumulated straight into a_acc.
    # TODO(synk): for production S, add a KV grid axis / pl.loop with running max/sum
    # accumulators (flash-style) so the (Bt, S, S) scores are never fully resident.
    a_acc = jnp.zeros((N, D), f32)
    for h in range(nhead):
        sl = slice(h * head_dim, (h + 1) * head_dim)
        s = jnp.einsum('bqd,bkd->bqk', qb[:, :, sl], kb[:, :, sl],
                       preferred_element_type=f32)               # (Bt, S, S) f32
        m = jnp.max(s, axis=-1, keepdims=True)
        p = jnp.exp(s - m)
        p = p * pl.reciprocal(jnp.sum(p, axis=-1, keepdims=True), approx=True)
        o = jnp.einsum('bqk,bkd->bqd', p.astype(cd), vb[:, :, sl],
                       preferred_element_type=f32)               # (Bt, S, dh) f32
        # Exact: concat_h(attn_h) @ Wo == sum_h attn_h @ Wo[h*dh:(h+1)*dh, :]
        a_acc = a_acc + jnp.dot(o.reshape(N, head_dim).astype(cd), wo_ref[sl, :],
                                preferred_element_type=f32)

    # ---- residual + LayerNorm1 (dropout1 = identity at inference) ----
    x = src2 + a_acc + bo
    mu = jnp.mean(x, axis=-1, keepdims=True)
    var = jnp.mean((x - mu) ** 2, axis=-1, keepdims=True)
    x = (x - mu) * lax.rsqrt(var + eps) * g1 + be1

    # ---- feed-forward: linear1 -> relu -> linear2, chunked over FF so the (N, FF)
    #      hidden activation is never fully resident (dropout = identity) ----
    x_b = x.astype(cd)
    h_acc = jnp.zeros((N, D), f32)
    for c in range(FF // ff_chunk):
        csl = slice(c * ff_chunk, (c + 1) * ff_chunk)
        h1 = jnp.dot(x_b, w1_ref[:, csl], preferred_element_type=f32) + b1_ref[:, csl]
        h1 = jnp.maximum(h1, 0.0).astype(cd)
        h_acc = h_acc + jnp.dot(h1, w2_ref[csl, :], preferred_element_type=f32)

    # ---- residual + LayerNorm2 ----
    y = x + h_acc + b2
    mu2 = jnp.mean(y, axis=-1, keepdims=True)
    var2 = jnp.mean((y - mu2) ** 2, axis=-1, keepdims=True)
    y = (y - mu2) * lax.rsqrt(var2 + eps) * g2 + be2

    # Single lane-dense store of the whole (Bt, S, D) tile.
    out_ref[...] = y.reshape(Bt, S, D).astype(out_ref.dtype)


def _vmem_limit_bytes(fraction=0.75, default=48 * 1024 * 1024):
    """Generation-aware scoped-VMEM limit: ~75% of physical VMEM (headroom for
    compiler-internal scratch) -> ~96 MiB on v5e/v6e, ~48 MiB on a v7x TensorCore."""
    try:
        cap = getattr(pltpu.get_tpu_info(), "vmem_capacity_bytes", None)
        if cap:
            return int(cap * fraction)
    except Exception:
        pass
    return default


def _pick_batch_block(S, B, D, tile_budget_bytes=4 << 20):
    """Smallest batch block (multiple of 8 sublanes, dividing B) whose S*Bt row count
    fills a 256-wide MXU (N >= 256), capped so one f32 tile stays within budget."""
    cands = [bt for bt in range(1, B + 1)
             if B % bt == 0 and (bt % 8 == 0 or bt == B)]
    fits = [bt for bt in cands if bt * S * D * 4 <= tile_budget_bytes] or cands[:1]
    for bt in sorted(fits):
        if S * bt >= 256:
            return bt
    return max(fits)


def _make_call(B, S, D, FF, Bt, nhead, head_dim, eps, ff_chunk, out_dtype,
               vmem_limit, single_buffer_weights):
    kernel = functools.partial(_encoder_layer_kernel, nhead=nhead,
                               head_dim=head_dim, eps=eps, ff_chunk=ff_chunk)

    # Constant-index blocks (weights + packed vectors) need only one VMEM buffer:
    # double-buffering constants doubles their residency for zero gain (worst on v7x).
    ckw = {"pipeline_mode": pl.Buffered(1)} if single_buffer_weights else {}
    cspec = lambda shape: pl.BlockSpec(shape, lambda b, _s=shape: tuple(0 for _ in _s), **ckw)
    tspec = lambda: pl.BlockSpec((Bt, S, D), lambda b: (b, 0, 0))

    return pl.pallas_call(
        kernel,
        out_shape=jax.ShapeDtypeStruct((B, S, D), out_dtype),
        grid_spec=pltpu.PrefetchScalarGridSpec(
            num_scalar_prefetch=0,
            grid=(B // Bt,),
            in_specs=[
                tspec(), tspec(),                                # src, pos (batch-major)
                cspec((D, D)), cspec((D, D)), cspec((D, D)), cspec((D, D)),  # Wq/Wk/Wv/Wo^T
                cspec((D, FF)), cspec((FF, D)),                  # W1^T, W2^T (bf16)
                cspec((1, FF)),                                  # b1
                cspec((9, D)),                                   # bq,bk,bv,bo,b2,g1,be1,g2,be2
            ],
            out_specs=tspec(),
        ),
        compiler_params=pltpu.CompilerParams(
            dimension_semantics=("parallel",),                   # batch blocks shard across TCs
            vmem_limit_bytes=vmem_limit,
        ),
    )


def transformer_encoder_layer(src_sbd, pos_sbd, params, *, nhead,
                              batch_block=None, eps=1e-5):
    """src_sbd, pos_sbd: (S, B, D) (PyTorch nn.MultiheadAttention layout).
    `params` must come from `prepare_params` (scale folded into wq/bq, bf16 weights,
    packed (9, D) bias/LayerNorm vector block)."""
    S, B, D = src_sbd.shape
    assert D % 128 == 0, "d_model must be a multiple of 128 lanes"
    assert D % nhead == 0
    head_dim = D // nhead
    assert head_dim % 8 == 0, "head_dim must be a multiple of 8 (sublane tile)"
    assert S % 8 == 0, "sequence length must be a multiple of 8 (sublane tile)"
    FF = params["w1_t"].shape[1]

    Bt = _pick_batch_block(S, B, D) if batch_block is None else min(batch_block, B)
    assert B % Bt == 0, "batch must be divisible by the batch block"

    ff_chunk = 512 if (FF > 512 and FF % 512 == 0) else FF

    # Layout plumbing only: the kernel is batch-major so that per-head attention is a
    # single leading-batch dot_general and every store is lane-dense.
    # TODO(synk): callers that already hold batch-first activations should skip these
    # two XLA transposes (and the inverse one on the output) to save HBM passes.
    src_bsd = jnp.transpose(src_sbd, (1, 0, 2))
    pos_bsd = jnp.transpose(pos_sbd, (1, 0, 2))

    args = (src_bsd, pos_bsd,
            params["wq_t"], params["wk_t"], params["wv_t"], params["wo_t"],
            params["w1_t"], params["w2_t"],
            params["b1"], params["vecs"])

    vmem_limit = _vmem_limit_bytes()

    def run(single_buffer):
        return _make_call(B, S, D, FF, Bt, nhead, head_dim, eps, ff_chunk,
                          src_sbd.dtype, vmem_limit, single_buffer)(*args)

    try:
        out_bsd = run(True)
    except Exception as e:
        # Only fall back (to default double-buffering of the constant blocks) if the
        # failure is specifically about pipeline_mode / buffering; everything else
        # (including VMEM OOM) is a real error and is re-raised.
        msg = str(e).lower()
        if not any(k in msg for k in ("pipeline_mode", "buffer")):
            raise
        out_bsd = run(False)

    return jnp.transpose(out_bsd, (1, 0, 2))


def prepare_params(raw, *, nhead, compute_dtype=jnp.bfloat16):
    """One-time parameter transform for the kernel:
      * fold 1/sqrt(head_dim) into the q projection (weight and bias),
      * cast the six matmul weight matrices to bf16 (MXU-native inputs),
      * pack the nine (1, D) bias / LayerNorm vectors into one (9, D) f32 block
        (one constant DMA per grid step instead of nine)."""
    D = raw["wq_t"].shape[0]
    scale = 1.0 / (float(D // nhead) ** 0.5)
    p = {}
    p["wq_t"] = (raw["wq_t"] * scale).astype(compute_dtype)
    for k in ("wk_t", "wv_t", "wo_t", "w1_t", "w2_t"):
        p[k] = raw[k].astype(compute_dtype)
    p["b1"] = raw["b1"].astype(jnp.float32)
    p["vecs"] = jnp.concatenate(
        [raw["bq"] * scale, raw["bk"], raw["bv"], raw["bo"], raw["b2"],
         raw["g1"], raw["be1"], raw["g2"], raw["be2"]], axis=0).astype(jnp.float32)
    return p


def _reference(src_sbd, pos_sbd, params, *, nhead, eps=1e-5):
    """Plain-JAX f32 reference (forward_post, eval mode); takes the raw f32 params."""
    S, B, D = src_sbd.shape
    dh = D // nhead
    x = jnp.transpose(src_sbd, (1, 0, 2))
    p = jnp.transpose(pos_sbd, (1, 0, 2))
    qk = x + p
    q = qk @ params["wq_t"] + params["bq"]
    k = qk @ params["wk_t"] + params["bk"]
    v = x @ params["wv_t"] + params["bv"]
    q = q.reshape(B, S, nhead, dh).transpose(0, 2, 1, 3) / jnp.sqrt(dh)
    k = k.reshape(B, S, nhead, dh).transpose(0, 2, 1, 3)
    v = v.reshape(B, S, nhead, dh).transpose(0, 2, 1, 3)
    a = jax.nn.softmax(q @ k.transpose(0, 1, 3, 2), axis=-1) @ v
    a = a.transpose(0, 2, 1, 3).reshape(B, S, D)
    a = a @ params["wo_t"] + params["bo"]
    x = x + a
    mu = x.mean(-1, keepdims=True); var = ((x - mu) ** 2).mean(-1, keepdims=True)
    x = (x - mu) / jnp.sqrt(var + eps) * params["g1"] + params["be1"]
    h = jnp.maximum(x @ params["w1_t"] + params["b1"], 0.0)
    h = h @ params["w2_t"] + params["b2"]
    y = x + h
    mu = y.mean(-1, keepdims=True); var = ((y - mu) ** 2).mean(-1, keepdims=True)
    y = (y - mu) / jnp.sqrt(var + eps) * params["g2"] + params["be2"]
    return jnp.transpose(y, (1, 0, 2))


if __name__ == "__main__":
    # Small but TPU-friendly shapes: lane-dense d_model (128); default batch block picks
    # Bt = 16 so each grid step feeds 256-row operands to the MXU.
    S, B, D = 16, 16, 128        # seq, batch, d_model
    NHEAD = 4
    FF = 256                     # dim_feedforward

    key = jax.random.PRNGKey(0)
    keys = jax.random.split(key, 16)

    def rnd(k, shape, scale=0.1):
        return (scale * jax.random.normal(k, shape)).astype(jnp.float32)

    # Parameters (PyTorch Linear: y = x @ W.T + b; we store W.T directly).
    raw = {
        "wq_t": rnd(keys[0], (D, D)),   "bq": rnd(keys[1], (1, D)),
        "wk_t": rnd(keys[2], (D, D)),   "bk": rnd(keys[3], (1, D)),
        "wv_t": rnd(keys[4], (D, D)),   "bv": rnd(keys[5], (1, D)),
        "wo_t": rnd(keys[6], (D, D)),   "bo": rnd(keys[7], (1, D)),
        "w1_t": rnd(keys[8], (D, FF)),  "b1": rnd(keys[9], (1, FF)),
        "w2_t": rnd(keys[10], (FF, D)), "b2": rnd(keys[11], (1, D)),
        "g1": jnp.ones((1, D), jnp.float32),  "be1": jnp.zeros((1, D), jnp.float32),
        "g2": jnp.ones((1, D), jnp.float32),  "be2": jnp.zeros((1, D), jnp.float32),
    }

    src = rnd(keys[12], (S, B, D), scale=1.0)   # (S, B, D), PyTorch seq-first layout
    pos = rnd(keys[13], (S, B, D), scale=1.0)

    params = prepare_params(raw, nhead=NHEAD)            # scale fold + bf16 + vec packing
    out = transformer_encoder_layer(src, pos, params, nhead=NHEAD)
    out = jax.block_until_ready(out)

    ref = _reference(src, pos, raw, nhead=NHEAD)
    assert out.shape == (S, B, D)
    err = float(jnp.max(jnp.abs(out - ref)))
    # bf16 MXU inputs + approx softmax reciprocal vs f32 reference -> loose tolerance.
    assert err < 1e-1, f"mismatch vs plain-JAX reference (max abs err {err})"

    # TODO(synk): dropout layers are treated as identity (inference mode); training-mode
    # stochastic dropout and attn_mask / key_padding_mask are not implemented.
    print("KERNEL_OK")
</pallas_src>

<mosaic_0001>
module attributes {stable_mosaic.version = 11 : i64} {
  func.func @_encoder_layer_kernel(%arg0: i32, %arg1: memref<16x16x128xf32, #tpu.memory_space<vmem>>, %arg2: memref<16x16x128xf32, #tpu.memory_space<vmem>>, %arg3: memref<128x128xbf16, #tpu.memory_space<vmem>>, %arg4: memref<128x128xbf16, #tpu.memory_space<vmem>>, %arg5: memref<128x128xbf16, #tpu.memory_space<vmem>>, %arg6: memref<128x128xbf16, #tpu.memory_space<vmem>>, %arg7: memref<128x256xbf16, #tpu.memory_space<vmem>>, %arg8: memref<256x128xbf16, #tpu.memory_space<vmem>>, %arg9: memref<1x256xf32, #tpu.memory_space<vmem>>, %arg10: memref<9x128xf32, #tpu.memory_space<vmem>>, %arg11: memref<16x16x128xf32, #tpu.memory_space<vmem>>) attributes {dimension_semantics = [#tpu.dimension_semantics<parallel>], iteration_bounds = array<i64: 1>, scalar_prefetch = 0 : i64, scratch_operands = 0 : i64, tpu.core_type = #tpu.core_type<tc>, window_params = [{transform_indices = @transform_0, window_bounds = array<i64: 16, 16, 128>}, {transform_indices = @transform_1, window_bounds = array<i64: 16, 16, 128>}, {pipeline_mode = #tpu.pipeline_mode<synchronous>, transform_indices = @transform_2, window_bounds = array<i64: 128, 128>}, {pipeline_mode = #tpu.pipeline_mode<synchronous>, transform_indices = @transform_3, window_bounds = array<i64: 128, 128>}, {pipeline_mode = #tpu.pipeline_mode<synchronous>, transform_indices = @transform_4, window_bounds = array<i64: 128, 128>}, {pipeline_mode = #tpu.pipeline_mode<synchronous>, transform_indices = @transform_5, window_bounds = array<i64: 128, 128>}, {pipeline_mode = #tpu.pipeline_mode<synchronous>, transform_indices = @transform_6, window_bounds = array<i64: 128, 256>}, {pipeline_mode = #tpu.pipeline_mode<synchronous>, transform_indices = @transform_7, window_bounds = array<i64: 256, 128>}, {pipeline_mode = #tpu.pipeline_mode<synchronous>, transform_indices = @transform_8, window_bounds = array<i64: 1, 256>}, {pipeline_mode = #tpu.pipeline_mode<synchronous>, transform_indices = @transform_9, window_bounds = array<i64: 9, 128>}, {transform_indices = @transform_10, window_bounds = array<i64: 16, 16, 128>}]} {
    %c0 = arith.constant 0 : index
    %c0_0 = arith.constant 0 : index
    %0 = vector.load %arg10[%c0, %c0_0] : memref<9x128xf32, #tpu.memory_space<vmem>>, vector<1x128xf32>
    %c1 = arith.constant 1 : index
    %c0_1 = arith.constant 0 : index
    %1 = vector.load %arg10[%c1, %c0_1] : memref<9x128xf32, #tpu.memory_space<vmem>>, vector<1x128xf32>
    %c2 = arith.constant 2 : index
    %c0_2 = arith.constant 0 : index
    %2 = vector.load %arg10[%c2, %c0_2] : memref<9x128xf32, #tpu.memory_space<vmem>>, vector<1x128xf32>
    %c3 = arith.constant 3 : index
    %c0_3 = arith.constant 0 : index
    %3 = vector.load %arg10[%c3, %c0_3] : memref<9x128xf32, #tpu.memory_space<vmem>>, vector<1x128xf32>
    %c4 = arith.constant 4 : index
    %c0_4 = arith.constant 0 : index
    %4 = vector.load %arg10[%c4, %c0_4] : memref<9x128xf32, #tpu.memory_space<vmem>>, vector<1x128xf32>
    %c5 = arith.constant 5 : index
    %c0_5 = arith.constant 0 : index
    %5 = vector.load %arg10[%c5, %c0_5] : memref<9x128xf32, #tpu.memory_space<vmem>>, vector<1x128xf32>
    %c6 = arith.constant 6 : index
    %c0_6 = arith.constant 0 : index
    %6 = vector.load %arg10[%c6, %c0_6] : memref<9x128xf32, #tpu.memory_space<vmem>>, vector<1x128xf32>
    %c7 = arith.constant 7 : index
    %c0_7 = arith.constant 0 : index
    %7 = vector.load %arg10[%c7, %c0_7] : memref<9x128xf32, #tpu.memory_space<vmem>>, vector<1x128xf32>
    %c8 = arith.constant 8 : index
    %c0_8 = arith.constant 0 : index
    %8 = vector.load %arg10[%c8, %c0_8] : memref<9x128xf32, #tpu.memory_space<vmem>>, vector<1x128xf32>
    %c0_9 = arith.constant 0 : index
    %c0_10 = arith.constant 0 : index
    %c0_11 = arith.constant 0 : index
    %9 = vector.load %arg1[%c0_9, %c0_10, %c0_11] : memref<16x16x128xf32, #tpu.memory_space<vmem>>, vector<16x16x128xf32>
    %10 = vector.shape_cast %9 : vector<16x16x128xf32> to vector<256x128xf32>
    %c0_12 = arith.constant 0 : index
    %c0_13 = arith.constant 0 : index
    %c0_14 = arith.constant 0 : index
    %11 = vector.load %arg2[%c0_12, %c0_13, %c0_14] : memref<16x16x128xf32, #tpu.memory_space<vmem>>, vector<16x16x128xf32>
    %12 = vector.shape_cast %11 : vector<16x16x128xf32> to vector<256x128xf32>
    %13 = arith.addf %10, %12 : vector<256x128xf32>
    %14 = arith.truncf %13 : vector<256x128xf32> to vector<256x128xbf16>
    %15 = arith.truncf %10 : vector<256x128xf32> to vector<256x128xbf16>
    %c0_15 = arith.constant 0 : index
    %c0_16 = arith.constant 0 : index
    %16 = vector.load %arg3[%c0_15, %c0_16] : memref<128x128xbf16, #tpu.memory_space<vmem>>, vector<128x128xbf16>
    %cst = arith.constant dense<0.000000e+00> : vector<256x128xf32>
    %17 = tpu.matmul %14, %16, %cst {dimension_numbers = #tpu.dot_dimension_numbers<[1], [0], [0], [1], [0, 0, 1, 1], [], []>} : vector<256x128xbf16>, vector<128x128xbf16>, vector<256x128xf32> -> vector<256x128xf32>
    %18 = vector.broadcast %0 : vector<1x128xf32> to vector<256x128xf32>
    %19 = arith.addf %17, %18 : vector<256x128xf32>
    %c0_17 = arith.constant 0 : index
    %c0_18 = arith.constant 0 : index
    %20 = vector.load %arg4[%c0_17, %c0_18] : memref<128x128xbf16, #tpu.memory_space<vmem>>, vector<128x128xbf16>
    %cst_19 = arith.constant dense<0.000000e+00> : vector<256x128xf32>
    %21 = tpu.matmul %14, %20, %cst_19 {dimension_numbers = #tpu.dot_dimension_numbers<[1], [0], [0], [1], [0, 0, 1, 1], [], []>} : vector<256x128xbf16>, vector<128x128xbf16>, vector<256x128xf32> -> vector<256x128xf32>
    %22 = vector.broadcast %1 : vector<1x128xf32> to vector<256x128xf32>
    %23 = arith.addf %21, %22 : vector<256x128xf32>
    %c0_20 = arith.constant 0 : index
    %c0_21 = arith.constant 0 : index
    %24 = vector.load %arg5[%c0_20, %c0_21] : memref<128x128xbf16, #tpu.memory_space<vmem>>, vector<128x128xbf16>
    %cst_22 = arith.constant dense<0.000000e+00> : vector<256x128xf32>
    %25 = tpu.matmul %15, %24, %cst_22 {dimension_numbers = #tpu.dot_dimension_numbers<[1], [0], [0], [1], [0, 0, 1, 1], [], []>} : vector<256x128xbf16>, vector<128x128xbf16>, vector<256x128xf32> -> vector<256x128xf32>
    %26 = vector.broadcast %2 : vector<1x128xf32> to vector<256x128xf32>
    %27 = arith.addf %25, %26 : vector<256x128xf32>
    %28 = arith.truncf %19 : vector<256x128xf32> to vector<256x128xbf16>
    %29 = vector.shape_cast %28 : vector<256x128xbf16> to vector<16x16x128xbf16>
    %30 = arith.truncf %23 : vector<256x128xf32> to vector<256x128xbf16>
    %31 = vector.shape_cast %30 : vector<256x128xbf16> to vector<16x16x128xbf16>
    %32 = arith.truncf %27 : vector<256x128xf32> to vector<256x128xbf16>
    %33 = vector.shape_cast %32 : vector<256x128xbf16> to vector<16x16x128xbf16>
    %cst_23 = arith.constant 0.000000e+00 : f32
    %34 = vector.broadcast %cst_23 : f32 to vector<256x128xf32>
    %35 = vector.extract_strided_slice %29 {offsets = [0, 0, 0], sizes = [16, 16, 32], strides = [1, 1, 1]} : vector<16x16x128xbf16> to vector<16x16x32xbf16>
    %36 = vector.extract_strided_slice %31 {offsets = [0, 0, 0], sizes = [16, 16, 32], strides = [1, 1, 1]} : vector<16x16x128xbf16> to vector<16x16x32xbf16>
    "tpu.trace_start"() <{level = 10 : i32, message = "bqd,bkd->bqk"}> : () -> ()
    %cst_24 = arith.constant dense<0.000000e+00> : vector<16x16x16xf32>
    %37 = tpu.matmul %35, %36, %cst_24 {dimension_numbers = #tpu.dot_dimension_numbers<[2], [2], [1], [1], [0, 0, 0, 1, 1, 1], [0], [0]>} : vector<16x16x32xbf16>, vector<16x16x32xbf16>, vector<16x16x16xf32> -> vector<16x16x16xf32>
    "tpu.trace_stop"() : () -> ()
    %cst_25 = arith.constant dense<0xFF800000> : vector<16x16xf32>
    %38 = vector.multi_reduction <maximumf>, %37, %cst_25 [2] : vector<16x16x16xf32> to vector<16x16xf32>
    %39 = vector.shape_cast %38 : vector<16x16xf32> to vector<16x16x1xf32>
    %40 = vector.broadcast %39 : vector<16x16x1xf32> to vector<16x16x16xf32>
    %41 = arith.subf %37, %40 : vector<16x16x16xf32>
    %42 = math.exp %41 : vector<16x16x16xf32>
    %cst_26 = arith.constant dense<0.000000e+00> : vector<16x16xf32>
    %43 = vector.multi_reduction <add>, %42, %cst_26 [2] : vector<16x16x16xf32> to vector<16x16xf32>
    %44 = vector.shape_cast %43 : vector<16x16xf32> to vector<16x16x1xf32>
    %45 = tpu.reciprocal %44 {approx = true} : vector<16x16x1xf32> -> vector<16x16x1xf32>
    %46 = vector.broadcast %45 : vector<16x16x1xf32> to vector<16x16x16xf32>
    %47 = arith.mulf %42, %46 : vector<16x16x16xf32>
    %48 = arith.truncf %47 : vector<16x16x16xf32> to vector<16x16x16xbf16>
    %49 = vector.extract_strided_slice %33 {offsets = [0, 0, 0], sizes = [16, 16, 32], strides = [1, 1, 1]} : vector<16x16x128xbf16> to vector<16x16x32xbf16>
    "tpu.trace_start"() <{level = 10 : i32, message = "bqk,bkd->bqd"}> : () -> ()
    %cst_27 = arith.constant dense<0.000000e+00> : vector<16x16x32xf32>
    %50 = tpu.matmul %48, %49, %cst_27 {dimension_numbers = #tpu.dot_dimension_numbers<[2], [1], [1], [2], [0, 0, 0, 1, 1, 2], [0], [0]>} : vector<16x16x16xbf16>, vector<16x16x32xbf16>, vector<16x16x32xf32> -> vector<16x16x32xf32>
    "tpu.trace_stop"() : () -> ()
    %51 = vector.shape_cast %50 : vector<16x16x32xf32> to vector<256x32xf32>
    %52 = arith.truncf %51 : vector<256x32xf32> to vector<256x32xbf16>
    %c0_28 = arith.constant 0 : index
    %c0_29 = arith.constant 0 : index
    %53 = vector.load %arg6[%c0_28, %c0_29] : memref<128x128xbf16, #tpu.memory_space<vmem>>, vector<32x128xbf16>
    %cst_30 = arith.constant dense<0.000000e+00> : vector<256x128xf32>
    %54 = tpu.matmul %52, %53, %cst_30 {dimension_numbers = #tpu.dot_dimension_numbers<[1], [0], [0], [1], [0, 0, 1, 1], [], []>} : vector<256x32xbf16>, vector<32x128xbf16>, vector<256x128xf32> -> vector<256x128xf32>
    %55 = arith.addf %34, %54 : vector<256x128xf32>
    %56 = vector.extract_strided_slice %29 {offsets = [0, 0, 32], sizes = [16, 16, 32], strides = [1, 1, 1]} : vector<16x16x128xbf16> to vector<16x16x32xbf16>
    %57 = vector.extract_strided_slice %31 {offsets = [0, 0, 32], sizes = [16, 16, 32], strides = [1, 1, 1]} : vector<16x16x128xbf16> to vector<16x16x32xbf16>
    "tpu.trace_start"() <{level = 10 : i32, message = "bqd,bkd->bqk"}> : () -> ()
    %cst_31 = arith.constant dense<0.000000e+00> : vector<16x16x16xf32>
    %58 = tpu.matmul %56, %57, %cst_31 {dimension_numbers = #tpu.dot_dimension_numbers<[2], [2], [1], [1], [0, 0, 0, 1, 1, 1], [0], [0]>} : vector<16x16x32xbf16>, vector<16x16x32xbf16>, vector<16x16x16xf32> -> vector<16x16x16xf32>
    "tpu.trace_stop"() : () -> ()
    %cst_32 = arith.constant dense<0xFF800000> : vector<16x16xf32>
    %59 = vector.multi_reduction <maximumf>, %58, %cst_32 [2] : vector<16x16x16xf32> to vector<16x16xf32>
    %60 = vector.shape_cast %59 : vector<16x16xf32> to vector<16x16x1xf32>
    %61 = vector.broadcast %60 : vector<16x16x1xf32> to vector<16x16x16xf32>
    %62 = arith.subf %58, %61 : vector<16x16x16xf32>
    %63 = math.exp %62 : vector<16x16x16xf32>
    %cst_33 = arith.constant dense<0.000000e+00> : vector<16x16xf32>
    %64 = vector.multi_reduction <add>, %63, %cst_33 [2] : vector<16x16x16xf32> to vector<16x16xf32>
    %65 = vector.shape_cast %64 : vector<16x16xf32> to vector<16x16x1xf32>
    %66 = tpu.reciprocal %65 {approx = true} : vector<16x16x1xf32> -> vector<16x16x1xf32>
    %67 = vector.broadcast %66 : vector<16x16x1xf32> to vector<16x16x16xf32>
    %68 = arith.mulf %63, %67 : vector<16x16x16xf32>
    %69 = arith.truncf %68 : vector<16x16x16xf32> to vector<16x16x16xbf16>
    %70 = vector.extract_strided_slice %33 {offsets = [0, 0, 32], sizes = [16, 16, 32], strides = [1, 1, 1]} : vector<16x16x128xbf16> to vector<16x16x32xbf16>
    "tpu.trace_start"() <{level = 10 : i32, message = "bqk,bkd->bqd"}> : () -> ()
    %cst_34 = arith.constant dense<0.000000e+00> : vector<16x16x32xf32>
    %71 = tpu.matmul %69, %70, %cst_34 {dimension_numbers = #tpu.dot_dimension_numbers<[2], [1], [1], [2], [0, 0, 0, 1, 1, 2], [0], [0]>} : vector<16x16x16xbf16>, vector<16x16x32xbf16>, vector<16x16x32xf32> -> vector<16x16x32xf32>
    "tpu.trace_stop"() : () -> ()
    %72 = vector.shape_cast %71 : vector<16x16x32xf32> to vector<256x32xf32>
    %73 = arith.truncf %72 : vector<256x32xf32> to vector<256x32xbf16>
    %c32 = arith.constant 32 : index
    %c0_35 = arith.constant 0 : index
    %74 = vector.load %arg6[%c32, %c0_35] : memref<128x128xbf16, #tpu.memory_space<vmem>>, vector<32x128xbf16>
    %cst_36 = arith.constant dense<0.000000e+00> : vector<256x128xf32>
    %75 = tpu.matmul %73, %74, %cst_36 {dimension_numbers = #tpu.dot_dimension_numbers<[1], [0], [0], [1], [0, 0, 1, 1], [], []>} : vector<256x32xbf16>, vector<32x128xbf16>, vector<256x128xf32> -> vector<256x128xf32>
    %76 = arith.addf %55, %75 : vector<256x128xf32>
    %77 = vector.extract_strided_slice %29 {offsets = [0, 0, 64], sizes = [16, 16, 32], strides = [1, 1, 1]} : vector<16x16x128xbf16> to vector<16x16x32xbf16>
    %78 = vector.extract_strided_slice %31 {offsets = [0, 0, 64], sizes = [16, 16, 32], strides = [1, 1, 1]} : vector<16x16x128xbf16> to vector<16x16x32xbf16>
    "tpu.trace_start"() <{level = 10 : i32, message = "bqd,bkd->bqk"}> : () -> ()
    %cst_37 = arith.constant dense<0.000000e+00> : vector<16x16x16xf32>
    %79 = tpu.matmul %77, %78, %cst_37 {dimension_numbers = #tpu.dot_dimension_numbers<[2], [2], [1], [1], [0, 0, 0, 1, 1, 1], [0], [0]>} : vector<16x16x32xbf16>, vector<16x16x32xbf16>, vector<16x16x16xf32> -> vector<16x16x16xf32>
    "tpu.trace_stop"() : () -> ()
    %cst_38 = arith.constant dense<0xFF800000> : vector<16x16xf32>
    %80 = vector.multi_reduction <maximumf>, %79, %cst_38 [2] : vector<16x16x16xf32> to vector<16x16xf32>
    %81 = vector.shape_cast %80 : vector<16x16xf32> to vector<16x16x1xf32>
    %82 = vector.broadcast %81 : vector<16x16x1xf32> to vector<16x16x16xf32>
    %83 = arith.subf %79, %82 : vector<16x16x16xf32>
    %84 = math.exp %83 : vector<16x16x16xf32>
    %cst_39 = arith.constant dense<0.000000e+00> : vector<16x16xf32>
    %85 = vector.multi_reduction <add>, %84, %cst_39 [2] : vector<16x16x16xf32> to vector<16x16xf32>
    %86 = vector.shape_cast %85 : vector<16x16xf32> to vector<16x16x1xf32>
    %87 = tpu.reciprocal %86 {approx = true} : vector<16x16x1xf32> -> vector<16x16x1xf32>
    %88 = vector.broadcast %87 : vector<16x16x1xf32> to vector<16x16x16xf32>
    %89 = arith.mulf %84, %88 : vector<16x16x16xf32>
    %90 = arith.truncf %89 : vector<16x16x16xf32> to vector<16x16x16xbf16>
    %91 = vector.extract_strided_slice %33 {offsets = [0, 0, 64], sizes = [16, 16, 32], strides = [1, 1, 1]} : vector<16x16x128xbf16> to vector<16x16x32xbf16>
    "tpu.trace_start"() <{level = 10 : i32, message = "bqk,bkd->bqd"}> : () -> ()
    %cst_40 = arith.constant dense<0.000000e+00> : vector<16x16x32xf32>
    %92 = tpu.matmul %90, %91, %cst_40 {dimension_numbers = #tpu.dot_dimension_numbers<[2], [1], [1], [2], [0, 0, 0, 1, 1, 2], [0], [0]>} : vector<16x16x16xbf16>, vector<16x16x32xbf16>, vector<16x16x32xf32> -> vector<16x16x32xf32>
    "tpu.trace_stop"() : () -> ()
    %93 = vector.shape_cast %92 : vector<16x16x32xf32> to vector<256x32xf32>
    %94 = arith.truncf %93 : vector<256x32xf32> to vector<256x32xbf16>
    %c64 = arith.constant 64 : index
    %c0_41 = arith.constant 0 : index
    %95 = vector.load %arg6[%c64, %c0_41] : memref<128x128xbf16, #tpu.memory_space<vmem>>, vector<32x128xbf16>
    %cst_42 = arith.constant dense<0.000000e+00> : vector<256x128xf32>
    %96 = tpu.matmul %94, %95, %cst_42 {dimension_numbers = #tpu.dot_dimension_numbers<[1], [0], [0], [1], [0, 0, 1, 1], [], []>} : vector<256x32xbf16>, vector<32x128xbf16>, vector<256x128xf32> -> vector<256x128xf32>
    %97 = arith.addf %76, %96 : vector<256x128xf32>
    %98 = vector.extract_strided_slice %29 {offsets = [0, 0, 96], sizes = [16, 16, 32], strides = [1, 1, 1]} : vector<16x16x128xbf16> to vector<16x16x32xbf16>
    %99 = vector.extract_strided_slice %31 {offsets = [0, 0, 96], sizes = [16, 16, 32], strides = [1, 1, 1]} : vector<16x16x128xbf16> to vector<16x16x32xbf16>
    "tpu.trace_start"() <{level = 10 : i32, message = "bqd,bkd->bqk"}> : () -> ()
    %cst_43 = arith.constant dense<0.000000e+00> : vector<16x16x16xf32>
    %100 = tpu.matmul %98, %99, %cst_43 {dimension_numbers = #tpu.dot_dimension_numbers<[2], [2], [1], [1], [0, 0, 0, 1, 1, 1], [0], [0]>} : vector<16x16x32xbf16>, vector<16x16x32xbf16>, vector<16x16x16xf32> -> vector<16x16x16xf32>
    "tpu.trace_stop"() : () -> ()
    %cst_44 = arith.constant dense<0xFF800000> : vector<16x16xf32>
    %101 = vector.multi_reduction <maximumf>, %100, %cst_44 [2] : vector<16x16x16xf32> to vector<16x16xf32>
    %102 = vector.shape_cast %101 : vector<16x16xf32> to vector<16x16x1xf32>
    %103 = vector.broadcast %102 : vector<16x16x1xf32> to vector<16x16x16xf32>
    %104 = arith.subf %100, %103 : vector<16x16x16xf32>
    %105 = math.exp %104 : vector<16x16x16xf32>
    %cst_45 = arith.constant dense<0.000000e+00> : vector<16x16xf32>
    %106 = vector.multi_reduction <add>, %105, %cst_45 [2] : vector<16x16x16xf32> to vector<16x16xf32>
    %107 = vector.shape_cast %106 : vector<16x16xf32> to vector<16x16x1xf32>
    %108 = tpu.reciprocal %107 {approx = true} : vector<16x16x1xf32> -> vector<16x16x1xf32>
    %109 = vector.broadcast %108 : vector<16x16x1xf32> to vector<16x16x16xf32>
    %110 = arith.mulf %105, %109 : vector<16x16x16xf32>
    %111 = arith.truncf %110 : vector<16x16x16xf32> to vector<16x16x16xbf16>
    %112 = vector.extract_strided_slice %33 {offsets = [0, 0, 96], sizes = [16, 16, 32], strides = [1, 1, 1]} : vector<16x16x128xbf16> to vector<16x16x32xbf16>
    "tpu.trace_start"() <{level = 10 : i32, message = "bqk,bkd->bqd"}> : () -> ()
    %cst_46 = arith.constant dense<0.000000e+00> : vector<16x16x32xf32>
    %113 = tpu.matmul %111, %112, %cst_46 {dimension_numbers = #tpu.dot_dimension_numbers<[2], [1], [1], [2], [0, 0, 0, 1, 1, 2], [0], [0]>} : vector<16x16x16xbf16>, vector<16x16x32xbf16>, vector<16x16x32xf32> -> vector<16x16x32xf32>
    "tpu.trace_stop"() : () -> ()
    %114 = vector.shape_cast %113 : vector<16x16x32xf32> to vector<256x32xf32>
    %115 = arith.truncf %114 : vector<256x32xf32> to vector<256x32xbf16>
    %c96 = arith.constant 96 : index
    %c0_47 = arith.constant 0 : index
    %116 = vector.load %arg6[%c96, %c0_47] : memref<128x128xbf16, #tpu.memory_space<vmem>>, vector<32x128xbf16>
    %cst_48 = arith.constant dense<0.000000e+00> : vector<256x128xf32>
    %117 = tpu.matmul %115, %116, %cst_48 {dimension_numbers = #tpu.dot_dimension_numbers<[1], [0], [0], [1], [0, 0, 1, 1], [], []>} : vector<256x32xbf16>, vector<32x128xbf16>, vector<256x128xf32> -> vector<256x128xf32>
    %118 = arith.addf %97, %117 : vector<256x128xf32>
    %119 = arith.addf %10, %118 : vector<256x128xf32>
    %120 = vector.broadcast %3 : vector<1x128xf32> to vector<256x128xf32>
    %121 = arith.addf %119, %120 : vector<256x128xf32>
    %cst_49 = arith.constant dense<0.000000e+00> : vector<256xf32>
    %122 = vector.multi_reduction <add>, %121, %cst_49 [1] : vector<256x128xf32> to vector<256xf32>
    %123 = vector.shape_cast %122 : vector<256xf32> to vector<256x1xf32>
    %cst_50 = arith.constant 1.280000e+02 : f32
    %124 = vector.broadcast %cst_50 : f32 to vector<256x1xf32>
    %125 = arith.divf %123, %124 : vector<256x1xf32>
    %126 = vector.broadcast %125 : vector<256x1xf32> to vector<256x128xf32>
    %127 = arith.subf %121, %126 : vector<256x128xf32>
    %128 = arith.mulf %127, %127 : vector<256x128xf32>
    %cst_51 = arith.constant dense<0.000000e+00> : vector<256xf32>
    %129 = vector.multi_reduction <add>, %128, %cst_51 [1] : vector<256x128xf32> to vector<256xf32>
    %130 = vector.shape_cast %129 : vector<256xf32> to vector<256x1xf32>
    %cst_52 = arith.constant 1.280000e+02 : f32
    %131 = vector.broadcast %cst_52 : f32 to vector<256x1xf32>
    %132 = arith.divf %130, %131 : vector<256x1xf32>
    %133 = vector.broadcast %125 : vector<256x1xf32> to vector<256x128xf32>
    %134 = arith.subf %121, %133 : vector<256x128xf32>
    %cst_53 = arith.constant 9.99999974E-6 : f32
    %135 = vector.broadcast %cst_53 : f32 to vector<256x1xf32>
    %136 = arith.addf %132, %135 : vector<256x1xf32>
    %137 = math.rsqrt %136 : vector<256x1xf32>
    %138 = vector.broadcast %137 : vector<256x1xf32> to vector<256x128xf32>
    %139 = arith.mulf %134, %138 : vector<256x128xf32>
    %140 = vector.broadcast %5 : vector<1x128xf32> to vector<256x128xf32>
    %141 = arith.mulf %139, %140 : vector<256x128xf32>
    %142 = vector.broadcast %6 : vector<1x128xf32> to vector<256x128xf32>
    %143 = arith.addf %141, %142 : vector<256x128xf32>
    %144 = arith.truncf %143 : vector<256x128xf32> to vector<256x128xbf16>
    %cst_54 = arith.constant 0.000000e+00 : f32
    %145 = vector.broadcast %cst_54 : f32 to vector<256x128xf32>
    %c0_55 = arith.constant 0 : index
    %c0_56 = arith.constant 0 : index
    %146 = vector.load %arg7[%c0_55, %c0_56] : memref<128x256xbf16, #tpu.memory_space<vmem>>, vector<128x256xbf16>
    %cst_57 = arith.constant dense<0.000000e+00> : vector<256x256xf32>
    %147 = tpu.matmul %144, %146, %cst_57 {dimension_numbers = #tpu.dot_dimension_numbers<[1], [0], [0], [1], [0, 0, 1, 1], [], []>} : vector<256x128xbf16>, vector<128x256xbf16>, vector<256x256xf32> -> vector<256x256xf32>
    %c0_58 = arith.constant 0 : index
    %c0_59 = arith.constant 0 : index
    %148 = vector.load %arg9[%c0_58, %c0_59] : memref<1x256xf32, #tpu.memory_space<vmem>>, vector<1x256xf32>
    %149 = vector.broadcast %148 : vector<1x256xf32> to vector<256x256xf32>
    %150 = arith.addf %147, %149 : vector<256x256xf32>
    %cst_60 = arith.constant 0.000000e+00 : f32
    %151 = vector.broadcast %cst_60 : f32 to vector<256x256xf32>
    %152 = arith.maximumf %150, %151 : vector<256x256xf32>
    %153 = arith.truncf %152 : vector<256x256xf32> to vector<256x256xbf16>
    %c0_61 = arith.constant 0 : index
    %c0_62 = arith.constant 0 : index
    %154 = vector.load %arg8[%c0_61, %c0_62] : memref<256x128xbf16, #tpu.memory_space<vmem>>, vector<256x128xbf16>
    %cst_63 = arith.constant dense<0.000000e+00> : vector<256x128xf32>
    %155 = tpu.matmul %153, %154, %cst_63 {dimension_numbers = #tpu.dot_dimension_numbers<[1], [0], [0], [1], [0, 0, 1, 1], [], []>} : vector<256x256xbf16>, vector<256x128xbf16>, vector<256x128xf32> -> vector<256x128xf32>
    %156 = arith.addf %145, %155 : vector<256x128xf32>
    %157 = arith.addf %143, %156 : vector<256x128xf32>
    %158 = vector.broadcast %4 : vector<1x128xf32> to vector<256x128xf32>
    %159 = arith.addf %157, %158 : vector<256x128xf32>
    %cst_64 = arith.constant dense<0.000000e+00> : vector<256xf32>
    %160 = vector.multi_reduction <add>, %159, %cst_64 [1] : vector<256x128xf32> to vector<256xf32>
    %161 = vector.shape_cast %160 : vector<256xf32> to vector<256x1xf32>
    %cst_65 = arith.constant 1.280000e+02 : f32
    %162 = vector.broadcast %cst_65 : f32 to vector<256x1xf32>
    %163 = arith.divf %161, %162 : vector<256x1xf32>
    %164 = vector.broadcast %163 : vector<256x1xf32> to vector<256x128xf32>
    %165 = arith.subf %159, %164 : vector<256x128xf32>
    %166 = arith.mulf %165, %165 : vector<256x128xf32>
    %cst_66 = arith.constant dense<0.000000e+00> : vector<256xf32>
    %167 = vector.multi_reduction <add>, %166, %cst_66 [1] : vector<256x128xf32> to vector<256xf32>
    %168 = vector.shape_cast %167 : vector<256xf32> to vector<256x1xf32>
    %cst_67 = arith.constant 1.280000e+02 : f32
    %169 = vector.broadcast %cst_67 : f32 to vector<256x1xf32>
    %170 = arith.divf %168, %169 : vector<256x1xf32>
    %171 = vector.broadcast %163 : vector<256x1xf32> to vector<256x128xf32>
    %172 = arith.subf %159, %171 : vector<256x128xf32>
    %cst_68 = arith.constant 9.99999974E-6 : f32
    %173 = vector.broadcast %cst_68 : f32 to vector<256x1xf32>
    %174 = arith.addf %170, %173 : vector<256x1xf32>
    %175 = math.rsqrt %174 : vector<256x1xf32>
    %176 = vector.broadcast %175 : vector<256x1xf32> to vector<256x128xf32>
    %177 = arith.mulf %172, %176 : vector<256x128xf32>
    %178 = vector.broadcast %7 : vector<1x128xf32> to vector<256x128xf32>
    %179 = arith.mulf %177, %178 : vector<256x128xf32>
    %180 = vector.broadcast %8 : vector<1x128xf32> to vector<256x128xf32>
    %181 = arith.addf %179, %180 : vector<256x128xf32>
    %182 = vector.shape_cast %181 : vector<256x128xf32> to vector<16x16x128xf32>
    %c0_69 = arith.constant 0 : index
    %c0_70 = arith.constant 0 : index
    %c0_71 = arith.constant 0 : index
    %183 = vector.load %arg11[%c0_69, %c0_70, %c0_71] : memref<16x16x128xf32, #tpu.memory_space<vmem>>, vector<16x16x128xf32>
    tpu.vector_store %arg11[%c0_69, %c0_70, %c0_71], %182 {strides = array<i32>} : memref<16x16x128xf32, #tpu.memory_space<vmem>>, vector<16x16x128xf32>,
    return
  }
  func.func @transform_0(%arg0: i32) -> (i32, i32, i32) {
    %c0_i32 = arith.constant 0 : i32
    %c0_i32_0 = arith.constant 0 : i32
    %c0_i32_1 = arith.constant 0 : i32
    return %arg0, %c0_i32, %c0_i32_0 : i32, i32, i32
  }
  func.func @transform_1(%arg0: i32) -> (i32, i32, i32) {
    %c0_i32 = arith.constant 0 : i32
    %c0_i32_0 = arith.constant 0 : i32
    %c0_i32_1 = arith.constant 0 : i32
    return %arg0, %c0_i32, %c0_i32_0 : i32, i32, i32
  }
  func.func @transform_2(%arg0: i32) -> (i32, i32) {
    %c0_i32 = arith.constant 0 : i32
    %c0_i32_0 = arith.constant 0 : i32
    %c0_i32_1 = arith.constant 0 : i32
    return %c0_i32, %c0_i32_0 : i32, i32
  }
  func.func @transform_3(%arg0: i32) -> (i32, i32) {
    %c0_i32 = arith.constant 0 : i32
    %c0_i32_0 = arith.constant 0 : i32
    %c0_i32_1 = arith.constant 0 : i32
    return %c0_i32, %c0_i32_0 : i32, i32
  }
  func.func @transform_4(%arg0: i32) -> (i32, i32) {
    %c0_i32 = arith.constant 0 : i32
    %c0_i32_0 = arith.constant 0 : i32
    %c0_i32_1 = arith.constant 0 : i32
    return %c0_i32, %c0_i32_0 : i32, i32
  }
  func.func @transform_5(%arg0: i32) -> (i32, i32) {
    %c0_i32 = arith.constant 0 : i32
    %c0_i32_0 = arith.constant 0 : i32
    %c0_i32_1 = arith.constant 0 : i32
    return %c0_i32, %c0_i32_0 : i32, i32
  }
  func.func @transform_6(%arg0: i32) -> (i32, i32) {
    %c0_i32 = arith.constant 0 : i32
    %c0_i32_0 = arith.constant 0 : i32
    %c0_i32_1 = arith.constant 0 : i32
    return %c0_i32, %c0_i32_0 : i32, i32
  }
  func.func @transform_7(%arg0: i32) -> (i32, i32) {
    %c0_i32 = arith.constant 0 : i32
    %c0_i32_0 = arith.constant 0 : i32
    %c0_i32_1 = arith.constant 0 : i32
    return %c0_i32, %c0_i32_0 : i32, i32
  }
  func.func @transform_8(%arg0: i32) -> (i32, i32) {
    %c0_i32 = arith.constant 0 : i32
    %c0_i32_0 = arith.constant 0 : i32
    %c0_i32_1 = arith.constant 0 : i32
    return %c0_i32, %c0_i32_0 : i32, i32
  }
  func.func @transform_9(%arg0: i32) -> (i32, i32) {
    %c0_i32 = arith.constant 0 : i32
    %c0_i32_0 = arith.constant 0 : i32
    %c0_i32_1 = arith.constant 0 : i32
    return %c0_i32, %c0_i32_0 : i32, i32
  }
  func.func @transform_10(%arg0: i32) -> (i32, i32, i32) {
    %c0_i32 = arith.constant 0 : i32
    %c0_i32_0 = arith.constant 0 : i32
    %c0_i32_1 = arith.constant 0 : i32
    return %arg0, %c0_i32, %c0_i32_0 : i32, i32, i32
  }
}

</mosaic_0001>

<llo_original>
// kernel: tpu_custom_call.1
$region0: #{tpu_custom_call.1}
  #allocation0 [shape = 'u32[]', space=smem, size = 0x4, offset = 0x4, fixed_abs, tag = 'smem constant byte address 0x4 - core index']
  #allocation1 [shape = 'u32[144,128]{1,0:T(1,128)}', space=vmem, size = 0x12000, scoped, tag = 'internal scratch']
  %s0 = inlined_call_operand.hbm [shape: f32[16,16,128], index: 0, kind: input, shape index: {}]
  %s1 = inlined_call_operand.hbm [shape: f32[16,16,128], index: 1, kind: input, shape index: {}]
  %s2 = inlined_call_operand.hbm [shape: bf16[128,128], index: 2, kind: input, shape index: {}]
  %s3 = inlined_call_operand.hbm [shape: bf16[128,128], index: 3, kind: input, shape index: {}]
  %s4 = inlined_call_operand.hbm [shape: bf16[128,128], index: 4, kind: input, shape index: {}]
  %s5 = inlined_call_operand.hbm [shape: bf16[128,128], index: 5, kind: input, shape index: {}]
  %s6 = inlined_call_operand.hbm [shape: bf16[128,256], index: 6, kind: input, shape index: {}]
  %s7 = inlined_call_operand.hbm [shape: bf16[256,128], index: 7, kind: input, shape index: {}]
  %s8 = inlined_call_operand.hbm [shape: f32[1,256], index: 8, kind: input, shape index: {}]
  %s9 = inlined_call_operand.vmem [shape: f32[9,128], index: 9, kind: input, shape index: {}]
  %s10 = inlined_call_operand.hbm [shape: f32[16,16,128], index: 10, kind: output, shape index: {}]
  %s11 = sld [smem:[#allocation0]]
  $region86: #{tpu_custom_call.1} parent=0
    _
  %s13 = ssub.s32 1, %s11
  %s14 = scalar_select 0, %s13, %s11
  $region1: #{tpu_custom_call.1} parent=0
    #allocation2 [shape = 'u8[131072]{0}', space=vmem, size = 0x20000, scoped, tag = 'input window, operand 0, single buffered']
    #allocation3 [shape = 's32[1]{0}', space=sflag, size = 0x4, scoped, tag = 'scoped memory for tpu_custom_call.1']
    #allocation4 [shape = 's32[1]{0}', space=sflag, size = 0x4, scoped, tag = 'scoped memory for tpu_custom_call.1']
    #allocation5 [shape = 'u8[131072]{0}', space=vmem, size = 0x20000, scoped, tag = 'input window, operand 1, single buffered']
    #allocation6 [shape = 's32[1]{0}', space=sflag, size = 0x4, scoped, tag = 'scoped memory for tpu_custom_call.1']
    #allocation7 [shape = 'u8[32768]{0}', space=vmem, size = 0x8000, scoped, tag = 'input window, operand 2, single buffered']
    #allocation8 [shape = 'u8[32768]{0}', space=vmem, size = 0x8000, scoped, tag = 'input window, operand 3, single buffered']
    #allocation9 [shape = 's32[1]{0}', space=sflag, size = 0x4, scoped, tag = 'scoped memory for tpu_custom_call.1']
    #allocation10 [shape = 'u8[32768]{0}', space=vmem, size = 0x8000, scoped, tag = 'input window, operand 4, single buffered']
    #allocation11 [shape = 'u8[32768]{0}', space=vmem, size = 0x8000, scoped, tag = 'input window, operand 5, single buffered']
    #allocation12 [shape = 's32[1]{0}', space=sflag, size = 0x4, scoped, tag = 'scoped memory for tpu_custom_call.1']
    #allocation13 [shape = 'u8[65536]{0}', space=vmem, size = 0x10000, scoped, tag = 'input window, operand 6, single buffered']
    #allocation14 [shape = 'u8[65536]{0}', space=vmem, size = 0x10000, scoped, tag = 'input window, operand 7, single buffered']
    #allocation15 [shape = 's32[1]{0}', space=sflag, size = 0x4, scoped, tag = 'scoped memory for tpu_custom_call.1']
    #allocation16 [shape = 'u8[1024]{0}', space=vmem, size = 0x400, scoped, tag = 'input window, operand 8, single buffered']
    #allocation17 [shape = 'u8[131072]{0}', space=vmem, size = 0x20000, scoped, tag = 'output window, operand 0, single buffered']
    %15 = vsyncpa [#allocation3], 0
    %16 = vsyncpa [#allocation6], 0
    %17 = vsyncpa [#allocation9], 0
    %18 = vsyncpa [#allocation12], 0
    %19 = vsyncpa [#allocation15], 0
    %20 = vsyncpa [#allocation4], 0
    // Predicated region
    $region2: #{tpu_custom_call.1} parent=1 // pred_check
      _
    $region3: #{tpu_custom_call.1} parent=1 // pred_check_branch
      %22 = sbr.rel (0) target = $region5
    $region4: #{tpu_custom_call.1} parent=1 // pred_region
      %s24 = ssub.s32 4096, 4096
      %25 = vsyncadd [#allocation3], %s24
      %s26 = sshll.u32 [#allocation2], 4
      %s27 = int_to_ptr.vmem [resolvable:$true] %s26
      %32 = dma.hbm_to_vmem [thread:$0]  %s0, 4096, %s27, [#allocation3], 128, 128, 8
    $region5: #{tpu_custom_call.1} parent=1 // pred_fallthru
      _
    // Predicated region
    $region6: #{tpu_custom_call.1} parent=1 // pred_check
      _
    $region7: #{tpu_custom_call.1} parent=1 // pred_check_branch
      %34 = sbr.rel (0) target = $region9
    $region8: #{tpu_custom_call.1} parent=1 // pred_region
      %s36 = ssub.s32 4096, 4096
      %37 = vsyncadd [#allocation6], %s36
      %s38 = sshll.u32 [#allocation5], 4
      %s39 = int_to_ptr.vmem [resolvable:$true] %s38
      %44 = dma.hbm_to_vmem [thread:$0]  %s1, 4096, %s39, [#allocation6], 128, 128, 8
    $region9: #{tpu_custom_call.1} parent=1 // pred_fallthru
      _
    // Predicated region
    $region10: #{tpu_custom_call.1} parent=1 // pred_check
      _
    $region11: #{tpu_custom_call.1} parent=1 // pred_check_branch
      %46 = sbr.rel (0) target = $region13
    $region12: #{tpu_custom_call.1} parent=1 // pred_region
      %s48 = ssub.s32 1024, 1024
      %49 = vsyncadd [#allocation6], %s48
      %s50 = sshll.u32 [#allocation7], 4
      %s51 = int_to_ptr.vmem [resolvable:$true] %s50
      %56 = dma.hbm_to_vmem [thread:$0]  %s2, 1024, %s51, [#allocation6], 64, 64, 4
    $region13: #{tpu_custom_call.1} parent=1 // pred_fallthru
      _
    // Predicated region
    $region14: #{tpu_custom_call.1} parent=1 // pred_check
      _
    $region15: #{tpu_custom_call.1} parent=1 // pred_check_branch
      %58 = sbr.rel (0) target = $region17
    $region16: #{tpu_custom_call.1} parent=1 // pred_region
      %s60 = ssub.s32 1024, 1024
      %61 = vsyncadd [#allocation9], %s60
      %s62 = sshll.u32 [#allocation8], 4
      %s63 = int_to_ptr.vmem [resolvable:$true] %s62
      %68 = dma.hbm_to_vmem [thread:$0]  %s3, 1024, %s63, [#allocation9], 64, 64, 4
    $region17: #{tpu_custom_call.1} parent=1 // pred_fallthru
      _
    // Predicated region
    $region18: #{tpu_custom_call.1} parent=1 // pred_check
      _
    $region19: #{tpu_custom_call.1} parent=1 // pred_check_branch
      %70 = sbr.rel (0) target = $region21
    $region20: #{tpu_custom_call.1} parent=1 // pred_region
      %s72 = ssub.s32 1024, 1024
      %73 = vsyncadd [#allocation9], %s72
      %s74 = sshll.u32 [#allocation10], 4
      %s75 = int_to_ptr.vmem [resolvable:$true] %s74
      %80 = dma.hbm_to_vmem [thread:$0]  %s4, 1024, %s75, [#allocation9], 64, 64, 4
    $region21: #{tpu_custom_call.1} parent=1 // pred_fallthru
      _
    // Predicated region
    $region22: #{tpu_custom_call.1} parent=1 // pred_check
      _
    $region23: #{tpu_custom_call.1} parent=1 // pred_check_branch
      %82 = sbr.rel (0) target = $region25
    $region24: #{tpu_custom_call.1} parent=1 // pred_region
      %s84 = ssub.s32 1024, 1024
      %85 = vsyncadd [#allocation12], %s84
      %s86 = sshll.u32 [#allocation11], 4
      %s87 = int_to_ptr.vmem [resolvable:$true] %s86
      %92 = dma.hbm_to_vmem [thread:$0]  %s5, 1024, %s87, [#allocation12], 64, 64, 4
    $region25: #{tpu_custom_call.1} parent=1 // pred_fallthru
      _
    // Predicated region
    $region26: #{tpu_custom_call.1} parent=1 // pred_check
      _
    $region27: #{tpu_custom_call.1} parent=1 // pred_check_branch
      %94 = sbr.rel (0) target = $region29
    $region28: #{tpu_custom_call.1} parent=1 // pred_region
      %s96 = ssub.s32 2048, 2048
      %97 = vsyncadd [#allocation12], %s96
      %s98 = sshll.u32 [#allocation13], 4
      %s99 = int_to_ptr.vmem [resolvable:$true] %s98
      %104 = dma.hbm_to_vmem [thread:$0]  %s6, 2048, %s99, [#allocation12], 128, 128, 8
    $region29: #{tpu_custom_call.1} parent=1 // pred_fallthru
      _
    // Predicated region
    $region30: #{tpu_custom_call.1} parent=1 // pred_check
      _
    $region31: #{tpu_custom_call.1} parent=1 // pred_check_branch
      %106 = sbr.rel (0) target = $region33
    $region32: #{tpu_custom_call.1} parent=1 // pred_region
      %s108 = ssub.s32 2048, 2048
      %109 = vsyncadd [#allocation15], %s108
      %s110 = sshll.u32 [#allocation14], 4
      %s111 = int_to_ptr.vmem [resolvable:$true] %s110
      %116 = dma.hbm_to_vmem [thread:$0]  %s7, 2048, %s111, [#allocation15], 64, 64, 4
    $region33: #{tpu_custom_call.1} parent=1 // pred_fallthru
      _
    // Predicated region
    $region34: #{tpu_custom_call.1} parent=1 // pred_check
      _
    $region35: #{tpu_custom_call.1} parent=1 // pred_check_branch
      %118 = sbr.rel (0) target = $region37
    $region36: #{tpu_custom_call.1} parent=1 // pred_region
      %s120 = ssub.s32 32, 32
      %121 = vsyncadd [#allocation15], %s120
      %s123 = sshll.u32 [#allocation16], 4
      %s124 = int_to_ptr.vmem [resolvable:$true] %s123
      %126 = dma.hbm_to_vmem [thread:$0]  %s8, 32, %s124, [#allocation15]
    $region37: #{tpu_custom_call.1} parent=1 // pred_fallthru
      _
    // Predicated region
    $region38: #{tpu_custom_call.1} parent=1 // pred_check
      _
    $region39: #{tpu_custom_call.1} parent=1 // pred_check_branch
      %128 = sbr.rel (0) target = $region41
    $region40: #{tpu_custom_call.1} parent=1 // pred_region
      _
    $region41: #{tpu_custom_call.1} parent=1 // pred_fallthru
      _
    // Predicated region
    $region42: #{tpu_custom_call.1} parent=1 // pred_check
      _
    $region43: #{tpu_custom_call.1} parent=1 // pred_check_branch
      %130 = sbr.rel (0) target = $region45
    $region44: #{tpu_custom_call.1} parent=1 // pred_region
      %131 = dma.done [#allocation3], 4096
    $region45: #{tpu_custom_call.1} parent=1 // pred_fallthru
      _
    // Predicated region
    $region46: #{tpu_custom_call.1} parent=1 // pred_check
      _
    $region47: #{tpu_custom_call.1} parent=1 // pred_check_branch
      %133 = sbr.rel (0) target = $region49
    $region48: #{tpu_custom_call.1} parent=1 // pred_region
      %134 = dma.done [#allocation6], 4096
    $region49: #{tpu_custom_call.1} parent=1 // pred_fallthru
      _
    // Predicated region
    $region50: #{tpu_custom_call.1} parent=1 // pred_check
      _
    $region51: #{tpu_custom_call.1} parent=1 // pred_check_branch
      %136 = sbr.rel (0) target = $region53
    $region52: #{tpu_custom_call.1} parent=1 // pred_region
      %137 = dma.done [#allocation6], 1024
    $region53: #{tpu_custom_call.1} parent=1 // pred_fallthru
      _
    // Predicated region
    $region54: #{tpu_custom_call.1} parent=1 // pred_check
      _
    $region55: #{tpu_custom_call.1} parent=1 // pred_check_branch
      %139 = sbr.rel (0) target = $region57
    $region56: #{tpu_custom_call.1} parent=1 // pred_region
      %140 = dma.done [#allocation9], 1024
    $region57: #{tpu_custom_call.1} parent=1 // pred_fallthru
      _
    // Predicated region
    $region58: #{tpu_custom_call.1} parent=1 // pred_check
      _
    $region59: #{tpu_custom_call.1} parent=1 // pred_check_branch
      %142 = sbr.rel (0) target = $region61
    $region60: #{tpu_custom_call.1} parent=1 // pred_region
      %143 = dma.done [#allocation9], 1024
    $region61: #{tpu_custom_call.1} parent=1 // pred_fallthru
      _
    // Predicated region
    $region62: #{tpu_custom_call.1} parent=1 // pred_check
      _
    $region63: #{tpu_custom_call.1} parent=1 // pred_check_branch
      %145 = sbr.rel (0) target = $region65
    $region64: #{tpu_custom_call.1} parent=1 // pred_region
      %146 = dma.done [#allocation12], 1024
    $region65: #{tpu_custom_call.1} parent=1 // pred_fallthru
      _
    // Predicated region
    $region66: #{tpu_custom_call.1} parent=1 // pred_check
      _
    $region67: #{tpu_custom_call.1} parent=1 // pred_check_branch
      %148 = sbr.rel (0) target = $region69
    $region68: #{tpu_custom_call.1} parent=1 // pred_region
      %149 = dma.done [#allocation12], 2048
    $region69: #{tpu_custom_call.1} parent=1 // pred_fallthru
      _
    // Predicated region
    $region70: #{tpu_custom_call.1} parent=1 // pred_check
      _
    $region71: #{tpu_custom_call.1} parent=1 // pred_check_branch
      %151 = sbr.rel (0) target = $region73
    $region72: #{tpu_custom_call.1} parent=1 // pred_region
      %152 = dma.done [#allocation15], 2048
    $region73: #{tpu_custom_call.1} parent=1 // pred_fallthru
      _
    // Predicated region
    $region74: #{tpu_custom_call.1} parent=1 // pred_check
      _
    $region75: #{tpu_custom_call.1} parent=1 // pred_check_branch
      %154 = sbr.rel (0) target = $region77
    $region76: #{tpu_custom_call.1} parent=1 // pred_region
      %155 = dma.done [#allocation15], 32
    $region77: #{tpu_custom_call.1} parent=1 // pred_fallthru
      _
    %v157 = vld [vmem:[%s9] sm:$0x1]
    %v158 = vld [vmem:[%s9 + $0x1] sm:$0x1]
    %v159 = vld [vmem:[%s9 + $0x2] sm:$0x1]
    %v160 = vld [vmem:[%s9 + $0x3] sm:$0x1]
    %v161 = vld [vmem:[%s9 + $0x4] sm:$0x1]
    %v162 = vld [vmem:[%s9 + $0x5] sm:$0x1]
    %v163 = vld [vmem:[%s9 + $0x6] sm:$0x1]
    %v164 = vld [vmem:[%s9 + $0x7] sm:$0x1]
    %v165 = vld [vmem:[%s9 + $0x8] sm:$0x1]
    %v166 = vld [vmem:[#allocation2] sm:$0xff]
    %v167 = vld [vmem:[#allocation2 + $0x8] sm:$0xff]
    %v168 = vld [vmem:[#allocation2 + $0x10] sm:$0xff]
    %v169 = vld [vmem:[#allocation2 + $0x18] sm:$0xff]
    %v170 = vld [vmem:[#allocation2 + $0x20] sm:$0xff]
    %v171 = vld [vmem:[#allocation2 + $0x28] sm:$0xff]
    %v172 = vld [vmem:[#allocation2 + $0x30] sm:$0xff]
    %v173 = vld [vmem:[#allocation2 + $0x38] sm:$0xff]
    %v174 = vld [vmem:[#allocation2 + $0x40] sm:$0xff]
    %v175 = vld [vmem:[#allocation2 + $0x48] sm:$0xff]
    %v176 = vld [vmem:[#allocation2 + $0x50] sm:$0xff]
    %v177 = vld [vmem:[#allocation2 + $0x58] sm:$0xff]
    %v178 = vld [vmem:[#allocation2 + $0x60] sm:$0xff]
    %v179 = vld [vmem:[#allocation2 + $0x68] sm:$0xff]
    %v180 = vld [vmem:[#allocation2 + $0x70] sm:$0xff]
    %v181 = vld [vmem:[#allocation2 + $0x78] sm:$0xff]
    %v182 = vld [vmem:[#allocation2 + $0x80] sm:$0xff]
    %v183 = vld [vmem:[#allocation2 + $0x88] sm:$0xff]
    %v184 = vld [vmem:[#allocation2 + $0x90] sm:$0xff]
    %v185 = vld [vmem:[#allocation2 + $0x98] sm:$0xff]
    %v186 = vld [vmem:[#allocation2 + $0xa0] sm:$0xff]
    %v187 = vld [vmem:[#allocation2 + $0xa8] sm:$0xff]
    %v188 = vld [vmem:[#allocation2 + $0xb0] sm:$0xff]
    %v189 = vld [vmem:[#allocation2 + $0xb8] sm:$0xff]
    %v190 = vld [vmem:[#allocation2 + $0xc0] sm:$0xff]
    %v191 = vld [vmem:[#allocation2 + $0xc8] sm:$0xff]
    %v192 = vld [vmem:[#allocation2 + $0xd0] sm:$0xff]
    %v193 = vld [vmem:[#allocation2 + $0xd8] sm:$0xff]
    %v194 = vld [vmem:[#allocation2 + $0xe0] sm:$0xff]
    %v195 = vld [vmem:[#allocation2 + $0xe8] sm:$0xff]
    %v196 = vld [vmem:[#allocation2 + $0xf0] sm:$0xff]
    %v197 = vld [vmem:[#allocation2 + $0xf8] sm:$0xff]
    %v198 = vld [vmem:[#allocation5] sm:$0xff]
    %v199 = vld [vmem:[#allocation5 + $0x8] sm:$0xff]
    %v200 = vld [vmem:[#allocation5 + $0x10] sm:$0xff]
    %v201 = vld [vmem:[#allocation5 + $0x18] sm:$0xff]
    %v202 = vld [vmem:[#allocation5 + $0x20] sm:$0xff]
    %v203 = vld [vmem:[#allocation5 + $0x28] sm:$0xff]
    %v204 = vld [vmem:[#allocation5 + $0x30] sm:$0xff]
    %v205 = vld [vmem:[#allocation5 + $0x38] sm:$0xff]
    %v206 = vld [vmem:[#allocation5 + $0x40] sm:$0xff]
    %v207 = vld [vmem:[#allocation5 + $0x48] sm:$0xff]
    %v208 = vld [vmem:[#allocation5 + $0x50] sm:$0xff]
    %v209 = vld [vmem:[#allocation5 + $0x58] sm:$0xff]
    %v210 = vld [vmem:[#allocation5 + $0x60] sm:$0xff]
    %v211 = vld [vmem:[#allocation5 + $0x68] sm:$0xff]
    %v212 = vld [vmem:[#allocation5 + $0x70] sm:$0xff]
    %v213 = vld [vmem:[#allocation5 + $0x78] sm:$0xff]
    %v214 = vld [vmem:[#allocation5 + $0x80] sm:$0xff]
    %v215 = vld [vmem:[#allocation5 + $0x88] sm:$0xff]
    %v216 = vld [vmem:[#allocation5 + $0x90] sm:$0xff]
    %v217 = vld [vmem:[#allocation5 + $0x98] sm:$0xff]
    %v218 = vld [vmem:[#allocation5 + $0xa0] sm:$0xff]
    %v219 = vld [vmem:[#allocation5 + $0xa8] sm:$0xff]
    %v220 = vld [vmem:[#allocation5 + $0xb0] sm:$0xff]
    %v221 = vld [vmem:[#allocation5 + $0xb8] sm:$0xff]
    %v222 = vld [vmem:[#allocation5 + $0xc0] sm:$0xff]
    %v223 = vld [vmem:[#allocation5 + $0xc8] sm:$0xff]
    %v224 = vld [vmem:[#allocation5 + $0xd0] sm:$0xff]
    %v225 = vld [vmem:[#allocation5 + $0xd8] sm:$0xff]
    %v226 = vld [vmem:[#allocation5 + $0xe0] sm:$0xff]
    %v227 = vld [vmem:[#allocation5 + $0xe8] sm:$0xff]
    %v228 = vld [vmem:[#allocation5 + $0xf0] sm:$0xff]
    %v229 = vld [vmem:[#allocation5 + $0xf8] sm:$0xff]
    %v230 = vadd.f32 %v166, %v198
    %v231 = vadd.f32 %v167, %v199
    %v232 = vadd.f32 %v168, %v200
    %v233 = vadd.f32 %v169, %v201
    %v234 = vadd.f32 %v170, %v202
    %v235 = vadd.f32 %v171, %v203
    %v236 = vadd.f32 %v172, %v204
    %v237 = vadd.f32 %v173, %v205
    %v238 = vadd.f32 %v174, %v206
    %v239 = vadd.f32 %v175, %v207
    %v240 = vadd.f32 %v176, %v208
    %v241 = vadd.f32 %v177, %v209
    %v242 = vadd.f32 %v178, %v210
    %v243 = vadd.f32 %v179, %v211
    %v244 = vadd.f32 %v180, %v212
    %v245 = vadd.f32 %v181, %v213
    %v246 = vadd.f32 %v182, %v214
    %v247 = vadd.f32 %v183, %v215
    %v248 = vadd.f32 %v184, %v216
    %v249 = vadd.f32 %v185, %v217
    %v250 = vadd.f32 %v186, %v218
    %v251 = vadd.f32 %v187, %v219
    %v252 = vadd.f32 %v188, %v220
    %v253 = vadd.f32 %v189, %v221
    %v254 = vadd.f32 %v190, %v222
    %v255 = vadd.f32 %v191, %v223
    %v256 = vadd.f32 %v192, %v224
    %v257 = vadd.f32 %v193, %v225
    %v258 = vadd.f32 %v194, %v226
    %v259 = vadd.f32 %v195, %v227
    %v260 = vadd.f32 %v196, %v228
    %v261 = vadd.f32 %v197, %v229
    %v262 = vpack.c.bf16 %v231, %v230
    %v263 = vpack.c.bf16 %v233, %v232
    %v264 = vpack.c.bf16 %v235, %v234
    %v265 = vpack.c.bf16 %v237, %v236
    %v266 = vpack.c.bf16 %v239, %v238
    %v267 = vpack.c.bf16 %v241, %v240
    %v268 = vpack.c.bf16 %v243, %v242
    %v269 = vpack.c.bf16 %v245, %v244
    %v270 = vpack.c.bf16 %v247, %v246
    %v271 = vpack.c.bf16 %v249, %v248
    %v272 = vpack.c.bf16 %v251, %v250
    %v273 = vpack.c.bf16 %v253, %v252
    %v274 = vpack.c.bf16 %v255, %v254
    %v275 = vpack.c.bf16 %v257, %v256
    %v276 = vpack.c.bf16 %v259, %v258
    %v277 = vpack.c.bf16 %v261, %v260
    %v278 = vpack.c.bf16 %v167, %v166
    %v279 = vpack.c.bf16 %v169, %v168
    %v280 = vpack.c.bf16 %v171, %v170
    %v281 = vpack.c.bf16 %v173, %v172
    %v282 = vpack.c.bf16 %v175, %v174
    %v283 = vpack.c.bf16 %v177, %v176
    %v284 = vpack.c.bf16 %v179, %v178
    %v285 = vpack.c.bf16 %v181, %v180
    %v286 = vpack.c.bf16 %v183, %v182
    %v287 = vpack.c.bf16 %v185, %v184
    %v288 = vpack.c.bf16 %v187, %v186
    %v289 = vpack.c.bf16 %v189, %v188
    %v290 = vpack.c.bf16 %v191, %v190
    %v291 = vpack.c.bf16 %v193, %v192
    %v292 = vpack.c.bf16 %v195, %v194
    %v293 = vpack.c.bf16 %v197, %v196
    %v294 = vld [vmem:[#allocation7] sm:$0xf]
    %v295 = vld [vmem:[#allocation7 + $0x4] sm:$0xf]
    %v296 = vld [vmem:[#allocation7 + $0x8] sm:$0xf]
    %v297 = vld [vmem:[#allocation7 + $0xc] sm:$0xf]
    %v298 = vld [vmem:[#allocation7 + $0x10] sm:$0xf]
    %v299 = vld [vmem:[#allocation7 + $0x14] sm:$0xf]
    %v300 = vld [vmem:[#allocation7 + $0x18] sm:$0xf]
    %v301 = vld [vmem:[#allocation7 + $0x1c] sm:$0xf]
    %v302 = vld [vmem:[#allocation7 + $0x20] sm:$0xf]
    %v303 = vld [vmem:[#allocation7 + $0x24] sm:$0xf]
    %v304 = vld [vmem:[#allocation7 + $0x28] sm:$0xf]
    %v305 = vld [vmem:[#allocation7 + $0x2c] sm:$0xf]
    %v306 = vld [vmem:[#allocation7 + $0x30] sm:$0xf]
    %v307 = vld [vmem:[#allocation7 + $0x34] sm:$0xf]
    %v308 = vld [vmem:[#allocation7 + $0x38] sm:$0xf]
    %v309 = vld [vmem:[#allocation7 + $0x3c] sm:$0xf]
    %v310 = vlaneseq
    %v311 = vshrl.u32 %v310, 7
    %v312 = vsub.s32 0, %v311
    %v313 = vrot.slane %v157, %v312
    %v330 = vunpack.c.l.b16 %v294
    %v331 = vunpack.c.l.b16 %v295
    %v332 = vunpack.c.l.b16 %v296
    %v333 = vunpack.c.l.b16 %v297
    %v334 = vunpack.c.l.b16 %v298
    %v335 = vunpack.c.l.b16 %v299
    %v336 = vunpack.c.l.b16 %v300
    %v337 = vunpack.c.l.b16 %v301
    %v338 = vunpack.c.l.b16 %v302
    %v339 = vunpack.c.l.b16 %v303
    %v340 = vunpack.c.l.b16 %v304
    %v341 = vunpack.c.l.b16 %v305
    %v342 = vunpack.c.l.b16 %v306
    %v343 = vunpack.c.l.b16 %v307
    %v344 = vunpack.c.l.b16 %v308
    %v345 = vunpack.c.l.b16 %v309
    %v346 = vpack.c.b16 %v331, %v330
    %v347 = vpack.c.b16 %v333, %v332
    %v348 = vpack.c.b16 %v335, %v334
    %v349 = vpack.c.b16 %v337, %v336
    %v350 = vpack.c.b16 %v339, %v338
    %v351 = vpack.c.b16 %v341, %v340
    %v352 = vpack.c.b16 %v343, %v342
    %v353 = vpack.c.b16 %v345, %v344
    %362 = vmatprep.subr.bf16.mxu0 0
    %363 = vmatpush1.bf16.msra.mxu0 %v353
    %364 = vmatprep.subr.bf16.mxu0 0
    %365 = vmatpush1.bf16.msra.mxu0 %v352
    %366 = vmatprep.subr.bf16.mxu0 0
    %367 = vmatpush1.bf16.msra.mxu0 %v351
    %368 = vmatprep.subr.bf16.mxu0 0
    %369 = vmatpush1.bf16.msra.mxu0 %v350
    %370 = vmatprep.subr.bf16.mxu0 0
    %371 = vmatpush1.bf16.msra.mxu0 %v349
    %372 = vmatprep.subr.bf16.mxu0 0
    %373 = vmatpush1.bf16.msra.mxu0 %v348
    %374 = vmatprep.subr.bf16.mxu0 0
    %375 = vmatpush1.bf16.msra.mxu0 %v347
    %376 = vmatprep.subr.bf16.mxu0 0
    %377 = vmatpush1.bf16.msra.mxu0 %v346
    %378 = vmatprep.subr.bf16.mxu0 0
    %379 = vmatpush2.bf16.msra.mxu0 0
    %380 = vmatprep.subr.bf16.mxu0 0
    %381 = vmatpush2.bf16.msra.mxu0 0
    %382 = vmatprep.subr.bf16.mxu0 0
    %383 = vmatpush2.bf16.msra.mxu0 0
    %384 = vmatprep.subr.bf16.mxu0 0
    %385 = vmatpush2.bf16.msra.mxu0 0
    %386 = vmatprep.subr.bf16.mxu0 0
    %387 = vmatpush2.bf16.msra.mxu0 0
    %388 = vmatprep.subr.bf16.mxu0 0
    %389 = vmatpush2.bf16.msra.mxu0 0
    %390 = vmatprep.subr.bf16.mxu0 0
    %391 = vmatpush2.bf16.msra.mxu0 0
    %392 = vmatprep.subr.bf16.mxu0 0
    %393 = vmatpush2.bf16.msra.mxu0 0
    %394 = vmatprep.mubr.bf16.mxu0 0
    %395 = vmatmul.mubr.bf16.gmra.mxu0 %v262
    %v396 = vpop.f32.mrf.mxu0
    %v397 = vadd.f32 %v313, %v396
    %v398 = vpop.f32.mrf.mxu0
    %v399 = vpop.f32.mrf.mxu0
    %v400 = vadd.f32 %v313, %v399
    %v401 = vpop.f32.mrf.mxu0
    %402 = vmatprep.mubr.bf16.mxu0 0
    %403 = vmatmul.mubr.bf16.gmra.mxu0 %v263
    %v404 = vpop.f32.mrf.mxu0
    %v405 = vadd.f32 %v313, %v404
    %v406 = vpop.f32.mrf.mxu0
    %v407 = vpop.f32.mrf.mxu0
    %v408 = vadd.f32 %v313, %v407
    %v409 = vpop.f32.mrf.mxu0
    %410 = vmatprep.mubr.bf16.mxu0 0
    %411 = vmatmul.mubr.bf16.gmra.mxu0 %v264
    %v412 = vpop.f32.mrf.mxu0
    %v413 = vadd.f32 %v313, %v412
    %v414 = vpop.f32.mrf.mxu0
    %v415 = vpop.f32.mrf.mxu0
    %v416 = vadd.f32 %v313, %v415
    %v417 = vpop.f32.mrf.mxu0
    %418 = vmatprep.mubr.bf16.mxu0 0
    %419 = vmatmul.mubr.bf16.gmra.mxu0 %v265
    %v420 = vpop.f32.mrf.mxu0
    %v421 = vadd.f32 %v313, %v420
    %v422 = vpop.f32.mrf.mxu0
    %v423 = vpop.f32.mrf.mxu0
    %v424 = vadd.f32 %v313, %v423
    %v425 = vpop.f32.mrf.mxu0
    %426 = vmatprep.mubr.bf16.mxu0 0
    %427 = vmatmul.mubr.bf16.gmra.mxu0 %v266
    %v428 = vpop.f32.mrf.mxu0
    %v429 = vadd.f32 %v313, %v428
    %v430 = vpop.f32.mrf.mxu0
    %v431 = vpop.f32.mrf.mxu0
    %v432 = vadd.f32 %v313, %v431
    %v433 = vpop.f32.mrf.mxu0
    %434 = vmatprep.mubr.bf16.mxu0 0
    %435 = vmatmul.mubr.bf16.gmra.mxu0 %v267
    %v436 = vpop.f32.mrf.mxu0
    %v437 = vadd.f32 %v313, %v436
    %v438 = vpop.f32.mrf.mxu0
    %v439 = vpop.f32.mrf.mxu0
    %v440 = vadd.f32 %v313, %v439
    %v441 = vpop.f32.mrf.mxu0
    %442 = vmatprep.mubr.bf16.mxu0 0
    %443 = vmatmul.mubr.bf16.gmra.mxu0 %v268
    %v444 = vpop.f32.mrf.mxu0
    %v445 = vadd.f32 %v313, %v444
    %v446 = vpop.f32.mrf.mxu0
    %v447 = vpop.f32.mrf.mxu0
    %v448 = vadd.f32 %v313, %v447
    %v449 = vpop.f32.mrf.mxu0
    %450 = vmatprep.mubr.bf16.mxu0 0
    %451 = vmatmul.mubr.bf16.gmra.mxu0 %v269
    %v452 = vpop.f32.mrf.mxu0
    %v453 = vadd.f32 %v313, %v452
    %v454 = vpop.f32.mrf.mxu0
    %v455 = vpop.f32.mrf.mxu0
    %v456 = vadd.f32 %v313, %v455
    %v457 = vpop.f32.mrf.mxu0
    %458 = vmatprep.mubr.bf16.mxu0 0
    %459 = vmatmul.mubr.bf16.gmra.mxu0 %v270
    %v460 = vpop.f32.mrf.mxu0
    %v461 = vadd.f32 %v313, %v460
    %v462 = vpop.f32.mrf.mxu0
    %v463 = vpop.f32.mrf.mxu0
    %v464 = vadd.f32 %v313, %v463
    %v465 = vpop.f32.mrf.mxu0
    %466 = vmatprep.mubr.bf16.mxu0 0
    %467 = vmatmul.mubr.bf16.gmra.mxu0 %v271
    %v468 = vpop.f32.mrf.mxu0
    %v469 = vadd.f32 %v313, %v468
    %v470 = vpop.f32.mrf.mxu0
    %v471 = vpop.f32.mrf.mxu0
    %v472 = vadd.f32 %v313, %v471
    %v473 = vpop.f32.mrf.mxu0
    %474 = vmatprep.mubr.bf16.mxu0 0
    %475 = vmatmul.mubr.bf16.gmra.mxu0 %v272
    %v476 = vpop.f32.mrf.mxu0
    %v477 = vadd.f32 %v313, %v476
    %v478 = vpop.f32.mrf.mxu0
    %v479 = vpop.f32.mrf.mxu0
    %v480 = vadd.f32 %v313, %v479
    %v481 = vpop.f32.mrf.mxu0
    %482 = vmatprep.mubr.bf16.mxu0 0
    %483 = vmatmul.mubr.bf16.gmra.mxu0 %v273
    %v484 = vpop.f32.mrf.mxu0
    %v485 = vadd.f32 %v313, %v484
    %v486 = vpop.f32.mrf.mxu0
    %v487 = vpop.f32.mrf.mxu0
    %v488 = vadd.f32 %v313, %v487
    %v489 = vpop.f32.mrf.mxu0
    %490 = vmatprep.mubr.bf16.mxu0 0
    %491 = vmatmul.mubr.bf16.gmra.mxu0 %v274
    %v492 = vpop.f32.mrf.mxu0
    %v493 = vadd.f32 %v313, %v492
    %v494 = vpop.f32.mrf.mxu0
    %v495 = vpop.f32.mrf.mxu0
    %v496 = vadd.f32 %v313, %v495
    %v497 = vpop.f32.mrf.mxu0
    %498 = vmatprep.mubr.bf16.mxu0 0
    %499 = vmatmul.mubr.bf16.gmra.mxu0 %v275
    %v500 = vpop.f32.mrf.mxu0
    %v501 = vadd.f32 %v313, %v500
    %v502 = vpop.f32.mrf.mxu0
    %v503 = vpop.f32.mrf.mxu0
    %v504 = vadd.f32 %v313, %v503
    %v505 = vpop.f32.mrf.mxu0
    %506 = vmatprep.mubr.bf16.mxu0 0
    %507 = vmatmul.mubr.bf16.gmra.mxu0 %v276
    %v508 = vpop.f32.mrf.mxu0
    %v509 = vadd.f32 %v313, %v508
    %v510 = vpop.f32.mrf.mxu0
    %v511 = vpop.f32.mrf.mxu0
    %v512 = vadd.f32 %v313, %v511
    %v513 = vpop.f32.mrf.mxu0
    %514 = vmatprep.mubr.bf16.mxu0 0
    %515 = vmatmul.mubr.bf16.gmra.mxu0 %v277
    %v516 = vpop.f32.mrf.mxu0
    %v517 = vadd.f32 %v313, %v516
    %v518 = vpop.f32.mrf.mxu0
    %v519 = vpop.f32.mrf.mxu0
    %v520 = vadd.f32 %v313, %v519
    %v521 = vpop.f32.mrf.mxu0
    %522 = vdwg.mxu0
    %v523 = vld [vmem:[#allocation8] sm:$0xf]
    %v524 = vld [vmem:[#allocation8 + $0x4] sm:$0xf]
    %v525 = vld [vmem:[#allocation8 + $0x8] sm:$0xf]
    %v526 = vld [vmem:[#allocation8 + $0xc] sm:$0xf]
    %v527 = vld [vmem:[#allocation8 + $0x10] sm:$0xf]
    %v528 = vld [vmem:[#allocation8 + $0x14] sm:$0xf]
    %v529 = vld [vmem:[#allocation8 + $0x18] sm:$0xf]
    %v530 = vld [vmem:[#allocation8 + $0x1c] sm:$0xf]
    %v531 = vld [vmem:[#allocation8 + $0x20] sm:$0xf]
    %v532 = vld [vmem:[#allocation8 + $0x24] sm:$0xf]
    %v533 = vld [vmem:[#allocation8 + $0x28] sm:$0xf]
    %v534 = vld [vmem:[#allocation8 + $0x2c] sm:$0xf]
    %v535 = vld [vmem:[#allocation8 + $0x30] sm:$0xf]
    %v536 = vld [vmem:[#allocation8 + $0x34] sm:$0xf]
    %v537 = vld [vmem:[#allocation8 + $0x38] sm:$0xf]
    %v538 = vld [vmem:[#allocation8 + $0x3c] sm:$0xf]
    %v539 = vlaneseq
    %v540 = vshrl.u32 %v539, 7
    %v541 = vsub.s32 0, %v540
    %v542 = vrot.slane %v158, %v541
    %v559 = vunpack.c.l.b16 %v523
    %v560 = vunpack.c.l.b16 %v524
    %v561 = vunpack.c.l.b16 %v525
    %v562 = vunpack.c.l.b16 %v526
    %v563 = vunpack.c.l.b16 %v527
    %v564 = vunpack.c.l.b16 %v528
    %v565 = vunpack.c.l.b16 %v529
    %v566 = vunpack.c.l.b16 %v530
    %v567 = vunpack.c.l.b16 %v531
    %v568 = vunpack.c.l.b16 %v532
    %v569 = vunpack.c.l.b16 %v533
    %v570 = vunpack.c.l.b16 %v534
    %v571 = vunpack.c.l.b16 %v535
    %v572 = vunpack.c.l.b16 %v536
    %v573 = vunpack.c.l.b16 %v537
    %v574 = vunpack.c.l.b16 %v538
    %v575 = vpack.c.b16 %v560, %v559
    %v576 = vpack.c.b16 %v562, %v561
    %v577 = vpack.c.b16 %v564, %v563
    %v578 = vpack.c.b16 %v566, %v565
    %v579 = vpack.c.b16 %v568, %v567
    %v580 = vpack.c.b16 %v570, %v569
    %v581 = vpack.c.b16 %v572, %v571
    %v582 = vpack.c.b16 %v574, %v573
    %591 = vmatprep.subr.bf16.mxu0 0
    %592 = vmatpush1.bf16.msra.mxu0 %v582
    %593 = vmatprep.subr.bf16.mxu0 0
    %594 = vmatpush1.bf16.msra.mxu0 %v581
    %595 = vmatprep.subr.bf16.mxu0 0
    %596 = vmatpush1.bf16.msra.mxu0 %v580
    %597 = vmatprep.subr.bf16.mxu0 0
    %598 = vmatpush1.bf16.msra.mxu0 %v579
    %599 = vmatprep.subr.bf16.mxu0 0
    %600 = vmatpush1.bf16.msra.mxu0 %v578
    %601 = vmatprep.subr.bf16.mxu0 0
    %602 = vmatpush1.bf16.msra.mxu0 %v577
    %603 = vmatprep.subr.bf16.mxu0 0
    %604 = vmatpush1.bf16.msra.mxu0 %v576
    %605 = vmatprep.subr.bf16.mxu0 0
    %606 = vmatpush1.bf16.msra.mxu0 %v575
    %607 = vmatprep.subr.bf16.mxu0 0
    %608 = vmatpush2.bf16.msra.mxu0 0
    %609 = vmatprep.subr.bf16.mxu0 0
    %610 = vmatpush2.bf16.msra.mxu0 0
    %611 = vmatprep.subr.bf16.mxu0 0
    %612 = vmatpush2.bf16.msra.mxu0 0
    %613 = vmatprep.subr.bf16.mxu0 0
    %614 = vmatpush2.bf16.msra.mxu0 0
    %615 = vmatprep.subr.bf16.mxu0 0
    %616 = vmatpush2.bf16.msra.mxu0 0
    %617 = vmatprep.subr.bf16.mxu0 0
    %618 = vmatpush2.bf16.msra.mxu0 0
    %619 = vmatprep.subr.bf16.mxu0 0
    %620 = vmatpush2.bf16.msra.mxu0 0
    %621 = vmatprep.subr.bf16.mxu0 0
    %622 = vmatpush2.bf16.msra.mxu0 0
    %623 = vmatprep.mubr.bf16.mxu0 0
    %624 = vmatmul.mubr.bf16.gmra.mxu0 %v262
    %v625 = vpop.f32.mrf.mxu0
    %v626 = vadd.f32 %v542, %v625
    %v627 = vpop.f32.mrf.mxu0
    %v628 = vpop.f32.mrf.mxu0
    %v629 = vadd.f32 %v542, %v628
    %v630 = vpop.f32.mrf.mxu0
    %631 = vmatprep.mubr.bf16.mxu0 0
    %632 = vmatmul.mubr.bf16.gmra.mxu0 %v263
    %v633 = vpop.f32.mrf.mxu0
    %v634 = vadd.f32 %v542, %v633
    %v635 = vpop.f32.mrf.mxu0
    %v636 = vpop.f32.mrf.mxu0
    %v637 = vadd.f32 %v542, %v636
    %v638 = vpop.f32.mrf.mxu0
    %639 = vmatprep.mubr.bf16.mxu0 0
    %640 = vmatmul.mubr.bf16.gmra.mxu0 %v264
    %v641 = vpop.f32.mrf.mxu0
    %v642 = vadd.f32 %v542, %v641
    %v643 = vpop.f32.mrf.mxu0
    %v644 = vpop.f32.mrf.mxu0
    %v645 = vadd.f32 %v542, %v644
    %v646 = vpop.f32.mrf.mxu0
    %647 = vmatprep.mubr.bf16.mxu0 0
    %648 = vmatmul.mubr.bf16.gmra.mxu0 %v265
    %v649 = vpop.f32.mrf.mxu0
    %v650 = vadd.f32 %v542, %v649
    %v651 = vpop.f32.mrf.mxu0
    %v652 = vpop.f32.mrf.mxu0
    %v653 = vadd.f32 %v542, %v652
    %v654 = vpop.f32.mrf.mxu0
    %655 = vmatprep.mubr.bf16.mxu0 0
    %656 = vmatmul.mubr.bf16.gmra.mxu0 %v266
    %v657 = vpop.f32.mrf.mxu0
    %v658 = vadd.f32 %v542, %v657
    %v659 = vpop.f32.mrf.mxu0
    %v660 = vpop.f32.mrf.mxu0
    %v661 = vadd.f32 %v542, %v660
    %v662 = vpop.f32.mrf.mxu0
    %663 = vmatprep.mubr.bf16.mxu0 0
    %664 = vmatmul.mubr.bf16.gmra.mxu0 %v267
    %v665 = vpop.f32.mrf.mxu0
    %v666 = vadd.f32 %v542, %v665
    %v667 = vpop.f32.mrf.mxu0
    %v668 = vpop.f32.mrf.mxu0
    %v669 = vadd.f32 %v542, %v668
    %v670 = vpop.f32.mrf.mxu0
    %671 = vmatprep.mubr.bf16.mxu0 0
    %672 = vmatmul.mubr.bf16.gmra.mxu0 %v268
    %v673 = vpop.f32.mrf.mxu0
    %v674 = vadd.f32 %v542, %v673
    %v675 = vpop.f32.mrf.mxu0
    %v676 = vpop.f32.mrf.mxu0
    %v677 = vadd.f32 %v542, %v676
    %v678 = vpop.f32.mrf.mxu0
    %679 = vmatprep.mubr.bf16.mxu0 0
    %680 = vmatmul.mubr.bf16.gmra.mxu0 %v269
    %v681 = vpop.f32.mrf.mxu0
    %v682 = vadd.f32 %v542, %v681
    %v683 = vpop.f32.mrf.mxu0
    %v684 = vpop.f32.mrf.mxu0
    %v685 = vadd.f32 %v542, %v684
    %v686 = vpop.f32.mrf.mxu0
    %687 = vmatprep.mubr.bf16.mxu0 0
    %688 = vmatmul.mubr.bf16.gmra.mxu0 %v270
    %v689 = vpop.f32.mrf.mxu0
    %v690 = vadd.f32 %v542, %v689
    %v691 = vpop.f32.mrf.mxu0
    %v692 = vpop.f32.mrf.mxu0
    %v693 = vadd.f32 %v542, %v692
    %v694 = vpop.f32.mrf.mxu0
    %695 = vmatprep.mubr.bf16.mxu0 0
    %696 = vmatmul.mubr.bf16.gmra.mxu0 %v271
    %v697 = vpop.f32.mrf.mxu0
    %v698 = vadd.f32 %v542, %v697
    %v699 = vpop.f32.mrf.mxu0
    %v700 = vpop.f32.mrf.mxu0
    %v701 = vadd.f32 %v542, %v700
    %v702 = vpop.f32.mrf.mxu0
    %703 = vmatprep.mubr.bf16.mxu0 0
    %704 = vmatmul.mubr.bf16.gmra.mxu0 %v272
    %v705 = vpop.f32.mrf.mxu0
    %v706 = vadd.f32 %v542, %v705
    %v707 = vpop.f32.mrf.mxu0
    %v708 = vpop.f32.mrf.mxu0
    %v709 = vadd.f32 %v542, %v708
    %v710 = vpop.f32.mrf.mxu0
    %711 = vmatprep.mubr.bf16.mxu0 0
    %712 = vmatmul.mubr.bf16.gmra.mxu0 %v273
    %v713 = vpop.f32.mrf.mxu0
    %v714 = vadd.f32 %v542, %v713
    %v715 = vpop.f32.mrf.mxu0
    %v716 = vpop.f32.mrf.mxu0
    %v717 = vadd.f32 %v542, %v716
    %v718 = vpop.f32.mrf.mxu0
    %719 = vmatprep.mubr.bf16.mxu0 0
    %720 = vmatmul.mubr.bf16.gmra.mxu0 %v274
    %v721 = vpop.f32.mrf.mxu0
    %v722 = vadd.f32 %v542, %v721
    %v723 = vpop.f32.mrf.mxu0
    %v724 = vpop.f32.mrf.mxu0
    %v725 = vadd.f32 %v542, %v724
    %v726 = vpop.f32.mrf.mxu0
    %727 = vmatprep.mubr.bf16.mxu0 0
    %728 = vmatmul.mubr.bf16.gmra.mxu0 %v275
    %v729 = vpop.f32.mrf.mxu0
    %v730 = vadd.f32 %v542, %v729
    %v731 = vpop.f32.mrf.mxu0
    %v732 = vpop.f32.mrf.mxu0
    %v733 = vadd.f32 %v542, %v732
    %v734 = vpop.f32.mrf.mxu0
    %735 = vmatprep.mubr.bf16.mxu0 0
    %736 = vmatmul.mubr.bf16.gmra.mxu0 %v276
    %v737 = vpop.f32.mrf.mxu0
    %v738 = vadd.f32 %v542, %v737
    %v739 = vpop.f32.mrf.mxu0
    %v740 = vpop.f32.mrf.mxu0
    %v741 = vadd.f32 %v542, %v740
    %v742 = vpop.f32.mrf.mxu0
    %743 = vmatprep.mubr.bf16.mxu0 0
    %744 = vmatmul.mubr.bf16.gmra.mxu0 %v277
    %v745 = vpop.f32.mrf.mxu0
    %v746 = vadd.f32 %v542, %v745
    %v747 = vpop.f32.mrf.mxu0
    %v748 = vpop.f32.mrf.mxu0
    %v749 = vadd.f32 %v542, %v748
    %v750 = vpop.f32.mrf.mxu0
    %751 = vdwg.mxu0
    %v752 = vld [vmem:[#allocation10] sm:$0xf]
    %v753 = vld [vmem:[#allocation10 + $0x4] sm:$0xf]
    %v754 = vld [vmem:[#allocation10 + $0x8] sm:$0xf]
    %v755 = vld [vmem:[#allocation10 + $0xc] sm:$0xf]
    %v756 = vld [vmem:[#allocation10 + $0x10] sm:$0xf]
    %v757 = vld [vmem:[#allocation10 + $0x14] sm:$0xf]
    %v758 = vld [vmem:[#allocation10 + $0x18] sm:$0xf]
    %v759 = vld [vmem:[#allocation10 + $0x1c] sm:$0xf]
    %v760 = vld [vmem:[#allocation10 + $0x20] sm:$0xf]
    %v761 = vld [vmem:[#allocation10 + $0x24] sm:$0xf]
    %v762 = vld [vmem:[#allocation10 + $0x28] sm:$0xf]
    %v763 = vld [vmem:[#allocation10 + $0x2c] sm:$0xf]
    %v764 = vld [vmem:[#allocation10 + $0x30] sm:$0xf]
    %v765 = vld [vmem:[#allocation10 + $0x34] sm:$0xf]
    %v766 = vld [vmem:[#allocation10 + $0x38] sm:$0xf]
    %v767 = vld [vmem:[#allocation10 + $0x3c] sm:$0xf]
    %v768 = vlaneseq
    %v769 = vshrl.u32 %v768, 7
    %v770 = vsub.s32 0, %v769
    %v771 = vrot.slane %v159, %v770
    %v788 = vunpack.c.l.b16 %v752
    %v789 = vunpack.c.l.b16 %v753
    %v790 = vunpack.c.l.b16 %v754
    %v791 = vunpack.c.l.b16 %v755
    %v792 = vunpack.c.l.b16 %v756
    %v793 = vunpack.c.l.b16 %v757
    %v794 = vunpack.c.l.b16 %v758
    %v795 = vunpack.c.l.b16 %v759
    %v796 = vunpack.c.l.b16 %v760
    %v797 = vunpack.c.l.b16 %v761
    %v798 = vunpack.c.l.b16 %v762
    %v799 = vunpack.c.l.b16 %v763
    %v800 = vunpack.c.l.b16 %v764
    %v801 = vunpack.c.l.b16 %v765
    %v802 = vunpack.c.l.b16 %v766
    %v803 = vunpack.c.l.b16 %v767
    %v804 = vpack.c.b16 %v789, %v788
    %v805 = vpack.c.b16 %v791, %v790
    %v806 = vpack.c.b16 %v793, %v792
    %v807 = vpack.c.b16 %v795, %v794
    %v808 = vpack.c.b16 %v797, %v796
    %v809 = vpack.c.b16 %v799, %v798
    %v810 = vpack.c.b16 %v801, %v800
    %v811 = vpack.c.b16 %v803, %v802
    %820 = vmatprep.subr.bf16.mxu0 0
    %821 = vmatpush1.bf16.msra.mxu0 %v811
    %822 = vmatprep.subr.bf16.mxu0 0
    %823 = vmatpush1.bf16.msra.mxu0 %v810
    %824 = vmatprep.subr.bf16.mxu0 0
    %825 = vmatpush1.bf16.msra.mxu0 %v809
    %826 = vmatprep.subr.bf16.mxu0 0
    %827 = vmatpush1.bf16.msra.mxu0 %v808
    %828 = vmatprep.subr.bf16.mxu0 0
    %829 = vmatpush1.bf16.msra.mxu0 %v807
    %830 = vmatprep.subr.bf16.mxu0 0
    %831 = vmatpush1.bf16.msra.mxu0 %v806
    %832 = vmatprep.subr.bf16.mxu0 0
    %833 = vmatpush1.bf16.msra.mxu0 %v805
    %834 = vmatprep.subr.bf16.mxu0 0
    %835 = vmatpush1.bf16.msra.mxu0 %v804
    %836 = vmatprep.subr.bf16.mxu0 0
    %837 = vmatpush2.bf16.msra.mxu0 0
    %838 = vmatprep.subr.bf16.mxu0 0
    %839 = vmatpush2.bf16.msra.mxu0 0
    %840 = vmatprep.subr.bf16.mxu0 0
    %841 = vmatpush2.bf16.msra.mxu0 0
    %842 = vmatprep.subr.bf16.mxu0 0
    %843 = vmatpush2.bf16.msra.mxu0 0
    %844 = vmatprep.subr.bf16.mxu0 0
    %845 = vmatpush2.bf16.msra.mxu0 0
    %846 = vmatprep.subr.bf16.mxu0 0
    %847 = vmatpush2.bf16.msra.mxu0 0
    %848 = vmatprep.subr.bf16.mxu0 0
    %849 = vmatpush2.bf16.msra.mxu0 0
    %850 = vmatprep.subr.bf16.mxu0 0
    %851 = vmatpush2.bf16.msra.mxu0 0
    %852 = vmatprep.mubr.bf16.mxu0 0
    %853 = vmatmul.mubr.bf16.gmra.mxu0 %v278
    %v854 = vpop.f32.mrf.mxu0
    %v855 = vadd.f32 %v771, %v854
    %v856 = vpop.f32.mrf.mxu0
    %v857 = vpop.f32.mrf.mxu0
    %v858 = vadd.f32 %v771, %v857
    %v859 = vpop.f32.mrf.mxu0
    %860 = vmatprep.mubr.bf16.mxu0 0
    %861 = vmatmul.mubr.bf16.gmra.mxu0 %v279
    %v862 = vpop.f32.mrf.mxu0
    %v863 = vadd.f32 %v771, %v862
    %v864 = vpop.f32.mrf.mxu0
    %v865 = vpop.f32.mrf.mxu0
    %v866 = vadd.f32 %v771, %v865
    %v867 = vpop.f32.mrf.mxu0
    %868 = vmatprep.mubr.bf16.mxu0 0
    %869 = vmatmul.mubr.bf16.gmra.mxu0 %v280
    %v870 = vpop.f32.mrf.mxu0
    %v871 = vadd.f32 %v771, %v870
    %v872 = vpop.f32.mrf.mxu0
    %v873 = vpop.f32.mrf.mxu0
    %v874 = vadd.f32 %v771, %v873
    %v875 = vpop.f32.mrf.mxu0
    %876 = vmatprep.mubr.bf16.mxu0 0
    %877 = vmatmul.mubr.bf16.gmra.mxu0 %v281
    %v878 = vpop.f32.mrf.mxu0
    %v879 = vadd.f32 %v771, %v878
    %v880 = vpop.f32.mrf.mxu0
    %v881 = vpop.f32.mrf.mxu0
    %v882 = vadd.f32 %v771, %v881
    %v883 = vpop.f32.mrf.mxu0
    %884 = vmatprep.mubr.bf16.mxu0 0
    %885 = vmatmul.mubr.bf16.gmra.mxu0 %v282
    %v886 = vpop.f32.mrf.mxu0
    %v887 = vadd.f32 %v771, %v886
    %v888 = vpop.f32.mrf.mxu0
    %v889 = vpop.f32.mrf.mxu0
    %v890 = vadd.f32 %v771, %v889
    %v891 = vpop.f32.mrf.mxu0
    %892 = vmatprep.mubr.bf16.mxu0 0
    %893 = vmatmul.mubr.bf16.gmra.mxu0 %v283
    %v894 = vpop.f32.mrf.mxu0
    %v895 = vadd.f32 %v771, %v894
    %v896 = vpop.f32.mrf.mxu0
    %v897 = vpop.f32.mrf.mxu0
    %v898 = vadd.f32 %v771, %v897
    %v899 = vpop.f32.mrf.mxu0
    %900 = vmatprep.mubr.bf16.mxu0 0
    %901 = vmatmul.mubr.bf16.gmra.mxu0 %v284
    %v902 = vpop.f32.mrf.mxu0
    %v903 = vadd.f32 %v771, %v902
    %v904 = vpop.f32.mrf.mxu0
    %v905 = vpop.f32.mrf.mxu0
    %v906 = vadd.f32 %v771, %v905
    %v907 = vpop.f32.mrf.mxu0
    %908 = vmatprep.mubr.bf16.mxu0 0
    %909 = vmatmul.mubr.bf16.gmra.mxu0 %v285
    %v910 = vpop.f32.mrf.mxu0
    %v911 = vadd.f32 %v771, %v910
    %v912 = vpop.f32.mrf.mxu0
    %v913 = vpop.f32.mrf.mxu0
    %v914 = vadd.f32 %v771, %v913
    %v915 = vpop.f32.mrf.mxu0
    %916 = vmatprep.mubr.bf16.mxu0 0
    %917 = vmatmul.mubr.bf16.gmra.mxu0 %v286
    %v918 = vpop.f32.mrf.mxu0
    %v919 = vadd.f32 %v771, %v918
    %v920 = vpop.f32.mrf.mxu0
    %v921 = vpop.f32.mrf.mxu0
    %v922 = vadd.f32 %v771, %v921
    %v923 = vpop.f32.mrf.mxu0
    %924 = vmatprep.mubr.bf16.mxu0 0
    %925 = vmatmul.mubr.bf16.gmra.mxu0 %v287
    %v926 = vpop.f32.mrf.mxu0
    %v927 = vadd.f32 %v771, %v926
    %v928 = vpop.f32.mrf.mxu0
    %v929 = vpop.f32.mrf.mxu0
    %v930 = vadd.f32 %v771, %v929
    %v931 = vpop.f32.mrf.mxu0
    %932 = vmatprep.mubr.bf16.mxu0 0
    %933 = vmatmul.mubr.bf16.gmra.mxu0 %v288
    %v934 = vpop.f32.mrf.mxu0
    %v935 = vadd.f32 %v771, %v934
    %v936 = vpop.f32.mrf.mxu0
    %v937 = vpop.f32.mrf.mxu0
    %v938 = vadd.f32 %v771, %v937
    %v939 = vpop.f32.mrf.mxu0
    %940 = vmatprep.mubr.bf16.mxu0 0
    %941 = vmatmul.mubr.bf16.gmra.mxu0 %v289
    %v942 = vpop.f32.mrf.mxu0
    %v943 = vadd.f32 %v771, %v942
    %v944 = vpop.f32.mrf.mxu0
    %v945 = vpop.f32.mrf.mxu0
    %v946 = vadd.f32 %v771, %v945
    %v947 = vpop.f32.mrf.mxu0
    %948 = vmatprep.mubr.bf16.mxu0 0
    %949 = vmatmul.mubr.bf16.gmra.mxu0 %v290
    %v950 = vpop.f32.mrf.mxu0
    %v951 = vadd.f32 %v771, %v950
    %v952 = vpop.f32.mrf.mxu0
    %v953 = vpop.f32.mrf.mxu0
    %v954 = vadd.f32 %v771, %v953
    %v955 = vpop.f32.mrf.mxu0
    %956 = vmatprep.mubr.bf16.mxu0 0
    %957 = vmatmul.mubr.bf16.gmra.mxu0 %v291
    %v958 = vpop.f32.mrf.mxu0
    %v959 = vadd.f32 %v771, %v958
    %v960 = vpop.f32.mrf.mxu0
    %v961 = vpop.f32.mrf.mxu0
    %v962 = vadd.f32 %v771, %v961
    %v963 = vpop.f32.mrf.mxu0
    %964 = vmatprep.mubr.bf16.mxu0 0
    %965 = vmatmul.mubr.bf16.gmra.mxu0 %v292
    %v966 = vpop.f32.mrf.mxu0
    %v967 = vadd.f32 %v771, %v966
    %v968 = vpop.f32.mrf.mxu0
    %v969 = vpop.f32.mrf.mxu0
    %v970 = vadd.f32 %v771, %v969
    %v971 = vpop.f32.mrf.mxu0
    %972 = vmatprep.mubr.bf16.mxu0 0
    %973 = vmatmul.mubr.bf16.gmra.mxu0 %v293
    %v974 = vpop.f32.mrf.mxu0
    %v975 = vadd.f32 %v771, %v974
    %v976 = vpop.f32.mrf.mxu0
    %v977 = vpop.f32.mrf.mxu0
    %v978 = vadd.f32 %v771, %v977
    %v979 = vpop.f32.mrf.mxu0
    %980 = vdwg.mxu0
    %v981 = vpack.c.bf16 %v400, %v397
    %v982 = vpack.c.bf16 %v408, %v405
    %v983 = vpack.c.bf16 %v416, %v413
    %v984 = vpack.c.bf16 %v424, %v421
    %v985 = vpack.c.bf16 %v432, %v429
    %v986 = vpack.c.bf16 %v440, %v437
    %v987 = vpack.c.bf16 %v448, %v445
    %v988 = vpack.c.bf16 %v456, %v453
    %v989 = vpack.c.bf16 %v464, %v461
    %v990 = vpack.c.bf16 %v472, %v469
    %v991 = vpack.c.bf16 %v480, %v477
    %v992 = vpack.c.bf16 %v488, %v485
    %v993 = vpack.c.bf16 %v496, %v493
    %v994 = vpack.c.bf16 %v504, %v501
    %v995 = vpack.c.bf16 %v512, %v509
    %v996 = vpack.c.bf16 %v520, %v517
    %v997 = vpack.c.bf16 %v629, %v626
    %v998 = vpack.c.bf16 %v637, %v634
    %v999 = vpack.c.bf16 %v645, %v642
    %v1000 = vpack.c.bf16 %v653, %v650
    %v1001 = vpack.c.bf16 %v661, %v658
    %v1002 = vpack.c.bf16 %v669, %v666
    %v1003 = vpack.c.bf16 %v677, %v674
    %v1004 = vpack.c.bf16 %v685, %v682
    %v1005 = vpack.c.bf16 %v693, %v690
    %v1006 = vpack.c.bf16 %v701, %v698
    %v1007 = vpack.c.bf16 %v709, %v706
    %v1008 = vpack.c.bf16 %v717, %v714
    %v1009 = vpack.c.bf16 %v725, %v722
    %v1010 = vpack.c.bf16 %v733, %v730
    %v1011 = vpack.c.bf16 %v741, %v738
    %v1012 = vpack.c.bf16 %v749, %v746
    %v1013 = vpack.c.bf16 %v858, %v855
    %v1014 = vpack.c.bf16 %v866, %v863
    %v1015 = vpack.c.bf16 %v874, %v871
    %v1016 = vpack.c.bf16 %v882, %v879
    %v1017 = vpack.c.bf16 %v890, %v887
    %v1018 = vpack.c.bf16 %v898, %v895
    %v1019 = vpack.c.bf16 %v906, %v903
    %v1020 = vpack.c.bf16 %v914, %v911
    %v1021 = vpack.c.bf16 %v922, %v919
    %v1022 = vpack.c.bf16 %v930, %v927
    %v1023 = vpack.c.bf16 %v938, %v935
    %v1024 = vpack.c.bf16 %v946, %v943
    %v1025 = vpack.c.bf16 %v954, %v951
    %v1026 = vpack.c.bf16 %v962, %v959
    %v1027 = vpack.c.bf16 %v970, %v967
    %v1028 = vpack.c.bf16 %v978, %v975
    %vm1029 = vcmask 261120
    %v1031 = vsel %vm1029, %v981, 0
    %v1034 = vsel %vm1029, %v997, 0
    %1036 = vmatprep.subr.bf16.mxu0 0
    %1037 = vmatpush1.bf16.xpose.msra.mxu0 0
    %1038 = vmatprep.subr.bf16.mxu0 0
    %1039 = vmatpush1.bf16.xpose.msra.mxu0 0
    %1040 = vmatprep.subr.bf16.mxu0 0
    %1041 = vmatpush1.bf16.xpose.msra.mxu0 0
    %1042 = vmatprep.subr.bf16.mxu0 0
    %1043 = vmatpush1.bf16.xpose.msra.mxu0 0
    %1044 = vmatprep.subr.bf16.mxu0 0
    %1045 = vmatpush1.bf16.xpose.msra.mxu0 0
    %1046 = vmatprep.subr.bf16.mxu0 0
    %1047 = vmatpush1.bf16.xpose.msra.mxu0 0
    %1048 = vmatprep.subr.bf16.mxu0 0
    %1049 = vmatpush1.bf16.xpose.msra.mxu0 0
    %1050 = vmatprep.subr.bf16.mxu0 0
    %1051 = vmatpush1.bf16.xpose.msra.mxu0 %v1034
    %1052 = vmatprep.subr.bf16.mxu0 0
    %1053 = vmatpush2.bf16.xpose.msra.mxu0 0
    %1054 = vmatprep.subr.bf16.mxu0 0
    %1055 = vmatpush2.bf16.xpose.msra.mxu0 0
    %1056 = vmatprep.subr.bf16.mxu0 0
    %1057 = vmatpush2.bf16.xpose.msra.mxu0 0
    %1058 = vmatprep.subr.bf16.mxu0 0
    %1059 = vmatpush2.bf16.xpose.msra.mxu0 0
    %1060 = vmatprep.subr.bf16.mxu0 0
    %1061 = vmatpush2.bf16.xpose.msra.mxu0 0
    %1062 = vmatprep.subr.bf16.mxu0 0
    %1063 = vmatpush2.bf16.xpose.msra.mxu0 0
    %1064 = vmatprep.subr.bf16.mxu0 0
    %1065 = vmatpush2.bf16.xpose.msra.mxu0 0
    %1066 = vmatprep.subr.bf16.mxu0 0
    %1067 = vmatpush2.bf16.xpose.msra.mxu0 0
    %1068 = vmatprep.mubr.bf16.mxu0 0
    %1069 = vmatmul.mubr.bf16.gmra.mxu0 %v1031
    %v1070 = vpop.f32.mrf.mxu0
    %v1071 = vadd.f32 0.0, %v1070
    %v1072 = vpop.f32.mrf.mxu0
    %v1073 = vpop.f32.mrf.mxu0
    %v1074 = vadd.f32 0.0, %v1073
    %v1075 = vpop.f32.mrf.mxu0
    %1076 = vdwg.mxu0
    %v1078 = vsel %vm1029, %v982, 0
    %v1081 = vsel %vm1029, %v998, 0
    %1083 = vmatprep.subr.bf16.mxu0 0
    %1084 = vmatpush1.bf16.xpose.msra.mxu0 0
    %1085 = vmatprep.subr.bf16.mxu0 0
    %1086 = vmatpush1.bf16.xpose.msra.mxu0 0
    %1087 = vmatprep.subr.bf16.mxu0 0
    %1088 = vmatpush1.bf16.xpose.msra.mxu0 0
    %1089 = vmatprep.subr.bf16.mxu0 0
    %1090 = vmatpush1.bf16.xpose.msra.mxu0 0
    %1091 = vmatprep.subr.bf16.mxu0 0
    %1092 = vmatpush1.bf16.xpose.msra.mxu0 0
    %1093 = vmatprep.subr.bf16.mxu0 0
    %1094 = vmatpush1.bf16.xpose.msra.mxu0 0
    %1095 = vmatprep.subr.bf16.mxu0 0
    %1096 = vmatpush1.bf16.xpose.msra.mxu0 0
    %1097 = vmatprep.subr.bf16.mxu0 0
    %1098 = vmatpush1.bf16.xpose.msra.mxu0 %v1081
    %1099 = vmatprep.subr.bf16.mxu0 0
    %1100 = vmatpush2.bf16.xpose.msra.mxu0 0
    %1101 = vmatprep.subr.bf16.mxu0 0
    %1102 = vmatpush2.bf16.xpose.msra.mxu0 0
    %1103 = vmatprep.subr.bf16.mxu0 0
    %1104 = vmatpush2.bf16.xpose.msra.mxu0 0
    %1105 = vmatprep.subr.bf16.mxu0 0
    %1106 = vmatpush2.bf16.xpose.msra.mxu0 0
    %1107 = vmatprep.subr.bf16.mxu0 0
    %1108 = vmatpush2.bf16.xpose.msra.mxu0 0
    %1109 = vmatprep.subr.bf16.mxu0 0
    %1110 = vmatpush2.bf16.xpose.msra.mxu0 0
    %1111 = vmatprep.subr.bf16.mxu0 0
    %1112 = vmatpush2.bf16.xpose.msra.mxu0 0
    %1113 = vmatprep.subr.bf16.mxu0 0
    %1114 = vmatpush2.bf16.xpose.msra.mxu0 0
    %1115 = vmatprep.mubr.bf16.mxu0 0
    %1116 = vmatmul.mubr.bf16.gmra.mxu0 %v1078
    %v1117 = vpop.f32.mrf.mxu0
    %v1118 = vadd.f32 0.0, %v1117
    %v1119 = vpop.f32.mrf.mxu0
    %v1120 = vpop.f32.mrf.mxu0
    %v1121 = vadd.f32 0.0, %v1120
    %v1122 = vpop.f32.mrf.mxu0
    %1123 = vdwg.mxu0
    %v1125 = vsel %vm1029, %v983, 0
    %v1128 = vsel %vm1029, %v999, 0
    %1130 = vmatprep.subr.bf16.mxu0 0
    %1131 = vmatpush1.bf16.xpose.msra.mxu0 0
    %1132 = vmatprep.subr.bf16.mxu0 0
    %1133 = vmatpush1.bf16.xpose.msra.mxu0 0
    %1134 = vmatprep.subr.bf16.mxu0 0
    %1135 = vmatpush1.bf16.xpose.msra.mxu0 0
    %1136 = vmatprep.subr.bf16.mxu0 0
    %1137 = vmatpush1.bf16.xpose.msra.mxu0 0
    %1138 = vmatprep.subr.bf16.mxu0 0
    %1139 = vmatpush1.bf16.xpose.msra.mxu0 0
    %1140 = vmatprep.subr.bf16.mxu0 0
    %1141 = vmatpush1.bf16.xpose.msra.mxu0 0
    %1142 = vmatprep.subr.bf16.mxu0 0
    %1143 = vmatpush1.bf16.xpose.msra.mxu0 0
    %1144 = vmatprep.subr.bf16.mxu0 0
    %1145 = vmatpush1.bf16.xpose.msra.mxu0 %v1128
    %1146 = vmatprep.subr.bf16.mxu0 0
    %1147 = vmatpush2.bf16.xpose.msra.mxu0 0
    %1148 = vmatprep.subr.bf16.mxu0 0
    %1149 = vmatpush2.bf16.xpose.msra.mxu0 0
    %1150 = vmatprep.subr.bf16.mxu0 0
    %1151 = vmatpush2.bf16.xpose.msra.mxu0 0
    %1152 = vmatprep.subr.bf16.mxu0 0
    %1153 = vmatpush2.bf16.xpose.msra.mxu0 0
    %1154 = vmatprep.subr.bf16.mxu0 0
    %1155 = vmatpush2.bf16.xpose.msra.mxu0 0
    %1156 = vmatprep.subr.bf16.mxu0 0
    %1157 = vmatpush2.bf16.xpose.msra.mxu0 0
    %1158 = vmatprep.subr.bf16.mxu0 0
    %1159 = vmatpush2.bf16.xpose.msra.mxu0 0
    %1160 = vmatprep.subr.bf16.mxu0 0
    %1161 = vmatpush2.bf16.xpose.msra.mxu0 0
    %1162 = vmatprep.mubr.bf16.mxu0 0
    %1163 = vmatmul.mubr.bf16.gmra.mxu0 %v1125
    %v1164 = vpop.f32.mrf.mxu0
    %v1165 = vadd.f32 0.0, %v1164
    %v1166 = vpop.f32.mrf.mxu0
    %v1167 = vpop.f32.mrf.mxu0
    %v1168 = vadd.f32 0.0, %v1167
    %v1169 = vpop.f32.mrf.mxu0
    %1170 = vdwg.mxu0
    %v1172 = vsel %vm1029, %v984, 0
    %v1175 = vsel %vm1029, %v1000, 0
    %1177 = vmatprep.subr.bf16.mxu0 0
    %1178 = vmatpush1.bf16.xpose.msra.mxu0 0
    %1179 = vmatprep.subr.bf16.mxu0 0
    %1180 = vmatpush1.bf16.xpose.msra.mxu0 0
    %1181 = vmatprep.subr.bf16.mxu0 0
    %1182 = vmatpush1.bf16.xpose.msra.mxu0 0
    %1183 = vmatprep.subr.bf16.mxu0 0
    %1184 = vmatpush1.bf16.xpose.msra.mxu0 0
    %1185 = vmatprep.subr.bf16.mxu0 0
    %1186 = vmatpush1.bf16.xpose.msra.mxu0 0
    %1187 = vmatprep.subr.bf16.mxu0 0
    %1188 = vmatpush1.bf16.xpose.msra.mxu0 0
    %1189 = vmatprep.subr.bf16.mxu0 0
    %1190 = vmatpush1.bf16.xpose.msra.mxu0 0
    %1191 = vmatprep.subr.bf16.mxu0 0
    %1192 = vmatpush1.bf16.xpose.msra.mxu0 %v1175
    %1193 = vmatprep.subr.bf16.mxu0 0
    %1194 = vmatpush2.bf16.xpose.msra.mxu0 0
    %1195 = vmatprep.subr.bf16.mxu0 0
    %1196 = vmatpush2.bf16.xpose.msra.mxu0 0
    %1197 = vmatprep.subr.bf16.mxu0 0
    %1198 = vmatpush2.bf16.xpose.msra.mxu0 0
    %1199 = vmatprep.subr.bf16.mxu0 0
    %1200 = vmatpush2.bf16.xpose.msra.mxu0 0
    %1201 = vmatprep.subr.bf16.mxu0 0
    %1202 = vmatpush2.bf16.xpose.msra.mxu0 0
    %1203 = vmatprep.subr.bf16.mxu0 0
    %1204 = vmatpush2.bf16.xpose.msra.mxu0 0
    %1205 = vmatprep.subr.bf16.mxu0 0
    %1206 = vmatpush2.bf16.xpose.msra.mxu0 0
    %1207 = vmatprep.subr.bf16.mxu0 0
    %1208 = vmatpush2.bf16.xpose.msra.mxu0 0
    %1209 = vmatprep.mubr.bf16.mxu0 0
    %1210 = vmatmul.mubr.bf16.gmra.mxu0 %v1172
    %v1211 = vpop.f32.mrf.mxu0
    %v1212 = vadd.f32 0.0, %v1211
    %v1213 = vpop.f32.mrf.mxu0
    %v1214 = vpop.f32.mrf.mxu0
    %v1215 = vadd.f32 0.0, %v1214
    %v1216 = vpop.f32.mrf.mxu0
    %1217 = vdwg.mxu0
    %v1219 = vsel %vm1029, %v985, 0
    %v1222 = vsel %vm1029, %v1001, 0
    %1224 = vmatprep.subr.bf16.mxu0 0
    %1225 = vmatpush1.bf16.xpose.msra.mxu0 0
    %1226 = vmatprep.subr.bf16.mxu0 0
    %1227 = vmatpush1.bf16.xpose.msra.mxu0 0
    %1228 = vmatprep.subr.bf16.mxu0 0
    %1229 = vmatpush1.bf16.xpose.msra.mxu0 0
    %1230 = vmatprep.subr.bf16.mxu0 0
    %1231 = vmatpush1.bf16.xpose.msra.mxu0 0
    %1232 = vmatprep.subr.bf16.mxu0 0
    %1233 = vmatpush1.bf16.xpose.msra.mxu0 0
    %1234 = vmatprep.subr.bf16.mxu0 0
    %1235 = vmatpush1.bf16.xpose.msra.mxu0 0
    %1236 = vmatprep.subr.bf16.mxu0 0
    %1237 = vmatpush1.bf16.xpose.msra.mxu0 0
    %1238 = vmatprep.subr.bf16.mxu0 0
    %1239 = vmatpush1.bf16.xpose.msra.mxu0 %v1222
    %1240 = vmatprep.subr.bf16.mxu0 0
    %1241 = vmatpush2.bf16.xpose.msra.mxu0 0
    %1242 = vmatprep.subr.bf16.mxu0 0
    %1243 = vmatpush2.bf16.xpose.msra.mxu0 0
    %1244 = vmatprep.subr.bf16.mxu0 0
    %1245 = vmatpush2.bf16.xpose.msra.mxu0 0
    %1246 = vmatprep.subr.bf16.mxu0 0
    %1247 = vmatpush2.bf16.xpose.msra.mxu0 0
    %1248 = vmatprep.subr.bf16.mxu0 0
    %1249 = vmatpush2.bf16.xpose.msra.mxu0 0
    %1250 = vmatprep.subr.bf16.mxu0 0
    %1251 = vmatpush2.bf16.xpose.msra.mxu0 0
    %1252 = vmatprep.subr.bf16.mxu0 0
    %1253 = vmatpush2.bf16.xpose.msra.mxu0 0
    %1254 = vmatprep.subr.bf16.mxu0 0
    %1255 = vmatpush2.bf16.xpose.msra.mxu0 0
    %1256 = vmatprep.mubr.bf16.mxu0 0
    %1257 = vmatmul.mubr.bf16.gmra.mxu0 %v1219
    %v1258 = vpop.f32.mrf.mxu0
    %v1259 = vadd.f32 0.0, %v1258
    %v1260 = vpop.f32.mrf.mxu0
    %v1261 = vpop.f32.mrf.mxu0
    %v1262 = vadd.f32 0.0, %v1261
    %v1263 = vpop.f32.mrf.mxu0
    %1264 = vdwg.mxu0
    %v1266 = vsel %vm1029, %v986, 0
    %v1269 = vsel %vm1029, %v1002, 0
    %1271 = vmatprep.subr.bf16.mxu0 0
    %1272 = vmatpush1.bf16.xpose.msra.mxu0 0
    %1273 = vmatprep.subr.bf16.mxu0 0
    %1274 = vmatpush1.bf16.xpose.msra.mxu0 0
    %1275 = vmatprep.subr.bf16.mxu0 0
    %1276 = vmatpush1.bf16.xpose.msra.mxu0 0
    %1277 = vmatprep.subr.bf16.mxu0 0
    %1278 = vmatpush1.bf16.xpose.msra.mxu0 0
    %1279 = vmatprep.subr.bf16.mxu0 0
    %1280 = vmatpush1.bf16.xpose.msra.mxu0 0
    %1281 = vmatprep.subr.bf16.mxu0 0
    %1282 = vmatpush1.bf16.xpose.msra.mxu0 0
    %1283 = vmatprep.subr.bf16.mxu0 0
    %1284 = vmatpush1.bf16.xpose.msra.mxu0 0
    %1285 = vmatprep.subr.bf16.mxu0 0
    %1286 = vmatpush1.bf16.xpose.msra.mxu0 %v1269
    %1287 = vmatprep.subr.bf16.mxu0 0
    %1288 = vmatpush2.bf16.xpose.msra.mxu0 0
    %1289 = vmatprep.subr.bf16.mxu0 0
    %1290 = vmatpush2.bf16.xpose.msra.mxu0 0
    %1291 = vmatprep.subr.bf16.mxu0 0
    %1292 = vmatpush2.bf16.xpose.msra.mxu0 0
    %1293 = vmatprep.subr.bf16.mxu0 0
    %1294 = vmatpush2.bf16.xpose.msra.mxu0 0
    %1295 = vmatprep.subr.bf16.mxu0 0
    %1296 = vmatpush2.bf16.xpose.msra.mxu0 0
    %1297 = vmatprep.subr.bf16.mxu0 0
    %1298 = vmatpush2.bf16.xpose.msra.mxu0 0
    %1299 = vmatprep.subr.bf16.mxu0 0
    %1300 = vmatpush2.bf16.xpose.msra.mxu0 0
    %1301 = vmatprep.subr.bf16.mxu0 0
    %1302 = vmatpush2.bf16.xpose.msra.mxu0 0
    %1303 = vmatprep.mubr.bf16.mxu0 0
    %1304 = vmatmul.mubr.bf16.gmra.mxu0 %v1266
    %v1305 = vpop.f32.mrf.mxu0
    %v1306 = vadd.f32 0.0, %v1305
    %v1307 = vpop.f32.mrf.mxu0
    %v1308 = vpop.f32.mrf.mxu0
    %v1309 = vadd.f32 0.0, %v1308
    %v1310 = vpop.f32.mrf.mxu0
    %1311 = vdwg.mxu0
    %v1313 = vsel %vm1029, %v987, 0
    %v1316 = vsel %vm1029, %v1003, 0
    %1318 = vmatprep.subr.bf16.mxu0 0
    %1319 = vmatpush1.bf16.xpose.msra.mxu0 0
    %1320 = vmatprep.subr.bf16.mxu0 0
    %1321 = vmatpush1.bf16.xpose.msra.mxu0 0
    %1322 = vmatprep.subr.bf16.mxu0 0
    %1323 = vmatpush1.bf16.xpose.msra.mxu0 0
    %1324 = vmatprep.subr.bf16.mxu0 0
    %1325 = vmatpush1.bf16.xpose.msra.mxu0 0
    %1326 = vmatprep.subr.bf16.mxu0 0
    %1327 = vmatpush1.bf16.xpose.msra.mxu0 0
    %1328 = vmatprep.subr.bf16.mxu0 0
    %1329 = vmatpush1.bf16.xpose.msra.mxu0 0
    %1330 = vmatprep.subr.bf16.mxu0 0
    %1331 = vmatpush1.bf16.xpose.msra.mxu0 0
    %1332 = vmatprep.subr.bf16.mxu0 0
    %1333 = vmatpush1.bf16.xpose.msra.mxu0 %v1316
    %1334 = vmatprep.subr.bf16.mxu0 0
    %1335 = vmatpush2.bf16.xpose.msra.mxu0 0
    %1336 = vmatprep.subr.bf16.mxu0 0
    %1337 = vmatpush2.bf16.xpose.msra.mxu0 0
    %1338 = vmatprep.subr.bf16.mxu0 0
    %1339 = vmatpush2.bf16.xpose.msra.mxu0 0
    %1340 = vmatprep.subr.bf16.mxu0 0
    %1341 = vmatpush2.bf16.xpose.msra.mxu0 0
    %1342 = vmatprep.subr.bf16.mxu0 0
    %1343 = vmatpush2.bf16.xpose.msra.mxu0 0
    %1344 = vmatprep.subr.bf16.mxu0 0
    %1345 = vmatpush2.bf16.xpose.msra.mxu0 0
    %1346 = vmatprep.subr.bf16.mxu0 0
    %1347 = vmatpush2.bf16.xpose.msra.mxu0 0
    %1348 = vmatprep.subr.bf16.mxu0 0
    %1349 = vmatpush2.bf16.xpose.msra.mxu0 0
    %1350 = vmatprep.mubr.bf16.mxu0 0
    %1351 = vmatmul.mubr.bf16.gmra.mxu0 %v1313
    %v1352 = vpop.f32.mrf.mxu0
    %v1353 = vadd.f32 0.0, %v1352
    %v1354 = vpop.f32.mrf.mxu0
    %v1355 = vpop.f32.mrf.mxu0
    %v1356 = vadd.f32 0.0, %v1355
    %v1357 = vpop.f32.mrf.mxu0
    %1358 = vdwg.mxu0
    %v1360 = vsel %vm1029, %v988, 0
    %v1363 = vsel %vm1029, %v1004, 0
    %1365 = vmatprep.subr.bf16.mxu0 0
    %1366 = vmatpush1.bf16.xpose.msra.mxu0 0
    %1367 = vmatprep.subr.bf16.mxu0 0
    %1368 = vmatpush1.bf16.xpose.msra.mxu0 0
    %1369 = vmatprep.subr.bf16.mxu0 0
    %1370 = vmatpush1.bf16.xpose.msra.mxu0 0
    %1371 = vmatprep.subr.bf16.mxu0 0
    %1372 = vmatpush1.bf16.xpose.msra.mxu0 0
    %1373 = vmatprep.subr.bf16.mxu0 0
    %1374 = vmatpush1.bf16.xpose.msra.mxu0 0
    %1375 = vmatprep.subr.bf16.mxu0 0
    %1376 = vmatpush1.bf16.xpose.msra.mxu0 0
    %1377 = vmatprep.subr.bf16.mxu0 0
    %1378 = vmatpush1.bf16.xpose.msra.mxu0 0
    %1379 = vmatprep.subr.bf16.mxu0 0
    %1380 = vmatpush1.bf16.xpose.msra.mxu0 %v1363
    %1381 = vmatprep.subr.bf16.mxu0 0
    %1382 = vmatpush2.bf16.xpose.msra.mxu0 0
    %1383 = vmatprep.subr.bf16.mxu0 0
    %1384 = vmatpush2.bf16.xpose.msra.mxu0 0
    %1385 = vmatprep.subr.bf16.mxu0 0
    %1386 = vmatpush2.bf16.xpose.msra.mxu0 0
    %1387 = vmatprep.subr.bf16.mxu0 0
    %1388 = vmatpush2.bf16.xpose.msra.mxu0 0
    %1389 = vmatprep.subr.bf16.mxu0 0
    %1390 = vmatpush2.bf16.xpose.msra.mxu0 0
    %1391 = vmatprep.subr.bf16.mxu0 0
    %1392 = vmatpush2.bf16.xpose.msra.mxu0 0
    %1393 = vmatprep.subr.bf16.mxu0 0
    %1394 = vmatpush2.bf16.xpose.msra.mxu0 0
    %1395 = vmatprep.subr.bf16.mxu0 0
    %1396 = vmatpush2.bf16.xpose.msra.mxu0 0
    %1397 = vmatprep.mubr.bf16.mxu0 0
    %1398 = vmatmul.mubr.bf16.gmra.mxu0 %v1360
    %v1399 = vpop.f32.mrf.mxu0
    %v1400 = vadd.f32 0.0, %v1399
    %v1401 = vpop.f32.mrf.mxu0
    %v1402 = vpop.f32.mrf.mxu0
    %v1403 = vadd.f32 0.0, %v1402
    %v1404 = vpop.f32.mrf.mxu0
    %1405 = vdwg.mxu0
    %v1407 = vsel %vm1029, %v989, 0
    %v1410 = vsel %vm1029, %v1005, 0
    %1412 = vmatprep.subr.bf16.mxu0 0
    %1413 = vmatpush1.bf16.xpose.msra.mxu0 0
    %1414 = vmatprep.subr.bf16.mxu0 0
    %1415 = vmatpush1.bf16.xpose.msra.mxu0 0
    %1416 = vmatprep.subr.bf16.mxu0 0
    %1417 = vmatpush1.bf16.xpose.msra.mxu0 0
    %1418 = vmatprep.subr.bf16.mxu0 0
    %1419 = vmatpush1.bf16.xpose.msra.mxu0 0
    %1420 = vmatprep.subr.bf16.mxu0 0
    %1421 = vmatpush1.bf16.xpose.msra.mxu0 0
    %1422 = vmatprep.subr.bf16.mxu0 0
    %1423 = vmatpush1.bf16.xpose.msra.mxu0 0
    %1424 = vmatprep.subr.bf16.mxu0 0
    %1425 = vmatpush1.bf16.xpose.msra.mxu0 0
    %1426 = vmatprep.subr.bf16.mxu0 0
    %1427 = vmatpush1.bf16.xpose.msra.mxu0 %v1410
    %1428 = vmatprep.subr.bf16.mxu0 0
    %1429 = vmatpush2.bf16.xpose.msra.mxu0 0
    %1430 = vmatprep.subr.bf16.mxu0 0
    %1431 = vmatpush2.bf16.xpose.msra.mxu0 0
    %1432 = vmatprep.subr.bf16.mxu0 0
    %1433 = vmatpush2.bf16.xpose.msra.mxu0 0
    %1434 = vmatprep.subr.bf16.mxu0 0
    %1435 = vmatpush2.bf16.xpose.msra.mxu0 0
    %1436 = vmatprep.subr.bf16.mxu0 0
    %1437 = vmatpush2.bf16.xpose.msra.mxu0 0
    %1438 = vmatprep.subr.bf16.mxu0 0
    %1439 = vmatpush2.bf16.xpose.msra.mxu0 0
    %1440 = vmatprep.subr.bf16.mxu0 0
    %1441 = vmatpush2.bf16.xpose.msra.mxu0 0
    %1442 = vmatprep.subr.bf16.mxu0 0
    %1443 = vmatpush2.bf16.xpose.msra.mxu0 0
    %1444 = vmatprep.mubr.bf16.mxu0 0
    %1445 = vmatmul.mubr.bf16.gmra.mxu0 %v1407
    %v1446 = vpop.f32.mrf.mxu0
    %v1447 = vadd.f32 0.0, %v1446
    %v1448 = vpop.f32.mrf.mxu0
    %v1449 = vpop.f32.mrf.mxu0
    %v1450 = vadd.f32 0.0, %v1449
    %v1451 = vpop.f32.mrf.mxu0
    %1452 = vdwg.mxu0
    %v1454 = vsel %vm1029, %v990, 0
    %v1457 = vsel %vm1029, %v1006, 0
    %1459 = vmatprep.subr.bf16.mxu0 0
    %1460 = vmatpush1.bf16.xpose.msra.mxu0 0
    %1461 = vmatprep.subr.bf16.mxu0 0
    %1462 = vmatpush1.bf16.xpose.msra.mxu0 0
    %1463 = vmatprep.subr.bf16.mxu0 0
    %1464 = vmatpush1.bf16.xpose.msra.mxu0 0
    %1465 = vmatprep.subr.bf16.mxu0 0
    %1466 = vmatpush1.bf16.xpose.msra.mxu0 0
    %1467 = vmatprep.subr.bf16.mxu0 0
    %1468 = vmatpush1.bf16.xpose.msra.mxu0 0
    %1469 = vmatprep.subr.bf16.mxu0 0
    %1470 = vmatpush1.bf16.xpose.msra.mxu0 0
    %1471 = vmatprep.subr.bf16.mxu0 0
    %1472 = vmatpush1.bf16.xpose.msra.mxu0 0
    %1473 = vmatprep.subr.bf16.mxu0 0
    %1474 = vmatpush1.bf16.xpose.msra.mxu0 %v1457
    %1475 = vmatprep.subr.bf16.mxu0 0
    %1476 = vmatpush2.bf16.xpose.msra.mxu0 0
    %1477 = vmatprep.subr.bf16.mxu0 0
    %1478 = vmatpush2.bf16.xpose.msra.mxu0 0
    %1479 = vmatprep.subr.bf16.mxu0 0
    %1480 = vmatpush2.bf16.xpose.msra.mxu0 0
    %1481 = vmatprep.subr.bf16.mxu0 0
    %1482 = vmatpush2.bf16.xpose.msra.mxu0 0
    %1483 = vmatprep.subr.bf16.mxu0 0
    %1484 = vmatpush2.bf16.xpose.msra.mxu0 0
    %1485 = vmatprep.subr.bf16.mxu0 0
    %1486 = vmatpush2.bf16.xpose.msra.mxu0 0
    %1487 = vmatprep.subr.bf16.mxu0 0
    %1488 = vmatpush2.bf16.xpose.msra.mxu0 0
    %1489 = vmatprep.subr.bf16.mxu0 0
    %1490 = vmatpush2.bf16.xpose.msra.mxu0 0
    %1491 = vmatprep.mubr.bf16.mxu0 0
    %1492 = vmatmul.mubr.bf16.gmra.mxu0 %v1454
    %v1493 = vpop.f32.mrf.mxu0
    %v1494 = vadd.f32 0.0, %v1493
    %v1495 = vpop.f32.mrf.mxu0
    %v1496 = vpop.f32.mrf.mxu0
    %v1497 = vadd.f32 0.0, %v1496
    %v1498 = vpop.f32.mrf.mxu0
    %1499 = vdwg.mxu0
    %v1501 = vsel %vm1029, %v991, 0
    %v1504 = vsel %vm1029, %v1007, 0
    %1506 = vmatprep.subr.bf16.mxu0 0
    %1507 = vmatpush1.bf16.xpose.msra.mxu0 0
    %1508 = vmatprep.subr.bf16.mxu0 0
    %1509 = vmatpush1.bf16.xpose.msra.mxu0 0
    %1510 = vmatprep.subr.bf16.mxu0 0
    %1511 = vmatpush1.bf16.xpose.msra.mxu0 0
    %1512 = vmatprep.subr.bf16.mxu0 0
    %1513 = vmatpush1.bf16.xpose.msra.mxu0 0
    %1514 = vmatprep.subr.bf16.mxu0 0
    %1515 = vmatpush1.bf16.xpose.msra.mxu0 0
    %1516 = vmatprep.subr.bf16.mxu0 0
    %1517 = vmatpush1.bf16.xpose.msra.mxu0 0
    %1518 = vmatprep.subr.bf16.mxu0 0
    %1519 = vmatpush1.bf16.xpose.msra.mxu0 0
    %1520 = vmatprep.subr.bf16.mxu0 0
    %1521 = vmatpush1.bf16.xpose.msra.mxu0 %v1504
    %1522 = vmatprep.subr.bf16.mxu0 0
    %1523 = vmatpush2.bf16.xpose.msra.mxu0 0
    %1524 = vmatprep.subr.bf16.mxu0 0
    %1525 = vmatpush2.bf16.xpose.msra.mxu0 0
    %1526 = vmatprep.subr.bf16.mxu0 0
    %1527 = vmatpush2.bf16.xpose.msra.mxu0 0
    %1528 = vmatprep.subr.bf16.mxu0 0
    %1529 = vmatpush2.bf16.xpose.msra.mxu0 0
    %1530 = vmatprep.subr.bf16.mxu0 0
    %1531 = vmatpush2.bf16.xpose.msra.mxu0 0
    %1532 = vmatprep.subr.bf16.mxu0 0
    %1533 = vmatpush2.bf16.xpose.msra.mxu0 0
    %1534 = vmatprep.subr.bf16.mxu0 0
    %1535 = vmatpush2.bf16.xpose.msra.mxu0 0
    %1536 = vmatprep.subr.bf16.mxu0 0
    %1537 = vmatpush2.bf16.xpose.msra.mxu0 0
    %1538 = vmatprep.mubr.bf16.mxu0 0
    %1539 = vmatmul.mubr.bf16.gmra.mxu0 %v1501
    %v1540 = vpop.f32.mrf.mxu0
    %v1541 = vadd.f32 0.0, %v1540
    %v1542 = vpop.f32.mrf.mxu0
    %v1543 = vpop.f32.mrf.mxu0
    %v1544 = vadd.f32 0.0, %v1543
    %v1545 = vpop.f32.mrf.mxu0
    %1546 = vdwg.mxu0
    %v1548 = vsel %vm1029, %v992, 0
    %v1551 = vsel %vm1029, %v1008, 0
    %1553 = vmatprep.subr.bf16.mxu0 0
    %1554 = vmatpush1.bf16.xpose.msra.mxu0 0
    %1555 = vmatprep.subr.bf16.mxu0 0
    %1556 = vmatpush1.bf16.xpose.msra.mxu0 0
    %1557 = vmatprep.subr.bf16.mxu0 0
    %1558 = vmatpush1.bf16.xpose.msra.mxu0 0
    %1559 = vmatprep.subr.bf16.mxu0 0
    %1560 = vmatpush1.bf16.xpose.msra.mxu0 0
    %1561 = vmatprep.subr.bf16.mxu0 0
    %1562 = vmatpush1.bf16.xpose.msra.mxu0 0
    %1563 = vmatprep.subr.bf16.mxu0 0
    %1564 = vmatpush1.bf16.xpose.msra.mxu0 0
    %1565 = vmatprep.subr.bf16.mxu0 0
    %1566 = vmatpush1.bf16.xpose.msra.mxu0 0
    %1567 = vmatprep.subr.bf16.mxu0 0
    %1568 = vmatpush1.bf16.xpose.msra.mxu0 %v1551
    %1569 = vmatprep.subr.bf16.mxu0 0
    %1570 = vmatpush2.bf16.xpose.msra.mxu0 0
    %1571 = vmatprep.subr.bf16.mxu0 0
    %1572 = vmatpush2.bf16.xpose.msra.mxu0 0
    %1573 = vmatprep.subr.bf16.mxu0 0
    %1574 = vmatpush2.bf16.xpose.msra.mxu0 0
    %1575 = vmatprep.subr.bf16.mxu0 0
    %1576 = vmatpush2.bf16.xpose.msra.mxu0 0
    %1577 = vmatprep.subr.bf16.mxu0 0
    %1578 = vmatpush2.bf16.xpose.msra.mxu0 0
    %1579 = vmatprep.subr.bf16.mxu0 0
    %1580 = vmatpush2.bf16.xpose.msra.mxu0 0
    %1581 = vmatprep.subr.bf16.mxu0 0
    %1582 = vmatpush2.bf16.xpose.msra.mxu0 0
    %1583 = vmatprep.subr.bf16.mxu0 0
    %1584 = vmatpush2.bf16.xpose.msra.mxu0 0
    %1585 = vmatprep.mubr.bf16.mxu0 0
    %1586 = vmatmul.mubr.bf16.gmra.mxu0 %v1548
    %v1587 = vpop.f32.mrf.mxu0
    %v1588 = vadd.f32 0.0, %v1587
    %v1589 = vpop.f32.mrf.mxu0
    %v1590 = vpop.f32.mrf.mxu0
    %v1591 = vadd.f32 0.0, %v1590
    %v1592 = vpop.f32.mrf.mxu0
    %1593 = vdwg.mxu0
    %v1595 = vsel %vm1029, %v993, 0
    %v1598 = vsel %vm1029, %v1009, 0
    %1600 = vmatprep.subr.bf16.mxu0 0
    %1601 = vmatpush1.bf16.xpose.msra.mxu0 0
    %1602 = vmatprep.subr.bf16.mxu0 0
    %1603 = vmatpush1.bf16.xpose.msra.mxu0 0
    %1604 = vmatprep.subr.bf16.mxu0 0
    %1605 = vmatpush1.bf16.xpose.msra.mxu0 0
    %1606 = vmatprep.subr.bf16.mxu0 0
    %1607 = vmatpush1.bf16.xpose.msra.mxu0 0
    %1608 = vmatprep.subr.bf16.mxu0 0
    %1609 = vmatpush1.bf16.xpose.msra.mxu0 0
    %1610 = vmatprep.subr.bf16.mxu0 0
    %1611 = vmatpush1.bf16.xpose.msra.mxu0 0
    %1612 = vmatprep.subr.bf16.mxu0 0
    %1613 = vmatpush1.bf16.xpose.msra.mxu0 0
    %1614 = vmatprep.subr.bf16.mxu0 0
    %1615 = vmatpush1.bf16.xpose.msra.mxu0 %v1598
    %1616 = vmatprep.subr.bf16.mxu0 0
    %1617 = vmatpush2.bf16.xpose.msra.mxu0 0
    %1618 = vmatprep.subr.bf16.mxu0 0
    %1619 = vmatpush2.bf16.xpose.msra.mxu0 0
    %1620 = vmatprep.subr.bf16.mxu0 0
    %1621 = vmatpush2.bf16.xpose.msra.mxu0 0
    %1622 = vmatprep.subr.bf16.mxu0 0
    %1623 = vmatpush2.bf16.xpose.msra.mxu0 0
    %1624 = vmatprep.subr.bf16.mxu0 0
    %1625 = vmatpush2.bf16.xpose.msra.mxu0 0
    %1626 = vmatprep.subr.bf16.mxu0 0
    %1627 = vmatpush2.bf16.xpose.msra.mxu0 0
    %1628 = vmatprep.subr.bf16.mxu0 0
    %1629 = vmatpush2.bf16.xpose.msra.mxu0 0
    %1630 = vmatprep.subr.bf16.mxu0 0
    %1631 = vmatpush2.bf16.xpose.msra.mxu0 0
    %1632 = vmatprep.mubr.bf16.mxu0 0
    %1633 = vmatmul.mubr.bf16.gmra.mxu0 %v1595
    %v1634 = vpop.f32.mrf.mxu0
    %v1635 = vadd.f32 0.0, %v1634
    %v1636 = vpop.f32.mrf.mxu0
    %v1637 = vpop.f32.mrf.mxu0
    %v1638 = vadd.f32 0.0, %v1637
    %v1639 = vpop.f32.mrf.mxu0
    %1640 = vdwg.mxu0
    %v1642 = vsel %vm1029, %v994, 0
    %v1645 = vsel %vm1029, %v1010, 0
    %1647 = vmatprep.subr.bf16.mxu0 0
    %1648 = vmatpush1.bf16.xpose.msra.mxu0 0
    %1649 = vmatprep.subr.bf16.mxu0 0
    %1650 = vmatpush1.bf16.xpose.msra.mxu0 0
    %1651 = vmatprep.subr.bf16.mxu0 0
    %1652 = vmatpush1.bf16.xpose.msra.mxu0 0
    %1653 = vmatprep.subr.bf16.mxu0 0
    %1654 = vmatpush1.bf16.xpose.msra.mxu0 0
    %1655 = vmatprep.subr.bf16.mxu0 0
    %1656 = vmatpush1.bf16.xpose.msra.mxu0 0
    %1657 = vmatprep.subr.bf16.mxu0 0
    %1658 = vmatpush1.bf16.xpose.msra.mxu0 0
    %1659 = vmatprep.subr.bf16.mxu0 0
    %1660 = vmatpush1.bf16.xpose.msra.mxu0 0
    %1661 = vmatprep.subr.bf16.mxu0 0
    %1662 = vmatpush1.bf16.xpose.msra.mxu0 %v1645
    %1663 = vmatprep.subr.bf16.mxu0 0
    %1664 = vmatpush2.bf16.xpose.msra.mxu0 0
    %1665 = vmatprep.subr.bf16.mxu0 0
    %1666 = vmatpush2.bf16.xpose.msra.mxu0 0
    %1667 = vmatprep.subr.bf16.mxu0 0
    %1668 = vmatpush2.bf16.xpose.msra.mxu0 0
    %1669 = vmatprep.subr.bf16.mxu0 0
    %1670 = vmatpush2.bf16.xpose.msra.mxu0 0
    %1671 = vmatprep.subr.bf16.mxu0 0
    %1672 = vmatpush2.bf16.xpose.msra.mxu0 0
    %1673 = vmatprep.subr.bf16.mxu0 0
    %1674 = vmatpush2.bf16.xpose.msra.mxu0 0
    %1675 = vmatprep.subr.bf16.mxu0 0
    %1676 = vmatpush2.bf16.xpose.msra.mxu0 0
    %1677 = vmatprep.subr.bf16.mxu0 0
    %1678 = vmatpush2.bf16.xpose.msra.mxu0 0
    %1679 = vmatprep.mubr.bf16.mxu0 0
    %1680 = vmatmul.mubr.bf16.gmra.mxu0 %v1642
    %v1681 = vpop.f32.mrf.mxu0
    %v1682 = vadd.f32 0.0, %v1681
    %v1683 = vpop.f32.mrf.mxu0
    %v1684 = vpop.f32.mrf.mxu0
    %v1685 = vadd.f32 0.0, %v1684
    %v1686 = vpop.f32.mrf.mxu0
    %1687 = vdwg.mxu0
    %v1689 = vsel %vm1029, %v995, 0
    %v1692 = vsel %vm1029, %v1011, 0
    %1694 = vmatprep.subr.bf16.mxu0 0
    %1695 = vmatpush1.bf16.xpose.msra.mxu0 0
    %1696 = vmatprep.subr.bf16.mxu0 0
    %1697 = vmatpush1.bf16.xpose.msra.mxu0 0
    %1698 = vmatprep.subr.bf16.mxu0 0
    %1699 = vmatpush1.bf16.xpose.msra.mxu0 0
    %1700 = vmatprep.subr.bf16.mxu0 0
    %1701 = vmatpush1.bf16.xpose.msra.mxu0 0
    %1702 = vmatprep.subr.bf16.mxu0 0
    %1703 = vmatpush1.bf16.xpose.msra.mxu0 0
    %1704 = vmatprep.subr.bf16.mxu0 0
    %1705 = vmatpush1.bf16.xpose.msra.mxu0 0
    %1706 = vmatprep.subr.bf16.mxu0 0
    %1707 = vmatpush1.bf16.xpose.msra.mxu0 0
    %1708 = vmatprep.subr.bf16.mxu0 0
    %1709 = vmatpush1.bf16.xpose.msra.mxu0 %v1692
    %1710 = vmatprep.subr.bf16.mxu0 0
    %1711 = vmatpush2.bf16.xpose.msra.mxu0 0
    %1712 = vmatprep.subr.bf16.mxu0 0
    %1713 = vmatpush2.bf16.xpose.msra.mxu0 0
    %1714 = vmatprep.subr.bf16.mxu0 0
    %1715 = vmatpush2.bf16.xpose.msra.mxu0 0
    %1716 = vmatprep.subr.bf16.mxu0 0
    %1717 = vmatpush2.bf16.xpose.msra.mxu0 0
    %1718 = vmatprep.subr.bf16.mxu0 0
    %1719 = vmatpush2.bf16.xpose.msra.mxu0 0
    %1720 = vmatprep.subr.bf16.mxu0 0
    %1721 = vmatpush2.bf16.xpose.msra.mxu0 0
    %1722 = vmatprep.subr.bf16.mxu0 0
    %1723 = vmatpush2.bf16.xpose.msra.mxu0 0
    %1724 = vmatprep.subr.bf16.mxu0 0
    %1725 = vmatpush2.bf16.xpose.msra.mxu0 0
    %1726 = vmatprep.mubr.bf16.mxu0 0
    %1727 = vmatmul.mubr.bf16.gmra.mxu0 %v1689
    %v1728 = vpop.f32.mrf.mxu0
    %v1729 = vadd.f32 0.0, %v1728
    %v1730 = vpop.f32.mrf.mxu0
    %v1731 = vpop.f32.mrf.mxu0
    %v1732 = vadd.f32 0.0, %v1731
    %v1733 = vpop.f32.mrf.mxu0
    %1734 = vdwg.mxu0
    %v1736 = vsel %vm1029, %v996, 0
    %v1739 = vsel %vm1029, %v1012, 0
    %1741 = vmatprep.subr.bf16.mxu0 0
    %1742 = vmatpush1.bf16.xpose.msra.mxu0 0
    %1743 = vmatprep.subr.bf16.mxu0 0
    %1744 = vmatpush1.bf16.xpose.msra.mxu0 0
    %1745 = vmatprep.subr.bf16.mxu0 0
    %1746 = vmatpush1.bf16.xpose.msra.mxu0 0
    %1747 = vmatprep.subr.bf16.mxu0 0
    %1748 = vmatpush1.bf16.xpose.msra.mxu0 0
    %1749 = vmatprep.subr.bf16.mxu0 0
    %1750 = vmatpush1.bf16.xpose.msra.mxu0 0
    %1751 = vmatprep.subr.bf16.mxu0 0
    %1752 = vmatpush1.bf16.xpose.msra.mxu0 0
    %1753 = vmatprep.subr.bf16.mxu0 0
    %1754 = vmatpush1.bf16.xpose.msra.mxu0 0
    %1755 = vmatprep.subr.bf16.mxu0 0
    %1756 = vmatpush1.bf16.xpose.msra.mxu0 %v1739
    %1757 = vmatprep.subr.bf16.mxu0 0
    %1758 = vmatpush2.bf16.xpose.msra.mxu0 0
    %1759 = vmatprep.subr.bf16.mxu0 0
    %1760 = vmatpush2.bf16.xpose.msra.mxu0 0
    %1761 = vmatprep.subr.bf16.mxu0 0
    %1762 = vmatpush2.bf16.xpose.msra.mxu0 0
    %1763 = vmatprep.subr.bf16.mxu0 0
    %1764 = vmatpush2.bf16.xpose.msra.mxu0 0
    %1765 = vmatprep.subr.bf16.mxu0 0
    %1766 = vmatpush2.bf16.xpose.msra.mxu0 0
    %1767 = vmatprep.subr.bf16.mxu0 0
    %1768 = vmatpush2.bf16.xpose.msra.mxu0 0
    %1769 = vmatprep.subr.bf16.mxu0 0
    %1770 = vmatpush2.bf16.xpose.msra.mxu0 0
    %1771 = vmatprep.subr.bf16.mxu0 0
    %1772 = vmatpush2.bf16.xpose.msra.mxu0 0
    %1773 = vmatprep.mubr.bf16.mxu0 0
    %1774 = vmatmul.mubr.bf16.gmra.mxu0 %v1736
    %v1775 = vpop.f32.mrf.mxu0
    %v1776 = vadd.f32 0.0, %v1775
    %v1777 = vpop.f32.mrf.mxu0
    %v1778 = vpop.f32.mrf.mxu0
    %v1779 = vadd.f32 0.0, %v1778
    %v1780 = vpop.f32.mrf.mxu0
    %1781 = vdwg.mxu0
    %vm1782 = vcmask 130048
    %v1783 = vsel %vm1782, %v1071, -inf
    %1784 = vmax.xlane.f32.xlu0 %v1783
    %v1785 = vpop.xlane.xlu0 %1784
    %v1786 = vsel %vm1782, %v1074, -inf
    %1787 = vmax.xlane.f32.xlu0 %v1786
    %v1788 = vpop.xlane.xlu0 %1787
    %v1789 = vsel %vm1782, %v1118, -inf
    %1790 = vmax.xlane.f32.xlu0 %v1789
    %v1791 = vpop.xlane.xlu0 %1790
    %v1792 = vsel %vm1782, %v1121, -inf
    %1793 = vmax.xlane.f32.xlu0 %v1792
    %v1794 = vpop.xlane.xlu0 %1793
    %v1795 = vsel %vm1782, %v1165, -inf
    %1796 = vmax.xlane.f32.xlu0 %v1795
    %v1797 = vpop.xlane.xlu0 %1796
    %v1798 = vsel %vm1782, %v1168, -inf
    %1799 = vmax.xlane.f32.xlu0 %v1798
    %v1800 = vpop.xlane.xlu0 %1799
    %v1801 = vsel %vm1782, %v1212, -inf
    %1802 = vmax.xlane.f32.xlu0 %v1801
    %v1803 = vpop.xlane.xlu0 %1802
    %v1804 = vsel %vm1782, %v1215, -inf
    %1805 = vmax.xlane.f32.xlu0 %v1804
    %v1806 = vpop.xlane.xlu0 %1805
    %v1807 = vsel %vm1782, %v1259, -inf
    %1808 = vmax.xlane.f32.xlu0 %v1807
    %v1809 = vpop.xlane.xlu0 %1808
    %v1810 = vsel %vm1782, %v1262, -inf
    %1811 = vmax.xlane.f32.xlu0 %v1810
    %v1812 = vpop.xlane.xlu0 %1811
    %v1813 = vsel %vm1782, %v1306, -inf
    %1814 = vmax.xlane.f32.xlu0 %v1813
    %v1815 = vpop.xlane.xlu0 %1814
    %v1816 = vsel %vm1782, %v1309, -inf
    %1817 = vmax.xlane.f32.xlu0 %v1816
    %v1818 = vpop.xlane.xlu0 %1817
    %v1819 = vsel %vm1782, %v1353, -inf
    %1820 = vmax.xlane.f32.xlu0 %v1819
    %v1821 = vpop.xlane.xlu0 %1820
    %v1822 = vsel %vm1782, %v1356, -inf
    %1823 = vmax.xlane.f32.xlu0 %v1822
    %v1824 = vpop.xlane.xlu0 %1823
    %v1825 = vsel %vm1782, %v1400, -inf
    %1826 = vmax.xlane.f32.xlu0 %v1825
    %v1827 = vpop.xlane.xlu0 %1826
    %v1828 = vsel %vm1782, %v1403, -inf
    %1829 = vmax.xlane.f32.xlu0 %v1828
    %v1830 = vpop.xlane.xlu0 %1829
    %v1831 = vsel %vm1782, %v1447, -inf
    %1832 = vmax.xlane.f32.xlu0 %v1831
    %v1833 = vpop.xlane.xlu0 %1832
    %v1834 = vsel %vm1782, %v1450, -inf
    %1835 = vmax.xlane.f32.xlu0 %v1834
    %v1836 = vpop.xlane.xlu0 %1835
    %v1837 = vsel %vm1782, %v1494, -inf
    %1838 = vmax.xlane.f32.xlu0 %v1837
    %v1839 = vpop.xlane.xlu0 %1838
    %v1840 = vsel %vm1782, %v1497, -inf
    %1841 = vmax.xlane.f32.xlu0 %v1840
    %v1842 = vpop.xlane.xlu0 %1841
    %v1843 = vsel %vm1782, %v1541, -inf
    %1844 = vmax.xlane.f32.xlu0 %v1843
    %v1845 = vpop.xlane.xlu0 %1844
    %v1846 = vsel %vm1782, %v1544, -inf
    %1847 = vmax.xlane.f32.xlu0 %v1846
    %v1848 = vpop.xlane.xlu0 %1847
    %v1849 = vsel %vm1782, %v1588, -inf
    %1850 = vmax.xlane.f32.xlu0 %v1849
    %v1851 = vpop.xlane.xlu0 %1850
    %v1852 = vsel %vm1782, %v1591, -inf
    %1853 = vmax.xlane.f32.xlu0 %v1852
    %v1854 = vpop.xlane.xlu0 %1853
    %v1855 = vsel %vm1782, %v1635, -inf
    %1856 = vmax.xlane.f32.xlu0 %v1855
    %v1857 = vpop.xlane.xlu0 %1856
    %v1858 = vsel %vm1782, %v1638, -inf
    %1859 = vmax.xlane.f32.xlu0 %v1858
    %v1860 = vpop.xlane.xlu0 %1859
    %v1861 = vsel %vm1782, %v1682, -inf
    %1862 = vmax.xlane.f32.xlu0 %v1861
    %v1863 = vpop.xlane.xlu0 %1862
    %v1864 = vsel %vm1782, %v1685, -inf
    %1865 = vmax.xlane.f32.xlu0 %v1864
    %v1866 = vpop.xlane.xlu0 %1865
    %v1867 = vsel %vm1782, %v1729, -inf
    %1868 = vmax.xlane.f32.xlu0 %v1867
    %v1869 = vpop.xlane.xlu0 %1868
    %v1870 = vsel %vm1782, %v1732, -inf
    %1871 = vmax.xlane.f32.xlu0 %v1870
    %v1872 = vpop.xlane.xlu0 %1871
    %v1873 = vsel %vm1782, %v1776, -inf
    %1874 = vmax.xlane.f32.xlu0 %v1873
    %v1875 = vpop.xlane.xlu0 %1874
    %v1876 = vsel %vm1782, %v1779, -inf
    %1877 = vmax.xlane.f32.xlu0 %v1876
    %v1878 = vpop.xlane.xlu0 %1877
    %v1879 = vsub.f32 %v1071, %v1785
    %v1880 = vsub.f32 %v1074, %v1788
    %v1881 = vsub.f32 %v1118, %v1791
    %v1882 = vsub.f32 %v1121, %v1794
    %v1883 = vsub.f32 %v1165, %v1797
    %v1884 = vsub.f32 %v1168, %v1800
    %v1885 = vsub.f32 %v1212, %v1803
    %v1886 = vsub.f32 %v1215, %v1806
    %v1887 = vsub.f32 %v1259, %v1809
    %v1888 = vsub.f32 %v1262, %v1812
    %v1889 = vsub.f32 %v1306, %v1815
    %v1890 = vsub.f32 %v1309, %v1818
    %v1891 = vsub.f32 %v1353, %v1821
    %v1892 = vsub.f32 %v1356, %v1824
    %v1893 = vsub.f32 %v1400, %v1827
    %v1894 = vsub.f32 %v1403, %v1830
    %v1895 = vsub.f32 %v1447, %v1833
    %v1896 = vsub.f32 %v1450, %v1836
    %v1897 = vsub.f32 %v1494, %v1839
    %v1898 = vsub.f32 %v1497, %v1842
    %v1899 = vsub.f32 %v1541, %v1845
    %v1900 = vsub.f32 %v1544, %v1848
    %v1901 = vsub.f32 %v1588, %v1851
    %v1902 = vsub.f32 %v1591, %v1854
    %v1903 = vsub.f32 %v1635, %v1857
    %v1904 = vsub.f32 %v1638, %v1860
    %v1905 = vsub.f32 %v1682, %v1863
    %v1906 = vsub.f32 %v1685, %v1866
    %v1907 = vsub.f32 %v1729, %v1869
    %v1908 = vsub.f32 %v1732, %v1872
    %v1909 = vsub.f32 %v1776, %v1875
    %v1910 = vsub.f32 %v1779, %v1878
    %v1911 = vmul.f32 %v1879, 1.442695
    %v1912 = vpow.pop %v1911
    %v1913 = vmul.f32 %v1880, 1.442695
    %v1914 = vpow.pop %v1913
    %v1915 = vmul.f32 %v1881, 1.442695
    %v1916 = vpow.pop %v1915
    %v1917 = vmul.f32 %v1882, 1.442695
    %v1918 = vpow.pop %v1917
    %v1919 = vmul.f32 %v1883, 1.442695
    %v1920 = vpow.pop %v1919
    %v1921 = vmul.f32 %v1884, 1.442695
    %v1922 = vpow.pop %v1921
    %v1923 = vmul.f32 %v1885, 1.442695
    %v1924 = vpow.pop %v1923
    %v1925 = vmul.f32 %v1886, 1.442695
    %v1926 = vpow.pop %v1925
    %v1927 = vmul.f32 %v1887, 1.442695
    %v1928 = vpow.pop %v1927
    %v1929 = vmul.f32 %v1888, 1.442695
    %v1930 = vpow.pop %v1929
    %v1931 = vmul.f32 %v1889, 1.442695
    %v1932 = vpow.pop %v1931
    %v1933 = vmul.f32 %v1890, 1.442695
    %v1934 = vpow.pop %v1933
    %v1935 = vmul.f32 %v1891, 1.442695
    %v1936 = vpow.pop %v1935
    %v1937 = vmul.f32 %v1892, 1.442695
    %v1938 = vpow.pop %v1937
    %v1939 = vmul.f32 %v1893, 1.442695
    %v1940 = vpow.pop %v1939
    %v1941 = vmul.f32 %v1894, 1.442695
    %v1942 = vpow.pop %v1941
    %v1943 = vmul.f32 %v1895, 1.442695
    %v1944 = vpow.pop %v1943
    %v1945 = vmul.f32 %v1896, 1.442695
    %v1946 = vpow.pop %v1945
    %v1947 = vmul.f32 %v1897, 1.442695
    %v1948 = vpow.pop %v1947
    %v1949 = vmul.f32 %v1898, 1.442695
    %v1950 = vpow.pop %v1949
    %v1951 = vmul.f32 %v1899, 1.442695
    %v1952 = vpow.pop %v1951
    %v1953 = vmul.f32 %v1900, 1.442695
    %v1954 = vpow.pop %v1953
    %v1955 = vmul.f32 %v1901, 1.442695
    %v1956 = vpow.pop %v1955
    %v1957 = vmul.f32 %v1902, 1.442695
    %v1958 = vpow.pop %v1957
    %v1959 = vmul.f32 %v1903, 1.442695
    %v1960 = vpow.pop %v1959
    %v1961 = vmul.f32 %v1904, 1.442695
    %v1962 = vpow.pop %v1961
    %v1963 = vmul.f32 %v1905, 1.442695
    %v1964 = vpow.pop %v1963
    %v1965 = vmul.f32 %v1906, 1.442695
    %v1966 = vpow.pop %v1965
    %v1967 = vmul.f32 %v1907, 1.442695
    %v1968 = vpow.pop %v1967
    %v1969 = vmul.f32 %v1908, 1.442695
    %v1970 = vpow.pop %v1969
    %v1971 = vmul.f32 %v1909, 1.442695
    %v1972 = vpow.pop %v1971
    %v1973 = vmul.f32 %v1910, 1.442695
    %v1974 = vpow.pop %v1973
    %v1975 = vsel %vm1782, %v1912, 0.0
    %1976 = vadd.xlane.f32.xlu0 %v1975
    %v1977 = vpop.xlane.xlu0 %1976
    %v1978 = vsel %vm1782, %v1914, 0.0
    %1979 = vadd.xlane.f32.xlu0 %v1978
    %v1980 = vpop.xlane.xlu0 %1979
    %v1981 = vsel %vm1782, %v1916, 0.0
    %1982 = vadd.xlane.f32.xlu0 %v1981
    %v1983 = vpop.xlane.xlu0 %1982
    %v1984 = vsel %vm1782, %v1918, 0.0
    %1985 = vadd.xlane.f32.xlu0 %v1984
    %v1986 = vpop.xlane.xlu0 %1985
    %v1987 = vsel %vm1782, %v1920, 0.0
    %1988 = vadd.xlane.f32.xlu0 %v1987
    %v1989 = vpop.xlane.xlu0 %1988
    %v1990 = vsel %vm1782, %v1922, 0.0
    %1991 = vadd.xlane.f32.xlu0 %v1990
    %v1992 = vpop.xlane.xlu0 %1991
    %v1993 = vsel %vm1782, %v1924, 0.0
    %1994 = vadd.xlane.f32.xlu0 %v1993
    %v1995 = vpop.xlane.xlu0 %1994
    %v1996 = vsel %vm1782, %v1926, 0.0
    %1997 = vadd.xlane.f32.xlu0 %v1996
    %v1998 = vpop.xlane.xlu0 %1997
    %v1999 = vsel %vm1782, %v1928, 0.0
    %2000 = vadd.xlane.f32.xlu0 %v1999
    %v2001 = vpop.xlane.xlu0 %2000
    %v2002 = vsel %vm1782, %v1930, 0.0
    %2003 = vadd.xlane.f32.xlu0 %v2002
    %v2004 = vpop.xlane.xlu0 %2003
    %v2005 = vsel %vm1782, %v1932, 0.0
    %2006 = vadd.xlane.f32.xlu0 %v2005
    %v2007 = vpop.xlane.xlu0 %2006
    %v2008 = vsel %vm1782, %v1934, 0.0
    %2009 = vadd.xlane.f32.xlu0 %v2008
    %v2010 = vpop.xlane.xlu0 %2009
    %v2011 = vsel %vm1782, %v1936, 0.0
    %2012 = vadd.xlane.f32.xlu0 %v2011
    %v2013 = vpop.xlane.xlu0 %2012
    %v2014 = vsel %vm1782, %v1938, 0.0
    %2015 = vadd.xlane.f32.xlu0 %v2014
    %v2016 = vpop.xlane.xlu0 %2015
    %v2017 = vsel %vm1782, %v1940, 0.0
    %2018 = vadd.xlane.f32.xlu0 %v2017
    %v2019 = vpop.xlane.xlu0 %2018
    %v2020 = vsel %vm1782, %v1942, 0.0
    %2021 = vadd.xlane.f32.xlu0 %v2020
    %v2022 = vpop.xlane.xlu0 %2021
    %v2023 = vsel %vm1782, %v1944, 0.0
    %2024 = vadd.xlane.f32.xlu0 %v2023
    %v2025 = vpop.xlane.xlu0 %2024
    %v2026 = vsel %vm1782, %v1946, 0.0
    %2027 = vadd.xlane.f32.xlu0 %v2026
    %v2028 = vpop.xlane.xlu0 %2027
    %v2029 = vsel %vm1782, %v1948, 0.0
    %2030 = vadd.xlane.f32.xlu0 %v2029
    %v2031 = vpop.xlane.xlu0 %2030
    %v2032 = vsel %vm1782, %v1950, 0.0
    %2033 = vadd.xlane.f32.xlu0 %v2032
    %v2034 = vpop.xlane.xlu0 %2033
    %v2035 = vsel %vm1782, %v1952, 0.0
    %2036 = vadd.xlane.f32.xlu0 %v2035
    %v2037 = vpop.xlane.xlu0 %2036
    %v2038 = vsel %vm1782, %v1954, 0.0
    %2039 = vadd.xlane.f32.xlu0 %v2038
    %v2040 = vpop.xlane.xlu0 %2039
    %v2041 = vsel %vm1782, %v1956, 0.0
    %2042 = vadd.xlane.f32.xlu0 %v2041
    %v2043 = vpop.xlane.xlu0 %2042
    %v2044 = vsel %vm1782, %v1958, 0.0
    %2045 = vadd.xlane.f32.xlu0 %v2044
    %v2046 = vpop.xlane.xlu0 %2045
    %v2047 = vsel %vm1782, %v1960, 0.0
    %2048 = vadd.xlane.f32.xlu0 %v2047
    %v2049 = vpop.xlane.xlu0 %2048
    %v2050 = vsel %vm1782, %v1962, 0.0
    %2051 = vadd.xlane.f32.xlu0 %v2050
    %v2052 = vpop.xlane.xlu0 %2051
    %v2053 = vsel %vm1782, %v1964, 0.0
    %2054 = vadd.xlane.f32.xlu0 %v2053
    %v2055 = vpop.xlane.xlu0 %2054
    %v2056 = vsel %vm1782, %v1966, 0.0
    %2057 = vadd.xlane.f32.xlu0 %v2056
    %v2058 = vpop.xlane.xlu0 %2057
    %v2059 = vsel %vm1782, %v1968, 0.0
    %2060 = vadd.xlane.f32.xlu0 %v2059
    %v2061 = vpop.xlane.xlu0 %2060
    %v2062 = vsel %vm1782, %v1970, 0.0
    %2063 = vadd.xlane.f32.xlu0 %v2062
    %v2064 = vpop.xlane.xlu0 %2063
    %v2065 = vsel %vm1782, %v1972, 0.0
    %2066 = vadd.xlane.f32.xlu0 %v2065
    %v2067 = vpop.xlane.xlu0 %2066
    %v2068 = vsel %vm1782, %v1974, 0.0
    %2069 = vadd.xlane.f32.xlu0 %v2068
    %v2070 = vpop.xlane.xlu0 %2069
    %v2071 = vrcp.pop %v1977
    %v2072 = vrcp.pop %v1980
    %v2073 = vrcp.pop %v1983
    %v2074 = vrcp.pop %v1986
    %v2075 = vrcp.pop %v1989
    %v2076 = vrcp.pop %v1992
    %v2077 = vrcp.pop %v1995
    %v2078 = vrcp.pop %v1998
    %v2079 = vrcp.pop %v2001
    %v2080 = vrcp.pop %v2004
    %v2081 = vrcp.pop %v2007
    %v2082 = vrcp.pop %v2010
    %v2083 = vrcp.pop %v2013
    %v2084 = vrcp.pop %v2016
    %v2085 = vrcp.pop %v2019
    %v2086 = vrcp.pop %v2022
    %v2087 = vrcp.pop %v2025
    %v2088 = vrcp.pop %v2028
    %v2089 = vrcp.pop %v2031
    %v2090 = vrcp.pop %v2034
    %v2091 = vrcp.pop %v2037
    %v2092 = vrcp.pop %v2040
    %v2093 = vrcp.pop %v2043
    %v2094 = vrcp.pop %v2046
    %v2095 = vrcp.pop %v2049
    %v2096 = vrcp.pop %v2052
    %v2097 = vrcp.pop %v2055
    %v2098 = vrcp.pop %v2058
    %v2099 = vrcp.pop %v2061
    %v2100 = vrcp.pop %v2064
    %v2101 = vrcp.pop %v2067
    %v2102 = vrcp.pop %v2070
    %v2103 = vmul.f32 %v1912, %v2071
    %v2104 = vmul.f32 %v1914, %v2072
    %v2105 = vmul.f32 %v1916, %v2073
    %v2106 = vmul.f32 %v1918, %v2074
    %v2107 = vmul.f32 %v1920, %v2075
    %v2108 = vmul.f32 %v1922, %v2076
    %v2109 = vmul.f32 %v1924, %v2077
    %v2110 = vmul.f32 %v1926, %v2078
    %v2111 = vmul.f32 %v1928, %v2079
    %v2112 = vmul.f32 %v1930, %v2080
    %v2113 = vmul.f32 %v1932, %v2081
    %v2114 = vmul.f32 %v1934, %v2082
    %v2115 = vmul.f32 %v1936, %v2083
    %v2116 = vmul.f32 %v1938, %v2084
    %v2117 = vmul.f32 %v1940, %v2085
    %v2118 = vmul.f32 %v1942, %v2086
    %v2119 = vmul.f32 %v1944, %v2087
    %v2120 = vmul.f32 %v1946, %v2088
    %v2121 = vmul.f32 %v1948, %v2089
    %v2122 = vmul.f32 %v1950, %v2090
    %v2123 = vmul.f32 %v1952, %v2091
    %v2124 = vmul.f32 %v1954, %v2092
    %v2125 = vmul.f32 %v1956, %v2093
    %v2126 = vmul.f32 %v1958, %v2094
    %v2127 = vmul.f32 %v1960, %v2095
    %v2128 = vmul.f32 %v1962, %v2096
    %v2129 = vmul.f32 %v1964, %v2097
    %v2130 = vmul.f32 %v1966, %v2098
    %v2131 = vmul.f32 %v1968, %v2099
    %v2132 = vmul.f32 %v1970, %v2100
    %v2133 = vmul.f32 %v1972, %v2101
    %v2134 = vmul.f32 %v1974, %v2102
    %v2135 = vpack.c.bf16 %v2104, %v2103
    %v2136 = vpack.c.bf16 %v2106, %v2105
    %v2137 = vpack.c.bf16 %v2108, %v2107
    %v2138 = vpack.c.bf16 %v2110, %v2109
    %v2139 = vpack.c.bf16 %v2112, %v2111
    %v2140 = vpack.c.bf16 %v2114, %v2113
    %v2141 = vpack.c.bf16 %v2116, %v2115
    %v2142 = vpack.c.bf16 %v2118, %v2117
    %v2143 = vpack.c.bf16 %v2120, %v2119
    %v2144 = vpack.c.bf16 %v2122, %v2121
    %v2145 = vpack.c.bf16 %v2124, %v2123
    %v2146 = vpack.c.bf16 %v2126, %v2125
    %v2147 = vpack.c.bf16 %v2128, %v2127
    %v2148 = vpack.c.bf16 %v2130, %v2129
    %v2149 = vpack.c.bf16 %v2132, %v2131
    %v2150 = vpack.c.bf16 %v2134, %v2133
    %v2152 = vsel %vm1782, %v2135, 0
    %2154 = vmatprep.subr.bf16.mxu0 0
    %2155 = vmatpush1.bf16.msra.mxu0 0
    %2156 = vmatprep.subr.bf16.mxu0 0
    %2157 = vmatpush1.bf16.msra.mxu0 0
    %2158 = vmatprep.subr.bf16.mxu0 0
    %2159 = vmatpush1.bf16.msra.mxu0 0
    %2160 = vmatprep.subr.bf16.mxu0 0
    %2161 = vmatpush1.bf16.msra.mxu0 0
    %2162 = vmatprep.subr.bf16.mxu0 0
    %2163 = vmatpush1.bf16.msra.mxu0 0
    %2164 = vmatprep.subr.bf16.mxu0 0
    %2165 = vmatpush1.bf16.msra.mxu0 0
    %2166 = vmatprep.subr.bf16.mxu0 0
    %2167 = vmatpush1.bf16.msra.mxu0 0
    %2168 = vmatprep.subr.bf16.mxu0 0
    %2169 = vmatpush1.bf16.msra.mxu0 %v1013
    %2170 = vmatprep.subr.bf16.mxu0 0
    %2171 = vmatpush2.bf16.msra.mxu0 0
    %2172 = vmatprep.subr.bf16.mxu0 0
    %2173 = vmatpush2.bf16.msra.mxu0 0
    %2174 = vmatprep.subr.bf16.mxu0 0
    %2175 = vmatpush2.bf16.msra.mxu0 0
    %2176 = vmatprep.subr.bf16.mxu0 0
    %2177 = vmatpush2.bf16.msra.mxu0 0
    %2178 = vmatprep.subr.bf16.mxu0 0
    %2179 = vmatpush2.bf16.msra.mxu0 0
    %2180 = vmatprep.subr.bf16.mxu0 0
    %2181 = vmatpush2.bf16.msra.mxu0 0
    %2182 = vmatprep.subr.bf16.mxu0 0
    %2183 = vmatpush2.bf16.msra.mxu0 0
    %2184 = vmatprep.subr.bf16.mxu0 0
    %2185 = vmatpush2.bf16.msra.mxu0 0
    %2186 = vmatprep.mubr.bf16.mxu0 0
    %2187 = vmatmul.mubr.bf16.gmra.mxu0 %v2152
    %v2188 = vpop.f32.mrf.mxu0
    %v2189 = vadd.f32 0.0, %v2188
    %v2190 = vpop.f32.mrf.mxu0
    %v2191 = vpop.f32.mrf.mxu0
    %v2192 = vadd.f32 0.0, %v2191
    %v2193 = vpop.f32.mrf.mxu0
    %2194 = vdwg.mxu0
    %v2196 = vsel %vm1782, %v2136, 0
    %2198 = vmatprep.subr.bf16.mxu0 0
    %2199 = vmatpush1.bf16.msra.mxu0 0
    %2200 = vmatprep.subr.bf16.mxu0 0
    %2201 = vmatpush1.bf16.msra.mxu0 0
    %2202 = vmatprep.subr.bf16.mxu0 0
    %2203 = vmatpush1.bf16.msra.mxu0 0
    %2204 = vmatprep.subr.bf16.mxu0 0
    %2205 = vmatpush1.bf16.msra.mxu0 0
    %2206 = vmatprep.subr.bf16.mxu0 0
    %2207 = vmatpush1.bf16.msra.mxu0 0
    %2208 = vmatprep.subr.bf16.mxu0 0
    %2209 = vmatpush1.bf16.msra.mxu0 0
    %2210 = vmatprep.subr.bf16.mxu0 0
    %2211 = vmatpush1.bf16.msra.mxu0 0
    %2212 = vmatprep.subr.bf16.mxu0 0
    %2213 = vmatpush1.bf16.msra.mxu0 %v1014
    %2214 = vmatprep.subr.bf16.mxu0 0
    %2215 = vmatpush2.bf16.msra.mxu0 0
    %2216 = vmatprep.subr.bf16.mxu0 0
    %2217 = vmatpush2.bf16.msra.mxu0 0
    %2218 = vmatprep.subr.bf16.mxu0 0
    %2219 = vmatpush2.bf16.msra.mxu0 0
    %2220 = vmatprep.subr.bf16.mxu0 0
    %2221 = vmatpush2.bf16.msra.mxu0 0
    %2222 = vmatprep.subr.bf16.mxu0 0
    %2223 = vmatpush2.bf16.msra.mxu0 0
    %2224 = vmatprep.subr.bf16.mxu0 0
    %2225 = vmatpush2.bf16.msra.mxu0 0
    %2226 = vmatprep.subr.bf16.mxu0 0
    %2227 = vmatpush2.bf16.msra.mxu0 0
    %2228 = vmatprep.subr.bf16.mxu0 0
    %2229 = vmatpush2.bf16.msra.mxu0 0
    %2230 = vmatprep.mubr.bf16.mxu0 0
    %2231 = vmatmul.mubr.bf16.gmra.mxu0 %v2196
    %v2232 = vpop.f32.mrf.mxu0
    %v2233 = vadd.f32 0.0, %v2232
    %v2234 = vpop.f32.mrf.mxu0
    %v2235 = vpop.f32.mrf.mxu0
    %v2236 = vadd.f32 0.0, %v2235
    %v2237 = vpop.f32.mrf.mxu0
    %2238 = vdwg.mxu0
    %v2240 = vsel %vm1782, %v2137, 0
    %2242 = vmatprep.subr.bf16.mxu0 0
    %2243 = vmatpush1.bf16.msra.mxu0 0
    %2244 = vmatprep.subr.bf16.mxu0 0
    %2245 = vmatpush1.bf16.msra.mxu0 0
    %2246 = vmatprep.subr.bf16.mxu0 0
    %2247 = vmatpush1.bf16.msra.mxu0 0
    %2248 = vmatprep.subr.bf16.mxu0 0
    %2249 = vmatpush1.bf16.msra.mxu0 0
    %2250 = vmatprep.subr.bf16.mxu0 0
    %2251 = vmatpush1.bf16.msra.mxu0 0
    %2252 = vmatprep.subr.bf16.mxu0 0
    %2253 = vmatpush1.bf16.msra.mxu0 0
    %2254 = vmatprep.subr.bf16.mxu0 0
    %2255 = vmatpush1.bf16.msra.mxu0 0
    %2256 = vmatprep.subr.bf16.mxu0 0
    %2257 = vmatpush1.bf16.msra.mxu0 %v1015
    %2258 = vmatprep.subr.bf16.mxu0 0
    %2259 = vmatpush2.bf16.msra.mxu0 0
    %2260 = vmatprep.subr.bf16.mxu0 0
    %2261 = vmatpush2.bf16.msra.mxu0 0
    %2262 = vmatprep.subr.bf16.mxu0 0
    %2263 = vmatpush2.bf16.msra.mxu0 0
    %2264 = vmatprep.subr.bf16.mxu0 0
    %2265 = vmatpush2.bf16.msra.mxu0 0
    %2266 = vmatprep.subr.bf16.mxu0 0
    %2267 = vmatpush2.bf16.msra.mxu0 0
    %2268 = vmatprep.subr.bf16.mxu0 0
    %2269 = vmatpush2.bf16.msra.mxu0 0
    %2270 = vmatprep.subr.bf16.mxu0 0
    %2271 = vmatpush2.bf16.msra.mxu0 0
    %2272 = vmatprep.subr.bf16.mxu0 0
    %2273 = vmatpush2.bf16.msra.mxu0 0
    %2274 = vmatprep.mubr.bf16.mxu0 0
    %2275 = vmatmul.mubr.bf16.gmra.mxu0 %v2240
    %v2276 = vpop.f32.mrf.mxu0
    %v2277 = vadd.f32 0.0, %v2276
    %v2278 = vpop.f32.mrf.mxu0
    %v2279 = vpop.f32.mrf.mxu0
    %v2280 = vadd.f32 0.0, %v2279
    %v2281 = vpop.f32.mrf.mxu0
    %2282 = vdwg.mxu0
    %v2284 = vsel %vm1782, %v2138, 0
    %2286 = vmatprep.subr.bf16.mxu0 0
    %2287 = vmatpush1.bf16.msra.mxu0 0
    %2288 = vmatprep.subr.bf16.mxu0 0
    %2289 = vmatpush1.bf16.msra.mxu0 0
    %2290 = vmatprep.subr.bf16.mxu0 0
    %2291 = vmatpush1.bf16.msra.mxu0 0
    %2292 = vmatprep.subr.bf16.mxu0 0
    %2293 = vmatpush1.bf16.msra.mxu0 0
    %2294 = vmatprep.subr.bf16.mxu0 0
    %2295 = vmatpush1.bf16.msra.mxu0 0
    %2296 = vmatprep.subr.bf16.mxu0 0
    %2297 = vmatpush1.bf16.msra.mxu0 0
    %2298 = vmatprep.subr.bf16.mxu0 0
    %2299 = vmatpush1.bf16.msra.mxu0 0
    %2300 = vmatprep.subr.bf16.mxu0 0
    %2301 = vmatpush1.bf16.msra.mxu0 %v1016
    %2302 = vmatprep.subr.bf16.mxu0 0
    %2303 = vmatpush2.bf16.msra.mxu0 0
    %2304 = vmatprep.subr.bf16.mxu0 0
    %2305 = vmatpush2.bf16.msra.mxu0 0
    %2306 = vmatprep.subr.bf16.mxu0 0
    %2307 = vmatpush2.bf16.msra.mxu0 0
    %2308 = vmatprep.subr.bf16.mxu0 0
    %2309 = vmatpush2.bf16.msra.mxu0 0
    %2310 = vmatprep.subr.bf16.mxu0 0
    %2311 = vmatpush2.bf16.msra.mxu0 0
    %2312 = vmatprep.subr.bf16.mxu0 0
    %2313 = vmatpush2.bf16.msra.mxu0 0
    %2314 = vmatprep.subr.bf16.mxu0 0
    %2315 = vmatpush2.bf16.msra.mxu0 0
    %2316 = vmatprep.subr.bf16.mxu0 0
    %2317 = vmatpush2.bf16.msra.mxu0 0
    %2318 = vmatprep.mubr.bf16.mxu0 0
    %2319 = vmatmul.mubr.bf16.gmra.mxu0 %v2284
    %v2320 = vpop.f32.mrf.mxu0
    %v2321 = vadd.f32 0.0, %v2320
    %v2322 = vpop.f32.mrf.mxu0
    %v2323 = vpop.f32.mrf.mxu0
    %v2324 = vadd.f32 0.0, %v2323
    %v2325 = vpop.f32.mrf.mxu0
    %2326 = vdwg.mxu0
    %v2328 = vsel %vm1782, %v2139, 0
    %2330 = vmatprep.subr.bf16.mxu0 0
    %2331 = vmatpush1.bf16.msra.mxu0 0
    %2332 = vmatprep.subr.bf16.mxu0 0
    %2333 = vmatpush1.bf16.msra.mxu0 0
    %2334 = vmatprep.subr.bf16.mxu0 0
    %2335 = vmatpush1.bf16.msra.mxu0 0
    %2336 = vmatprep.subr.bf16.mxu0 0
    %2337 = vmatpush1.bf16.msra.mxu0 0
    %2338 = vmatprep.subr.bf16.mxu0 0
    %2339 = vmatpush1.bf16.msra.mxu0 0
    %2340 = vmatprep.subr.bf16.mxu0 0
    %2341 = vmatpush1.bf16.msra.mxu0 0
    %2342 = vmatprep.subr.bf16.mxu0 0
    %2343 = vmatpush1.bf16.msra.mxu0 0
    %2344 = vmatprep.subr.bf16.mxu0 0
    %2345 = vmatpush1.bf16.msra.mxu0 %v1017
    %2346 = vmatprep.subr.bf16.mxu0 0
    %2347 = vmatpush2.bf16.msra.mxu0 0
    %2348 = vmatprep.subr.bf16.mxu0 0
    %2349 = vmatpush2.bf16.msra.mxu0 0
    %2350 = vmatprep.subr.bf16.mxu0 0
    %2351 = vmatpush2.bf16.msra.mxu0 0
    %2352 = vmatprep.subr.bf16.mxu0 0
    %2353 = vmatpush2.bf16.msra.mxu0 0
    %2354 = vmatprep.subr.bf16.mxu0 0
    %2355 = vmatpush2.bf16.msra.mxu0 0
    %2356 = vmatprep.subr.bf16.mxu0 0
    %2357 = vmatpush2.bf16.msra.mxu0 0
    %2358 = vmatprep.subr.bf16.mxu0 0
    %2359 = vmatpush2.bf16.msra.mxu0 0
    %2360 = vmatprep.subr.bf16.mxu0 0
    %2361 = vmatpush2.bf16.msra.mxu0 0
    %2362 = vmatprep.mubr.bf16.mxu0 0
    %2363 = vmatmul.mubr.bf16.gmra.mxu0 %v2328
    %v2364 = vpop.f32.mrf.mxu0
    %v2365 = vadd.f32 0.0, %v2364
    %v2366 = vpop.f32.mrf.mxu0
    %v2367 = vpop.f32.mrf.mxu0
    %v2368 = vadd.f32 0.0, %v2367
    %v2369 = vpop.f32.mrf.mxu0
    %2370 = vdwg.mxu0
    %v2372 = vsel %vm1782, %v2140, 0
    %2374 = vmatprep.subr.bf16.mxu0 0
    %2375 = vmatpush1.bf16.msra.mxu0 0
    %2376 = vmatprep.subr.bf16.mxu0 0
    %2377 = vmatpush1.bf16.msra.mxu0 0
    %2378 = vmatprep.subr.bf16.mxu0 0
    %2379 = vmatpush1.bf16.msra.mxu0 0
    %2380 = vmatprep.subr.bf16.mxu0 0
    %2381 = vmatpush1.bf16.msra.mxu0 0
    %2382 = vmatprep.subr.bf16.mxu0 0
    %2383 = vmatpush1.bf16.msra.mxu0 0
    %2384 = vmatprep.subr.bf16.mxu0 0
    %2385 = vmatpush1.bf16.msra.mxu0 0
    %2386 = vmatprep.subr.bf16.mxu0 0
    %2387 = vmatpush1.bf16.msra.mxu0 0
    %2388 = vmatprep.subr.bf16.mxu0 0
    %2389 = vmatpush1.bf16.msra.mxu0 %v1018
    %2390 = vmatprep.subr.bf16.mxu0 0
    %2391 = vmatpush2.bf16.msra.mxu0 0
    %2392 = vmatprep.subr.bf16.mxu0 0
    %2393 = vmatpush2.bf16.msra.mxu0 0
    %2394 = vmatprep.subr.bf16.mxu0 0
    %2395 = vmatpush2.bf16.msra.mxu0 0
    %2396 = vmatprep.subr.bf16.mxu0 0
    %2397 = vmatpush2.bf16.msra.mxu0 0
    %2398 = vmatprep.subr.bf16.mxu0 0
    %2399 = vmatpush2.bf16.msra.mxu0 0
    %2400 = vmatprep.subr.bf16.mxu0 0
    %2401 = vmatpush2.bf16.msra.mxu0 0
    %2402 = vmatprep.subr.bf16.mxu0 0
    %2403 = vmatpush2.bf16.msra.mxu0 0
    %2404 = vmatprep.subr.bf16.mxu0 0
    %2405 = vmatpush2.bf16.msra.mxu0 0
    %2406 = vmatprep.mubr.bf16.mxu0 0
    %2407 = vmatmul.mubr.bf16.gmra.mxu0 %v2372
    %v2408 = vpop.f32.mrf.mxu0
    %v2409 = vadd.f32 0.0, %v2408
    %v2410 = vpop.f32.mrf.mxu0
    %v2411 = vpop.f32.mrf.mxu0
    %v2412 = vadd.f32 0.0, %v2411
    %v2413 = vpop.f32.mrf.mxu0
    %2414 = vdwg.mxu0
    %v2416 = vsel %vm1782, %v2141, 0
    %2418 = vmatprep.subr.bf16.mxu0 0
    %2419 = vmatpush1.bf16.msra.mxu0 0
    %2420 = vmatprep.subr.bf16.mxu0 0
    %2421 = vmatpush1.bf16.msra.mxu0 0
    %2422 = vmatprep.subr.bf16.mxu0 0
    %2423 = vmatpush1.bf16.msra.mxu0 0
    %2424 = vmatprep.subr.bf16.mxu0 0
    %2425 = vmatpush1.bf16.msra.mxu0 0
    %2426 = vmatprep.subr.bf16.mxu0 0
    %2427 = vmatpush1.bf16.msra.mxu0 0
    %2428 = vmatprep.subr.bf16.mxu0 0
    %2429 = vmatpush1.bf16.msra.mxu0 0
    %2430 = vmatprep.subr.bf16.mxu0 0
    %2431 = vmatpush1.bf16.msra.mxu0 0
    %2432 = vmatprep.subr.bf16.mxu0 0
    %2433 = vmatpush1.bf16.msra.mxu0 %v1019
    %2434 = vmatprep.subr.bf16.mxu0 0
    %2435 = vmatpush2.bf16.msra.mxu0 0
    %2436 = vmatprep.subr.bf16.mxu0 0
    %2437 = vmatpush2.bf16.msra.mxu0 0
    %2438 = vmatprep.subr.bf16.mxu0 0
    %2439 = vmatpush2.bf16.msra.mxu0 0
    %2440 = vmatprep.subr.bf16.mxu0 0
    %2441 = vmatpush2.bf16.msra.mxu0 0
    %2442 = vmatprep.subr.bf16.mxu0 0
    %2443 = vmatpush2.bf16.msra.mxu0 0
    %2444 = vmatprep.subr.bf16.mxu0 0
    %2445 = vmatpush2.bf16.msra.mxu0 0
    %2446 = vmatprep.subr.bf16.mxu0 0
    %2447 = vmatpush2.bf16.msra.mxu0 0
    %2448 = vmatprep.subr.bf16.mxu0 0
    %2449 = vmatpush2.bf16.msra.mxu0 0
    %2450 = vmatprep.mubr.bf16.mxu0 0
    %2451 = vmatmul.mubr.bf16.gmra.mxu0 %v2416
    %v2452 = vpop.f32.mrf.mxu0
    %v2453 = vadd.f32 0.0, %v2452
    %v2454 = vpop.f32.mrf.mxu0
    %v2455 = vpop.f32.mrf.mxu0
    %v2456 = vadd.f32 0.0, %v2455
    %v2457 = vpop.f32.mrf.mxu0
    %2458 = vdwg.mxu0
    %v2460 = vsel %vm1782, %v2142, 0
    %2462 = vmatprep.subr.bf16.mxu0 0
    %2463 = vmatpush1.bf16.msra.mxu0 0
    %2464 = vmatprep.subr.bf16.mxu0 0
    %2465 = vmatpush1.bf16.msra.mxu0 0
    %2466 = vmatprep.subr.bf16.mxu0 0
    %2467 = vmatpush1.bf16.msra.mxu0 0
    %2468 = vmatprep.subr.bf16.mxu0 0
    %2469 = vmatpush1.bf16.msra.mxu0 0
    %2470 = vmatprep.subr.bf16.mxu0 0
    %2471 = vmatpush1.bf16.msra.mxu0 0
    %2472 = vmatprep.subr.bf16.mxu0 0
    %2473 = vmatpush1.bf16.msra.mxu0 0
    %2474 = vmatprep.subr.bf16.mxu0 0
    %2475 = vmatpush1.bf16.msra.mxu0 0
    %2476 = vmatprep.subr.bf16.mxu0 0
    %2477 = vmatpush1.bf16.msra.mxu0 %v1020
    %2478 = vmatprep.subr.bf16.mxu0 0
    %2479 = vmatpush2.bf16.msra.mxu0 0
    %2480 = vmatprep.subr.bf16.mxu0 0
    %2481 = vmatpush2.bf16.msra.mxu0 0
    %2482 = vmatprep.subr.bf16.mxu0 0
    %2483 = vmatpush2.bf16.msra.mxu0 0
    %2484 = vmatprep.subr.bf16.mxu0 0
    %2485 = vmatpush2.bf16.msra.mxu0 0
    %2486 = vmatprep.subr.bf16.mxu0 0
    %2487 = vmatpush2.bf16.msra.mxu0 0
    %2488 = vmatprep.subr.bf16.mxu0 0
    %2489 = vmatpush2.bf16.msra.mxu0 0
    %2490 = vmatprep.subr.bf16.mxu0 0
    %2491 = vmatpush2.bf16.msra.mxu0 0
    %2492 = vmatprep.subr.bf16.mxu0 0
    %2493 = vmatpush2.bf16.msra.mxu0 0
    %2494 = vmatprep.mubr.bf16.mxu0 0
    %2495 = vmatmul.mubr.bf16.gmra.mxu0 %v2460
    %v2496 = vpop.f32.mrf.mxu0
    %v2497 = vadd.f32 0.0, %v2496
    %v2498 = vpop.f32.mrf.mxu0
    %v2499 = vpop.f32.mrf.mxu0
    %v2500 = vadd.f32 0.0, %v2499
    %v2501 = vpop.f32.mrf.mxu0
    %2502 = vdwg.mxu0
    %v2504 = vsel %vm1782, %v2143, 0
    %2506 = vmatprep.subr.bf16.mxu0 0
    %2507 = vmatpush1.bf16.msra.mxu0 0
    %2508 = vmatprep.subr.bf16.mxu0 0
    %2509 = vmatpush1.bf16.msra.mxu0 0
    %2510 = vmatprep.subr.bf16.mxu0 0
    %2511 = vmatpush1.bf16.msra.mxu0 0
    %2512 = vmatprep.subr.bf16.mxu0 0
    %2513 = vmatpush1.bf16.msra.mxu0 0
    %2514 = vmatprep.subr.bf16.mxu0 0
    %2515 = vmatpush1.bf16.msra.mxu0 0
    %2516 = vmatprep.subr.bf16.mxu0 0
    %2517 = vmatpush1.bf16.msra.mxu0 0
    %2518 = vmatprep.subr.bf16.mxu0 0
    %2519 = vmatpush1.bf16.msra.mxu0 0
    %2520 = vmatprep.subr.bf16.mxu0 0
    %2521 = vmatpush1.bf16.msra.mxu0 %v1021
    %2522 = vmatprep.subr.bf16.mxu0 0
    %2523 = vmatpush2.bf16.msra.mxu0 0
    %2524 = vmatprep.subr.bf16.mxu0 0
    %2525 = vmatpush2.bf16.msra.mxu0 0
    %2526 = vmatprep.subr.bf16.mxu0 0
    %2527 = vmatpush2.bf16.msra.mxu0 0
    %2528 = vmatprep.subr.bf16.mxu0 0
    %2529 = vmatpush2.bf16.msra.mxu0 0
    %2530 = vmatprep.subr.bf16.mxu0 0
    %2531 = vmatpush2.bf16.msra.mxu0 0
    %2532 = vmatprep.subr.bf16.mxu0 0
    %2533 = vmatpush2.bf16.msra.mxu0 0
    %2534 = vmatprep.subr.bf16.mxu0 0
    %2535 = vmatpush2.bf16.msra.mxu0 0
    %2536 = vmatprep.subr.bf16.mxu0 0
    %2537 = vmatpush2.bf16.msra.mxu0 0
    %2538 = vmatprep.mubr.bf16.mxu0 0
    %2539 = vmatmul.mubr.bf16.gmra.mxu0 %v2504
    %v2540 = vpop.f32.mrf.mxu0
    %v2541 = vadd.f32 0.0, %v2540
    %v2542 = vpop.f32.mrf.mxu0
    %v2543 = vpop.f32.mrf.mxu0
    %v2544 = vadd.f32 0.0, %v2543
    %v2545 = vpop.f32.mrf.mxu0
    %2546 = vdwg.mxu0
    %v2548 = vsel %vm1782, %v2144, 0
    %2550 = vmatprep.subr.bf16.mxu0 0
    %2551 = vmatpush1.bf16.msra.mxu0 0
    %2552 = vmatprep.subr.bf16.mxu0 0
    %2553 = vmatpush1.bf16.msra.mxu0 0
    %2554 = vmatprep.subr.bf16.mxu0 0
    %2555 = vmatpush1.bf16.msra.mxu0 0
    %2556 = vmatprep.subr.bf16.mxu0 0
    %2557 = vmatpush1.bf16.msra.mxu0 0
    %2558 = vmatprep.subr.bf16.mxu0 0
    %2559 = vmatpush1.bf16.msra.mxu0 0
    %2560 = vmatprep.subr.bf16.mxu0 0
    %2561 = vmatpush1.bf16.msra.mxu0 0
    %2562 = vmatprep.subr.bf16.mxu0 0
    %2563 = vmatpush1.bf16.msra.mxu0 0
    %2564 = vmatprep.subr.bf16.mxu0 0
    %2565 = vmatpush1.bf16.msra.mxu0 %v1022
    %2566 = vmatprep.subr.bf16.mxu0 0
    %2567 = vmatpush2.bf16.msra.mxu0 0
    %2568 = vmatprep.subr.bf16.mxu0 0
    %2569 = vmatpush2.bf16.msra.mxu0 0
    %2570 = vmatprep.subr.bf16.mxu0 0
    %2571 = vmatpush2.bf16.msra.mxu0 0
    %2572 = vmatprep.subr.bf16.mxu0 0
    %2573 = vmatpush2.bf16.msra.mxu0 0
    %2574 = vmatprep.subr.bf16.mxu0 0
    %2575 = vmatpush2.bf16.msra.mxu0 0
    %2576 = vmatprep.subr.bf16.mxu0 0
    %2577 = vmatpush2.bf16.msra.mxu0 0
    %2578 = vmatprep.subr.bf16.mxu0 0
    %2579 = vmatpush2.bf16.msra.mxu0 0
    %2580 = vmatprep.subr.bf16.mxu0 0
    %2581 = vmatpush2.bf16.msra.mxu0 0
    %2582 = vmatprep.mubr.bf16.mxu0 0
    %2583 = vmatmul.mubr.bf16.gmra.mxu0 %v2548
    %v2584 = vpop.f32.mrf.mxu0
    %v2585 = vadd.f32 0.0, %v2584
    %v2586 = vpop.f32.mrf.mxu0
    %v2587 = vpop.f32.mrf.mxu0
    %v2588 = vadd.f32 0.0, %v2587
    %v2589 = vpop.f32.mrf.mxu0
    %2590 = vdwg.mxu0
    %v2592 = vsel %vm1782, %v2145, 0
    %2594 = vmatprep.subr.bf16.mxu0 0
    %2595 = vmatpush1.bf16.msra.mxu0 0
    %2596 = vmatprep.subr.bf16.mxu0 0
    %2597 = vmatpush1.bf16.msra.mxu0 0
    %2598 = vmatprep.subr.bf16.mxu0 0
    %2599 = vmatpush1.bf16.msra.mxu0 0
    %2600 = vmatprep.subr.bf16.mxu0 0
    %2601 = vmatpush1.bf16.msra.mxu0 0
    %2602 = vmatprep.subr.bf16.mxu0 0
    %2603 = vmatpush1.bf16.msra.mxu0 0
    %2604 = vmatprep.subr.bf16.mxu0 0
    %2605 = vmatpush1.bf16.msra.mxu0 0
    %2606 = vmatprep.subr.bf16.mxu0 0
    %2607 = vmatpush1.bf16.msra.mxu0 0
    %2608 = vmatprep.subr.bf16.mxu0 0
    %2609 = vmatpush1.bf16.msra.mxu0 %v1023
    %2610 = vmatprep.subr.bf16.mxu0 0
    %2611 = vmatpush2.bf16.msra.mxu0 0
    %2612 = vmatprep.subr.bf16.mxu0 0
    %2613 = vmatpush2.bf16.msra.mxu0 0
    %2614 = vmatprep.subr.bf16.mxu0 0
    %2615 = vmatpush2.bf16.msra.mxu0 0
    %2616 = vmatprep.subr.bf16.mxu0 0
    %2617 = vmatpush2.bf16.msra.mxu0 0
    %2618 = vmatprep.subr.bf16.mxu0 0
    %2619 = vmatpush2.bf16.msra.mxu0 0
    %2620 = vmatprep.subr.bf16.mxu0 0
    %2621 = vmatpush2.bf16.msra.mxu0 0
    %2622 = vmatprep.subr.bf16.mxu0 0
    %2623 = vmatpush2.bf16.msra.mxu0 0
    %2624 = vmatprep.subr.bf16.mxu0 0
    %2625 = vmatpush2.bf16.msra.mxu0 0
    %2626 = vmatprep.mubr.bf16.mxu0 0
    %2627 = vmatmul.mubr.bf16.gmra.mxu0 %v2592
    %v2628 = vpop.f32.mrf.mxu0
    %v2629 = vadd.f32 0.0, %v2628
    %v2630 = vpop.f32.mrf.mxu0
    %v2631 = vpop.f32.mrf.mxu0
    %v2632 = vadd.f32 0.0, %v2631
    %v2633 = vpop.f32.mrf.mxu0
    %2634 = vdwg.mxu0
    %v2636 = vsel %vm1782, %v2146, 0
    %2638 = vmatprep.subr.bf16.mxu0 0
    %2639 = vmatpush1.bf16.msra.mxu0 0
    %2640 = vmatprep.subr.bf16.mxu0 0
    %2641 = vmatpush1.bf16.msra.mxu0 0
    %2642 = vmatprep.subr.bf16.mxu0 0
    %2643 = vmatpush1.bf16.msra.mxu0 0
    %2644 = vmatprep.subr.bf16.mxu0 0
    %2645 = vmatpush1.bf16.msra.mxu0 0
    %2646 = vmatprep.subr.bf16.mxu0 0
    %2647 = vmatpush1.bf16.msra.mxu0 0
    %2648 = vmatprep.subr.bf16.mxu0 0
    %2649 = vmatpush1.bf16.msra.mxu0 0
    %2650 = vmatprep.subr.bf16.mxu0 0
    %2651 = vmatpush1.bf16.msra.mxu0 0
    %2652 = vmatprep.subr.bf16.mxu0 0
    %2653 = vmatpush1.bf16.msra.mxu0 %v1024
    %2654 = vmatprep.subr.bf16.mxu0 0
    %2655 = vmatpush2.bf16.msra.mxu0 0
    %2656 = vmatprep.subr.bf16.mxu0 0
    %2657 = vmatpush2.bf16.msra.mxu0 0
    %2658 = vmatprep.subr.bf16.mxu0 0
    %2659 = vmatpush2.bf16.msra.mxu0 0
    %2660 = vmatprep.subr.bf16.mxu0 0
    %2661 = vmatpush2.bf16.msra.mxu0 0
    %2662 = vmatprep.subr.bf16.mxu0 0
    %2663 = vmatpush2.bf16.msra.mxu0 0
    %2664 = vmatprep.subr.bf16.mxu0 0
    %2665 = vmatpush2.bf16.msra.mxu0 0
    %2666 = vmatprep.subr.bf16.mxu0 0
    %2667 = vmatpush2.bf16.msra.mxu0 0
    %2668 = vmatprep.subr.bf16.mxu0 0
    %2669 = vmatpush2.bf16.msra.mxu0 0
    %2670 = vmatprep.mubr.bf16.mxu0 0
    %2671 = vmatmul.mubr.bf16.gmra.mxu0 %v2636
    %v2672 = vpop.f32.mrf.mxu0
    %v2673 = vadd.f32 0.0, %v2672
    %v2674 = vpop.f32.mrf.mxu0
    %v2675 = vpop.f32.mrf.mxu0
    %v2676 = vadd.f32 0.0, %v2675
    %v2677 = vpop.f32.mrf.mxu0
    %2678 = vdwg.mxu0
    %v2680 = vsel %vm1782, %v2147, 0
    %2682 = vmatprep.subr.bf16.mxu0 0
    %2683 = vmatpush1.bf16.msra.mxu0 0
    %2684 = vmatprep.subr.bf16.mxu0 0
    %2685 = vmatpush1.bf16.msra.mxu0 0
    %2686 = vmatprep.subr.bf16.mxu0 0
    %2687 = vmatpush1.bf16.msra.mxu0 0
    %2688 = vmatprep.subr.bf16.mxu0 0
    %2689 = vmatpush1.bf16.msra.mxu0 0
    %2690 = vmatprep.subr.bf16.mxu0 0
    %2691 = vmatpush1.bf16.msra.mxu0 0
    %2692 = vmatprep.subr.bf16.mxu0 0
    %2693 = vmatpush1.bf16.msra.mxu0 0
    %2694 = vmatprep.subr.bf16.mxu0 0
    %2695 = vmatpush1.bf16.msra.mxu0 0
    %2696 = vmatprep.subr.bf16.mxu0 0
    %2697 = vmatpush1.bf16.msra.mxu0 %v1025
    %2698 = vmatprep.subr.bf16.mxu0 0
    %2699 = vmatpush2.bf16.msra.mxu0 0
    %2700 = vmatprep.subr.bf16.mxu0 0
    %2701 = vmatpush2.bf16.msra.mxu0 0
    %2702 = vmatprep.subr.bf16.mxu0 0
    %2703 = vmatpush2.bf16.msra.mxu0 0
    %2704 = vmatprep.subr.bf16.mxu0 0
    %2705 = vmatpush2.bf16.msra.mxu0 0
    %2706 = vmatprep.subr.bf16.mxu0 0
    %2707 = vmatpush2.bf16.msra.mxu0 0
    %2708 = vmatprep.subr.bf16.mxu0 0
    %2709 = vmatpush2.bf16.msra.mxu0 0
    %2710 = vmatprep.subr.bf16.mxu0 0
    %2711 = vmatpush2.bf16.msra.mxu0 0
    %2712 = vmatprep.subr.bf16.mxu0 0
    %2713 = vmatpush2.bf16.msra.mxu0 0
    %2714 = vmatprep.mubr.bf16.mxu0 0
    %2715 = vmatmul.mubr.bf16.gmra.mxu0 %v2680
    %v2716 = vpop.f32.mrf.mxu0
    %v2717 = vadd.f32 0.0, %v2716
    %v2718 = vpop.f32.mrf.mxu0
    %v2719 = vpop.f32.mrf.mxu0
    %v2720 = vadd.f32 0.0, %v2719
    %v2721 = vpop.f32.mrf.mxu0
    %2722 = vdwg.mxu0
    %v2724 = vsel %vm1782, %v2148, 0
    %2726 = vmatprep.subr.bf16.mxu0 0
    %2727 = vmatpush1.bf16.msra.mxu0 0
    %2728 = vmatprep.subr.bf16.mxu0 0
    %2729 = vmatpush1.bf16.msra.mxu0 0
    %2730 = vmatprep.subr.bf16.mxu0 0
    %2731 = vmatpush1.bf16.msra.mxu0 0
    %2732 = vmatprep.subr.bf16.mxu0 0
    %2733 = vmatpush1.bf16.msra.mxu0 0
    %2734 = vmatprep.subr.bf16.mxu0 0
    %2735 = vmatpush1.bf16.msra.mxu0 0
    %2736 = vmatprep.subr.bf16.mxu0 0
    %2737 = vmatpush1.bf16.msra.mxu0 0
    %2738 = vmatprep.subr.bf16.mxu0 0
    %2739 = vmatpush1.bf16.msra.mxu0 0
    %2740 = vmatprep.subr.bf16.mxu0 0
    %2741 = vmatpush1.bf16.msra.mxu0 %v1026
    %2742 = vmatprep.subr.bf16.mxu0 0
    %2743 = vmatpush2.bf16.msra.mxu0 0
    %2744 = vmatprep.subr.bf16.mxu0 0
    %2745 = vmatpush2.bf16.msra.mxu0 0
    %2746 = vmatprep.subr.bf16.mxu0 0
    %2747 = vmatpush2.bf16.msra.mxu0 0
    %2748 = vmatprep.subr.bf16.mxu0 0
    %2749 = vmatpush2.bf16.msra.mxu0 0
    %2750 = vmatprep.subr.bf16.mxu0 0
    %2751 = vmatpush2.bf16.msra.mxu0 0
    %2752 = vmatprep.subr.bf16.mxu0 0
    %2753 = vmatpush2.bf16.msra.mxu0 0
    %2754 = vmatprep.subr.bf16.mxu0 0
    %2755 = vmatpush2.bf16.msra.mxu0 0
    %2756 = vmatprep.subr.bf16.mxu0 0
    %2757 = vmatpush2.bf16.msra.mxu0 0
    %2758 = vmatprep.mubr.bf16.mxu0 0
    %2759 = vmatmul.mubr.bf16.gmra.mxu0 %v2724
    %v2760 = vpop.f32.mrf.mxu0
    %v2761 = vadd.f32 0.0, %v2760
    %v2762 = vpop.f32.mrf.mxu0
    %v2763 = vpop.f32.mrf.mxu0
    %v2764 = vadd.f32 0.0, %v2763
    %v2765 = vpop.f32.mrf.mxu0
    %2766 = vdwg.mxu0
    %v2768 = vsel %vm1782, %v2149, 0
    %2770 = vmatprep.subr.bf16.mxu0 0
    %2771 = vmatpush1.bf16.msra.mxu0 0
    %2772 = vmatprep.subr.bf16.mxu0 0
    %2773 = vmatpush1.bf16.msra.mxu0 0
    %2774 = vmatprep.subr.bf16.mxu0 0
    %2775 = vmatpush1.bf16.msra.mxu0 0
    %2776 = vmatprep.subr.bf16.mxu0 0
    %2777 = vmatpush1.bf16.msra.mxu0 0
    %2778 = vmatprep.subr.bf16.mxu0 0
    %2779 = vmatpush1.bf16.msra.mxu0 0
    %2780 = vmatprep.subr.bf16.mxu0 0
    %2781 = vmatpush1.bf16.msra.mxu0 0
    %2782 = vmatprep.subr.bf16.mxu0 0
    %2783 = vmatpush1.bf16.msra.mxu0 0
    %2784 = vmatprep.subr.bf16.mxu0 0
    %2785 = vmatpush1.bf16.msra.mxu0 %v1027
    %2786 = vmatprep.subr.bf16.mxu0 0
    %2787 = vmatpush2.bf16.msra.mxu0 0
    %2788 = vmatprep.subr.bf16.mxu0 0
    %2789 = vmatpush2.bf16.msra.mxu0 0
    %2790 = vmatprep.subr.bf16.mxu0 0
    %2791 = vmatpush2.bf16.msra.mxu0 0
    %2792 = vmatprep.subr.bf16.mxu0 0
    %2793 = vmatpush2.bf16.msra.mxu0 0
    %2794 = vmatprep.subr.bf16.mxu0 0
    %2795 = vmatpush2.bf16.msra.mxu0 0
    %2796 = vmatprep.subr.bf16.mxu0 0
    %2797 = vmatpush2.bf16.msra.mxu0 0
    %2798 = vmatprep.subr.bf16.mxu0 0
    %2799 = vmatpush2.bf16.msra.mxu0 0
    %2800 = vmatprep.subr.bf16.mxu0 0
    %2801 = vmatpush2.bf16.msra.mxu0 0
    %2802 = vmatprep.mubr.bf16.mxu0 0
    %2803 = vmatmul.mubr.bf16.gmra.mxu0 %v2768
    %v2804 = vpop.f32.mrf.mxu0
    %v2805 = vadd.f32 0.0, %v2804
    %v2806 = vpop.f32.mrf.mxu0
    %v2807 = vpop.f32.mrf.mxu0
    %v2808 = vadd.f32 0.0, %v2807
    %v2809 = vpop.f32.mrf.mxu0
    %2810 = vdwg.mxu0
    %v2812 = vsel %vm1782, %v2150, 0
    %2814 = vmatprep.subr.bf16.mxu0 0
    %2815 = vmatpush1.bf16.msra.mxu0 0
    %2816 = vmatprep.subr.bf16.mxu0 0
    %2817 = vmatpush1.bf16.msra.mxu0 0
    %2818 = vmatprep.subr.bf16.mxu0 0
    %2819 = vmatpush1.bf16.msra.mxu0 0
    %2820 = vmatprep.subr.bf16.mxu0 0
    %2821 = vmatpush1.bf16.msra.mxu0 0
    %2822 = vmatprep.subr.bf16.mxu0 0
    %2823 = vmatpush1.bf16.msra.mxu0 0
    %2824 = vmatprep.subr.bf16.mxu0 0
    %2825 = vmatpush1.bf16.msra.mxu0 0
    %2826 = vmatprep.subr.bf16.mxu0 0
    %2827 = vmatpush1.bf16.msra.mxu0 0
    %2828 = vmatprep.subr.bf16.mxu0 0
    %2829 = vmatpush1.bf16.msra.mxu0 %v1028
    %2830 = vmatprep.subr.bf16.mxu0 0
    %2831 = vmatpush2.bf16.msra.mxu0 0
    %2832 = vmatprep.subr.bf16.mxu0 0
    %2833 = vmatpush2.bf16.msra.mxu0 0
    %2834 = vmatprep.subr.bf16.mxu0 0
    %2835 = vmatpush2.bf16.msra.mxu0 0
    %2836 = vmatprep.subr.bf16.mxu0 0
    %2837 = vmatpush2.bf16.msra.mxu0 0
    %2838 = vmatprep.subr.bf16.mxu0 0
    %2839 = vmatpush2.bf16.msra.mxu0 0
    %2840 = vmatprep.subr.bf16.mxu0 0
    %2841 = vmatpush2.bf16.msra.mxu0 0
    %2842 = vmatprep.subr.bf16.mxu0 0
    %2843 = vmatpush2.bf16.msra.mxu0 0
    %2844 = vmatprep.subr.bf16.mxu0 0
    %2845 = vmatpush2.bf16.msra.mxu0 0
    %2846 = vmatprep.mubr.bf16.mxu0 0
    %2847 = vmatmul.mubr.bf16.gmra.mxu0 %v2812
    %v2848 = vpop.f32.mrf.mxu0
    %v2849 = vadd.f32 0.0, %v2848
    %v2850 = vpop.f32.mrf.mxu0
    %v2851 = vpop.f32.mrf.mxu0
    %v2852 = vadd.f32 0.0, %v2851
    %v2853 = vpop.f32.mrf.mxu0
    %2854 = vdwg.mxu0
    %v2855 = vpack.c.bf16 %v2192, %v2189
    %v2856 = vpack.c.bf16 %v2236, %v2233
    %v2857 = vpack.c.bf16 %v2280, %v2277
    %v2858 = vpack.c.bf16 %v2324, %v2321
    %v2859 = vpack.c.bf16 %v2368, %v2365
    %v2860 = vpack.c.bf16 %v2412, %v2409
    %v2861 = vpack.c.bf16 %v2456, %v2453
    %v2862 = vpack.c.bf16 %v2500, %v2497
    %v2863 = vpack.c.bf16 %v2544, %v2541
    %v2864 = vpack.c.bf16 %v2588, %v2585
    %v2865 = vpack.c.bf16 %v2632, %v2629
    %v2866 = vpack.c.bf16 %v2676, %v2673
    %v2867 = vpack.c.bf16 %v2720, %v2717
    %v2868 = vpack.c.bf16 %v2764, %v2761
    %v2869 = vpack.c.bf16 %v2808, %v2805
    %v2870 = vpack.c.bf16 %v2852, %v2849
    %v2871 = vld [vmem:[#allocation11] sm:$0xf]
    %v2872 = vld [vmem:[#allocation11 + $0x4] sm:$0xf]
    %v2873 = vld [vmem:[#allocation11 + $0x8] sm:$0xf]
    %v2874 = vld [vmem:[#allocation11 + $0xc] sm:$0xf]
    %2876 = vrot.lane.b32.xlu0 %v981, 96
    %v2877 = vpop.permute.xlu0 %2876
    %2879 = vrot.lane.b32.xlu0 %v997, 96
    %v2880 = vpop.permute.xlu0 %2879
    %v2882 = vsel %vm1029, %v2877, 0
    %v2885 = vsel %vm1029, %v2880, 0
    %2887 = vmatprep.subr.bf16.mxu0 0
    %2888 = vmatpush1.bf16.xpose.msra.mxu0 0
    %2889 = vmatprep.subr.bf16.mxu0 0
    %2890 = vmatpush1.bf16.xpose.msra.mxu0 0
    %2891 = vmatprep.subr.bf16.mxu0 0
    %2892 = vmatpush1.bf16.xpose.msra.mxu0 0
    %2893 = vmatprep.subr.bf16.mxu0 0
    %2894 = vmatpush1.bf16.xpose.msra.mxu0 0
    %2895 = vmatprep.subr.bf16.mxu0 0
    %2896 = vmatpush1.bf16.xpose.msra.mxu0 0
    %2897 = vmatprep.subr.bf16.mxu0 0
    %2898 = vmatpush1.bf16.xpose.msra.mxu0 0
    %2899 = vmatprep.subr.bf16.mxu0 0
    %2900 = vmatpush1.bf16.xpose.msra.mxu0 0
    %2901 = vmatprep.subr.bf16.mxu0 0
    %2902 = vmatpush1.bf16.xpose.msra.mxu0 %v2885
    %2903 = vmatprep.subr.bf16.mxu0 0
    %2904 = vmatpush2.bf16.xpose.msra.mxu0 0
    %2905 = vmatprep.subr.bf16.mxu0 0
    %2906 = vmatpush2.bf16.xpose.msra.mxu0 0
    %2907 = vmatprep.subr.bf16.mxu0 0
    %2908 = vmatpush2.bf16.xpose.msra.mxu0 0
    %2909 = vmatprep.subr.bf16.mxu0 0
    %2910 = vmatpush2.bf16.xpose.msra.mxu0 0
    %2911 = vmatprep.subr.bf16.mxu0 0
    %2912 = vmatpush2.bf16.xpose.msra.mxu0 0
    %2913 = vmatprep.subr.bf16.mxu0 0
    %2914 = vmatpush2.bf16.xpose.msra.mxu0 0
    %2915 = vmatprep.subr.bf16.mxu0 0
    %2916 = vmatpush2.bf16.xpose.msra.mxu0 0
    %2917 = vmatprep.subr.bf16.mxu0 0
    %2918 = vmatpush2.bf16.xpose.msra.mxu0 0
    %2919 = vmatprep.mubr.bf16.mxu0 0
    %2920 = vmatmul.mubr.bf16.gmra.mxu0 %v2882
    %v2921 = vpop.f32.mrf.mxu0
    %v2922 = vadd.f32 0.0, %v2921
    %v2923 = vpop.f32.mrf.mxu0
    %v2924 = vpop.f32.mrf.mxu0
    %v2925 = vadd.f32 0.0, %v2924
    %v2926 = vpop.f32.mrf.mxu0
    %2927 = vdwg.mxu0
    %2929 = vrot.lane.b32.xlu0 %v982, 96
    %v2930 = vpop.permute.xlu0 %2929
    %2932 = vrot.lane.b32.xlu0 %v998, 96
    %v2933 = vpop.permute.xlu0 %2932
    %v2935 = vsel %vm1029, %v2930, 0
    %v2938 = vsel %vm1029, %v2933, 0
    %2940 = vmatprep.subr.bf16.mxu0 0
    %2941 = vmatpush1.bf16.xpose.msra.mxu0 0
    %2942 = vmatprep.subr.bf16.mxu0 0
    %2943 = vmatpush1.bf16.xpose.msra.mxu0 0
    %2944 = vmatprep.subr.bf16.mxu0 0
    %2945 = vmatpush1.bf16.xpose.msra.mxu0 0
    %2946 = vmatprep.subr.bf16.mxu0 0
    %2947 = vmatpush1.bf16.xpose.msra.mxu0 0
    %2948 = vmatprep.subr.bf16.mxu0 0
    %2949 = vmatpush1.bf16.xpose.msra.mxu0 0
    %2950 = vmatprep.subr.bf16.mxu0 0
    %2951 = vmatpush1.bf16.xpose.msra.mxu0 0
    %2952 = vmatprep.subr.bf16.mxu0 0
    %2953 = vmatpush1.bf16.xpose.msra.mxu0 0
    %2954 = vmatprep.subr.bf16.mxu0 0
    %2955 = vmatpush1.bf16.xpose.msra.mxu0 %v2938
    %2956 = vmatprep.subr.bf16.mxu0 0
    %2957 = vmatpush2.bf16.xpose.msra.mxu0 0
    %2958 = vmatprep.subr.bf16.mxu0 0
    %2959 = vmatpush2.bf16.xpose.msra.mxu0 0
    %2960 = vmatprep.subr.bf16.mxu0 0
    %2961 = vmatpush2.bf16.xpose.msra.mxu0 0
    %2962 = vmatprep.subr.bf16.mxu0 0
    %2963 = vmatpush2.bf16.xpose.msra.mxu0 0
    %2964 = vmatprep.subr.bf16.mxu0 0
    %2965 = vmatpush2.bf16.xpose.msra.mxu0 0
    %2966 = vmatprep.subr.bf16.mxu0 0
    %2967 = vmatpush2.bf16.xpose.msra.mxu0 0
    %2968 = vmatprep.subr.bf16.mxu0 0
    %2969 = vmatpush2.bf16.xpose.msra.mxu0 0
    %2970 = vmatprep.subr.bf16.mxu0 0
    %2971 = vmatpush2.bf16.xpose.msra.mxu0 0
    %2972 = vmatprep.mubr.bf16.mxu0 0
    %2973 = vmatmul.mubr.bf16.gmra.mxu0 %v2935
    %v2974 = vpop.f32.mrf.mxu0
    %v2975 = vadd.f32 0.0, %v2974
    %v2976 = vpop.f32.mrf.mxu0
    %v2977 = vpop.f32.mrf.mxu0
    %v2978 = vadd.f32 0.0, %v2977
    %v2979 = vpop.f32.mrf.mxu0
    %2980 = vdwg.mxu0
    %2982 = vrot.lane.b32.xlu0 %v983, 96
    %v2983 = vpop.permute.xlu0 %2982
    %2985 = vrot.lane.b32.xlu0 %v999, 96
    %v2986 = vpop.permute.xlu0 %2985
    %v2988 = vsel %vm1029, %v2983, 0
    %v2991 = vsel %vm1029, %v2986, 0
    %2993 = vmatprep.subr.bf16.mxu0 0
    %2994 = vmatpush1.bf16.xpose.msra.mxu0 0
    %2995 = vmatprep.subr.bf16.mxu0 0
    %2996 = vmatpush1.bf16.xpose.msra.mxu0 0
    %2997 = vmatprep.subr.bf16.mxu0 0
    %2998 = vmatpush1.bf16.xpose.msra.mxu0 0
    %2999 = vmatprep.subr.bf16.mxu0 0
    %3000 = vmatpush1.bf16.xpose.msra.mxu0 0
    %3001 = vmatprep.subr.bf16.mxu0 0
    %3002 = vmatpush1.bf16.xpose.msra.mxu0 0
    %3003 = vmatprep.subr.bf16.mxu0 0
    %3004 = vmatpush1.bf16.xpose.msra.mxu0 0
    %3005 = vmatprep.subr.bf16.mxu0 0
    %3006 = vmatpush1.bf16.xpose.msra.mxu0 0
    %3007 = vmatprep.subr.bf16.mxu0 0
    %3008 = vmatpush1.bf16.xpose.msra.mxu0 %v2991
    %3009 = vmatprep.subr.bf16.mxu0 0
    %3010 = vmatpush2.bf16.xpose.msra.mxu0 0
    %3011 = vmatprep.subr.bf16.mxu0 0
    %3012 = vmatpush2.bf16.xpose.msra.mxu0 0
    %3013 = vmatprep.subr.bf16.mxu0 0
    %3014 = vmatpush2.bf16.xpose.msra.mxu0 0
    %3015 = vmatprep.subr.bf16.mxu0 0
    %3016 = vmatpush2.bf16.xpose.msra.mxu0 0
    %3017 = vmatprep.subr.bf16.mxu0 0
    %3018 = vmatpush2.bf16.xpose.msra.mxu0 0
    %3019 = vmatprep.subr.bf16.mxu0 0
    %3020 = vmatpush2.bf16.xpose.msra.mxu0 0
    %3021 = vmatprep.subr.bf16.mxu0 0
    %3022 = vmatpush2.bf16.xpose.msra.mxu0 0
    %3023 = vmatprep.subr.bf16.mxu0 0
    %3024 = vmatpush2.bf16.xpose.msra.mxu0 0
    %3025 = vmatprep.mubr.bf16.mxu0 0
    %3026 = vmatmul.mubr.bf16.gmra.mxu0 %v2988
    %v3027 = vpop.f32.mrf.mxu0
    %v3028 = vadd.f32 0.0, %v3027
    %v3029 = vpop.f32.mrf.mxu0
    %v3030 = vpop.f32.mrf.mxu0
    %v3031 = vadd.f32 0.0, %v3030
    %v3032 = vpop.f32.mrf.mxu0
    %3033 = vdwg.mxu0
    %3035 = vrot.lane.b32.xlu0 %v984, 96
    %v3036 = vpop.permute.xlu0 %3035
    %3038 = vrot.lane.b32.xlu0 %v1000, 96
    %v3039 = vpop.permute.xlu0 %3038
    %v3041 = vsel %vm1029, %v3036, 0
    %v3044 = vsel %vm1029, %v3039, 0
    %3046 = vmatprep.subr.bf16.mxu0 0
    %3047 = vmatpush1.bf16.xpose.msra.mxu0 0
    %3048 = vmatprep.subr.bf16.mxu0 0
    %3049 = vmatpush1.bf16.xpose.msra.mxu0 0
    %3050 = vmatprep.subr.bf16.mxu0 0
    %3051 = vmatpush1.bf16.xpose.msra.mxu0 0
    %3052 = vmatprep.subr.bf16.mxu0 0
    %3053 = vmatpush1.bf16.xpose.msra.mxu0 0
    %3054 = vmatprep.subr.bf16.mxu0 0
    %3055 = vmatpush1.bf16.xpose.msra.mxu0 0
    %3056 = vmatprep.subr.bf16.mxu0 0
    %3057 = vmatpush1.bf16.xpose.msra.mxu0 0
    %3058 = vmatprep.subr.bf16.mxu0 0
    %3059 = vmatpush1.bf16.xpose.msra.mxu0 0
    %3060 = vmatprep.subr.bf16.mxu0 0
    %3061 = vmatpush1.bf16.xpose.msra.mxu0 %v3044
    %3062 = vmatprep.subr.bf16.mxu0 0
    %3063 = vmatpush2.bf16.xpose.msra.mxu0 0
    %3064 = vmatprep.subr.bf16.mxu0 0
    %3065 = vmatpush2.bf16.xpose.msra.mxu0 0
    %3066 = vmatprep.subr.bf16.mxu0 0
    %3067 = vmatpush2.bf16.xpose.msra.mxu0 0
    %3068 = vmatprep.subr.bf16.mxu0 0
    %3069 = vmatpush2.bf16.xpose.msra.mxu0 0
    %3070 = vmatprep.subr.bf16.mxu0 0
    %3071 = vmatpush2.bf16.xpose.msra.mxu0 0
    %3072 = vmatprep.subr.bf16.mxu0 0
    %3073 = vmatpush2.bf16.xpose.msra.mxu0 0
    %3074 = vmatprep.subr.bf16.mxu0 0
    %3075 = vmatpush2.bf16.xpose.msra.mxu0 0
    %3076 = vmatprep.subr.bf16.mxu0 0
    %3077 = vmatpush2.bf16.xpose.msra.mxu0 0
    %3078 = vmatprep.mubr.bf16.mxu0 0
    %3079 = vmatmul.mubr.bf16.gmra.mxu0 %v3041
    %v3080 = vpop.f32.mrf.mxu0
    %v3081 = vadd.f32 0.0, %v3080
    %v3082 = vpop.f32.mrf.mxu0
    %v3083 = vpop.f32.mrf.mxu0
    %v3084 = vadd.f32 0.0, %v3083
    %v3085 = vpop.f32.mrf.mxu0
    %3086 = vdwg.mxu0
    %3088 = vrot.lane.b32.xlu0 %v985, 96
    %v3089 = vpop.permute.xlu0 %3088
    %3091 = vrot.lane.b32.xlu0 %v1001, 96
    %v3092 = vpop.permute.xlu0 %3091
    %v3094 = vsel %vm1029, %v3089, 0
    %v3097 = vsel %vm1029, %v3092, 0
    %3099 = vmatprep.subr.bf16.mxu0 0
    %3100 = vmatpush1.bf16.xpose.msra.mxu0 0
    %3101 = vmatprep.subr.bf16.mxu0 0
    %3102 = vmatpush1.bf16.xpose.msra.mxu0 0
    %3103 = vmatprep.subr.bf16.mxu0 0
    %3104 = vmatpush1.bf16.xpose.msra.mxu0 0
    %3105 = vmatprep.subr.bf16.mxu0 0
    %3106 = vmatpush1.bf16.xpose.msra.mxu0 0
    %3107 = vmatprep.subr.bf16.mxu0 0
    %3108 = vmatpush1.bf16.xpose.msra.mxu0 0
    %3109 = vmatprep.subr.bf16.mxu0 0
    %3110 = vmatpush1.bf16.xpose.msra.mxu0 0
    %3111 = vmatprep.subr.bf16.mxu0 0
    %3112 = vmatpush1.bf16.xpose.msra.mxu0 0
    %3113 = vmatprep.subr.bf16.mxu0 0
    %3114 = vmatpush1.bf16.xpose.msra.mxu0 %v3097
    %3115 = vmatprep.subr.bf16.mxu0 0
    %3116 = vmatpush2.bf16.xpose.msra.mxu0 0
    %3117 = vmatprep.subr.bf16.mxu0 0
    %3118 = vmatpush2.bf16.xpose.msra.mxu0 0
    %3119 = vmatprep.subr.bf16.mxu0 0
    %3120 = vmatpush2.bf16.xpose.msra.mxu0 0
    %3121 = vmatprep.subr.bf16.mxu0 0
    %3122 = vmatpush2.bf16.xpose.msra.mxu0 0
    %3123 = vmatprep.subr.bf16.mxu0 0
    %3124 = vmatpush2.bf16.xpose.msra.mxu0 0
    %3125 = vmatprep.subr.bf16.mxu0 0
    %3126 = vmatpush2.bf16.xpose.msra.mxu0 0
    %3127 = vmatprep.subr.bf16.mxu0 0
    %3128 = vmatpush2.bf16.xpose.msra.mxu0 0
    %3129 = vmatprep.subr.bf16.mxu0 0
    %3130 = vmatpush2.bf16.xpose.msra.mxu0 0
    %3131 = vmatprep.mubr.bf16.mxu0 0
    %3132 = vmatmul.mubr.bf16.gmra.mxu0 %v3094
    %v3133 = vpop.f32.mrf.mxu0
    %v3134 = vadd.f32 0.0, %v3133
    %v3135 = vpop.f32.mrf.mxu0
    %v3136 = vpop.f32.mrf.mxu0
    %v3137 = vadd.f32 0.0, %v3136
    %v3138 = vpop.f32.mrf.mxu0
    %3139 = vdwg.mxu0
    %3141 = vrot.lane.b32.xlu0 %v986, 96
    %v3142 = vpop.permute.xlu0 %3141
    %3144 = vrot.lane.b32.xlu0 %v1002, 96
    %v3145 = vpop.permute.xlu0 %3144
    %v3147 = vsel %vm1029, %v3142, 0
    %v3150 = vsel %vm1029, %v3145, 0
    %3152 = vmatprep.subr.bf16.mxu0 0
    %3153 = vmatpush1.bf16.xpose.msra.mxu0 0
    %3154 = vmatprep.subr.bf16.mxu0 0
    %3155 = vmatpush1.bf16.xpose.msra.mxu0 0
    %3156 = vmatprep.subr.bf16.mxu0 0
    %3157 = vmatpush1.bf16.xpose.msra.mxu0 0
    %3158 = vmatprep.subr.bf16.mxu0 0
    %3159 = vmatpush1.bf16.xpose.msra.mxu0 0
    %3160 = vmatprep.subr.bf16.mxu0 0
    %3161 = vmatpush1.bf16.xpose.msra.mxu0 0
    %3162 = vmatprep.subr.bf16.mxu0 0
    %3163 = vmatpush1.bf16.xpose.msra.mxu0 0
    %3164 = vmatprep.subr.bf16.mxu0 0
    %3165 = vmatpush1.bf16.xpose.msra.mxu0 0
    %3166 = vmatprep.subr.bf16.mxu0 0
    %3167 = vmatpush1.bf16.xpose.msra.mxu0 %v3150
    %3168 = vmatprep.subr.bf16.mxu0 0
    %3169 = vmatpush2.bf16.xpose.msra.mxu0 0
    %3170 = vmatprep.subr.bf16.mxu0 0
    %3171 = vmatpush2.bf16.xpose.msra.mxu0 0
    %3172 = vmatprep.subr.bf16.mxu0 0
    %3173 = vmatpush2.bf16.xpose.msra.mxu0 0
    %3174 = vmatprep.subr.bf16.mxu0 0
    %3175 = vmatpush2.bf16.xpose.msra.mxu0 0
    %3176 = vmatprep.subr.bf16.mxu0 0
    %3177 = vmatpush2.bf16.xpose.msra.mxu0 0
    %3178 = vmatprep.subr.bf16.mxu0 0
    %3179 = vmatpush2.bf16.xpose.msra.mxu0 0
    %3180 = vmatprep.subr.bf16.mxu0 0
    %3181 = vmatpush2.bf16.xpose.msra.mxu0 0
    %3182 = vmatprep.subr.bf16.mxu0 0
    %3183 = vmatpush2.bf16.xpose.msra.mxu0 0
    %3184 = vmatprep.mubr.bf16.mxu0 0
    %3185 = vmatmul.mubr.bf16.gmra.mxu0 %v3147
    %v3186 = vpop.f32.mrf.mxu0
    %v3187 = vadd.f32 0.0, %v3186
    %v3188 = vpop.f32.mrf.mxu0
    %v3189 = vpop.f32.mrf.mxu0
    %v3190 = vadd.f32 0.0, %v3189
    %v3191 = vpop.f32.mrf.mxu0
    %3192 = vdwg.mxu0
    %3194 = vrot.lane.b32.xlu0 %v987, 96
    %v3195 = vpop.permute.xlu0 %3194
    %3197 = vrot.lane.b32.xlu0 %v1003, 96
    %v3198 = vpop.permute.xlu0 %3197
    %v3200 = vsel %vm1029, %v3195, 0
    %v3203 = vsel %vm1029, %v3198, 0
    %3205 = vmatprep.subr.bf16.mxu0 0
    %3206 = vmatpush1.bf16.xpose.msra.mxu0 0
    %3207 = vmatprep.subr.bf16.mxu0 0
    %3208 = vmatpush1.bf16.xpose.msra.mxu0 0
    %3209 = vmatprep.subr.bf16.mxu0 0
    %3210 = vmatpush1.bf16.xpose.msra.mxu0 0
    %3211 = vmatprep.subr.bf16.mxu0 0
    %3212 = vmatpush1.bf16.xpose.msra.mxu0 0
    %3213 = vmatprep.subr.bf16.mxu0 0
    %3214 = vmatpush1.bf16.xpose.msra.mxu0 0
    %3215 = vmatprep.subr.bf16.mxu0 0
    %3216 = vmatpush1.bf16.xpose.msra.mxu0 0
    %3217 = vmatprep.subr.bf16.mxu0 0
    %3218 = vmatpush1.bf16.xpose.msra.mxu0 0
    %3219 = vmatprep.subr.bf16.mxu0 0
    %3220 = vmatpush1.bf16.xpose.msra.mxu0 %v3203
    %3221 = vmatprep.subr.bf16.mxu0 0
    %3222 = vmatpush2.bf16.xpose.msra.mxu0 0
    %3223 = vmatprep.subr.bf16.mxu0 0
    %3224 = vmatpush2.bf16.xpose.msra.mxu0 0
    %3225 = vmatprep.subr.bf16.mxu0 0
    %3226 = vmatpush2.bf16.xpose.msra.mxu0 0
    %3227 = vmatprep.subr.bf16.mxu0 0
    %3228 = vmatpush2.bf16.xpose.msra.mxu0 0
    %3229 = vmatprep.subr.bf16.mxu0 0
    %3230 = vmatpush2.bf16.xpose.msra.mxu0 0
    %3231 = vmatprep.subr.bf16.mxu0 0
    %3232 = vmatpush2.bf16.xpose.msra.mxu0 0
    %3233 = vmatprep.subr.bf16.mxu0 0
    %3234 = vmatpush2.bf16.xpose.msra.mxu0 0
    %3235 = vmatprep.subr.bf16.mxu0 0
    %3236 = vmatpush2.bf16.xpose.msra.mxu0 0
    %3237 = vmatprep.mubr.bf16.mxu0 0
    %3238 = vmatmul.mubr.bf16.gmra.mxu0 %v3200
    %v3239 = vpop.f32.mrf.mxu0
    %v3240 = vadd.f32 0.0, %v3239
    %v3241 = vpop.f32.mrf.mxu0
    %v3242 = vpop.f32.mrf.mxu0
    %v3243 = vadd.f32 0.0, %v3242
    %v3244 = vpop.f32.mrf.mxu0
    %3245 = vdwg.mxu0
    %3247 = vrot.lane.b32.xlu0 %v988, 96
    %v3248 = vpop.permute.xlu0 %3247
    %3250 = vrot.lane.b32.xlu0 %v1004, 96
    %v3251 = vpop.permute.xlu0 %3250
    %v3253 = vsel %vm1029, %v3248, 0
    %v3256 = vsel %vm1029, %v3251, 0
    %3258 = vmatprep.subr.bf16.mxu0 0
    %3259 = vmatpush1.bf16.xpose.msra.mxu0 0
    %3260 = vmatprep.subr.bf16.mxu0 0
    %3261 = vmatpush1.bf16.xpose.msra.mxu0 0
    %3262 = vmatprep.subr.bf16.mxu0 0
    %3263 = vmatpush1.bf16.xpose.msra.mxu0 0
    %3264 = vmatprep.subr.bf16.mxu0 0
    %3265 = vmatpush1.bf16.xpose.msra.mxu0 0
    %3266 = vmatprep.subr.bf16.mxu0 0
    %3267 = vmatpush1.bf16.xpose.msra.mxu0 0
    %3268 = vmatprep.subr.bf16.mxu0 0
    %3269 = vmatpush1.bf16.xpose.msra.mxu0 0
    %3270 = vmatprep.subr.bf16.mxu0 0
    %3271 = vmatpush1.bf16.xpose.msra.mxu0 0
    %3272 = vmatprep.subr.bf16.mxu0 0
    %3273 = vmatpush1.bf16.xpose.msra.mxu0 %v3256
    %3274 = vmatprep.subr.bf16.mxu0 0
    %3275 = vmatpush2.bf16.xpose.msra.mxu0 0
    %3276 = vmatprep.subr.bf16.mxu0 0
    %3277 = vmatpush2.bf16.xpose.msra.mxu0 0
    %3278 = vmatprep.subr.bf16.mxu0 0
    %3279 = vmatpush2.bf16.xpose.msra.mxu0 0
    %3280 = vmatprep.subr.bf16.mxu0 0
    %3281 = vmatpush2.bf16.xpose.msra.mxu0 0
    %3282 = vmatprep.subr.bf16.mxu0 0
    %3283 = vmatpush2.bf16.xpose.msra.mxu0 0
    %3284 = vmatprep.subr.bf16.mxu0 0
    %3285 = vmatpush2.bf16.xpose.msra.mxu0 0
    %3286 = vmatprep.subr.bf16.mxu0 0
    %3287 = vmatpush2.bf16.xpose.msra.mxu0 0
    %3288 = vmatprep.subr.bf16.mxu0 0
    %3289 = vmatpush2.bf16.xpose.msra.mxu0 0
    %3290 = vmatprep.mubr.bf16.mxu0 0
    %3291 = vmatmul.mubr.bf16.gmra.mxu0 %v3253
    %v3292 = vpop.f32.mrf.mxu0
    %v3293 = vadd.f32 0.0, %v3292
    %v3294 = vpop.f32.mrf.mxu0
    %v3295 = vpop.f32.mrf.mxu0
    %v3296 = vadd.f32 0.0, %v3295
    %v3297 = vpop.f32.mrf.mxu0
    %3298 = vdwg.mxu0
    %3300 = vrot.lane.b32.xlu0 %v989, 96
    %v3301 = vpop.permute.xlu0 %3300
    %3303 = vrot.lane.b32.xlu0 %v1005, 96
    %v3304 = vpop.permute.xlu0 %3303
    %v3306 = vsel %vm1029, %v3301, 0
    %v3309 = vsel %vm1029, %v3304, 0
    %3311 = vmatprep.subr.bf16.mxu0 0
    %3312 = vmatpush1.bf16.xpose.msra.mxu0 0
    %3313 = vmatprep.subr.bf16.mxu0 0
    %3314 = vmatpush1.bf16.xpose.msra.mxu0 0
    %3315 = vmatprep.subr.bf16.mxu0 0
    %3316 = vmatpush1.bf16.xpose.msra.mxu0 0
    %3317 = vmatprep.subr.bf16.mxu0 0
    %3318 = vmatpush1.bf16.xpose.msra.mxu0 0
    %3319 = vmatprep.subr.bf16.mxu0 0
    %3320 = vmatpush1.bf16.xpose.msra.mxu0 0
    %3321 = vmatprep.subr.bf16.mxu0 0
    %3322 = vmatpush1.bf16.xpose.msra.mxu0 0
    %3323 = vmatprep.subr.bf16.mxu0 0
    %3324 = vmatpush1.bf16.xpose.msra.mxu0 0
    %3325 = vmatprep.subr.bf16.mxu0 0
    %3326 = vmatpush1.bf16.xpose.msra.mxu0 %v3309
    %3327 = vmatprep.subr.bf16.mxu0 0
    %3328 = vmatpush2.bf16.xpose.msra.mxu0 0
    %3329 = vmatprep.subr.bf16.mxu0 0
    %3330 = vmatpush2.bf16.xpose.msra.mxu0 0
    %3331 = vmatprep.subr.bf16.mxu0 0
    %3332 = vmatpush2.bf16.xpose.msra.mxu0 0
    %3333 = vmatprep.subr.bf16.mxu0 0
    %3334 = vmatpush2.bf16.xpose.msra.mxu0 0
    %3335 = vmatprep.subr.bf16.mxu0 0
    %3336 = vmatpush2.bf16.xpose.msra.mxu0 0
    %3337 = vmatprep.subr.bf16.mxu0 0
    %3338 = vmatpush2.bf16.xpose.msra.mxu0 0
    %3339 = vmatprep.subr.bf16.mxu0 0
    %3340 = vmatpush2.bf16.xpose.msra.mxu0 0
    %3341 = vmatprep.subr.bf16.mxu0 0
    %3342 = vmatpush2.bf16.xpose.msra.mxu0 0
    %3343 = vmatprep.mubr.bf16.mxu0 0
    %3344 = vmatmul.mubr.bf16.gmra.mxu0 %v3306
    %v3345 = vpop.f32.mrf.mxu0
    %v3346 = vadd.f32 0.0, %v3345
    %v3347 = vpop.f32.mrf.mxu0
    %v3348 = vpop.f32.mrf.mxu0
    %v3349 = vadd.f32 0.0, %v3348
    %v3350 = vpop.f32.mrf.mxu0
    %3351 = vdwg.mxu0
    %3353 = vrot.lane.b32.xlu0 %v990, 96
    %v3354 = vpop.permute.xlu0 %3353
    %3356 = vrot.lane.b32.xlu0 %v1006, 96
    %v3357 = vpop.permute.xlu0 %3356
    %v3359 = vsel %vm1029, %v3354, 0
    %v3362 = vsel %vm1029, %v3357, 0
    %3364 = vmatprep.subr.bf16.mxu0 0
    %3365 = vmatpush1.bf16.xpose.msra.mxu0 0
    %3366 = vmatprep.subr.bf16.mxu0 0
    %3367 = vmatpush1.bf16.xpose.msra.mxu0 0
    %3368 = vmatprep.subr.bf16.mxu0 0
    %3369 = vmatpush1.bf16.xpose.msra.mxu0 0
    %3370 = vmatprep.subr.bf16.mxu0 0
    %3371 = vmatpush1.bf16.xpose.msra.mxu0 0
    %3372 = vmatprep.subr.bf16.mxu0 0
    %3373 = vmatpush1.bf16.xpose.msra.mxu0 0
    %3374 = vmatprep.subr.bf16.mxu0 0
    %3375 = vmatpush1.bf16.xpose.msra.mxu0 0
    %3376 = vmatprep.subr.bf16.mxu0 0
    %3377 = vmatpush1.bf16.xpose.msra.mxu0 0
    %3378 = vmatprep.subr.bf16.mxu0 0
    %3379 = vmatpush1.bf16.xpose.msra.mxu0 %v3362
    %3380 = vmatprep.subr.bf16.mxu0 0
    %3381 = vmatpush2.bf16.xpose.msra.mxu0 0
    %3382 = vmatprep.subr.bf16.mxu0 0
    %3383 = vmatpush2.bf16.xpose.msra.mxu0 0
    %3384 = vmatprep.subr.bf16.mxu0 0
    %3385 = vmatpush2.bf16.xpose.msra.mxu0 0
    %3386 = vmatprep.subr.bf16.mxu0 0
    %3387 = vmatpush2.bf16.xpose.msra.mxu0 0
    %3388 = vmatprep.subr.bf16.mxu0 0
    %3389 = vmatpush2.bf16.xpose.msra.mxu0 0
    %3390 = vmatprep.subr.bf16.mxu0 0
    %3391 = vmatpush2.bf16.xpose.msra.mxu0 0
    %3392 = vmatprep.subr.bf16.mxu0 0
    %3393 = vmatpush2.bf16.xpose.msra.mxu0 0
    %3394 = vmatprep.subr.bf16.mxu0 0
    %3395 = vmatpush2.bf16.xpose.msra.mxu0 0
    %3396 = vmatprep.mubr.bf16.mxu0 0
    %3397 = vmatmul.mubr.bf16.gmra.mxu0 %v3359
    %v3398 = vpop.f32.mrf.mxu0
    %v3399 = vadd.f32 0.0, %v3398
    %v3400 = vpop.f32.mrf.mxu0
    %v3401 = vpop.f32.mrf.mxu0
    %v3402 = vadd.f32 0.0, %v3401
    %v3403 = vpop.f32.mrf.mxu0
    %3404 = vdwg.mxu0
    %3406 = vrot.lane.b32.xlu0 %v991, 96
    %v3407 = vpop.permute.xlu0 %3406
    %3409 = vrot.lane.b32.xlu0 %v1007, 96
    %v3410 = vpop.permute.xlu0 %3409
    %v3412 = vsel %vm1029, %v3407, 0
    %v3415 = vsel %vm1029, %v3410, 0
    %3417 = vmatprep.subr.bf16.mxu0 0
    %3418 = vmatpush1.bf16.xpose.msra.mxu0 0
    %3419 = vmatprep.subr.bf16.mxu0 0
    %3420 = vmatpush1.bf16.xpose.msra.mxu0 0
    %3421 = vmatprep.subr.bf16.mxu0 0
    %3422 = vmatpush1.bf16.xpose.msra.mxu0 0
    %3423 = vmatprep.subr.bf16.mxu0 0
    %3424 = vmatpush1.bf16.xpose.msra.mxu0 0
    %3425 = vmatprep.subr.bf16.mxu0 0
    %3426 = vmatpush1.bf16.xpose.msra.mxu0 0
    %3427 = vmatprep.subr.bf16.mxu0 0
    %3428 = vmatpush1.bf16.xpose.msra.mxu0 0
    %3429 = vmatprep.subr.bf16.mxu0 0
    %3430 = vmatpush1.bf16.xpose.msra.mxu0 0
    %3431 = vmatprep.subr.bf16.mxu0 0
    %3432 = vmatpush1.bf16.xpose.msra.mxu0 %v3415
    %3433 = vmatprep.subr.bf16.mxu0 0
    %3434 = vmatpush2.bf16.xpose.msra.mxu0 0
    %3435 = vmatprep.subr.bf16.mxu0 0
    %3436 = vmatpush2.bf16.xpose.msra.mxu0 0
    %3437 = vmatprep.subr.bf16.mxu0 0
    %3438 = vmatpush2.bf16.xpose.msra.mxu0 0
    %3439 = vmatprep.subr.bf16.mxu0 0
    %3440 = vmatpush2.bf16.xpose.msra.mxu0 0
    %3441 = vmatprep.subr.bf16.mxu0 0
    %3442 = vmatpush2.bf16.xpose.msra.mxu0 0
    %3443 = vmatprep.subr.bf16.mxu0 0
    %3444 = vmatpush2.bf16.xpose.msra.mxu0 0
    %3445 = vmatprep.subr.bf16.mxu0 0
    %3446 = vmatpush2.bf16.xpose.msra.mxu0 0
    %3447 = vmatprep.subr.bf16.mxu0 0
    %3448 = vmatpush2.bf16.xpose.msra.mxu0 0
    %3449 = vmatprep.mubr.bf16.mxu0 0
    %3450 = vmatmul.mubr.bf16.gmra.mxu0 %v3412
    %v3451 = vpop.f32.mrf.mxu0
    %v3452 = vadd.f32 0.0, %v3451
    %v3453 = vpop.f32.mrf.mxu0
    %v3454 = vpop.f32.mrf.mxu0
    %v3455 = vadd.f32 0.0, %v3454
    %v3456 = vpop.f32.mrf.mxu0
    %3457 = vdwg.mxu0
    %3459 = vrot.lane.b32.xlu0 %v992, 96
    %v3460 = vpop.permute.xlu0 %3459
    %3462 = vrot.lane.b32.xlu0 %v1008, 96
    %v3463 = vpop.permute.xlu0 %3462
    %v3465 = vsel %vm1029, %v3460, 0
    %v3468 = vsel %vm1029, %v3463, 0
    %3470 = vmatprep.subr.bf16.mxu0 0
    %3471 = vmatpush1.bf16.xpose.msra.mxu0 0
    %3472 = vmatprep.subr.bf16.mxu0 0
    %3473 = vmatpush1.bf16.xpose.msra.mxu0 0
    %3474 = vmatprep.subr.bf16.mxu0 0
    %3475 = vmatpush1.bf16.xpose.msra.mxu0 0
    %3476 = vmatprep.subr.bf16.mxu0 0
    %3477 = vmatpush1.bf16.xpose.msra.mxu0 0
    %3478 = vmatprep.subr.bf16.mxu0 0
    %3479 = vmatpush1.bf16.xpose.msra.mxu0 0
    %3480 = vmatprep.subr.bf16.mxu0 0
    %3481 = vmatpush1.bf16.xpose.msra.mxu0 0
    %3482 = vmatprep.subr.bf16.mxu0 0
    %3483 = vmatpush1.bf16.xpose.msra.mxu0 0
    %3484 = vmatprep.subr.bf16.mxu0 0
    %3485 = vmatpush1.bf16.xpose.msra.mxu0 %v3468
    %3486 = vmatprep.subr.bf16.mxu0 0
    %3487 = vmatpush2.bf16.xpose.msra.mxu0 0
    %3488 = vmatprep.subr.bf16.mxu0 0
    %3489 = vmatpush2.bf16.xpose.msra.mxu0 0
    %3490 = vmatprep.subr.bf16.mxu0 0
    %3491 = vmatpush2.bf16.xpose.msra.mxu0 0
    %3492 = vmatprep.subr.bf16.mxu0 0
    %3493 = vmatpush2.bf16.xpose.msra.mxu0 0
    %3494 = vmatprep.subr.bf16.mxu0 0
    %3495 = vmatpush2.bf16.xpose.msra.mxu0 0
    %3496 = vmatprep.subr.bf16.mxu0 0
    %3497 = vmatpush2.bf16.xpose.msra.mxu0 0
    %3498 = vmatprep.subr.bf16.mxu0 0
    %3499 = vmatpush2.bf16.xpose.msra.mxu0 0
    %3500 = vmatprep.subr.bf16.mxu0 0
    %3501 = vmatpush2.bf16.xpose.msra.mxu0 0
    %3502 = vmatprep.mubr.bf16.mxu0 0
    %3503 = vmatmul.mubr.bf16.gmra.mxu0 %v3465
    %v3504 = vpop.f32.mrf.mxu0
    %v3505 = vadd.f32 0.0, %v3504
    %v3506 = vpop.f32.mrf.mxu0
    %v3507 = vpop.f32.mrf.mxu0
    %v3508 = vadd.f32 0.0, %v3507
    %v3509 = vpop.f32.mrf.mxu0
    %3510 = vdwg.mxu0
    %3512 = vrot.lane.b32.xlu0 %v993, 96
    %v3513 = vpop.permute.xlu0 %3512
    %3515 = vrot.lane.b32.xlu0 %v1009, 96
    %v3516 = vpop.permute.xlu0 %3515
    %v3518 = vsel %vm1029, %v3513, 0
    %v3521 = vsel %vm1029, %v3516, 0
    %3523 = vmatprep.subr.bf16.mxu0 0
    %3524 = vmatpush1.bf16.xpose.msra.mxu0 0
    %3525 = vmatprep.subr.bf16.mxu0 0
    %3526 = vmatpush1.bf16.xpose.msra.mxu0 0
    %3527 = vmatprep.subr.bf16.mxu0 0
    %3528 = vmatpush1.bf16.xpose.msra.mxu0 0
    %3529 = vmatprep.subr.bf16.mxu0 0
    %3530 = vmatpush1.bf16.xpose.msra.mxu0 0
    %3531 = vmatprep.subr.bf16.mxu0 0
    %3532 = vmatpush1.bf16.xpose.msra.mxu0 0
    %3533 = vmatprep.subr.bf16.mxu0 0
    %3534 = vmatpush1.bf16.xpose.msra.mxu0 0
    %3535 = vmatprep.subr.bf16.mxu0 0
    %3536 = vmatpush1.bf16.xpose.msra.mxu0 0
    %3537 = vmatprep.subr.bf16.mxu0 0
    %3538 = vmatpush1.bf16.xpose.msra.mxu0 %v3521
    %3539 = vmatprep.subr.bf16.mxu0 0
    %3540 = vmatpush2.bf16.xpose.msra.mxu0 0
    %3541 = vmatprep.subr.bf16.mxu0 0
    %3542 = vmatpush2.bf16.xpose.msra.mxu0 0
    %3543 = vmatprep.subr.bf16.mxu0 0
    %3544 = vmatpush2.bf16.xpose.msra.mxu0 0
    %3545 = vmatprep.subr.bf16.mxu0 0
    %3546 = vmatpush2.bf16.xpose.msra.mxu0 0
    %3547 = vmatprep.subr.bf16.mxu0 0
    %3548 = vmatpush2.bf16.xpose.msra.mxu0 0
    %3549 = vmatprep.subr.bf16.mxu0 0
    %3550 = vmatpush2.bf16.xpose.msra.mxu0 0
    %3551 = vmatprep.subr.bf16.mxu0 0
    %3552 = vmatpush2.bf16.xpose.msra.mxu0 0
    %3553 = vmatprep.subr.bf16.mxu0 0
    %3554 = vmatpush2.bf16.xpose.msra.mxu0 0
    %3555 = vmatprep.mubr.bf16.mxu0 0
    %3556 = vmatmul.mubr.bf16.gmra.mxu0 %v3518
    %v3557 = vpop.f32.mrf.mxu0
    %v3558 = vadd.f32 0.0, %v3557
    %v3559 = vpop.f32.mrf.mxu0
    %v3560 = vpop.f32.mrf.mxu0
    %v3561 = vadd.f32 0.0, %v3560
    %v3562 = vpop.f32.mrf.mxu0
    %3563 = vdwg.mxu0
    %3565 = vrot.lane.b32.xlu0 %v994, 96
    %v3566 = vpop.permute.xlu0 %3565
    %3568 = vrot.lane.b32.xlu0 %v1010, 96
    %v3569 = vpop.permute.xlu0 %3568
    %v3571 = vsel %vm1029, %v3566, 0
    %v3574 = vsel %vm1029, %v3569, 0
    %3576 = vmatprep.subr.bf16.mxu0 0
    %3577 = vmatpush1.bf16.xpose.msra.mxu0 0
    %3578 = vmatprep.subr.bf16.mxu0 0
    %3579 = vmatpush1.bf16.xpose.msra.mxu0 0
    %3580 = vmatprep.subr.bf16.mxu0 0
    %3581 = vmatpush1.bf16.xpose.msra.mxu0 0
    %3582 = vmatprep.subr.bf16.mxu0 0
    %3583 = vmatpush1.bf16.xpose.msra.mxu0 0
    %3584 = vmatprep.subr.bf16.mxu0 0
    %3585 = vmatpush1.bf16.xpose.msra.mxu0 0
    %3586 = vmatprep.subr.bf16.mxu0 0
    %3587 = vmatpush1.bf16.xpose.msra.mxu0 0
    %3588 = vmatprep.subr.bf16.mxu0 0
    %3589 = vmatpush1.bf16.xpose.msra.mxu0 0
    %3590 = vmatprep.subr.bf16.mxu0 0
    %3591 = vmatpush1.bf16.xpose.msra.mxu0 %v3574
    %3592 = vmatprep.subr.bf16.mxu0 0
    %3593 = vmatpush2.bf16.xpose.msra.mxu0 0
    %3594 = vmatprep.subr.bf16.mxu0 0
    %3595 = vmatpush2.bf16.xpose.msra.mxu0 0
    %3596 = vmatprep.subr.bf16.mxu0 0
    %3597 = vmatpush2.bf16.xpose.msra.mxu0 0
    %3598 = vmatprep.subr.bf16.mxu0 0
    %3599 = vmatpush2.bf16.xpose.msra.mxu0 0
    %3600 = vmatprep.subr.bf16.mxu0 0
    %3601 = vmatpush2.bf16.xpose.msra.mxu0 0
    %3602 = vmatprep.subr.bf16.mxu0 0
    %3603 = vmatpush2.bf16.xpose.msra.mxu0 0
    %3604 = vmatprep.subr.bf16.mxu0 0
    %3605 = vmatpush2.bf16.xpose.msra.mxu0 0
    %3606 = vmatprep.subr.bf16.mxu0 0
    %3607 = vmatpush2.bf16.xpose.msra.mxu0 0
    %3608 = vmatprep.mubr.bf16.mxu0 0
    %3609 = vmatmul.mubr.bf16.gmra.mxu0 %v3571
    %v3610 = vpop.f32.mrf.mxu0
    %v3611 = vadd.f32 0.0, %v3610
    %v3612 = vpop.f32.mrf.mxu0
    %v3613 = vpop.f32.mrf.mxu0
    %v3614 = vadd.f32 0.0, %v3613
    %v3615 = vpop.f32.mrf.mxu0
    %3616 = vdwg.mxu0
    %3618 = vrot.lane.b32.xlu0 %v995, 96
    %v3619 = vpop.permute.xlu0 %3618
    %3621 = vrot.lane.b32.xlu0 %v1011, 96
    %v3622 = vpop.permute.xlu0 %3621
    %v3624 = vsel %vm1029, %v3619, 0
    %v3627 = vsel %vm1029, %v3622, 0
    %3629 = vmatprep.subr.bf16.mxu0 0
    %3630 = vmatpush1.bf16.xpose.msra.mxu0 0
    %3631 = vmatprep.subr.bf16.mxu0 0
    %3632 = vmatpush1.bf16.xpose.msra.mxu0 0
    %3633 = vmatprep.subr.bf16.mxu0 0
    %3634 = vmatpush1.bf16.xpose.msra.mxu0 0
    %3635 = vmatprep.subr.bf16.mxu0 0
    %3636 = vmatpush1.bf16.xpose.msra.mxu0 0
    %3637 = vmatprep.subr.bf16.mxu0 0
    %3638 = vmatpush1.bf16.xpose.msra.mxu0 0
    %3639 = vmatprep.subr.bf16.mxu0 0
    %3640 = vmatpush1.bf16.xpose.msra.mxu0 0
    %3641 = vmatprep.subr.bf16.mxu0 0
    %3642 = vmatpush1.bf16.xpose.msra.mxu0 0
    %3643 = vmatprep.subr.bf16.mxu0 0
    %3644 = vmatpush1.bf16.xpose.msra.mxu0 %v3627
    %3645 = vmatprep.subr.bf16.mxu0 0
    %3646 = vmatpush2.bf16.xpose.msra.mxu0 0
    %3647 = vmatprep.subr.bf16.mxu0 0
    %3648 = vmatpush2.bf16.xpose.msra.mxu0 0
    %3649 = vmatprep.subr.bf16.mxu0 0
    %3650 = vmatpush2.bf16.xpose.msra.mxu0 0
    %3651 = vmatprep.subr.bf16.mxu0 0
    %3652 = vmatpush2.bf16.xpose.msra.mxu0 0
    %3653 = vmatprep.subr.bf16.mxu0 0
    %3654 = vmatpush2.bf16.xpose.msra.mxu0 0
    %3655 = vmatprep.subr.bf16.mxu0 0
    %3656 = vmatpush2.bf16.xpose.msra.mxu0 0
    %3657 = vmatprep.subr.bf16.mxu0 0
    %3658 = vmatpush2.bf16.xpose.msra.mxu0 0
    %3659 = vmatprep.subr.bf16.mxu0 0
    %3660 = vmatpush2.bf16.xpose.msra.mxu0 0
    %3661 = vmatprep.mubr.bf16.mxu0 0
    %3662 = vmatmul.mubr.bf16.gmra.mxu0 %v3624
    %v3663 = vpop.f32.mrf.mxu0
    %v3664 = vadd.f32 0.0, %v3663
    %v3665 = vpop.f32.mrf.mxu0
    %v3666 = vpop.f32.mrf.mxu0
    %v3667 = vadd.f32 0.0, %v3666
    %v3668 = vpop.f32.mrf.mxu0
    %3669 = vdwg.mxu0
    %3671 = vrot.lane.b32.xlu0 %v996, 96
    %v3672 = vpop.permute.xlu0 %3671
    %3674 = vrot.lane.b32.xlu0 %v1012, 96
    %v3675 = vpop.permute.xlu0 %3674
    %v3677 = vsel %vm1029, %v3672, 0
    %v3680 = vsel %vm1029, %v3675, 0
    %3682 = vmatprep.subr.bf16.mxu0 0
    %3683 = vmatpush1.bf16.xpose.msra.mxu0 0
    %3684 = vmatprep.subr.bf16.mxu0 0
    %3685 = vmatpush1.bf16.xpose.msra.mxu0 0
    %3686 = vmatprep.subr.bf16.mxu0 0
    %3687 = vmatpush1.bf16.xpose.msra.mxu0 0
    %3688 = vmatprep.subr.bf16.mxu0 0
    %3689 = vmatpush1.bf16.xpose.msra.mxu0 0
    %3690 = vmatprep.subr.bf16.mxu0 0
    %3691 = vmatpush1.bf16.xpose.msra.mxu0 0
    %3692 = vmatprep.subr.bf16.mxu0 0
    %3693 = vmatpush1.bf16.xpose.msra.mxu0 0
    %3694 = vmatprep.subr.bf16.mxu0 0
    %3695 = vmatpush1.bf16.xpose.msra.mxu0 0
    %3696 = vmatprep.subr.bf16.mxu0 0
    %3697 = vmatpush1.bf16.xpose.msra.mxu0 %v3680
    %3698 = vmatprep.subr.bf16.mxu0 0
    %3699 = vmatpush2.bf16.xpose.msra.mxu0 0
    %3700 = vmatprep.subr.bf16.mxu0 0
    %3701 = vmatpush2.bf16.xpose.msra.mxu0 0
    %3702 = vmatprep.subr.bf16.mxu0 0
    %3703 = vmatpush2.bf16.xpose.msra.mxu0 0
    %3704 = vmatprep.subr.bf16.mxu0 0
    %3705 = vmatpush2.bf16.xpose.msra.mxu0 0
    %3706 = vmatprep.subr.bf16.mxu0 0
    %3707 = vmatpush2.bf16.xpose.msra.mxu0 0
    %3708 = vmatprep.subr.bf16.mxu0 0
    %3709 = vmatpush2.bf16.xpose.msra.mxu0 0
    %3710 = vmatprep.subr.bf16.mxu0 0
    %3711 = vmatpush2.bf16.xpose.msra.mxu0 0
    %3712 = vmatprep.subr.bf16.mxu0 0
    %3713 = vmatpush2.bf16.xpose.msra.mxu0 0
    %3714 = vmatprep.mubr.bf16.mxu0 0
    %3715 = vmatmul.mubr.bf16.gmra.mxu0 %v3677
    %v3716 = vpop.f32.mrf.mxu0
    %v3717 = vadd.f32 0.0, %v3716
    %v3718 = vpop.f32.mrf.mxu0
    %v3719 = vpop.f32.mrf.mxu0
    %v3720 = vadd.f32 0.0, %v3719
    %v3721 = vpop.f32.mrf.mxu0
    %3722 = vdwg.mxu0
    %v3723 = vsel %vm1782, %v2922, -inf
    %3724 = vmax.xlane.f32.xlu0 %v3723
    %v3725 = vpop.xlane.xlu0 %3724
    %v3726 = vsel %vm1782, %v2925, -inf
    %3727 = vmax.xlane.f32.xlu0 %v3726
    %v3728 = vpop.xlane.xlu0 %3727
    %v3729 = vsel %vm1782, %v2975, -inf
    %3730 = vmax.xlane.f32.xlu0 %v3729
    %v3731 = vpop.xlane.xlu0 %3730
    %v3732 = vsel %vm1782, %v2978, -inf
    %3733 = vmax.xlane.f32.xlu0 %v3732
    %v3734 = vpop.xlane.xlu0 %3733
    %v3735 = vsel %vm1782, %v3028, -inf
    %3736 = vmax.xlane.f32.xlu0 %v3735
    %v3737 = vpop.xlane.xlu0 %3736
    %v3738 = vsel %vm1782, %v3031, -inf
    %3739 = vmax.xlane.f32.xlu0 %v3738
    %v3740 = vpop.xlane.xlu0 %3739
    %v3741 = vsel %vm1782, %v3081, -inf
    %3742 = vmax.xlane.f32.xlu0 %v3741
    %v3743 = vpop.xlane.xlu0 %3742
    %v3744 = vsel %vm1782, %v3084, -inf
    %3745 = vmax.xlane.f32.xlu0 %v3744
    %v3746 = vpop.xlane.xlu0 %3745
    %v3747 = vsel %vm1782, %v3134, -inf
    %3748 = vmax.xlane.f32.xlu0 %v3747
    %v3749 = vpop.xlane.xlu0 %3748
    %v3750 = vsel %vm1782, %v3137, -inf
    %3751 = vmax.xlane.f32.xlu0 %v3750
    %v3752 = vpop.xlane.xlu0 %3751
    %v3753 = vsel %vm1782, %v3187, -inf
    %3754 = vmax.xlane.f32.xlu0 %v3753
    %v3755 = vpop.xlane.xlu0 %3754
    %v3756 = vsel %vm1782, %v3190, -inf
    %3757 = vmax.xlane.f32.xlu0 %v3756
    %v3758 = vpop.xlane.xlu0 %3757
    %v3759 = vsel %vm1782, %v3240, -inf
    %3760 = vmax.xlane.f32.xlu0 %v3759
    %v3761 = vpop.xlane.xlu0 %3760
    %v3762 = vsel %vm1782, %v3243, -inf
    %3763 = vmax.xlane.f32.xlu0 %v3762
    %v3764 = vpop.xlane.xlu0 %3763
    %v3765 = vsel %vm1782, %v3293, -inf
    %3766 = vmax.xlane.f32.xlu0 %v3765
    %v3767 = vpop.xlane.xlu0 %3766
    %v3768 = vsel %vm1782, %v3296, -inf
    %3769 = vmax.xlane.f32.xlu0 %v3768
    %v3770 = vpop.xlane.xlu0 %3769
    %v3771 = vsel %vm1782, %v3346, -inf
    %3772 = vmax.xlane.f32.xlu0 %v3771
    %v3773 = vpop.xlane.xlu0 %3772
    %v3774 = vsel %vm1782, %v3349, -inf
    %3775 = vmax.xlane.f32.xlu0 %v3774
    %v3776 = vpop.xlane.xlu0 %3775
    %v3777 = vsel %vm1782, %v3399, -inf
    %3778 = vmax.xlane.f32.xlu0 %v3777
    %v3779 = vpop.xlane.xlu0 %3778
    %v3780 = vsel %vm1782, %v3402, -inf
    %3781 = vmax.xlane.f32.xlu0 %v3780
    %v3782 = vpop.xlane.xlu0 %3781
    %v3783 = vsel %vm1782, %v3452, -inf
    %3784 = vmax.xlane.f32.xlu0 %v3783
    %v3785 = vpop.xlane.xlu0 %3784
    %v3786 = vsel %vm1782, %v3455, -inf
    %3787 = vmax.xlane.f32.xlu0 %v3786
    %v3788 = vpop.xlane.xlu0 %3787
    %v3789 = vsel %vm1782, %v3505, -inf
    %3790 = vmax.xlane.f32.xlu0 %v3789
    %v3791 = vpop.xlane.xlu0 %3790
    %v3792 = vsel %vm1782, %v3508, -inf
    %3793 = vmax.xlane.f32.xlu0 %v3792
    %v3794 = vpop.xlane.xlu0 %3793
    %v3795 = vsel %vm1782, %v3558, -inf
    %3796 = vmax.xlane.f32.xlu0 %v3795
    %v3797 = vpop.xlane.xlu0 %3796
    %v3798 = vsel %vm1782, %v3561, -inf
    %3799 = vmax.xlane.f32.xlu0 %v3798
    %v3800 = vpop.xlane.xlu0 %3799
    %v3801 = vsel %vm1782, %v3611, -inf
    %3802 = vmax.xlane.f32.xlu0 %v3801
    %v3803 = vpop.xlane.xlu0 %3802
    %v3804 = vsel %vm1782, %v3614, -inf
    %3805 = vmax.xlane.f32.xlu0 %v3804
    %v3806 = vpop.xlane.xlu0 %3805
    %v3807 = vsel %vm1782, %v3664, -inf
    %3808 = vmax.xlane.f32.xlu0 %v3807
    %v3809 = vpop.xlane.xlu0 %3808
    %v3810 = vsel %vm1782, %v3667, -inf
    %3811 = vmax.xlane.f32.xlu0 %v3810
    %v3812 = vpop.xlane.xlu0 %3811
    %v3813 = vsel %vm1782, %v3717, -inf
    %3814 = vmax.xlane.f32.xlu0 %v3813
    %v3815 = vpop.xlane.xlu0 %3814
    %v3816 = vsel %vm1782, %v3720, -inf
    %3817 = vmax.xlane.f32.xlu0 %v3816
    %v3818 = vpop.xlane.xlu0 %3817
    %v3819 = vsub.f32 %v2922, %v3725
    %v3820 = vsub.f32 %v2925, %v3728
    %v3821 = vsub.f32 %v2975, %v3731
    %v3822 = vsub.f32 %v2978, %v3734
    %v3823 = vsub.f32 %v3028, %v3737
    %v3824 = vsub.f32 %v3031, %v3740
    %v3825 = vsub.f32 %v3081, %v3743
    %v3826 = vsub.f32 %v3084, %v3746
    %v3827 = vsub.f32 %v3134, %v3749
    %v3828 = vsub.f32 %v3137, %v3752
    %v3829 = vsub.f32 %v3187, %v3755
    %v3830 = vsub.f32 %v3190, %v3758
    %v3831 = vsub.f32 %v3240, %v3761
    %v3832 = vsub.f32 %v3243, %v3764
    %v3833 = vsub.f32 %v3293, %v3767
    %v3834 = vsub.f32 %v3296, %v3770
    %v3835 = vsub.f32 %v3346, %v3773
    %v3836 = vsub.f32 %v3349, %v3776
    %v3837 = vsub.f32 %v3399, %v3779
    %v3838 = vsub.f32 %v3402, %v3782
    %v3839 = vsub.f32 %v3452, %v3785
    %v3840 = vsub.f32 %v3455, %v3788
    %v3841 = vsub.f32 %v3505, %v3791
    %v3842 = vsub.f32 %v3508, %v3794
    %v3843 = vsub.f32 %v3558, %v3797
    %v3844 = vsub.f32 %v3561, %v3800
    %v3845 = vsub.f32 %v3611, %v3803
    %v3846 = vsub.f32 %v3614, %v3806
    %v3847 = vsub.f32 %v3664, %v3809
    %v3848 = vsub.f32 %v3667, %v3812
    %v3849 = vsub.f32 %v3717, %v3815
    %v3850 = vsub.f32 %v3720, %v3818
    %v3851 = vmul.f32 %v3819, 1.442695
    %v3852 = vpow.pop %v3851
    %v3853 = vmul.f32 %v3820, 1.442695
    %v3854 = vpow.pop %v3853
    %v3855 = vmul.f32 %v3821, 1.442695
    %v3856 = vpow.pop %v3855
    %v3857 = vmul.f32 %v3822, 1.442695
    %v3858 = vpow.pop %v3857
    %v3859 = vmul.f32 %v3823, 1.442695
    %v3860 = vpow.pop %v3859
    %v3861 = vmul.f32 %v3824, 1.442695
    %v3862 = vpow.pop %v3861
    %v3863 = vmul.f32 %v3825, 1.442695
    %v3864 = vpow.pop %v3863
    %v3865 = vmul.f32 %v3826, 1.442695
    %v3866 = vpow.pop %v3865
    %v3867 = vmul.f32 %v3827, 1.442695
    %v3868 = vpow.pop %v3867
    %v3869 = vmul.f32 %v3828, 1.442695
    %v3870 = vpow.pop %v3869
    %v3871 = vmul.f32 %v3829, 1.442695
    %v3872 = vpow.pop %v3871
    %v3873 = vmul.f32 %v3830, 1.442695
    %v3874 = vpow.pop %v3873
    %v3875 = vmul.f32 %v3831, 1.442695
    %v3876 = vpow.pop %v3875
    %v3877 = vmul.f32 %v3832, 1.442695
    %v3878 = vpow.pop %v3877
    %v3879 = vmul.f32 %v3833, 1.442695
    %v3880 = vpow.pop %v3879
    %v3881 = vmul.f32 %v3834, 1.442695
    %v3882 = vpow.pop %v3881
    %v3883 = vmul.f32 %v3835, 1.442695
    %v3884 = vpow.pop %v3883
    %v3885 = vmul.f32 %v3836, 1.442695
    %v3886 = vpow.pop %v3885
    %v3887 = vmul.f32 %v3837, 1.442695
    %v3888 = vpow.pop %v3887
    %v3889 = vmul.f32 %v3838, 1.442695
    %v3890 = vpow.pop %v3889
    %v3891 = vmul.f32 %v3839, 1.442695
    %v3892 = vpow.pop %v3891
    %v3893 = vmul.f32 %v3840, 1.442695
    %v3894 = vpow.pop %v3893
    %v3895 = vmul.f32 %v3841, 1.442695
    %v3896 = vpow.pop %v3895
    %v3897 = vmul.f32 %v3842, 1.442695
    %v3898 = vpow.pop %v3897
    %v3899 = vmul.f32 %v3843, 1.442695
    %v3900 = vpow.pop %v3899
    %v3901 = vmul.f32 %v3844, 1.442695
    %v3902 = vpow.pop %v3901
    %v3903 = vmul.f32 %v3845, 1.442695
    %v3904 = vpow.pop %v3903
    %v3905 = vmul.f32 %v3846, 1.442695
    %v3906 = vpow.pop %v3905
    %v3907 = vmul.f32 %v3847, 1.442695
    %v3908 = vpow.pop %v3907
    %v3909 = vmul.f32 %v3848, 1.442695
    %v3910 = vpow.pop %v3909
    %v3911 = vmul.f32 %v3849, 1.442695
    %v3912 = vpow.pop %v3911
    %v3913 = vmul.f32 %v3850, 1.442695
    %v3914 = vpow.pop %v3913
    %v3915 = vsel %vm1782, %v3852, 0.0
    %3916 = vadd.xlane.f32.xlu0 %v3915
    %v3917 = vpop.xlane.xlu0 %3916
    %v3918 = vsel %vm1782, %v3854, 0.0
    %3919 = vadd.xlane.f32.xlu0 %v3918
    %v3920 = vpop.xlane.xlu0 %3919
    %v3921 = vsel %vm1782, %v3856, 0.0
    %3922 = vadd.xlane.f32.xlu0 %v3921
    %v3923 = vpop.xlane.xlu0 %3922
    %v3924 = vsel %vm1782, %v3858, 0.0
    %3925 = vadd.xlane.f32.xlu0 %v3924
    %v3926 = vpop.xlane.xlu0 %3925
    %v3927 = vsel %vm1782, %v3860, 0.0
    %3928 = vadd.xlane.f32.xlu0 %v3927
    %v3929 = vpop.xlane.xlu0 %3928
    %v3930 = vsel %vm1782, %v3862, 0.0
    %3931 = vadd.xlane.f32.xlu0 %v3930
    %v3932 = vpop.xlane.xlu0 %3931
    %v3933 = vsel %vm1782, %v3864, 0.0
    %3934 = vadd.xlane.f32.xlu0 %v3933
    %v3935 = vpop.xlane.xlu0 %3934
    %v3936 = vsel %vm1782, %v3866, 0.0
    %3937 = vadd.xlane.f32.xlu0 %v3936
    %v3938 = vpop.xlane.xlu0 %3937
    %v3939 = vsel %vm1782, %v3868, 0.0
    %3940 = vadd.xlane.f32.xlu0 %v3939
    %v3941 = vpop.xlane.xlu0 %3940
    %v3942 = vsel %vm1782, %v3870, 0.0
    %3943 = vadd.xlane.f32.xlu0 %v3942
    %v3944 = vpop.xlane.xlu0 %3943
    %v3945 = vsel %vm1782, %v3872, 0.0
    %3946 = vadd.xlane.f32.xlu0 %v3945
    %v3947 = vpop.xlane.xlu0 %3946
    %v3948 = vsel %vm1782, %v3874, 0.0
    %3949 = vadd.xlane.f32.xlu0 %v3948
    %v3950 = vpop.xlane.xlu0 %3949
    %v3951 = vsel %vm1782, %v3876, 0.0
    %3952 = vadd.xlane.f32.xlu0 %v3951
    %v3953 = vpop.xlane.xlu0 %3952
    %v3954 = vsel %vm1782, %v3878, 0.0
    %3955 = vadd.xlane.f32.xlu0 %v3954
    %v3956 = vpop.xlane.xlu0 %3955
    %v3957 = vsel %vm1782, %v3880, 0.0
    %3958 = vadd.xlane.f32.xlu0 %v3957
    %v3959 = vpop.xlane.xlu0 %3958
    %v3960 = vsel %vm1782, %v3882, 0.0
    %3961 = vadd.xlane.f32.xlu0 %v3960
    %v3962 = vpop.xlane.xlu0 %3961
    %v3963 = vsel %vm1782, %v3884, 0.0
    %3964 = vadd.xlane.f32.xlu0 %v3963
    %v3965 = vpop.xlane.xlu0 %3964
    %v3966 = vsel %vm1782, %v3886, 0.0
    %3967 = vadd.xlane.f32.xlu0 %v3966
    %v3968 = vpop.xlane.xlu0 %3967
    %v3969 = vsel %vm1782, %v3888, 0.0
    %3970 = vadd.xlane.f32.xlu0 %v3969
    %v3971 = vpop.xlane.xlu0 %3970
    %v3972 = vsel %vm1782, %v3890, 0.0
    %3973 = vadd.xlane.f32.xlu0 %v3972
    %v3974 = vpop.xlane.xlu0 %3973
    %v3975 = vsel %vm1782, %v3892, 0.0
    %3976 = vadd.xlane.f32.xlu0 %v3975
    %v3977 = vpop.xlane.xlu0 %3976
    %v3978 = vsel %vm1782, %v3894, 0.0
    %3979 = vadd.xlane.f32.xlu0 %v3978
    %v3980 = vpop.xlane.xlu0 %3979
    %v3981 = vsel %vm1782, %v3896, 0.0
    %3982 = vadd.xlane.f32.xlu0 %v3981
    %v3983 = vpop.xlane.xlu0 %3982
    %v3984 = vsel %vm1782, %v3898, 0.0
    %3985 = vadd.xlane.f32.xlu0 %v3984
    %v3986 = vpop.xlane.xlu0 %3985
    %v3987 = vsel %vm1782, %v3900, 0.0
    %3988 = vadd.xlane.f32.xlu0 %v3987
    %v3989 = vpop.xlane.xlu0 %3988
    %v3990 = vsel %vm1782, %v3902, 0.0
    %3991 = vadd.xlane.f32.xlu0 %v3990
    %v3992 = vpop.xlane.xlu0 %3991
    %v3993 = vsel %vm1782, %v3904, 0.0
    %3994 = vadd.xlane.f32.xlu0 %v3993
    %v3995 = vpop.xlane.xlu0 %3994
    %v3996 = vsel %vm1782, %v3906, 0.0
    %3997 = vadd.xlane.f32.xlu0 %v3996
    %v3998 = vpop.xlane.xlu0 %3997
    %v3999 = vsel %vm1782, %v3908, 0.0
    %4000 = vadd.xlane.f32.xlu0 %v3999
    %v4001 = vpop.xlane.xlu0 %4000
    %v4002 = vsel %vm1782, %v3910, 0.0
    %4003 = vadd.xlane.f32.xlu0 %v4002
    %v4004 = vpop.xlane.xlu0 %4003
    %v4005 = vsel %vm1782, %v3912, 0.0
    %4006 = vadd.xlane.f32.xlu0 %v4005
    %v4007 = vpop.xlane.xlu0 %4006
    %v4008 = vsel %vm1782, %v3914, 0.0
    %4009 = vadd.xlane.f32.xlu0 %v4008
    %v4010 = vpop.xlane.xlu0 %4009
    %v4011 = vrcp.pop %v3917
    %v4012 = vrcp.pop %v3920
    %v4013 = vrcp.pop %v3923
    %v4014 = vrcp.pop %v3926
    %v4015 = vrcp.pop %v3929
    %v4016 = vrcp.pop %v3932
    %v4017 = vrcp.pop %v3935
    %v4018 = vrcp.pop %v3938
    %v4019 = vrcp.pop %v3941
    %v4020 = vrcp.pop %v3944
    %v4021 = vrcp.pop %v3947
    %v4022 = vrcp.pop %v3950
    %v4023 = vrcp.pop %v3953
    %v4024 = vrcp.pop %v3956
    %v4025 = vrcp.pop %v3959
    %v4026 = vrcp.pop %v3962
    %v4027 = vrcp.pop %v3965
    %v4028 = vrcp.pop %v3968
    %v4029 = vrcp.pop %v3971
    %v4030 = vrcp.pop %v3974
    %v4031 = vrcp.pop %v3977
    %v4032 = vrcp.pop %v3980
    %v4033 = vrcp.pop %v3983
    %v4034 = vrcp.pop %v3986
    %v4035 = vrcp.pop %v3989
    %v4036 = vrcp.pop %v3992
    %v4037 = vrcp.pop %v3995
    %v4038 = vrcp.pop %v3998
    %v4039 = vrcp.pop %v4001
    %v4040 = vrcp.pop %v4004
    %v4041 = vrcp.pop %v4007
    %v4042 = vrcp.pop %v4010
    %v4043 = vmul.f32 %v3852, %v4011
    %v4044 = vmul.f32 %v3854, %v4012
    %v4045 = vmul.f32 %v3856, %v4013
    %v4046 = vmul.f32 %v3858, %v4014
    %v4047 = vmul.f32 %v3860, %v4015
    %v4048 = vmul.f32 %v3862, %v4016
    %v4049 = vmul.f32 %v3864, %v4017
    %v4050 = vmul.f32 %v3866, %v4018
    %v4051 = vmul.f32 %v3868, %v4019
    %v4052 = vmul.f32 %v3870, %v4020
    %v4053 = vmul.f32 %v3872, %v4021
    %v4054 = vmul.f32 %v3874, %v4022
    %v4055 = vmul.f32 %v3876, %v4023
    %v4056 = vmul.f32 %v3878, %v4024
    %v4057 = vmul.f32 %v3880, %v4025
    %v4058 = vmul.f32 %v3882, %v4026
    %v4059 = vmul.f32 %v3884, %v4027
    %v4060 = vmul.f32 %v3886, %v4028
    %v4061 = vmul.f32 %v3888, %v4029
    %v4062 = vmul.f32 %v3890, %v4030
    %v4063 = vmul.f32 %v3892, %v4031
    %v4064 = vmul.f32 %v3894, %v4032
    %v4065 = vmul.f32 %v3896, %v4033
    %v4066 = vmul.f32 %v3898, %v4034
    %v4067 = vmul.f32 %v3900, %v4035
    %v4068 = vmul.f32 %v3902, %v4036
    %v4069 = vmul.f32 %v3904, %v4037
    %v4070 = vmul.f32 %v3906, %v4038
    %v4071 = vmul.f32 %v3908, %v4039
    %v4072 = vmul.f32 %v3910, %v4040
    %v4073 = vmul.f32 %v3912, %v4041
    %v4074 = vmul.f32 %v3914, %v4042
    %v4075 = vpack.c.bf16 %v4044, %v4043
    %v4076 = vpack.c.bf16 %v4046, %v4045
    %v4077 = vpack.c.bf16 %v4048, %v4047
    %v4078 = vpack.c.bf16 %v4050, %v4049
    %v4079 = vpack.c.bf16 %v4052, %v4051
    %v4080 = vpack.c.bf16 %v4054, %v4053
    %v4081 = vpack.c.bf16 %v4056, %v4055
    %v4082 = vpack.c.bf16 %v4058, %v4057
    %v4083 = vpack.c.bf16 %v4060, %v4059
    %v4084 = vpack.c.bf16 %v4062, %v4061
    %v4085 = vpack.c.bf16 %v4064, %v4063
    %v4086 = vpack.c.bf16 %v4066, %v4065
    %v4087 = vpack.c.bf16 %v4068, %v4067
    %v4088 = vpack.c.bf16 %v4070, %v4069
    %v4089 = vpack.c.bf16 %v4072, %v4071
    %v4090 = vpack.c.bf16 %v4074, %v4073
    %4092 = vrot.lane.b32.xlu0 %v1013, 96
    %v4093 = vpop.permute.xlu0 %4092
    %v4096 = vsel %vm1782, %v4075, 0
    %4098 = vmatprep.subr.bf16.mxu0 0
    %4099 = vmatpush1.bf16.msra.mxu0 0
    %4100 = vmatprep.subr.bf16.mxu0 0
    %4101 = vmatpush1.bf16.msra.mxu0 0
    %4102 = vmatprep.subr.bf16.mxu0 0
    %4103 = vmatpush1.bf16.msra.mxu0 0
    %4104 = vmatprep.subr.bf16.mxu0 0
    %4105 = vmatpush1.bf16.msra.mxu0 0
    %4106 = vmatprep.subr.bf16.mxu0 0
    %4107 = vmatpush1.bf16.msra.mxu0 0
    %4108 = vmatprep.subr.bf16.mxu0 0
    %4109 = vmatpush1.bf16.msra.mxu0 0
    %4110 = vmatprep.subr.bf16.mxu0 0
    %4111 = vmatpush1.bf16.msra.mxu0 0
    %4112 = vmatprep.subr.bf16.mxu0 0
    %4113 = vmatpush1.bf16.msra.mxu0 %v4093
    %4114 = vmatprep.subr.bf16.mxu0 0
    %4115 = vmatpush2.bf16.msra.mxu0 0
    %4116 = vmatprep.subr.bf16.mxu0 0
    %4117 = vmatpush2.bf16.msra.mxu0 0
    %4118 = vmatprep.subr.bf16.mxu0 0
    %4119 = vmatpush2.bf16.msra.mxu0 0
    %4120 = vmatprep.subr.bf16.mxu0 0
    %4121 = vmatpush2.bf16.msra.mxu0 0
    %4122 = vmatprep.subr.bf16.mxu0 0
    %4123 = vmatpush2.bf16.msra.mxu0 0
    %4124 = vmatprep.subr.bf16.mxu0 0
    %4125 = vmatpush2.bf16.msra.mxu0 0
    %4126 = vmatprep.subr.bf16.mxu0 0
    %4127 = vmatpush2.bf16.msra.mxu0 0
    %4128 = vmatprep.subr.bf16.mxu0 0
    %4129 = vmatpush2.bf16.msra.mxu0 0
    %4130 = vmatprep.mubr.bf16.mxu0 0
    %4131 = vmatmul.mubr.bf16.gmra.mxu0 %v4096
    %v4132 = vpop.f32.mrf.mxu0
    %v4133 = vadd.f32 0.0, %v4132
    %v4134 = vpop.f32.mrf.mxu0
    %v4135 = vpop.f32.mrf.mxu0
    %v4136 = vadd.f32 0.0, %v4135
    %v4137 = vpop.f32.mrf.mxu0
    %4138 = vdwg.mxu0
    %4140 = vrot.lane.b32.xlu0 %v1014, 96
    %v4141 = vpop.permute.xlu0 %4140
    %v4144 = vsel %vm1782, %v4076, 0
    %4146 = vmatprep.subr.bf16.mxu0 0
    %4147 = vmatpush1.bf16.msra.mxu0 0
    %4148 = vmatprep.subr.bf16.mxu0 0
    %4149 = vmatpush1.bf16.msra.mxu0 0
    %4150 = vmatprep.subr.bf16.mxu0 0
    %4151 = vmatpush1.bf16.msra.mxu0 0
    %4152 = vmatprep.subr.bf16.mxu0 0
    %4153 = vmatpush1.bf16.msra.mxu0 0
    %4154 = vmatprep.subr.bf16.mxu0 0
    %4155 = vmatpush1.bf16.msra.mxu0 0
    %4156 = vmatprep.subr.bf16.mxu0 0
    %4157 = vmatpush1.bf16.msra.mxu0 0
    %4158 = vmatprep.subr.bf16.mxu0 0
    %4159 = vmatpush1.bf16.msra.mxu0 0
    %4160 = vmatprep.subr.bf16.mxu0 0
    %4161 = vmatpush1.bf16.msra.mxu0 %v4141
    %4162 = vmatprep.subr.bf16.mxu0 0
    %4163 = vmatpush2.bf16.msra.mxu0 0
    %4164 = vmatprep.subr.bf16.mxu0 0
    %4165 = vmatpush2.bf16.msra.mxu0 0
    %4166 = vmatprep.subr.bf16.mxu0 0
    %4167 = vmatpush2.bf16.msra.mxu0 0
    %4168 = vmatprep.subr.bf16.mxu0 0
    %4169 = vmatpush2.bf16.msra.mxu0 0
    %4170 = vmatprep.subr.bf16.mxu0 0
    %4171 = vmatpush2.bf16.msra.mxu0 0
    %4172 = vmatprep.subr.bf16.mxu0 0
    %4173 = vmatpush2.bf16.msra.mxu0 0
    %4174 = vmatprep.subr.bf16.mxu0 0
    %4175 = vmatpush2.bf16.msra.mxu0 0
    %4176 = vmatprep.subr.bf16.mxu0 0
    %4177 = vmatpush2.bf16.msra.mxu0 0
    %4178 = vmatprep.mubr.bf16.mxu0 0
    %4179 = vmatmul.mubr.bf16.gmra.mxu0 %v4144
    %v4180 = vpop.f32.mrf.mxu0
    %v4181 = vadd.f32 0.0, %v4180
    %v4182 = vpop.f32.mrf.mxu0
    %v4183 = vpop.f32.mrf.mxu0
    %v4184 = vadd.f32 0.0, %v4183
    %v4185 = vpop.f32.mrf.mxu0
    %4186 = vdwg.mxu0
    %4188 = vrot.lane.b32.xlu0 %v1015, 96
    %v4189 = vpop.permute.xlu0 %4188
    %v4192 = vsel %vm1782, %v4077, 0
    %4194 = vmatprep.subr.bf16.mxu0 0
    %4195 = vmatpush1.bf16.msra.mxu0 0
    %4196 = vmatprep.subr.bf16.mxu0 0
    %4197 = vmatpush1.bf16.msra.mxu0 0
    %4198 = vmatprep.subr.bf16.mxu0 0
    %4199 = vmatpush1.bf16.msra.mxu0 0
    %4200 = vmatprep.subr.bf16.mxu0 0
    %4201 = vmatpush1.bf16.msra.mxu0 0
    %4202 = vmatprep.subr.bf16.mxu0 0
    %4203 = vmatpush1.bf16.msra.mxu0 0
    %4204 = vmatprep.subr.bf16.mxu0 0
    %4205 = vmatpush1.bf16.msra.mxu0 0
    %4206 = vmatprep.subr.bf16.mxu0 0
    %4207 = vmatpush1.bf16.msra.mxu0 0
    %4208 = vmatprep.subr.bf16.mxu0 0
    %4209 = vmatpush1.bf16.msra.mxu0 %v4189
    %4210 = vmatprep.subr.bf16.mxu0 0
    %4211 = vmatpush2.bf16.msra.mxu0 0
    %4212 = vmatprep.subr.bf16.mxu0 0
    %4213 = vmatpush2.bf16.msra.mxu0 0
    %4214 = vmatprep.subr.bf16.mxu0 0
    %4215 = vmatpush2.bf16.msra.mxu0 0
    %4216 = vmatprep.subr.bf16.mxu0 0
    %4217 = vmatpush2.bf16.msra.mxu0 0
    %4218 = vmatprep.subr.bf16.mxu0 0
    %4219 = vmatpush2.bf16.msra.mxu0 0
    %4220 = vmatprep.subr.bf16.mxu0 0
    %4221 = vmatpush2.bf16.msra.mxu0 0
    %4222 = vmatprep.subr.bf16.mxu0 0
    %4223 = vmatpush2.bf16.msra.mxu0 0
    %4224 = vmatprep.subr.bf16.mxu0 0
    %4225 = vmatpush2.bf16.msra.mxu0 0
    %4226 = vmatprep.mubr.bf16.mxu0 0
    %4227 = vmatmul.mubr.bf16.gmra.mxu0 %v4192
    %v4228 = vpop.f32.mrf.mxu0
    %v4229 = vadd.f32 0.0, %v4228
    %v4230 = vpop.f32.mrf.mxu0
    %v4231 = vpop.f32.mrf.mxu0
    %v4232 = vadd.f32 0.0, %v4231
    %v4233 = vpop.f32.mrf.mxu0
    %4234 = vdwg.mxu0
    %4236 = vrot.lane.b32.xlu0 %v1016, 96
    %v4237 = vpop.permute.xlu0 %4236
    %v4240 = vsel %vm1782, %v4078, 0
    %4242 = vmatprep.subr.bf16.mxu0 0
    %4243 = vmatpush1.bf16.msra.mxu0 0
    %4244 = vmatprep.subr.bf16.mxu0 0
    %4245 = vmatpush1.bf16.msra.mxu0 0
    %4246 = vmatprep.subr.bf16.mxu0 0
    %4247 = vmatpush1.bf16.msra.mxu0 0
    %4248 = vmatprep.subr.bf16.mxu0 0
    %4249 = vmatpush1.bf16.msra.mxu0 0
    %4250 = vmatprep.subr.bf16.mxu0 0
    %4251 = vmatpush1.bf16.msra.mxu0 0
    %4252 = vmatprep.subr.bf16.mxu0 0
    %4253 = vmatpush1.bf16.msra.mxu0 0
    %4254 = vmatprep.subr.bf16.mxu0 0
    %4255 = vmatpush1.bf16.msra.mxu0 0
    %4256 = vmatprep.subr.bf16.mxu0 0
    %4257 = vmatpush1.bf16.msra.mxu0 %v4237
    %4258 = vmatprep.subr.bf16.mxu0 0
    %4259 = vmatpush2.bf16.msra.mxu0 0
    %4260 = vmatprep.subr.bf16.mxu0 0
    %4261 = vmatpush2.bf16.msra.mxu0 0
    %4262 = vmatprep.subr.bf16.mxu0 0
    %4263 = vmatpush2.bf16.msra.mxu0 0
    %4264 = vmatprep.subr.bf16.mxu0 0
    %4265 = vmatpush2.bf16.msra.mxu0 0
    %4266 = vmatprep.subr.bf16.mxu0 0
    %4267 = vmatpush2.bf16.msra.mxu0 0
    %4268 = vmatprep.subr.bf16.mxu0 0
    %4269 = vmatpush2.bf16.msra.mxu0 0
    %4270 = vmatprep.subr.bf16.mxu0 0
    %4271 = vmatpush2.bf16.msra.mxu0 0
    %4272 = vmatprep.subr.bf16.mxu0 0
    %4273 = vmatpush2.bf16.msra.mxu0 0
    %4274 = vmatprep.mubr.bf16.mxu0 0
    %4275 = vmatmul.mubr.bf16.gmra.mxu0 %v4240
    %v4276 = vpop.f32.mrf.mxu0
    %v4277 = vadd.f32 0.0, %v4276
    %v4278 = vpop.f32.mrf.mxu0
    %v4279 = vpop.f32.mrf.mxu0
    %v4280 = vadd.f32 0.0, %v4279
    %v4281 = vpop.f32.mrf.mxu0
    %4282 = vdwg.mxu0
    %4284 = vrot.lane.b32.xlu0 %v1017, 96
    %v4285 = vpop.permute.xlu0 %4284
    %v4288 = vsel %vm1782, %v4079, 0
    %4290 = vmatprep.subr.bf16.mxu0 0
    %4291 = vmatpush1.bf16.msra.mxu0 0
    %4292 = vmatprep.subr.bf16.mxu0 0
    %4293 = vmatpush1.bf16.msra.mxu0 0
    %4294 = vmatprep.subr.bf16.mxu0 0
    %4295 = vmatpush1.bf16.msra.mxu0 0
    %4296 = vmatprep.subr.bf16.mxu0 0
    %4297 = vmatpush1.bf16.msra.mxu0 0
    %4298 = vmatprep.subr.bf16.mxu0 0
    %4299 = vmatpush1.bf16.msra.mxu0 0
    %4300 = vmatprep.subr.bf16.mxu0 0
    %4301 = vmatpush1.bf16.msra.mxu0 0
    %4302 = vmatprep.subr.bf16.mxu0 0
    %4303 = vmatpush1.bf16.msra.mxu0 0
    %4304 = vmatprep.subr.bf16.mxu0 0
    %4305 = vmatpush1.bf16.msra.mxu0 %v4285
    %4306 = vmatprep.subr.bf16.mxu0 0
    %4307 = vmatpush2.bf16.msra.mxu0 0
    %4308 = vmatprep.subr.bf16.mxu0 0
    %4309 = vmatpush2.bf16.msra.mxu0 0
    %4310 = vmatprep.subr.bf16.mxu0 0
    %4311 = vmatpush2.bf16.msra.mxu0 0
    %4312 = vmatprep.subr.bf16.mxu0 0
    %4313 = vmatpush2.bf16.msra.mxu0 0
    %4314 = vmatprep.subr.bf16.mxu0 0
    %4315 = vmatpush2.bf16.msra.mxu0 0
    %4316 = vmatprep.subr.bf16.mxu0 0
    %4317 = vmatpush2.bf16.msra.mxu0 0
    %4318 = vmatprep.subr.bf16.mxu0 0
    %4319 = vmatpush2.bf16.msra.mxu0 0
    %4320 = vmatprep.subr.bf16.mxu0 0
    %4321 = vmatpush2.bf16.msra.mxu0 0
    %4322 = vmatprep.mubr.bf16.mxu0 0
    %4323 = vmatmul.mubr.bf16.gmra.mxu0 %v4288
    %v4324 = vpop.f32.mrf.mxu0
    %v4325 = vadd.f32 0.0, %v4324
    %v4326 = vpop.f32.mrf.mxu0
    %v4327 = vpop.f32.mrf.mxu0
    %v4328 = vadd.f32 0.0, %v4327
    %v4329 = vpop.f32.mrf.mxu0
    %4330 = vdwg.mxu0
    %4332 = vrot.lane.b32.xlu0 %v1018, 96
    %v4333 = vpop.permute.xlu0 %4332
    %v4336 = vsel %vm1782, %v4080, 0
    %4338 = vmatprep.subr.bf16.mxu0 0
    %4339 = vmatpush1.bf16.msra.mxu0 0
    %4340 = vmatprep.subr.bf16.mxu0 0
    %4341 = vmatpush1.bf16.msra.mxu0 0
    %4342 = vmatprep.subr.bf16.mxu0 0
    %4343 = vmatpush1.bf16.msra.mxu0 0
    %4344 = vmatprep.subr.bf16.mxu0 0
    %4345 = vmatpush1.bf16.msra.mxu0 0
    %4346 = vmatprep.subr.bf16.mxu0 0
    %4347 = vmatpush1.bf16.msra.mxu0 0
    %4348 = vmatprep.subr.bf16.mxu0 0
    %4349 = vmatpush1.bf16.msra.mxu0 0
    %4350 = vmatprep.subr.bf16.mxu0 0
    %4351 = vmatpush1.bf16.msra.mxu0 0
    %4352 = vmatprep.subr.bf16.mxu0 0
    %4353 = vmatpush1.bf16.msra.mxu0 %v4333
    %4354 = vmatprep.subr.bf16.mxu0 0
    %4355 = vmatpush2.bf16.msra.mxu0 0
    %4356 = vmatprep.subr.bf16.mxu0 0
    %4357 = vmatpush2.bf16.msra.mxu0 0
    %4358 = vmatprep.subr.bf16.mxu0 0
    %4359 = vmatpush2.bf16.msra.mxu0 0
    %4360 = vmatprep.subr.bf16.mxu0 0
    %4361 = vmatpush2.bf16.msra.mxu0 0
    %4362 = vmatprep.subr.bf16.mxu0 0
    %4363 = vmatpush2.bf16.msra.mxu0 0
    %4364 = vmatprep.subr.bf16.mxu0 0
    %4365 = vmatpush2.bf16.msra.mxu0 0
    %4366 = vmatprep.subr.bf16.mxu0 0
    %4367 = vmatpush2.bf16.msra.mxu0 0
    %4368 = vmatprep.subr.bf16.mxu0 0
    %4369 = vmatpush2.bf16.msra.mxu0 0
    %4370 = vmatprep.mubr.bf16.mxu0 0
    %4371 = vmatmul.mubr.bf16.gmra.mxu0 %v4336
    %v4372 = vpop.f32.mrf.mxu0
    %v4373 = vadd.f32 0.0, %v4372
    %v4374 = vpop.f32.mrf.mxu0
    %v4375 = vpop.f32.mrf.mxu0
    %v4376 = vadd.f32 0.0, %v4375
    %v4377 = vpop.f32.mrf.mxu0
    %4378 = vdwg.mxu0
    %4380 = vrot.lane.b32.xlu0 %v1019, 96
    %v4381 = vpop.permute.xlu0 %4380
    %v4384 = vsel %vm1782, %v4081, 0
    %4386 = vmatprep.subr.bf16.mxu0 0
    %4387 = vmatpush1.bf16.msra.mxu0 0
    %4388 = vmatprep.subr.bf16.mxu0 0
    %4389 = vmatpush1.bf16.msra.mxu0 0
    %4390 = vmatprep.subr.bf16.mxu0 0
    %4391 = vmatpush1.bf16.msra.mxu0 0
    %4392 = vmatprep.subr.bf16.mxu0 0
    %4393 = vmatpush1.bf16.msra.mxu0 0
    %4394 = vmatprep.subr.bf16.mxu0 0
    %4395 = vmatpush1.bf16.msra.mxu0 0
    %4396 = vmatprep.subr.bf16.mxu0 0
    %4397 = vmatpush1.bf16.msra.mxu0 0
    %4398 = vmatprep.subr.bf16.mxu0 0
    %4399 = vmatpush1.bf16.msra.mxu0 0
    %4400 = vmatprep.subr.bf16.mxu0 0
    %4401 = vmatpush1.bf16.msra.mxu0 %v4381
    %4402 = vmatprep.subr.bf16.mxu0 0
    %4403 = vmatpush2.bf16.msra.mxu0 0
    %4404 = vmatprep.subr.bf16.mxu0 0
    %4405 = vmatpush2.bf16.msra.mxu0 0
    %4406 = vmatprep.subr.bf16.mxu0 0
    %4407 = vmatpush2.bf16.msra.mxu0 0
    %4408 = vmatprep.subr.bf16.mxu0 0
    %4409 = vmatpush2.bf16.msra.mxu0 0
    %4410 = vmatprep.subr.bf16.mxu0 0
    %4411 = vmatpush2.bf16.msra.mxu0 0
    %4412 = vmatprep.subr.bf16.mxu0 0
    %4413 = vmatpush2.bf16.msra.mxu0 0
    %4414 = vmatprep.subr.bf16.mxu0 0
    %4415 = vmatpush2.bf16.msra.mxu0 0
    %4416 = vmatprep.subr.bf16.mxu0 0
    %4417 = vmatpush2.bf16.msra.mxu0 0
    %4418 = vmatprep.mubr.bf16.mxu0 0
    %4419 = vmatmul.mubr.bf16.gmra.mxu0 %v4384
    %v4420 = vpop.f32.mrf.mxu0
    %v4421 = vadd.f32 0.0, %v4420
    %v4422 = vpop.f32.mrf.mxu0
    %v4423 = vpop.f32.mrf.mxu0
    %v4424 = vadd.f32 0.0, %v4423
    %v4425 = vpop.f32.mrf.mxu0
    %4426 = vdwg.mxu0
    %4428 = vrot.lane.b32.xlu0 %v1020, 96
    %v4429 = vpop.permute.xlu0 %4428
    %v4432 = vsel %vm1782, %v4082, 0
    %4434 = vmatprep.subr.bf16.mxu0 0
    %4435 = vmatpush1.bf16.msra.mxu0 0
    %4436 = vmatprep.subr.bf16.mxu0 0
    %4437 = vmatpush1.bf16.msra.mxu0 0
    %4438 = vmatprep.subr.bf16.mxu0 0
    %4439 = vmatpush1.bf16.msra.mxu0 0
    %4440 = vmatprep.subr.bf16.mxu0 0
    %4441 = vmatpush1.bf16.msra.mxu0 0
    %4442 = vmatprep.subr.bf16.mxu0 0
    %4443 = vmatpush1.bf16.msra.mxu0 0
    %4444 = vmatprep.subr.bf16.mxu0 0
    %4445 = vmatpush1.bf16.msra.mxu0 0
    %4446 = vmatprep.subr.bf16.mxu0 0
    %4447 = vmatpush1.bf16.msra.mxu0 0
    %4448 = vmatprep.subr.bf16.mxu0 0
    %4449 = vmatpush1.bf16.msra.mxu0 %v4429
    %4450 = vmatprep.subr.bf16.mxu0 0
    %4451 = vmatpush2.bf16.msra.mxu0 0
    %4452 = vmatprep.subr.bf16.mxu0 0
    %4453 = vmatpush2.bf16.msra.mxu0 0
    %4454 = vmatprep.subr.bf16.mxu0 0
    %4455 = vmatpush2.bf16.msra.mxu0 0
    %4456 = vmatprep.subr.bf16.mxu0 0
    %4457 = vmatpush2.bf16.msra.mxu0 0
    %4458 = vmatprep.subr.bf16.mxu0 0
    %4459 = vmatpush2.bf16.msra.mxu0 0
    %4460 = vmatprep.subr.bf16.mxu0 0
    %4461 = vmatpush2.bf16.msra.mxu0 0
    %4462 = vmatprep.subr.bf16.mxu0 0
    %4463 = vmatpush2.bf16.msra.mxu0 0
    %4464 = vmatprep.subr.bf16.mxu0 0
    %4465 = vmatpush2.bf16.msra.mxu0 0
    %4466 = vmatprep.mubr.bf16.mxu0 0
    %4467 = vmatmul.mubr.bf16.gmra.mxu0 %v4432
    %v4468 = vpop.f32.mrf.mxu0
    %v4469 = vadd.f32 0.0, %v4468
    %v4470 = vpop.f32.mrf.mxu0
    %v4471 = vpop.f32.mrf.mxu0
    %v4472 = vadd.f32 0.0, %v4471
    %v4473 = vpop.f32.mrf.mxu0
    %4474 = vdwg.mxu0
    %4476 = vrot.lane.b32.xlu0 %v1021, 96
    %v4477 = vpop.permute.xlu0 %4476
    %v4480 = vsel %vm1782, %v4083, 0
    %4482 = vmatprep.subr.bf16.mxu0 0
    %4483 = vmatpush1.bf16.msra.mxu0 0
    %4484 = vmatprep.subr.bf16.mxu0 0
    %4485 = vmatpush1.bf16.msra.mxu0 0
    %4486 = vmatprep.subr.bf16.mxu0 0
    %4487 = vmatpush1.bf16.msra.mxu0 0
    %4488 = vmatprep.subr.bf16.mxu0 0
    %4489 = vmatpush1.bf16.msra.mxu0 0
    %4490 = vmatprep.subr.bf16.mxu0 0
    %4491 = vmatpush1.bf16.msra.mxu0 0
    %4492 = vmatprep.subr.bf16.mxu0 0
    %4493 = vmatpush1.bf16.msra.mxu0 0
    %4494 = vmatprep.subr.bf16.mxu0 0
    %4495 = vmatpush1.bf16.msra.mxu0 0
    %4496 = vmatprep.subr.bf16.mxu0 0
    %4497 = vmatpush1.bf16.msra.mxu0 %v4477
    %4498 = vmatprep.subr.bf16.mxu0 0
    %4499 = vmatpush2.bf16.msra.mxu0 0
    %4500 = vmatprep.subr.bf16.mxu0 0
    %4501 = vmatpush2.bf16.msra.mxu0 0
    %4502 = vmatprep.subr.bf16.mxu0 0
    %4503 = vmatpush2.bf16.msra.mxu0 0
    %4504 = vmatprep.subr.bf16.mxu0 0
    %4505 = vmatpush2.bf16.msra.mxu0 0
    %4506 = vmatprep.subr.bf16.mxu0 0
    %4507 = vmatpush2.bf16.msra.mxu0 0
    %4508 = vmatprep.subr.bf16.mxu0 0
    %4509 = vmatpush2.bf16.msra.mxu0 0
    %4510 = vmatprep.subr.bf16.mxu0 0
    %4511 = vmatpush2.bf16.msra.mxu0 0
    %4512 = vmatprep.subr.bf16.mxu0 0
    %4513 = vmatpush2.bf16.msra.mxu0 0
    %4514 = vmatprep.mubr.bf16.mxu0 0
    %4515 = vmatmul.mubr.bf16.gmra.mxu0 %v4480
    %v4516 = vpop.f32.mrf.mxu0
    %v4517 = vadd.f32 0.0, %v4516
    %v4518 = vpop.f32.mrf.mxu0
    %v4519 = vpop.f32.mrf.mxu0
    %v4520 = vadd.f32 0.0, %v4519
    %v4521 = vpop.f32.mrf.mxu0
    %4522 = vdwg.mxu0
    %4524 = vrot.lane.b32.xlu0 %v1022, 96
    %v4525 = vpop.permute.xlu0 %4524
    %v4528 = vsel %vm1782, %v4084, 0
    %4530 = vmatprep.subr.bf16.mxu0 0
    %4531 = vmatpush1.bf16.msra.mxu0 0
    %4532 = vmatprep.subr.bf16.mxu0 0
    %4533 = vmatpush1.bf16.msra.mxu0 0
    %4534 = vmatprep.subr.bf16.mxu0 0
    %4535 = vmatpush1.bf16.msra.mxu0 0
    %4536 = vmatprep.subr.bf16.mxu0 0
    %4537 = vmatpush1.bf16.msra.mxu0 0
    %4538 = vmatprep.subr.bf16.mxu0 0
    %4539 = vmatpush1.bf16.msra.mxu0 0
    %4540 = vmatprep.subr.bf16.mxu0 0
    %4541 = vmatpush1.bf16.msra.mxu0 0
    %4542 = vmatprep.subr.bf16.mxu0 0
    %4543 = vmatpush1.bf16.msra.mxu0 0
    %4544 = vmatprep.subr.bf16.mxu0 0
    %4545 = vmatpush1.bf16.msra.mxu0 %v4525
    %4546 = vmatprep.subr.bf16.mxu0 0
    %4547 = vmatpush2.bf16.msra.mxu0 0
    %4548 = vmatprep.subr.bf16.mxu0 0
    %4549 = vmatpush2.bf16.msra.mxu0 0
    %4550 = vmatprep.subr.bf16.mxu0 0
    %4551 = vmatpush2.bf16.msra.mxu0 0
    %4552 = vmatprep.subr.bf16.mxu0 0
    %4553 = vmatpush2.bf16.msra.mxu0 0
    %4554 = vmatprep.subr.bf16.mxu0 0
    %4555 = vmatpush2.bf16.msra.mxu0 0
    %4556 = vmatprep.subr.bf16.mxu0 0
    %4557 = vmatpush2.bf16.msra.mxu0 0
    %4558 = vmatprep.subr.bf16.mxu0 0
    %4559 = vmatpush2.bf16.msra.mxu0 0
    %4560 = vmatprep.subr.bf16.mxu0 0
    %4561 = vmatpush2.bf16.msra.mxu0 0
    %4562 = vmatprep.mubr.bf16.mxu0 0
    %4563 = vmatmul.mubr.bf16.gmra.mxu0 %v4528
    %v4564 = vpop.f32.mrf.mxu0
    %v4565 = vadd.f32 0.0, %v4564
    %v4566 = vpop.f32.mrf.mxu0
    %v4567 = vpop.f32.mrf.mxu0
    %v4568 = vadd.f32 0.0, %v4567
    %v4569 = vpop.f32.mrf.mxu0
    %4570 = vdwg.mxu0
    %4572 = vrot.lane.b32.xlu0 %v1023, 96
    %v4573 = vpop.permute.xlu0 %4572
    %v4576 = vsel %vm1782, %v4085, 0
    %4578 = vmatprep.subr.bf16.mxu0 0
    %4579 = vmatpush1.bf16.msra.mxu0 0
    %4580 = vmatprep.subr.bf16.mxu0 0
    %4581 = vmatpush1.bf16.msra.mxu0 0
    %4582 = vmatprep.subr.bf16.mxu0 0
    %4583 = vmatpush1.bf16.msra.mxu0 0
    %4584 = vmatprep.subr.bf16.mxu0 0
    %4585 = vmatpush1.bf16.msra.mxu0 0
    %4586 = vmatprep.subr.bf16.mxu0 0
    %4587 = vmatpush1.bf16.msra.mxu0 0
    %4588 = vmatprep.subr.bf16.mxu0 0
    %4589 = vmatpush1.bf16.msra.mxu0 0
    %4590 = vmatprep.subr.bf16.mxu0 0
    %4591 = vmatpush1.bf16.msra.mxu0 0
    %4592 = vmatprep.subr.bf16.mxu0 0
    %4593 = vmatpush1.bf16.msra.mxu0 %v4573
    %4594 = vmatprep.subr.bf16.mxu0 0
    %4595 = vmatpush2.bf16.msra.mxu0 0
    %4596 = vmatprep.subr.bf16.mxu0 0
    %4597 = vmatpush2.bf16.msra.mxu0 0
    %4598 = vmatprep.subr.bf16.mxu0 0
    %4599 = vmatpush2.bf16.msra.mxu0 0
    %4600 = vmatprep.subr.bf16.mxu0 0
    %4601 = vmatpush2.bf16.msra.mxu0 0
    %4602 = vmatprep.subr.bf16.mxu0 0
    %4603 = vmatpush2.bf16.msra.mxu0 0
    %4604 = vmatprep.subr.bf16.mxu0 0
    %4605 = vmatpush2.bf16.msra.mxu0 0
    %4606 = vmatprep.subr.bf16.mxu0 0
    %4607 = vmatpush2.bf16.msra.mxu0 0
    %4608 = vmatprep.subr.bf16.mxu0 0
    %4609 = vmatpush2.bf16.msra.mxu0 0
    %4610 = vmatprep.mubr.bf16.mxu0 0
    %4611 = vmatmul.mubr.bf16.gmra.mxu0 %v4576
    %v4612 = vpop.f32.mrf.mxu0
    %v4613 = vadd.f32 0.0, %v4612
    %v4614 = vpop.f32.mrf.mxu0
    %v4615 = vpop.f32.mrf.mxu0
    %v4616 = vadd.f32 0.0, %v4615
    %v4617 = vpop.f32.mrf.mxu0
    %4618 = vdwg.mxu0
    %4620 = vrot.lane.b32.xlu0 %v1024, 96
    %v4621 = vpop.permute.xlu0 %4620
    %v4624 = vsel %vm1782, %v4086, 0
    %4626 = vmatprep.subr.bf16.mxu0 0
    %4627 = vmatpush1.bf16.msra.mxu0 0
    %4628 = vmatprep.subr.bf16.mxu0 0
    %4629 = vmatpush1.bf16.msra.mxu0 0
    %4630 = vmatprep.subr.bf16.mxu0 0
    %4631 = vmatpush1.bf16.msra.mxu0 0
    %4632 = vmatprep.subr.bf16.mxu0 0
    %4633 = vmatpush1.bf16.msra.mxu0 0
    %4634 = vmatprep.subr.bf16.mxu0 0
    %4635 = vmatpush1.bf16.msra.mxu0 0
    %4636 = vmatprep.subr.bf16.mxu0 0
    %4637 = vmatpush1.bf16.msra.mxu0 0
    %4638 = vmatprep.subr.bf16.mxu0 0
    %4639 = vmatpush1.bf16.msra.mxu0 0
    %4640 = vmatprep.subr.bf16.mxu0 0
    %4641 = vmatpush1.bf16.msra.mxu0 %v4621
    %4642 = vmatprep.subr.bf16.mxu0 0
    %4643 = vmatpush2.bf16.msra.mxu0 0
    %4644 = vmatprep.subr.bf16.mxu0 0
    %4645 = vmatpush2.bf16.msra.mxu0 0
    %4646 = vmatprep.subr.bf16.mxu0 0
    %4647 = vmatpush2.bf16.msra.mxu0 0
    %4648 = vmatprep.subr.bf16.mxu0 0
    %4649 = vmatpush2.bf16.msra.mxu0 0
    %4650 = vmatprep.subr.bf16.mxu0 0
    %4651 = vmatpush2.bf16.msra.mxu0 0
    %4652 = vmatprep.subr.bf16.mxu0 0
    %4653 = vmatpush2.bf16.msra.mxu0 0
    %4654 = vmatprep.subr.bf16.mxu0 0
    %4655 = vmatpush2.bf16.msra.mxu0 0
    %4656 = vmatprep.subr.bf16.mxu0 0
    %4657 = vmatpush2.bf16.msra.mxu0 0
    %4658 = vmatprep.mubr.bf16.mxu0 0
    %4659 = vmatmul.mubr.bf16.gmra.mxu0 %v4624
    %v4660 = vpop.f32.mrf.mxu0
    %v4661 = vadd.f32 0.0, %v4660
    %v4662 = vpop.f32.mrf.mxu0
    %v4663 = vpop.f32.mrf.mxu0
    %v4664 = vadd.f32 0.0, %v4663
    %v4665 = vpop.f32.mrf.mxu0
    %4666 = vdwg.mxu0
    %4668 = vrot.lane.b32.xlu0 %v1025, 96
    %v4669 = vpop.permute.xlu0 %4668
    %v4672 = vsel %vm1782, %v4087, 0
    %4674 = vmatprep.subr.bf16.mxu0 0
    %4675 = vmatpush1.bf16.msra.mxu0 0
    %4676 = vmatprep.subr.bf16.mxu0 0
    %4677 = vmatpush1.bf16.msra.mxu0 0
    %4678 = vmatprep.subr.bf16.mxu0 0
    %4679 = vmatpush1.bf16.msra.mxu0 0
    %4680 = vmatprep.subr.bf16.mxu0 0
    %4681 = vmatpush1.bf16.msra.mxu0 0
    %4682 = vmatprep.subr.bf16.mxu0 0
    %4683 = vmatpush1.bf16.msra.mxu0 0
    %4684 = vmatprep.subr.bf16.mxu0 0
    %4685 = vmatpush1.bf16.msra.mxu0 0
    %4686 = vmatprep.subr.bf16.mxu0 0
    %4687 = vmatpush1.bf16.msra.mxu0 0
    %4688 = vmatprep.subr.bf16.mxu0 0
    %4689 = vmatpush1.bf16.msra.mxu0 %v4669
    %4690 = vmatprep.subr.bf16.mxu0 0
    %4691 = vmatpush2.bf16.msra.mxu0 0
    %4692 = vmatprep.subr.bf16.mxu0 0
    %4693 = vmatpush2.bf16.msra.mxu0 0
    %4694 = vmatprep.subr.bf16.mxu0 0
    %4695 = vmatpush2.bf16.msra.mxu0 0
    %4696 = vmatprep.subr.bf16.mxu0 0
    %4697 = vmatpush2.bf16.msra.mxu0 0
    %4698 = vmatprep.subr.bf16.mxu0 0
    %4699 = vmatpush2.bf16.msra.mxu0 0
    %4700 = vmatprep.subr.bf16.mxu0 0
    %4701 = vmatpush2.bf16.msra.mxu0 0
    %4702 = vmatprep.subr.bf16.mxu0 0
    %4703 = vmatpush2.bf16.msra.mxu0 0
    %4704 = vmatprep.subr.bf16.mxu0 0
    %4705 = vmatpush2.bf16.msra.mxu0 0
    %4706 = vmatprep.mubr.bf16.mxu0 0
    %4707 = vmatmul.mubr.bf16.gmra.mxu0 %v4672
    %v4708 = vpop.f32.mrf.mxu0
    %v4709 = vadd.f32 0.0, %v4708
    %v4710 = vpop.f32.mrf.mxu0
    %v4711 = vpop.f32.mrf.mxu0
    %v4712 = vadd.f32 0.0, %v4711
    %v4713 = vpop.f32.mrf.mxu0
    %4714 = vdwg.mxu0
    %4716 = vrot.lane.b32.xlu0 %v1026, 96
    %v4717 = vpop.permute.xlu0 %4716
    %v4720 = vsel %vm1782, %v4088, 0
    %4722 = vmatprep.subr.bf16.mxu0 0
    %4723 = vmatpush1.bf16.msra.mxu0 0
    %4724 = vmatprep.subr.bf16.mxu0 0
    %4725 = vmatpush1.bf16.msra.mxu0 0
    %4726 = vmatprep.subr.bf16.mxu0 0
    %4727 = vmatpush1.bf16.msra.mxu0 0
    %4728 = vmatprep.subr.bf16.mxu0 0
    %4729 = vmatpush1.bf16.msra.mxu0 0
    %4730 = vmatprep.subr.bf16.mxu0 0
    %4731 = vmatpush1.bf16.msra.mxu0 0
    %4732 = vmatprep.subr.bf16.mxu0 0
    %4733 = vmatpush1.bf16.msra.mxu0 0
    %4734 = vmatprep.subr.bf16.mxu0 0
    %4735 = vmatpush1.bf16.msra.mxu0 0
    %4736 = vmatprep.subr.bf16.mxu0 0
    %4737 = vmatpush1.bf16.msra.mxu0 %v4717
    %4738 = vmatprep.subr.bf16.mxu0 0
    %4739 = vmatpush2.bf16.msra.mxu0 0
    %4740 = vmatprep.subr.bf16.mxu0 0
    %4741 = vmatpush2.bf16.msra.mxu0 0
    %4742 = vmatprep.subr.bf16.mxu0 0
    %4743 = vmatpush2.bf16.msra.mxu0 0
    %4744 = vmatprep.subr.bf16.mxu0 0
    %4745 = vmatpush2.bf16.msra.mxu0 0
    %4746 = vmatprep.subr.bf16.mxu0 0
    %4747 = vmatpush2.bf16.msra.mxu0 0
    %4748 = vmatprep.subr.bf16.mxu0 0
    %4749 = vmatpush2.bf16.msra.mxu0 0
    %4750 = vmatprep.subr.bf16.mxu0 0
    %4751 = vmatpush2.bf16.msra.mxu0 0
    %4752 = vmatprep.subr.bf16.mxu0 0
    %4753 = vmatpush2.bf16.msra.mxu0 0
    %4754 = vmatprep.mubr.bf16.mxu0 0
    %4755 = vmatmul.mubr.bf16.gmra.mxu0 %v4720
    %v4756 = vpop.f32.mrf.mxu0
    %v4757 = vadd.f32 0.0, %v4756
    %v4758 = vpop.f32.mrf.mxu0
    %v4759 = vpop.f32.mrf.mxu0
    %v4760 = vadd.f32 0.0, %v4759
    %v4761 = vpop.f32.mrf.mxu0
    %4762 = vdwg.mxu0
    %4764 = vrot.lane.b32.xlu0 %v1027, 96
    %v4765 = vpop.permute.xlu0 %4764
    %v4768 = vsel %vm1782, %v4089, 0
    %4770 = vmatprep.subr.bf16.mxu0 0
    %4771 = vmatpush1.bf16.msra.mxu0 0
    %4772 = vmatprep.subr.bf16.mxu0 0
    %4773 = vmatpush1.bf16.msra.mxu0 0
    %4774 = vmatprep.subr.bf16.mxu0 0
    %4775 = vmatpush1.bf16.msra.mxu0 0
    %4776 = vmatprep.subr.bf16.mxu0 0
    %4777 = vmatpush1.bf16.msra.mxu0 0
    %4778 = vmatprep.subr.bf16.mxu0 0
    %4779 = vmatpush1.bf16.msra.mxu0 0
    %4780 = vmatprep.subr.bf16.mxu0 0
    %4781 = vmatpush1.bf16.msra.mxu0 0
    %4782 = vmatprep.subr.bf16.mxu0 0
    %4783 = vmatpush1.bf16.msra.mxu0 0
    %4784 = vmatprep.subr.bf16.mxu0 0
    %4785 = vmatpush1.bf16.msra.mxu0 %v4765
    %4786 = vmatprep.subr.bf16.mxu0 0
    %4787 = vmatpush2.bf16.msra.mxu0 0
    %4788 = vmatprep.subr.bf16.mxu0 0
    %4789 = vmatpush2.bf16.msra.mxu0 0
    %4790 = vmatprep.subr.bf16.mxu0 0
    %4791 = vmatpush2.bf16.msra.mxu0 0
    %4792 = vmatprep.subr.bf16.mxu0 0
    %4793 = vmatpush2.bf16.msra.mxu0 0
    %4794 = vmatprep.subr.bf16.mxu0 0
    %4795 = vmatpush2.bf16.msra.mxu0 0
    %4796 = vmatprep.subr.bf16.mxu0 0
    %4797 = vmatpush2.bf16.msra.mxu0 0
    %4798 = vmatprep.subr.bf16.mxu0 0
    %4799 = vmatpush2.bf16.msra.mxu0 0
    %4800 = vmatprep.subr.bf16.mxu0 0
    %4801 = vmatpush2.bf16.msra.mxu0 0
    %4802 = vmatprep.mubr.bf16.mxu0 0
    %4803 = vmatmul.mubr.bf16.gmra.mxu0 %v4768
    %v4804 = vpop.f32.mrf.mxu0
    %v4805 = vadd.f32 0.0, %v4804
    %v4806 = vpop.f32.mrf.mxu0
    %v4807 = vpop.f32.mrf.mxu0
    %v4808 = vadd.f32 0.0, %v4807
    %v4809 = vpop.f32.mrf.mxu0
    %4810 = vdwg.mxu0
    %4812 = vrot.lane.b32.xlu0 %v1028, 96
    %v4813 = vpop.permute.xlu0 %4812
    %v4816 = vsel %vm1782, %v4090, 0
    %4818 = vmatprep.subr.bf16.mxu0 0
    %4819 = vmatpush1.bf16.msra.mxu0 0
    %4820 = vmatprep.subr.bf16.mxu0 0
    %4821 = vmatpush1.bf16.msra.mxu0 0
    %4822 = vmatprep.subr.bf16.mxu0 0
    %4823 = vmatpush1.bf16.msra.mxu0 0
    %4824 = vmatprep.subr.bf16.mxu0 0
    %4825 = vmatpush1.bf16.msra.mxu0 0
    %4826 = vmatprep.subr.bf16.mxu0 0
    %4827 = vmatpush1.bf16.msra.mxu0 0
    %4828 = vmatprep.subr.bf16.mxu0 0
    %4829 = vmatpush1.bf16.msra.mxu0 0
    %4830 = vmatprep.subr.bf16.mxu0 0
    %4831 = vmatpush1.bf16.msra.mxu0 0
    %4832 = vmatprep.subr.bf16.mxu0 0
    %4833 = vmatpush1.bf16.msra.mxu0 %v4813
    %4834 = vmatprep.subr.bf16.mxu0 0
    %4835 = vmatpush2.bf16.msra.mxu0 0
    %4836 = vmatprep.subr.bf16.mxu0 0
    %4837 = vmatpush2.bf16.msra.mxu0 0
    %4838 = vmatprep.subr.bf16.mxu0 0
    %4839 = vmatpush2.bf16.msra.mxu0 0
    %4840 = vmatprep.subr.bf16.mxu0 0
    %4841 = vmatpush2.bf16.msra.mxu0 0
    %4842 = vmatprep.subr.bf16.mxu0 0
    %4843 = vmatpush2.bf16.msra.mxu0 0
    %4844 = vmatprep.subr.bf16.mxu0 0
    %4845 = vmatpush2.bf16.msra.mxu0 0
    %4846 = vmatprep.subr.bf16.mxu0 0
    %4847 = vmatpush2.bf16.msra.mxu0 0
    %4848 = vmatprep.subr.bf16.mxu0 0
    %4849 = vmatpush2.bf16.msra.mxu0 0
    %4850 = vmatprep.mubr.bf16.mxu0 0
    %4851 = vmatmul.mubr.bf16.gmra.mxu0 %v4816
    %v4852 = vpop.f32.mrf.mxu0
    %v4853 = vadd.f32 0.0, %v4852
    %v4854 = vpop.f32.mrf.mxu0
    %v4855 = vpop.f32.mrf.mxu0
    %v4856 = vadd.f32 0.0, %v4855
    %v4857 = vpop.f32.mrf.mxu0
    %4858 = vdwg.mxu0
    %v4859 = vpack.c.bf16 %v4136, %v4133
    %v4860 = vpack.c.bf16 %v4184, %v4181
    %v4861 = vpack.c.bf16 %v4232, %v4229
    %v4862 = vpack.c.bf16 %v4280, %v4277
    %v4863 = vpack.c.bf16 %v4328, %v4325
    %v4864 = vpack.c.bf16 %v4376, %v4373
    %v4865 = vpack.c.bf16 %v4424, %v4421
    %v4866 = vpack.c.bf16 %v4472, %v4469
    %v4867 = vpack.c.bf16 %v4520, %v4517
    %v4868 = vpack.c.bf16 %v4568, %v4565
    %v4869 = vpack.c.bf16 %v4616, %v4613
    %v4870 = vpack.c.bf16 %v4664, %v4661
    %v4871 = vpack.c.bf16 %v4712, %v4709
    %v4872 = vpack.c.bf16 %v4760, %v4757
    %v4873 = vpack.c.bf16 %v4808, %v4805
    %v4874 = vpack.c.bf16 %v4856, %v4853
    %v4875 = vld [vmem:[#allocation11 + $0x10] sm:$0xf]
    %v4876 = vld [vmem:[#allocation11 + $0x14] sm:$0xf]
    %v4877 = vld [vmem:[#allocation11 + $0x18] sm:$0xf]
    %v4878 = vld [vmem:[#allocation11 + $0x1c] sm:$0xf]
    %v4883 = vunpack.c.l.b16 %v4875
    %v4884 = vunpack.c.l.b16 %v4876
    %v4885 = vunpack.c.l.b16 %v4877
    %v4886 = vunpack.c.l.b16 %v4878
    %v4887 = vpack.c.b16 %v4884, %v4883
    %v4888 = vpack.c.b16 %v4886, %v4885
    %v4892 = vsel %vm1029, %v4859, 0
    %v4895 = vsel %vm1029, %v4860, 0
    %v4898 = vsel %vm1029, %v4861, 0
    %v4901 = vsel %vm1029, %v4862, 0
    %v4904 = vsel %vm1029, %v4863, 0
    %v4907 = vsel %vm1029, %v4864, 0
    %v4910 = vsel %vm1029, %v4865, 0
    %v4913 = vsel %vm1029, %v4866, 0
    %v4916 = vsel %vm1029, %v4867, 0
    %v4919 = vsel %vm1029, %v4868, 0
    %v4922 = vsel %vm1029, %v4869, 0
    %v4925 = vsel %vm1029, %v4870, 0
    %v4928 = vsel %vm1029, %v4871, 0
    %v4931 = vsel %vm1029, %v4872, 0
    %v4934 = vsel %vm1029, %v4873, 0
    %v4937 = vsel %vm1029, %v4874, 0
    %4939 = vmatprep.subr.bf16.mxu0 0
    %4940 = vmatpush1.bf16.msra.mxu0 0
    %4941 = vmatprep.subr.bf16.mxu0 0
    %4942 = vmatpush1.bf16.msra.mxu0 0
    %4943 = vmatprep.subr.bf16.mxu0 0
    %4944 = vmatpush1.bf16.msra.mxu0 0
    %4945 = vmatprep.subr.bf16.mxu0 0
    %4946 = vmatpush1.bf16.msra.mxu0 0
    %4947 = vmatprep.subr.bf16.mxu0 0
    %4948 = vmatpush1.bf16.msra.mxu0 0
    %4949 = vmatprep.subr.bf16.mxu0 0
    %4950 = vmatpush1.bf16.msra.mxu0 0
    %4951 = vmatprep.subr.bf16.mxu0 0
    %4952 = vmatpush1.bf16.msra.mxu0 %v4888
    %4953 = vmatprep.subr.bf16.mxu0 0
    %4954 = vmatpush1.bf16.msra.mxu0 %v4887
    %4955 = vmatprep.subr.bf16.mxu0 0
    %4956 = vmatpush2.bf16.msra.mxu0 0
    %4957 = vmatprep.subr.bf16.mxu0 0
    %4958 = vmatpush2.bf16.msra.mxu0 0
    %4959 = vmatprep.subr.bf16.mxu0 0
    %4960 = vmatpush2.bf16.msra.mxu0 0
    %4961 = vmatprep.subr.bf16.mxu0 0
    %4962 = vmatpush2.bf16.msra.mxu0 0
    %4963 = vmatprep.subr.bf16.mxu0 0
    %4964 = vmatpush2.bf16.msra.mxu0 0
    %4965 = vmatprep.subr.bf16.mxu0 0
    %4966 = vmatpush2.bf16.msra.mxu0 0
    %4967 = vmatprep.subr.bf16.mxu0 0
    %4968 = vmatpush2.bf16.msra.mxu0 0
    %4969 = vmatprep.subr.bf16.mxu0 0
    %4970 = vmatpush2.bf16.msra.mxu0 0
    %4971 = vmatprep.mubr.bf16.mxu0 0
    %4972 = vmatmul.mubr.bf16.gmra.mxu0 %v4892
    %v4973 = vpop.f32.mrf.mxu0
    %v4974 = vadd.f32 0.0, %v4973
    %v4975 = vpop.f32.mrf.mxu0
    %v4976 = vpop.f32.mrf.mxu0
    %v4977 = vadd.f32 0.0, %v4976
    %v4978 = vpop.f32.mrf.mxu0
    %4979 = vmatprep.mubr.bf16.mxu0 0
    %4980 = vmatmul.mubr.bf16.gmra.mxu0 %v4895
    %v4981 = vpop.f32.mrf.mxu0
    %v4982 = vadd.f32 0.0, %v4981
    %v4983 = vpop.f32.mrf.mxu0
    %v4984 = vpop.f32.mrf.mxu0
    %v4985 = vadd.f32 0.0, %v4984
    %v4986 = vpop.f32.mrf.mxu0
    %4987 = vmatprep.mubr.bf16.mxu0 0
    %4988 = vmatmul.mubr.bf16.gmra.mxu0 %v4898
    %v4989 = vpop.f32.mrf.mxu0
    %v4990 = vadd.f32 0.0, %v4989
    %v4991 = vpop.f32.mrf.mxu0
    %v4992 = vpop.f32.mrf.mxu0
    %v4993 = vadd.f32 0.0, %v4992
    %v4994 = vpop.f32.mrf.mxu0
    %4995 = vmatprep.mubr.bf16.mxu0 0
    %4996 = vmatmul.mubr.bf16.gmra.mxu0 %v4901
    %v4997 = vpop.f32.mrf.mxu0
    %v4998 = vadd.f32 0.0, %v4997
    %v4999 = vpop.f32.mrf.mxu0
    %v5000 = vpop.f32.mrf.mxu0
    %v5001 = vadd.f32 0.0, %v5000
    %v5002 = vpop.f32.mrf.mxu0
    %5003 = vmatprep.mubr.bf16.mxu0 0
    %5004 = vmatmul.mubr.bf16.gmra.mxu0 %v4904
    %v5005 = vpop.f32.mrf.mxu0
    %v5006 = vadd.f32 0.0, %v5005
    %v5007 = vpop.f32.mrf.mxu0
    %v5008 = vpop.f32.mrf.mxu0
    %v5009 = vadd.f32 0.0, %v5008
    %v5010 = vpop.f32.mrf.mxu0
    %5011 = vmatprep.mubr.bf16.mxu0 0
    %5012 = vmatmul.mubr.bf16.gmra.mxu0 %v4907
    %v5013 = vpop.f32.mrf.mxu0
    %v5014 = vadd.f32 0.0, %v5013
    %v5015 = vpop.f32.mrf.mxu0
    %v5016 = vpop.f32.mrf.mxu0
    %v5017 = vadd.f32 0.0, %v5016
    %v5018 = vpop.f32.mrf.mxu0
    %5019 = vmatprep.mubr.bf16.mxu0 0
    %5020 = vmatmul.mubr.bf16.gmra.mxu0 %v4910
    %v5021 = vpop.f32.mrf.mxu0
    %v5022 = vadd.f32 0.0, %v5021
    %v5023 = vpop.f32.mrf.mxu0
    %v5024 = vpop.f32.mrf.mxu0
    %v5025 = vadd.f32 0.0, %v5024
    %v5026 = vpop.f32.mrf.mxu0
    %5027 = vmatprep.mubr.bf16.mxu0 0
    %5028 = vmatmul.mubr.bf16.gmra.mxu0 %v4913
    %v5029 = vpop.f32.mrf.mxu0
    %v5030 = vadd.f32 0.0, %v5029
    %v5031 = vpop.f32.mrf.mxu0
    %v5032 = vpop.f32.mrf.mxu0
    %v5033 = vadd.f32 0.0, %v5032
    %v5034 = vpop.f32.mrf.mxu0
    %5035 = vmatprep.mubr.bf16.mxu0 0
    %5036 = vmatmul.mubr.bf16.gmra.mxu0 %v4916
    %v5037 = vpop.f32.mrf.mxu0
    %v5038 = vadd.f32 0.0, %v5037
    %v5039 = vpop.f32.mrf.mxu0
    %v5040 = vpop.f32.mrf.mxu0
    %v5041 = vadd.f32 0.0, %v5040
    %v5042 = vpop.f32.mrf.mxu0
    %5043 = vmatprep.mubr.bf16.mxu0 0
    %5044 = vmatmul.mubr.bf16.gmra.mxu0 %v4919
    %v5045 = vpop.f32.mrf.mxu0
    %v5046 = vadd.f32 0.0, %v5045
    %v5047 = vpop.f32.mrf.mxu0
    %v5048 = vpop.f32.mrf.mxu0
    %v5049 = vadd.f32 0.0, %v5048
    %v5050 = vpop.f32.mrf.mxu0
    %5051 = vmatprep.mubr.bf16.mxu0 0
    %5052 = vmatmul.mubr.bf16.gmra.mxu0 %v4922
    %v5053 = vpop.f32.mrf.mxu0
    %v5054 = vadd.f32 0.0, %v5053
    %v5055 = vpop.f32.mrf.mxu0
    %v5056 = vpop.f32.mrf.mxu0
    %v5057 = vadd.f32 0.0, %v5056
    %v5058 = vpop.f32.mrf.mxu0
    %5059 = vmatprep.mubr.bf16.mxu0 0
    %5060 = vmatmul.mubr.bf16.gmra.mxu0 %v4925
    %v5061 = vpop.f32.mrf.mxu0
    %v5062 = vadd.f32 0.0, %v5061
    %v5063 = vpop.f32.mrf.mxu0
    %v5064 = vpop.f32.mrf.mxu0
    %v5065 = vadd.f32 0.0, %v5064
    %v5066 = vpop.f32.mrf.mxu0
    %5067 = vmatprep.mubr.bf16.mxu0 0
    %5068 = vmatmul.mubr.bf16.gmra.mxu0 %v4928
    %v5069 = vpop.f32.mrf.mxu0
    %v5070 = vadd.f32 0.0, %v5069
    %v5071 = vpop.f32.mrf.mxu0
    %v5072 = vpop.f32.mrf.mxu0
    %v5073 = vadd.f32 0.0, %v5072
    %v5074 = vpop.f32.mrf.mxu0
    %5075 = vmatprep.mubr.bf16.mxu0 0
    %5076 = vmatmul.mubr.bf16.gmra.mxu0 %v4931
    %v5077 = vpop.f32.mrf.mxu0
    %v5078 = vadd.f32 0.0, %v5077
    %v5079 = vpop.f32.mrf.mxu0
    %v5080 = vpop.f32.mrf.mxu0
    %v5081 = vadd.f32 0.0, %v5080
    %v5082 = vpop.f32.mrf.mxu0
    %5083 = vmatprep.mubr.bf16.mxu0 0
    %5084 = vmatmul.mubr.bf16.gmra.mxu0 %v4934
    %v5085 = vpop.f32.mrf.mxu0
    %v5086 = vadd.f32 0.0, %v5085
    %v5087 = vpop.f32.mrf.mxu0
    %v5088 = vpop.f32.mrf.mxu0
    %v5089 = vadd.f32 0.0, %v5088
    %v5090 = vpop.f32.mrf.mxu0
    %5091 = vmatprep.mubr.bf16.mxu0 0
    %5092 = vmatmul.mubr.bf16.gmra.mxu0 %v4937
    %v5093 = vpop.f32.mrf.mxu0
    %v5094 = vadd.f32 0.0, %v5093
    %v5095 = vpop.f32.mrf.mxu0
    %v5096 = vpop.f32.mrf.mxu0
    %v5097 = vadd.f32 0.0, %v5096
    %v5098 = vpop.f32.mrf.mxu0
    %5099 = vdwg.mxu0
    %v5104 = vunpack.c.l.b16 %v2871
    %v5105 = vunpack.c.l.b16 %v2872
    %v5106 = vunpack.c.l.b16 %v2873
    %v5107 = vunpack.c.l.b16 %v2874
    %v5108 = vpack.c.b16 %v5105, %v5104
    %v5109 = vpack.c.b16 %v5107, %v5106
    %v5113 = vsel %vm1029, %v2855, 0
    %v5116 = vsel %vm1029, %v2856, 0
    %v5119 = vsel %vm1029, %v2857, 0
    %v5122 = vsel %vm1029, %v2858, 0
    %v5125 = vsel %vm1029, %v2859, 0
    %v5128 = vsel %vm1029, %v2860, 0
    %v5131 = vsel %vm1029, %v2861, 0
    %v5134 = vsel %vm1029, %v2862, 0
    %v5137 = vsel %vm1029, %v2863, 0
    %v5140 = vsel %vm1029, %v2864, 0
    %v5143 = vsel %vm1029, %v2865, 0
    %v5146 = vsel %vm1029, %v2866, 0
    %v5149 = vsel %vm1029, %v2867, 0
    %v5152 = vsel %vm1029, %v2868, 0
    %v5155 = vsel %vm1029, %v2869, 0
    %v5158 = vsel %vm1029, %v2870, 0
    %5160 = vmatprep.subr.bf16.mxu0 0
    %5161 = vmatpush1.bf16.msra.mxu0 0
    %5162 = vmatprep.subr.bf16.mxu0 0
    %5163 = vmatpush1.bf16.msra.mxu0 0
    %5164 = vmatprep.subr.bf16.mxu0 0
    %5165 = vmatpush1.bf16.msra.mxu0 0
    %5166 = vmatprep.subr.bf16.mxu0 0
    %5167 = vmatpush1.bf16.msra.mxu0 0
    %5168 = vmatprep.subr.bf16.mxu0 0
    %5169 = vmatpush1.bf16.msra.mxu0 0
    %5170 = vmatprep.subr.bf16.mxu0 0
    %5171 = vmatpush1.bf16.msra.mxu0 0
    %5172 = vmatprep.subr.bf16.mxu0 0
    %5173 = vmatpush1.bf16.msra.mxu0 %v5109
    %5174 = vmatprep.subr.bf16.mxu0 0
    %5175 = vmatpush1.bf16.msra.mxu0 %v5108
    %5176 = vmatprep.subr.bf16.mxu0 0
    %5177 = vmatpush2.bf16.msra.mxu0 0
    %5178 = vmatprep.subr.bf16.mxu0 0
    %5179 = vmatpush2.bf16.msra.mxu0 0
    %5180 = vmatprep.subr.bf16.mxu0 0
    %5181 = vmatpush2.bf16.msra.mxu0 0
    %5182 = vmatprep.subr.bf16.mxu0 0
    %5183 = vmatpush2.bf16.msra.mxu0 0
    %5184 = vmatprep.subr.bf16.mxu0 0
    %5185 = vmatpush2.bf16.msra.mxu0 0
    %5186 = vmatprep.subr.bf16.mxu0 0
    %5187 = vmatpush2.bf16.msra.mxu0 0
    %5188 = vmatprep.subr.bf16.mxu0 0
    %5189 = vmatpush2.bf16.msra.mxu0 0
    %5190 = vmatprep.subr.bf16.mxu0 0
    %5191 = vmatpush2.bf16.msra.mxu0 0
    %5192 = vmatprep.mubr.bf16.mxu0 0
    %5193 = vmatmul.mubr.bf16.gmra.mxu0 %v5113
    %v5194 = vpop.f32.mrf.mxu0
    %v5195 = vadd.f32 %v4974, %v5194
    %v5196 = vpop.f32.mrf.mxu0
    %v5197 = vpop.f32.mrf.mxu0
    %v5198 = vadd.f32 %v4977, %v5197
    %v5199 = vpop.f32.mrf.mxu0
    %5200 = vmatprep.mubr.bf16.mxu0 0
    %5201 = vmatmul.mubr.bf16.gmra.mxu0 %v5116
    %v5202 = vpop.f32.mrf.mxu0
    %v5203 = vadd.f32 %v4982, %v5202
    %v5204 = vpop.f32.mrf.mxu0
    %v5205 = vpop.f32.mrf.mxu0
    %v5206 = vadd.f32 %v4985, %v5205
    %v5207 = vpop.f32.mrf.mxu0
    %5208 = vmatprep.mubr.bf16.mxu0 0
    %5209 = vmatmul.mubr.bf16.gmra.mxu0 %v5119
    %v5210 = vpop.f32.mrf.mxu0
    %v5211 = vadd.f32 %v4990, %v5210
    %v5212 = vpop.f32.mrf.mxu0
    %v5213 = vpop.f32.mrf.mxu0
    %v5214 = vadd.f32 %v4993, %v5213
    %v5215 = vpop.f32.mrf.mxu0
    %5216 = vmatprep.mubr.bf16.mxu0 0
    %5217 = vmatmul.mubr.bf16.gmra.mxu0 %v5122
    %v5218 = vpop.f32.mrf.mxu0
    %v5219 = vadd.f32 %v4998, %v5218
    %v5220 = vpop.f32.mrf.mxu0
    %v5221 = vpop.f32.mrf.mxu0
    %v5222 = vadd.f32 %v5001, %v5221
    %v5223 = vpop.f32.mrf.mxu0
    %5224 = vmatprep.mubr.bf16.mxu0 0
    %5225 = vmatmul.mubr.bf16.gmra.mxu0 %v5125
    %v5226 = vpop.f32.mrf.mxu0
    %v5227 = vadd.f32 %v5006, %v5226
    %v5228 = vpop.f32.mrf.mxu0
    %v5229 = vpop.f32.mrf.mxu0
    %v5230 = vadd.f32 %v5009, %v5229
    %v5231 = vpop.f32.mrf.mxu0
    %5232 = vmatprep.mubr.bf16.mxu0 0
    %5233 = vmatmul.mubr.bf16.gmra.mxu0 %v5128
    %v5234 = vpop.f32.mrf.mxu0
    %v5235 = vadd.f32 %v5014, %v5234
    %v5236 = vpop.f32.mrf.mxu0
    %v5237 = vpop.f32.mrf.mxu0
    %v5238 = vadd.f32 %v5017, %v5237
    %v5239 = vpop.f32.mrf.mxu0
    %5240 = vmatprep.mubr.bf16.mxu0 0
    %5241 = vmatmul.mubr.bf16.gmra.mxu0 %v5131
    %v5242 = vpop.f32.mrf.mxu0
    %v5243 = vadd.f32 %v5022, %v5242
    %v5244 = vpop.f32.mrf.mxu0
    %v5245 = vpop.f32.mrf.mxu0
    %v5246 = vadd.f32 %v5025, %v5245
    %v5247 = vpop.f32.mrf.mxu0
    %5248 = vmatprep.mubr.bf16.mxu0 0
    %5249 = vmatmul.mubr.bf16.gmra.mxu0 %v5134
    %v5250 = vpop.f32.mrf.mxu0
    %v5251 = vadd.f32 %v5030, %v5250
    %v5252 = vpop.f32.mrf.mxu0
    %v5253 = vpop.f32.mrf.mxu0
    %v5254 = vadd.f32 %v5033, %v5253
    %v5255 = vpop.f32.mrf.mxu0
    %5256 = vmatprep.mubr.bf16.mxu0 0
    %5257 = vmatmul.mubr.bf16.gmra.mxu0 %v5137
    %v5258 = vpop.f32.mrf.mxu0
    %v5259 = vadd.f32 %v5038, %v5258
    %v5260 = vpop.f32.mrf.mxu0
    %v5261 = vpop.f32.mrf.mxu0
    %v5262 = vadd.f32 %v5041, %v5261
    %v5263 = vpop.f32.mrf.mxu0
    %5264 = vmatprep.mubr.bf16.mxu0 0
    %5265 = vmatmul.mubr.bf16.gmra.mxu0 %v5140
    %v5266 = vpop.f32.mrf.mxu0
    %v5267 = vadd.f32 %v5046, %v5266
    %v5268 = vpop.f32.mrf.mxu0
    %v5269 = vpop.f32.mrf.mxu0
    %v5270 = vadd.f32 %v5049, %v5269
    %v5271 = vpop.f32.mrf.mxu0
    %5272 = vmatprep.mubr.bf16.mxu0 0
    %5273 = vmatmul.mubr.bf16.gmra.mxu0 %v5143
    %v5274 = vpop.f32.mrf.mxu0
    %v5275 = vadd.f32 %v5054, %v5274
    %v5276 = vpop.f32.mrf.mxu0
    %v5277 = vpop.f32.mrf.mxu0
    %v5278 = vadd.f32 %v5057, %v5277
    %v5279 = vpop.f32.mrf.mxu0
    %5280 = vmatprep.mubr.bf16.mxu0 0
    %5281 = vmatmul.mubr.bf16.gmra.mxu0 %v5146
    %v5282 = vpop.f32.mrf.mxu0
    %v5283 = vadd.f32 %v5062, %v5282
    %v5284 = vpop.f32.mrf.mxu0
    %v5285 = vpop.f32.mrf.mxu0
    %v5286 = vadd.f32 %v5065, %v5285
    %v5287 = vpop.f32.mrf.mxu0
    %5288 = vmatprep.mubr.bf16.mxu0 0
    %5289 = vmatmul.mubr.bf16.gmra.mxu0 %v5149
    %v5290 = vpop.f32.mrf.mxu0
    %v5291 = vadd.f32 %v5070, %v5290
    %v5292 = vpop.f32.mrf.mxu0
    %v5293 = vpop.f32.mrf.mxu0
    %v5294 = vadd.f32 %v5073, %v5293
    %v5295 = vpop.f32.mrf.mxu0
    %5296 = vmatprep.mubr.bf16.mxu0 0
    %5297 = vmatmul.mubr.bf16.gmra.mxu0 %v5152
    %v5298 = vpop.f32.mrf.mxu0
    %v5299 = vadd.f32 %v5078, %v5298
    %v5300 = vpop.f32.mrf.mxu0
    %v5301 = vpop.f32.mrf.mxu0
    %v5302 = vadd.f32 %v5081, %v5301
    %v5303 = vpop.f32.mrf.mxu0
    %5304 = vmatprep.mubr.bf16.mxu0 0
    %5305 = vmatmul.mubr.bf16.gmra.mxu0 %v5155
    %v5306 = vpop.f32.mrf.mxu0
    %v5307 = vadd.f32 %v5086, %v5306
    %v5308 = vpop.f32.mrf.mxu0
    %v5309 = vpop.f32.mrf.mxu0
    %v5310 = vadd.f32 %v5089, %v5309
    %v5311 = vpop.f32.mrf.mxu0
    %5312 = vmatprep.mubr.bf16.mxu0 0
    %5313 = vmatmul.mubr.bf16.gmra.mxu0 %v5158
    %v5314 = vpop.f32.mrf.mxu0
    %v5315 = vadd.f32 %v5094, %v5314
    %v5316 = vpop.f32.mrf.mxu0
    %v5317 = vpop.f32.mrf.mxu0
    %v5318 = vadd.f32 %v5097, %v5317
    %v5319 = vpop.f32.mrf.mxu0
    %5320 = vdwg.mxu0
    %5321 = vrot.lane.b32.xlu0 %v981, 64
    %v5322 = vpop.permute.xlu0 %5321
    %5323 = vrot.lane.b32.xlu0 %v997, 64
    %v5324 = vpop.permute.xlu0 %5323
    %v5326 = vsel %vm1029, %v5322, 0
    %v5329 = vsel %vm1029, %v5324, 0
    %5331 = vmatprep.subr.bf16.mxu0 0
    %5332 = vmatpush1.bf16.xpose.msra.mxu0 0
    %5333 = vmatprep.subr.bf16.mxu0 0
    %5334 = vmatpush1.bf16.xpose.msra.mxu0 0
    %5335 = vmatprep.subr.bf16.mxu0 0
    %5336 = vmatpush1.bf16.xpose.msra.mxu0 0
    %5337 = vmatprep.subr.bf16.mxu0 0
    %5338 = vmatpush1.bf16.xpose.msra.mxu0 0
    %5339 = vmatprep.subr.bf16.mxu0 0
    %5340 = vmatpush1.bf16.xpose.msra.mxu0 0
    %5341 = vmatprep.subr.bf16.mxu0 0
    %5342 = vmatpush1.bf16.xpose.msra.mxu0 0
    %5343 = vmatprep.subr.bf16.mxu0 0
    %5344 = vmatpush1.bf16.xpose.msra.mxu0 0
    %5345 = vmatprep.subr.bf16.mxu0 0
    %5346 = vmatpush1.bf16.xpose.msra.mxu0 %v5329
    %5347 = vmatprep.subr.bf16.mxu0 0
    %5348 = vmatpush2.bf16.xpose.msra.mxu0 0
    %5349 = vmatprep.subr.bf16.mxu0 0
    %5350 = vmatpush2.bf16.xpose.msra.mxu0 0
    %5351 = vmatprep.subr.bf16.mxu0 0
    %5352 = vmatpush2.bf16.xpose.msra.mxu0 0
    %5353 = vmatprep.subr.bf16.mxu0 0
    %5354 = vmatpush2.bf16.xpose.msra.mxu0 0
    %5355 = vmatprep.subr.bf16.mxu0 0
    %5356 = vmatpush2.bf16.xpose.msra.mxu0 0
    %5357 = vmatprep.subr.bf16.mxu0 0
    %5358 = vmatpush2.bf16.xpose.msra.mxu0 0
    %5359 = vmatprep.subr.bf16.mxu0 0
    %5360 = vmatpush2.bf16.xpose.msra.mxu0 0
    %5361 = vmatprep.subr.bf16.mxu0 0
    %5362 = vmatpush2.bf16.xpose.msra.mxu0 0
    %5363 = vmatprep.mubr.bf16.mxu0 0
    %5364 = vmatmul.mubr.bf16.gmra.mxu0 %v5326
    %v5365 = vpop.f32.mrf.mxu0
    %v5366 = vadd.f32 0.0, %v5365
    %v5367 = vpop.f32.mrf.mxu0
    %v5368 = vpop.f32.mrf.mxu0
    %v5369 = vadd.f32 0.0, %v5368
    %v5370 = vpop.f32.mrf.mxu0
    %5371 = vdwg.mxu0
    %5372 = vrot.lane.b32.xlu0 %v982, 64
    %v5373 = vpop.permute.xlu0 %5372
    %5374 = vrot.lane.b32.xlu0 %v998, 64
    %v5375 = vpop.permute.xlu0 %5374
    %v5377 = vsel %vm1029, %v5373, 0
    %v5380 = vsel %vm1029, %v5375, 0
    %5382 = vmatprep.subr.bf16.mxu0 0
    %5383 = vmatpush1.bf16.xpose.msra.mxu0 0
    %5384 = vmatprep.subr.bf16.mxu0 0
    %5385 = vmatpush1.bf16.xpose.msra.mxu0 0
    %5386 = vmatprep.subr.bf16.mxu0 0
    %5387 = vmatpush1.bf16.xpose.msra.mxu0 0
    %5388 = vmatprep.subr.bf16.mxu0 0
    %5389 = vmatpush1.bf16.xpose.msra.mxu0 0
    %5390 = vmatprep.subr.bf16.mxu0 0
    %5391 = vmatpush1.bf16.xpose.msra.mxu0 0
    %5392 = vmatprep.subr.bf16.mxu0 0
    %5393 = vmatpush1.bf16.xpose.msra.mxu0 0
    %5394 = vmatprep.subr.bf16.mxu0 0
    %5395 = vmatpush1.bf16.xpose.msra.mxu0 0
    %5396 = vmatprep.subr.bf16.mxu0 0
    %5397 = vmatpush1.bf16.xpose.msra.mxu0 %v5380
    %5398 = vmatprep.subr.bf16.mxu0 0
    %5399 = vmatpush2.bf16.xpose.msra.mxu0 0
    %5400 = vmatprep.subr.bf16.mxu0 0
    %5401 = vmatpush2.bf16.xpose.msra.mxu0 0
    %5402 = vmatprep.subr.bf16.mxu0 0
    %5403 = vmatpush2.bf16.xpose.msra.mxu0 0
    %5404 = vmatprep.subr.bf16.mxu0 0
    %5405 = vmatpush2.bf16.xpose.msra.mxu0 0
    %5406 = vmatprep.subr.bf16.mxu0 0
    %5407 = vmatpush2.bf16.xpose.msra.mxu0 0
    %5408 = vmatprep.subr.bf16.mxu0 0
    %5409 = vmatpush2.bf16.xpose.msra.mxu0 0
    %5410 = vmatprep.subr.bf16.mxu0 0
    %5411 = vmatpush2.bf16.xpose.msra.mxu0 0
    %5412 = vmatprep.subr.bf16.mxu0 0
    %5413 = vmatpush2.bf16.xpose.msra.mxu0 0
    %5414 = vmatprep.mubr.bf16.mxu0 0
    %5415 = vmatmul.mubr.bf16.gmra.mxu0 %v5377
    %v5416 = vpop.f32.mrf.mxu0
    %v5417 = vadd.f32 0.0, %v5416
    %v5418 = vpop.f32.mrf.mxu0
    %v5419 = vpop.f32.mrf.mxu0
    %v5420 = vadd.f32 0.0, %v5419
    %v5421 = vpop.f32.mrf.mxu0
    %5422 = vdwg.mxu0
    %5423 = vrot.lane.b32.xlu0 %v983, 64
    %v5424 = vpop.permute.xlu0 %5423
    %5425 = vrot.lane.b32.xlu0 %v999, 64
    %v5426 = vpop.permute.xlu0 %5425
    %v5428 = vsel %vm1029, %v5424, 0
    %v5431 = vsel %vm1029, %v5426, 0
    %5433 = vmatprep.subr.bf16.mxu0 0
    %5434 = vmatpush1.bf16.xpose.msra.mxu0 0
    %5435 = vmatprep.subr.bf16.mxu0 0
    %5436 = vmatpush1.bf16.xpose.msra.mxu0 0
    %5437 = vmatprep.subr.bf16.mxu0 0
    %5438 = vmatpush1.bf16.xpose.msra.mxu0 0
    %5439 = vmatprep.subr.bf16.mxu0 0
    %5440 = vmatpush1.bf16.xpose.msra.mxu0 0
    %5441 = vmatprep.subr.bf16.mxu0 0
    %5442 = vmatpush1.bf16.xpose.msra.mxu0 0
    %5443 = vmatprep.subr.bf16.mxu0 0
    %5444 = vmatpush1.bf16.xpose.msra.mxu0 0
    %5445 = vmatprep.subr.bf16.mxu0 0
    %5446 = vmatpush1.bf16.xpose.msra.mxu0 0
    %5447 = vmatprep.subr.bf16.mxu0 0
    %5448 = vmatpush1.bf16.xpose.msra.mxu0 %v5431
    %5449 = vmatprep.subr.bf16.mxu0 0
    %5450 = vmatpush2.bf16.xpose.msra.mxu0 0
    %5451 = vmatprep.subr.bf16.mxu0 0
    %5452 = vmatpush2.bf16.xpose.msra.mxu0 0
    %5453 = vmatprep.subr.bf16.mxu0 0
    %5454 = vmatpush2.bf16.xpose.msra.mxu0 0
    %5455 = vmatprep.subr.bf16.mxu0 0
    %5456 = vmatpush2.bf16.xpose.msra.mxu0 0
    %5457 = vmatprep.subr.bf16.mxu0 0
    %5458 = vmatpush2.bf16.xpose.msra.mxu0 0
    %5459 = vmatprep.subr.bf16.mxu0 0
    %5460 = vmatpush2.bf16.xpose.msra.mxu0 0
    %5461 = vmatprep.subr.bf16.mxu0 0
    %5462 = vmatpush2.bf16.xpose.msra.mxu0 0
    %5463 = vmatprep.subr.bf16.mxu0 0
    %5464 = vmatpush2.bf16.xpose.msra.mxu0 0
    %5465 = vmatprep.mubr.bf16.mxu0 0
    %5466 = vmatmul.mubr.bf16.gmra.mxu0 %v5428
    %v5467 = vpop.f32.mrf.mxu0
    %v5468 = vadd.f32 0.0, %v5467
    %v5469 = vpop.f32.mrf.mxu0
    %v5470 = vpop.f32.mrf.mxu0
    %v5471 = vadd.f32 0.0, %v5470
    %v5472 = vpop.f32.mrf.mxu0
    %5473 = vdwg.mxu0
    %5474 = vrot.lane.b32.xlu0 %v984, 64
    %v5475 = vpop.permute.xlu0 %5474
    %5476 = vrot.lane.b32.xlu0 %v1000, 64
    %v5477 = vpop.permute.xlu0 %5476
    %v5479 = vsel %vm1029, %v5475, 0
    %v5482 = vsel %vm1029, %v5477, 0
    %5484 = vmatprep.subr.bf16.mxu0 0
    %5485 = vmatpush1.bf16.xpose.msra.mxu0 0
    %5486 = vmatprep.subr.bf16.mxu0 0
    %5487 = vmatpush1.bf16.xpose.msra.mxu0 0
    %5488 = vmatprep.subr.bf16.mxu0 0
    %5489 = vmatpush1.bf16.xpose.msra.mxu0 0
    %5490 = vmatprep.subr.bf16.mxu0 0
    %5491 = vmatpush1.bf16.xpose.msra.mxu0 0
    %5492 = vmatprep.subr.bf16.mxu0 0
    %5493 = vmatpush1.bf16.xpose.msra.mxu0 0
    %5494 = vmatprep.subr.bf16.mxu0 0
    %5495 = vmatpush1.bf16.xpose.msra.mxu0 0
    %5496 = vmatprep.subr.bf16.mxu0 0
    %5497 = vmatpush1.bf16.xpose.msra.mxu0 0
    %5498 = vmatprep.subr.bf16.mxu0 0
    %5499 = vmatpush1.bf16.xpose.msra.mxu0 %v5482
    %5500 = vmatprep.subr.bf16.mxu0 0
    %5501 = vmatpush2.bf16.xpose.msra.mxu0 0
    %5502 = vmatprep.subr.bf16.mxu0 0
    %5503 = vmatpush2.bf16.xpose.msra.mxu0 0
    %5504 = vmatprep.subr.bf16.mxu0 0
    %5505 = vmatpush2.bf16.xpose.msra.mxu0 0
    %5506 = vmatprep.subr.bf16.mxu0 0
    %5507 = vmatpush2.bf16.xpose.msra.mxu0 0
    %5508 = vmatprep.subr.bf16.mxu0 0
    %5509 = vmatpush2.bf16.xpose.msra.mxu0 0
    %5510 = vmatprep.subr.bf16.mxu0 0
    %5511 = vmatpush2.bf16.xpose.msra.mxu0 0
    %5512 = vmatprep.subr.bf16.mxu0 0
    %5513 = vmatpush2.bf16.xpose.msra.mxu0 0
    %5514 = vmatprep.subr.bf16.mxu0 0
    %5515 = vmatpush2.bf16.xpose.msra.mxu0 0
    %5516 = vmatprep.mubr.bf16.mxu0 0
    %5517 = vmatmul.mubr.bf16.gmra.mxu0 %v5479
    %v5518 = vpop.f32.mrf.mxu0
    %v5519 = vadd.f32 0.0, %v5518
    %v5520 = vpop.f32.mrf.mxu0
    %v5521 = vpop.f32.mrf.mxu0
    %v5522 = vadd.f32 0.0, %v5521
    %v5523 = vpop.f32.mrf.mxu0
    %5524 = vdwg.mxu0
    %5525 = vrot.lane.b32.xlu0 %v985, 64
    %v5526 = vpop.permute.xlu0 %5525
    %5527 = vrot.lane.b32.xlu0 %v1001, 64
    %v5528 = vpop.permute.xlu0 %5527
    %v5530 = vsel %vm1029, %v5526, 0
    %v5533 = vsel %vm1029, %v5528, 0
    %5535 = vmatprep.subr.bf16.mxu0 0
    %5536 = vmatpush1.bf16.xpose.msra.mxu0 0
    %5537 = vmatprep.subr.bf16.mxu0 0
    %5538 = vmatpush1.bf16.xpose.msra.mxu0 0
    %5539 = vmatprep.subr.bf16.mxu0 0
    %5540 = vmatpush1.bf16.xpose.msra.mxu0 0
    %5541 = vmatprep.subr.bf16.mxu0 0
    %5542 = vmatpush1.bf16.xpose.msra.mxu0 0
    %5543 = vmatprep.subr.bf16.mxu0 0
    %5544 = vmatpush1.bf16.xpose.msra.mxu0 0
    %5545 = vmatprep.subr.bf16.mxu0 0
    %5546 = vmatpush1.bf16.xpose.msra.mxu0 0
    %5547 = vmatprep.subr.bf16.mxu0 0
    %5548 = vmatpush1.bf16.xpose.msra.mxu0 0
    %5549 = vmatprep.subr.bf16.mxu0 0
    %5550 = vmatpush1.bf16.xpose.msra.mxu0 %v5533
    %5551 = vmatprep.subr.bf16.mxu0 0
    %5552 = vmatpush2.bf16.xpose.msra.mxu0 0
    %5553 = vmatprep.subr.bf16.mxu0 0
    %5554 = vmatpush2.bf16.xpose.msra.mxu0 0
    %5555 = vmatprep.subr.bf16.mxu0 0
    %5556 = vmatpush2.bf16.xpose.msra.mxu0 0
    %5557 = vmatprep.subr.bf16.mxu0 0
    %5558 = vmatpush2.bf16.xpose.msra.mxu0 0
    %5559 = vmatprep.subr.bf16.mxu0 0
    %5560 = vmatpush2.bf16.xpose.msra.mxu0 0
    %5561 = vmatprep.subr.bf16.mxu0 0
    %5562 = vmatpush2.bf16.xpose.msra.mxu0 0
    %5563 = vmatprep.subr.bf16.mxu0 0
    %5564 = vmatpush2.bf16.xpose.msra.mxu0 0
    %5565 = vmatprep.subr.bf16.mxu0 0
    %5566 = vmatpush2.bf16.xpose.msra.mxu0 0
    %5567 = vmatprep.mubr.bf16.mxu0 0
    %5568 = vmatmul.mubr.bf16.gmra.mxu0 %v5530
    %v5569 = vpop.f32.mrf.mxu0
    %v5570 = vadd.f32 0.0, %v5569
    %v5571 = vpop.f32.mrf.mxu0
    %v5572 = vpop.f32.mrf.mxu0
    %v5573 = vadd.f32 0.0, %v5572
    %v5574 = vpop.f32.mrf.mxu0
    %5575 = vdwg.mxu0
    %5576 = vrot.lane.b32.xlu0 %v986, 64
    %v5577 = vpop.permute.xlu0 %5576
    %5578 = vrot.lane.b32.xlu0 %v1002, 64
    %v5579 = vpop.permute.xlu0 %5578
    %v5581 = vsel %vm1029, %v5577, 0
    %v5584 = vsel %vm1029, %v5579, 0
    %5586 = vmatprep.subr.bf16.mxu0 0
    %5587 = vmatpush1.bf16.xpose.msra.mxu0 0
    %5588 = vmatprep.subr.bf16.mxu0 0
    %5589 = vmatpush1.bf16.xpose.msra.mxu0 0
    %5590 = vmatprep.subr.bf16.mxu0 0
    %5591 = vmatpush1.bf16.xpose.msra.mxu0 0
    %5592 = vmatprep.subr.bf16.mxu0 0
    %5593 = vmatpush1.bf16.xpose.msra.mxu0 0
    %5594 = vmatprep.subr.bf16.mxu0 0
    %5595 = vmatpush1.bf16.xpose.msra.mxu0 0
    %5596 = vmatprep.subr.bf16.mxu0 0
    %5597 = vmatpush1.bf16.xpose.msra.mxu0 0
    %5598 = vmatprep.subr.bf16.mxu0 0
    %5599 = vmatpush1.bf16.xpose.msra.mxu0 0
    %5600 = vmatprep.subr.bf16.mxu0 0
    %5601 = vmatpush1.bf16.xpose.msra.mxu0 %v5584
    %5602 = vmatprep.subr.bf16.mxu0 0
    %5603 = vmatpush2.bf16.xpose.msra.mxu0 0
    %5604 = vmatprep.subr.bf16.mxu0 0
    %5605 = vmatpush2.bf16.xpose.msra.mxu0 0
    %5606 = vmatprep.subr.bf16.mxu0 0
    %5607 = vmatpush2.bf16.xpose.msra.mxu0 0
    %5608 = vmatprep.subr.bf16.mxu0 0
    %5609 = vmatpush2.bf16.xpose.msra.mxu0 0
    %5610 = vmatprep.subr.bf16.mxu0 0
    %5611 = vmatpush2.bf16.xpose.msra.mxu0 0
    %5612 = vmatprep.subr.bf16.mxu0 0
    %5613 = vmatpush2.bf16.xpose.msra.mxu0 0
    %5614 = vmatprep.subr.bf16.mxu0 0
    %5615 = vmatpush2.bf16.xpose.msra.mxu0 0
    %5616 = vmatprep.subr.bf16.mxu0 0
    %5617 = vmatpush2.bf16.xpose.msra.mxu0 0
    %5618 = vmatprep.mubr.bf16.mxu0 0
    %5619 = vmatmul.mubr.bf16.gmra.mxu0 %v5581
    %v5620 = vpop.f32.mrf.mxu0
    %v5621 = vadd.f32 0.0, %v5620
    %v5622 = vpop.f32.mrf.mxu0
    %v5623 = vpop.f32.mrf.mxu0
    %v5624 = vadd.f32 0.0, %v5623
    %v5625 = vpop.f32.mrf.mxu0
    %5626 = vdwg.mxu0
    %5627 = vrot.lane.b32.xlu0 %v987, 64
    %v5628 = vpop.permute.xlu0 %5627
    %5629 = vrot.lane.b32.xlu0 %v1003, 64
    %v5630 = vpop.permute.xlu0 %5629
    %v5632 = vsel %vm1029, %v5628, 0
    %v5635 = vsel %vm1029, %v5630, 0
    %5637 = vmatprep.subr.bf16.mxu0 0
    %5638 = vmatpush1.bf16.xpose.msra.mxu0 0
    %5639 = vmatprep.subr.bf16.mxu0 0
    %5640 = vmatpush1.bf16.xpose.msra.mxu0 0
    %5641 = vmatprep.subr.bf16.mxu0 0
    %5642 = vmatpush1.bf16.xpose.msra.mxu0 0
    %5643 = vmatprep.subr.bf16.mxu0 0
    %5644 = vmatpush1.bf16.xpose.msra.mxu0 0
    %5645 = vmatprep.subr.bf16.mxu0 0
    %5646 = vmatpush1.bf16.xpose.msra.mxu0 0
    %5647 = vmatprep.subr.bf16.mxu0 0
    %5648 = vmatpush1.bf16.xpose.msra.mxu0 0
    %5649 = vmatprep.subr.bf16.mxu0 0
    %5650 = vmatpush1.bf16.xpose.msra.mxu0 0
    %5651 = vmatprep.subr.bf16.mxu0 0
    %5652 = vmatpush1.bf16.xpose.msra.mxu0 %v5635
    %5653 = vmatprep.subr.bf16.mxu0 0
    %5654 = vmatpush2.bf16.xpose.msra.mxu0 0
    %5655 = vmatprep.subr.bf16.mxu0 0
    %5656 = vmatpush2.bf16.xpose.msra.mxu0 0
    %5657 = vmatprep.subr.bf16.mxu0 0
    %5658 = vmatpush2.bf16.xpose.msra.mxu0 0
    %5659 = vmatprep.subr.bf16.mxu0 0
    %5660 = vmatpush2.bf16.xpose.msra.mxu0 0
    %5661 = vmatprep.subr.bf16.mxu0 0
    %5662 = vmatpush2.bf16.xpose.msra.mxu0 0
    %5663 = vmatprep.subr.bf16.mxu0 0
    %5664 = vmatpush2.bf16.xpose.msra.mxu0 0
    %5665 = vmatprep.subr.bf16.mxu0 0
    %5666 = vmatpush2.bf16.xpose.msra.mxu0 0
    %5667 = vmatprep.subr.bf16.mxu0 0
    %5668 = vmatpush2.bf16.xpose.msra.mxu0 0
    %5669 = vmatprep.mubr.bf16.mxu0 0
    %5670 = vmatmul.mubr.bf16.gmra.mxu0 %v5632
    %v5671 = vpop.f32.mrf.mxu0
    %v5672 = vadd.f32 0.0, %v5671
    %v5673 = vpop.f32.mrf.mxu0
    %v5674 = vpop.f32.mrf.mxu0
    %v5675 = vadd.f32 0.0, %v5674
    %v5676 = vpop.f32.mrf.mxu0
    %5677 = vdwg.mxu0
    %5678 = vrot.lane.b32.xlu0 %v988, 64
    %v5679 = vpop.permute.xlu0 %5678
    %5680 = vrot.lane.b32.xlu0 %v1004, 64
    %v5681 = vpop.permute.xlu0 %5680
    %v5683 = vsel %vm1029, %v5679, 0
    %v5686 = vsel %vm1029, %v5681, 0
    %5688 = vmatprep.subr.bf16.mxu0 0
    %5689 = vmatpush1.bf16.xpose.msra.mxu0 0
    %5690 = vmatprep.subr.bf16.mxu0 0
    %5691 = vmatpush1.bf16.xpose.msra.mxu0 0
    %5692 = vmatprep.subr.bf16.mxu0 0
    %5693 = vmatpush1.bf16.xpose.msra.mxu0 0
    %5694 = vmatprep.subr.bf16.mxu0 0
    %5695 = vmatpush1.bf16.xpose.msra.mxu0 0
    %5696 = vmatprep.subr.bf16.mxu0 0
    %5697 = vmatpush1.bf16.xpose.msra.mxu0 0
    %5698 = vmatprep.subr.bf16.mxu0 0
    %5699 = vmatpush1.bf16.xpose.msra.mxu0 0
    %5700 = vmatprep.subr.bf16.mxu0 0
    %5701 = vmatpush1.bf16.xpose.msra.mxu0 0
    %5702 = vmatprep.subr.bf16.mxu0 0
    %5703 = vmatpush1.bf16.xpose.msra.mxu0 %v5686
    %5704 = vmatprep.subr.bf16.mxu0 0
    %5705 = vmatpush2.bf16.xpose.msra.mxu0 0
    %5706 = vmatprep.subr.bf16.mxu0 0
    %5707 = vmatpush2.bf16.xpose.msra.mxu0 0
    %5708 = vmatprep.subr.bf16.mxu0 0
    %5709 = vmatpush2.bf16.xpose.msra.mxu0 0
    %5710 = vmatprep.subr.bf16.mxu0 0
    %5711 = vmatpush2.bf16.xpose.msra.mxu0 0
    %5712 = vmatprep.subr.bf16.mxu0 0
    %5713 = vmatpush2.bf16.xpose.msra.mxu0 0
    %5714 = vmatprep.subr.bf16.mxu0 0
    %5715 = vmatpush2.bf16.xpose.msra.mxu0 0
    %5716 = vmatprep.subr.bf16.mxu0 0
    %5717 = vmatpush2.bf16.xpose.msra.mxu0 0
    %5718 = vmatprep.subr.bf16.mxu0 0
    %5719 = vmatpush2.bf16.xpose.msra.mxu0 0
    %5720 = vmatprep.mubr.bf16.mxu0 0
    %5721 = vmatmul.mubr.bf16.gmra.mxu0 %v5683
    %v5722 = vpop.f32.mrf.mxu0
    %v5723 = vadd.f32 0.0, %v5722
    %v5724 = vpop.f32.mrf.mxu0
    %v5725 = vpop.f32.mrf.mxu0
    %v5726 = vadd.f32 0.0, %v5725
    %v5727 = vpop.f32.mrf.mxu0
    %5728 = vdwg.mxu0
    %5729 = vrot.lane.b32.xlu0 %v989, 64
    %v5730 = vpop.permute.xlu0 %5729
    %5731 = vrot.lane.b32.xlu0 %v1005, 64
    %v5732 = vpop.permute.xlu0 %5731
    %v5734 = vsel %vm1029, %v5730, 0
    %v5737 = vsel %vm1029, %v5732, 0
    %5739 = vmatprep.subr.bf16.mxu0 0
    %5740 = vmatpush1.bf16.xpose.msra.mxu0 0
    %5741 = vmatprep.subr.bf16.mxu0 0
    %5742 = vmatpush1.bf16.xpose.msra.mxu0 0
    %5743 = vmatprep.subr.bf16.mxu0 0
    %5744 = vmatpush1.bf16.xpose.msra.mxu0 0
    %5745 = vmatprep.subr.bf16.mxu0 0
    %5746 = vmatpush1.bf16.xpose.msra.mxu0 0
    %5747 = vmatprep.subr.bf16.mxu0 0
    %5748 = vmatpush1.bf16.xpose.msra.mxu0 0
    %5749 = vmatprep.subr.bf16.mxu0 0
    %5750 = vmatpush1.bf16.xpose.msra.mxu0 0
    %5751 = vmatprep.subr.bf16.mxu0 0
    %5752 = vmatpush1.bf16.xpose.msra.mxu0 0
    %5753 = vmatprep.subr.bf16.mxu0 0
    %5754 = vmatpush1.bf16.xpose.msra.mxu0 %v5737
    %5755 = vmatprep.subr.bf16.mxu0 0
    %5756 = vmatpush2.bf16.xpose.msra.mxu0 0
    %5757 = vmatprep.subr.bf16.mxu0 0
    %5758 = vmatpush2.bf16.xpose.msra.mxu0 0
    %5759 = vmatprep.subr.bf16.mxu0 0
    %5760 = vmatpush2.bf16.xpose.msra.mxu0 0
    %5761 = vmatprep.subr.bf16.mxu0 0
    %5762 = vmatpush2.bf16.xpose.msra.mxu0 0
    %5763 = vmatprep.subr.bf16.mxu0 0
    %5764 = vmatpush2.bf16.xpose.msra.mxu0 0
    %5765 = vmatprep.subr.bf16.mxu0 0
    %5766 = vmatpush2.bf16.xpose.msra.mxu0 0
    %5767 = vmatprep.subr.bf16.mxu0 0
    %5768 = vmatpush2.bf16.xpose.msra.mxu0 0
    %5769 = vmatprep.subr.bf16.mxu0 0
    %5770 = vmatpush2.bf16.xpose.msra.mxu0 0
    %5771 = vmatprep.mubr.bf16.mxu0 0
    %5772 = vmatmul.mubr.bf16.gmra.mxu0 %v5734
    %v5773 = vpop.f32.mrf.mxu0
    %v5774 = vadd.f32 0.0, %v5773
    %v5775 = vpop.f32.mrf.mxu0
    %v5776 = vpop.f32.mrf.mxu0
    %v5777 = vadd.f32 0.0, %v5776
    %v5778 = vpop.f32.mrf.mxu0
    %5779 = vdwg.mxu0
    %5780 = vrot.lane.b32.xlu0 %v990, 64
    %v5781 = vpop.permute.xlu0 %5780
    %5782 = vrot.lane.b32.xlu0 %v1006, 64
    %v5783 = vpop.permute.xlu0 %5782
    %v5785 = vsel %vm1029, %v5781, 0
    %v5788 = vsel %vm1029, %v5783, 0
    %5790 = vmatprep.subr.bf16.mxu0 0
    %5791 = vmatpush1.bf16.xpose.msra.mxu0 0
    %5792 = vmatprep.subr.bf16.mxu0 0
    %5793 = vmatpush1.bf16.xpose.msra.mxu0 0
    %5794 = vmatprep.subr.bf16.mxu0 0
    %5795 = vmatpush1.bf16.xpose.msra.mxu0 0
    %5796 = vmatprep.subr.bf16.mxu0 0
    %5797 = vmatpush1.bf16.xpose.msra.mxu0 0
    %5798 = vmatprep.subr.bf16.mxu0 0
    %5799 = vmatpush1.bf16.xpose.msra.mxu0 0
    %5800 = vmatprep.subr.bf16.mxu0 0
    %5801 = vmatpush1.bf16.xpose.msra.mxu0 0
    %5802 = vmatprep.subr.bf16.mxu0 0
    %5803 = vmatpush1.bf16.xpose.msra.mxu0 0
    %5804 = vmatprep.subr.bf16.mxu0 0
    %5805 = vmatpush1.bf16.xpose.msra.mxu0 %v5788
    %5806 = vmatprep.subr.bf16.mxu0 0
    %5807 = vmatpush2.bf16.xpose.msra.mxu0 0
    %5808 = vmatprep.subr.bf16.mxu0 0
    %5809 = vmatpush2.bf16.xpose.msra.mxu0 0
    %5810 = vmatprep.subr.bf16.mxu0 0
    %5811 = vmatpush2.bf16.xpose.msra.mxu0 0
    %5812 = vmatprep.subr.bf16.mxu0 0
    %5813 = vmatpush2.bf16.xpose.msra.mxu0 0
    %5814 = vmatprep.subr.bf16.mxu0 0
    %5815 = vmatpush2.bf16.xpose.msra.mxu0 0
    %5816 = vmatprep.subr.bf16.mxu0 0
    %5817 = vmatpush2.bf16.xpose.msra.mxu0 0
    %5818 = vmatprep.subr.bf16.mxu0 0
    %5819 = vmatpush2.bf16.xpose.msra.mxu0 0
    %5820 = vmatprep.subr.bf16.mxu0 0
    %5821 = vmatpush2.bf16.xpose.msra.mxu0 0
    %5822 = vmatprep.mubr.bf16.mxu0 0
    %5823 = vmatmul.mubr.bf16.gmra.mxu0 %v5785
    %v5824 = vpop.f32.mrf.mxu0
    %v5825 = vadd.f32 0.0, %v5824
    %v5826 = vpop.f32.mrf.mxu0
    %v5827 = vpop.f32.mrf.mxu0
    %v5828 = vadd.f32 0.0, %v5827
    %v5829 = vpop.f32.mrf.mxu0
    %5830 = vdwg.mxu0
    %5831 = vrot.lane.b32.xlu0 %v991, 64
    %v5832 = vpop.permute.xlu0 %5831
    %5833 = vrot.lane.b32.xlu0 %v1007, 64
    %v5834 = vpop.permute.xlu0 %5833
    %v5836 = vsel %vm1029, %v5832, 0
    %v5839 = vsel %vm1029, %v5834, 0
    %5841 = vmatprep.subr.bf16.mxu0 0
    %5842 = vmatpush1.bf16.xpose.msra.mxu0 0
    %5843 = vmatprep.subr.bf16.mxu0 0
    %5844 = vmatpush1.bf16.xpose.msra.mxu0 0
    %5845 = vmatprep.subr.bf16.mxu0 0
    %5846 = vmatpush1.bf16.xpose.msra.mxu0 0
    %5847 = vmatprep.subr.bf16.mxu0 0
    %5848 = vmatpush1.bf16.xpose.msra.mxu0 0
    %5849 = vmatprep.subr.bf16.mxu0 0
    %5850 = vmatpush1.bf16.xpose.msra.mxu0 0
    %5851 = vmatprep.subr.bf16.mxu0 0
    %5852 = vmatpush1.bf16.xpose.msra.mxu0 0
    %5853 = vmatprep.subr.bf16.mxu0 0
    %5854 = vmatpush1.bf16.xpose.msra.mxu0 0
    %5855 = vmatprep.subr.bf16.mxu0 0
    %5856 = vmatpush1.bf16.xpose.msra.mxu0 %v5839
    %5857 = vmatprep.subr.bf16.mxu0 0
    %5858 = vmatpush2.bf16.xpose.msra.mxu0 0
    %5859 = vmatprep.subr.bf16.mxu0 0
    %5860 = vmatpush2.bf16.xpose.msra.mxu0 0
    %5861 = vmatprep.subr.bf16.mxu0 0
    %5862 = vmatpush2.bf16.xpose.msra.mxu0 0
    %5863 = vmatprep.subr.bf16.mxu0 0
    %5864 = vmatpush2.bf16.xpose.msra.mxu0 0
    %5865 = vmatprep.subr.bf16.mxu0 0
    %5866 = vmatpush2.bf16.xpose.msra.mxu0 0
    %5867 = vmatprep.subr.bf16.mxu0 0
    %5868 = vmatpush2.bf16.xpose.msra.mxu0 0
    %5869 = vmatprep.subr.bf16.mxu0 0
    %5870 = vmatpush2.bf16.xpose.msra.mxu0 0
    %5871 = vmatprep.subr.bf16.mxu0 0
    %5872 = vmatpush2.bf16.xpose.msra.mxu0 0
    %5873 = vmatprep.mubr.bf16.mxu0 0
    %5874 = vmatmul.mubr.bf16.gmra.mxu0 %v5836
    %v5875 = vpop.f32.mrf.mxu0
    %v5876 = vadd.f32 0.0, %v5875
    %v5877 = vpop.f32.mrf.mxu0
    %v5878 = vpop.f32.mrf.mxu0
    %v5879 = vadd.f32 0.0, %v5878
    %v5880 = vpop.f32.mrf.mxu0
    %5881 = vdwg.mxu0
    %5882 = vrot.lane.b32.xlu0 %v992, 64
    %v5883 = vpop.permute.xlu0 %5882
    %5884 = vrot.lane.b32.xlu0 %v1008, 64
    %v5885 = vpop.permute.xlu0 %5884
    %v5887 = vsel %vm1029, %v5883, 0
    %v5890 = vsel %vm1029, %v5885, 0
    %5892 = vmatprep.subr.bf16.mxu0 0
    %5893 = vmatpush1.bf16.xpose.msra.mxu0 0
    %5894 = vmatprep.subr.bf16.mxu0 0
    %5895 = vmatpush1.bf16.xpose.msra.mxu0 0
    %5896 = vmatprep.subr.bf16.mxu0 0
    %5897 = vmatpush1.bf16.xpose.msra.mxu0 0
    %5898 = vmatprep.subr.bf16.mxu0 0
    %5899 = vmatpush1.bf16.xpose.msra.mxu0 0
    %5900 = vmatprep.subr.bf16.mxu0 0
    %5901 = vmatpush1.bf16.xpose.msra.mxu0 0
    %5902 = vmatprep.subr.bf16.mxu0 0
    %5903 = vmatpush1.bf16.xpose.msra.mxu0 0
    %5904 = vmatprep.subr.bf16.mxu0 0
    %5905 = vmatpush1.bf16.xpose.msra.mxu0 0
    %5906 = vmatprep.subr.bf16.mxu0 0
    %5907 = vmatpush1.bf16.xpose.msra.mxu0 %v5890
    %5908 = vmatprep.subr.bf16.mxu0 0
    %5909 = vmatpush2.bf16.xpose.msra.mxu0 0
    %5910 = vmatprep.subr.bf16.mxu0 0
    %5911 = vmatpush2.bf16.xpose.msra.mxu0 0
    %5912 = vmatprep.subr.bf16.mxu0 0
    %5913 = vmatpush2.bf16.xpose.msra.mxu0 0
    %5914 = vmatprep.subr.bf16.mxu0 0
    %5915 = vmatpush2.bf16.xpose.msra.mxu0 0
    %5916 = vmatprep.subr.bf16.mxu0 0
    %5917 = vmatpush2.bf16.xpose.msra.mxu0 0
    %5918 = vmatprep.subr.bf16.mxu0 0
    %5919 = vmatpush2.bf16.xpose.msra.mxu0 0
    %5920 = vmatprep.subr.bf16.mxu0 0
    %5921 = vmatpush2.bf16.xpose.msra.mxu0 0
    %5922 = vmatprep.subr.bf16.mxu0 0
    %5923 = vmatpush2.bf16.xpose.msra.mxu0 0
    %5924 = vmatprep.mubr.bf16.mxu0 0
    %5925 = vmatmul.mubr.bf16.gmra.mxu0 %v5887
    %v5926 = vpop.f32.mrf.mxu0
    %v5927 = vadd.f32 0.0, %v5926
    %v5928 = vpop.f32.mrf.mxu0
    %v5929 = vpop.f32.mrf.mxu0
    %v5930 = vadd.f32 0.0, %v5929
    %v5931 = vpop.f32.mrf.mxu0
    %5932 = vdwg.mxu0
    %5933 = vrot.lane.b32.xlu0 %v993, 64
    %v5934 = vpop.permute.xlu0 %5933
    %5935 = vrot.lane.b32.xlu0 %v1009, 64
    %v5936 = vpop.permute.xlu0 %5935
    %v5938 = vsel %vm1029, %v5934, 0
    %v5941 = vsel %vm1029, %v5936, 0
    %5943 = vmatprep.subr.bf16.mxu0 0
    %5944 = vmatpush1.bf16.xpose.msra.mxu0 0
    %5945 = vmatprep.subr.bf16.mxu0 0
    %5946 = vmatpush1.bf16.xpose.msra.mxu0 0
    %5947 = vmatprep.subr.bf16.mxu0 0
    %5948 = vmatpush1.bf16.xpose.msra.mxu0 0
    %5949 = vmatprep.subr.bf16.mxu0 0
    %5950 = vmatpush1.bf16.xpose.msra.mxu0 0
    %5951 = vmatprep.subr.bf16.mxu0 0
    %5952 = vmatpush1.bf16.xpose.msra.mxu0 0
    %5953 = vmatprep.subr.bf16.mxu0 0
    %5954 = vmatpush1.bf16.xpose.msra.mxu0 0
    %5955 = vmatprep.subr.bf16.mxu0 0
    %5956 = vmatpush1.bf16.xpose.msra.mxu0 0
    %5957 = vmatprep.subr.bf16.mxu0 0
    %5958 = vmatpush1.bf16.xpose.msra.mxu0 %v5941
    %5959 = vmatprep.subr.bf16.mxu0 0
    %5960 = vmatpush2.bf16.xpose.msra.mxu0 0
    %5961 = vmatprep.subr.bf16.mxu0 0
    %5962 = vmatpush2.bf16.xpose.msra.mxu0 0
    %5963 = vmatprep.subr.bf16.mxu0 0
    %5964 = vmatpush2.bf16.xpose.msra.mxu0 0
    %5965 = vmatprep.subr.bf16.mxu0 0
    %5966 = vmatpush2.bf16.xpose.msra.mxu0 0
    %5967 = vmatprep.subr.bf16.mxu0 0
    %5968 = vmatpush2.bf16.xpose.msra.mxu0 0
    %5969 = vmatprep.subr.bf16.mxu0 0
    %5970 = vmatpush2.bf16.xpose.msra.mxu0 0
    %5971 = vmatprep.subr.bf16.mxu0 0
    %5972 = vmatpush2.bf16.xpose.msra.mxu0 0
    %5973 = vmatprep.subr.bf16.mxu0 0
    %5974 = vmatpush2.bf16.xpose.msra.mxu0 0
    %5975 = vmatprep.mubr.bf16.mxu0 0
    %5976 = vmatmul.mubr.bf16.gmra.mxu0 %v5938
    %v5977 = vpop.f32.mrf.mxu0
    %v5978 = vadd.f32 0.0, %v5977
    %v5979 = vpop.f32.mrf.mxu0
    %v5980 = vpop.f32.mrf.mxu0
    %v5981 = vadd.f32 0.0, %v5980
    %v5982 = vpop.f32.mrf.mxu0
    %5983 = vdwg.mxu0
    %5984 = vrot.lane.b32.xlu0 %v994, 64
    %v5985 = vpop.permute.xlu0 %5984
    %5986 = vrot.lane.b32.xlu0 %v1010, 64
    %v5987 = vpop.permute.xlu0 %5986
    %v5989 = vsel %vm1029, %v5985, 0
    %v5992 = vsel %vm1029, %v5987, 0
    %5994 = vmatprep.subr.bf16.mxu0 0
    %5995 = vmatpush1.bf16.xpose.msra.mxu0 0
    %5996 = vmatprep.subr.bf16.mxu0 0
    %5997 = vmatpush1.bf16.xpose.msra.mxu0 0
    %5998 = vmatprep.subr.bf16.mxu0 0
    %5999 = vmatpush1.bf16.xpose.msra.mxu0 0
    %6000 = vmatprep.subr.bf16.mxu0 0
    %6001 = vmatpush1.bf16.xpose.msra.mxu0 0
    %6002 = vmatprep.subr.bf16.mxu0 0
    %6003 = vmatpush1.bf16.xpose.msra.mxu0 0
    %6004 = vmatprep.subr.bf16.mxu0 0
    %6005 = vmatpush1.bf16.xpose.msra.mxu0 0
    %6006 = vmatprep.subr.bf16.mxu0 0
    %6007 = vmatpush1.bf16.xpose.msra.mxu0 0
    %6008 = vmatprep.subr.bf16.mxu0 0
    %6009 = vmatpush1.bf16.xpose.msra.mxu0 %v5992
    %6010 = vmatprep.subr.bf16.mxu0 0
    %6011 = vmatpush2.bf16.xpose.msra.mxu0 0
    %6012 = vmatprep.subr.bf16.mxu0 0
    %6013 = vmatpush2.bf16.xpose.msra.mxu0 0
    %6014 = vmatprep.subr.bf16.mxu0 0
    %6015 = vmatpush2.bf16.xpose.msra.mxu0 0
    %6016 = vmatprep.subr.bf16.mxu0 0
    %6017 = vmatpush2.bf16.xpose.msra.mxu0 0
    %6018 = vmatprep.subr.bf16.mxu0 0
    %6019 = vmatpush2.bf16.xpose.msra.mxu0 0
    %6020 = vmatprep.subr.bf16.mxu0 0
    %6021 = vmatpush2.bf16.xpose.msra.mxu0 0
    %6022 = vmatprep.subr.bf16.mxu0 0
    %6023 = vmatpush2.bf16.xpose.msra.mxu0 0
    %6024 = vmatprep.subr.bf16.mxu0 0
    %6025 = vmatpush2.bf16.xpose.msra.mxu0 0
    %6026 = vmatprep.mubr.bf16.mxu0 0
    %6027 = vmatmul.mubr.bf16.gmra.mxu0 %v5989
    %v6028 = vpop.f32.mrf.mxu0
    %v6029 = vadd.f32 0.0, %v6028
    %v6030 = vpop.f32.mrf.mxu0
    %v6031 = vpop.f32.mrf.mxu0
    %v6032 = vadd.f32 0.0, %v6031
    %v6033 = vpop.f32.mrf.mxu0
    %6034 = vdwg.mxu0
    %6035 = vrot.lane.b32.xlu0 %v995, 64
    %v6036 = vpop.permute.xlu0 %6035
    %6037 = vrot.lane.b32.xlu0 %v1011, 64
    %v6038 = vpop.permute.xlu0 %6037
    %v6040 = vsel %vm1029, %v6036, 0
    %v6043 = vsel %vm1029, %v6038, 0
    %6045 = vmatprep.subr.bf16.mxu0 0
    %6046 = vmatpush1.bf16.xpose.msra.mxu0 0
    %6047 = vmatprep.subr.bf16.mxu0 0
    %6048 = vmatpush1.bf16.xpose.msra.mxu0 0
    %6049 = vmatprep.subr.bf16.mxu0 0
    %6050 = vmatpush1.bf16.xpose.msra.mxu0 0
    %6051 = vmatprep.subr.bf16.mxu0 0
    %6052 = vmatpush1.bf16.xpose.msra.mxu0 0
    %6053 = vmatprep.subr.bf16.mxu0 0
    %6054 = vmatpush1.bf16.xpose.msra.mxu0 0
    %6055 = vmatprep.subr.bf16.mxu0 0
    %6056 = vmatpush1.bf16.xpose.msra.mxu0 0
    %6057 = vmatprep.subr.bf16.mxu0 0
    %6058 = vmatpush1.bf16.xpose.msra.mxu0 0
    %6059 = vmatprep.subr.bf16.mxu0 0
    %6060 = vmatpush1.bf16.xpose.msra.mxu0 %v6043
    %6061 = vmatprep.subr.bf16.mxu0 0
    %6062 = vmatpush2.bf16.xpose.msra.mxu0 0
    %6063 = vmatprep.subr.bf16.mxu0 0
    %6064 = vmatpush2.bf16.xpose.msra.mxu0 0
    %6065 = vmatprep.subr.bf16.mxu0 0
    %6066 = vmatpush2.bf16.xpose.msra.mxu0 0
    %6067 = vmatprep.subr.bf16.mxu0 0
    %6068 = vmatpush2.bf16.xpose.msra.mxu0 0
    %6069 = vmatprep.subr.bf16.mxu0 0
    %6070 = vmatpush2.bf16.xpose.msra.mxu0 0
    %6071 = vmatprep.subr.bf16.mxu0 0
    %6072 = vmatpush2.bf16.xpose.msra.mxu0 0
    %6073 = vmatprep.subr.bf16.mxu0 0
    %6074 = vmatpush2.bf16.xpose.msra.mxu0 0
    %6075 = vmatprep.subr.bf16.mxu0 0
    %6076 = vmatpush2.bf16.xpose.msra.mxu0 0
    %6077 = vmatprep.mubr.bf16.mxu0 0
    %6078 = vmatmul.mubr.bf16.gmra.mxu0 %v6040
    %v6079 = vpop.f32.mrf.mxu0
    %v6080 = vadd.f32 0.0, %v6079
    %v6081 = vpop.f32.mrf.mxu0
    %v6082 = vpop.f32.mrf.mxu0
    %v6083 = vadd.f32 0.0, %v6082
    %v6084 = vpop.f32.mrf.mxu0
    %6085 = vdwg.mxu0
    %6086 = vrot.lane.b32.xlu0 %v996, 64
    %v6087 = vpop.permute.xlu0 %6086
    %6088 = vrot.lane.b32.xlu0 %v1012, 64
    %v6089 = vpop.permute.xlu0 %6088
    %v6091 = vsel %vm1029, %v6087, 0
    %v6094 = vsel %vm1029, %v6089, 0
    %6096 = vmatprep.subr.bf16.mxu0 0
    %6097 = vmatpush1.bf16.xpose.msra.mxu0 0
    %6098 = vmatprep.subr.bf16.mxu0 0
    %6099 = vmatpush1.bf16.xpose.msra.mxu0 0
    %6100 = vmatprep.subr.bf16.mxu0 0
    %6101 = vmatpush1.bf16.xpose.msra.mxu0 0
    %6102 = vmatprep.subr.bf16.mxu0 0
    %6103 = vmatpush1.bf16.xpose.msra.mxu0 0
    %6104 = vmatprep.subr.bf16.mxu0 0
    %6105 = vmatpush1.bf16.xpose.msra.mxu0 0
    %6106 = vmatprep.subr.bf16.mxu0 0
    %6107 = vmatpush1.bf16.xpose.msra.mxu0 0
    %6108 = vmatprep.subr.bf16.mxu0 0
    %6109 = vmatpush1.bf16.xpose.msra.mxu0 0
    %6110 = vmatprep.subr.bf16.mxu0 0
    %6111 = vmatpush1.bf16.xpose.msra.mxu0 %v6094
    %6112 = vmatprep.subr.bf16.mxu0 0
    %6113 = vmatpush2.bf16.xpose.msra.mxu0 0
    %6114 = vmatprep.subr.bf16.mxu0 0
    %6115 = vmatpush2.bf16.xpose.msra.mxu0 0
    %6116 = vmatprep.subr.bf16.mxu0 0
    %6117 = vmatpush2.bf16.xpose.msra.mxu0 0
    %6118 = vmatprep.subr.bf16.mxu0 0
    %6119 = vmatpush2.bf16.xpose.msra.mxu0 0
    %6120 = vmatprep.subr.bf16.mxu0 0
    %6121 = vmatpush2.bf16.xpose.msra.mxu0 0
    %6122 = vmatprep.subr.bf16.mxu0 0
    %6123 = vmatpush2.bf16.xpose.msra.mxu0 0
    %6124 = vmatprep.subr.bf16.mxu0 0
    %6125 = vmatpush2.bf16.xpose.msra.mxu0 0
    %6126 = vmatprep.subr.bf16.mxu0 0
    %6127 = vmatpush2.bf16.xpose.msra.mxu0 0
    %6128 = vmatprep.mubr.bf16.mxu0 0
    %6129 = vmatmul.mubr.bf16.gmra.mxu0 %v6091
    %v6130 = vpop.f32.mrf.mxu0
    %v6131 = vadd.f32 0.0, %v6130
    %v6132 = vpop.f32.mrf.mxu0
    %v6133 = vpop.f32.mrf.mxu0
    %v6134 = vadd.f32 0.0, %v6133
    %v6135 = vpop.f32.mrf.mxu0
    %6136 = vdwg.mxu0
    %v6137 = vsel %vm1782, %v5366, -inf
    %6138 = vmax.xlane.f32.xlu0 %v6137
    %v6139 = vpop.xlane.xlu0 %6138
    %v6140 = vsel %vm1782, %v5369, -inf
    %6141 = vmax.xlane.f32.xlu0 %v6140
    %v6142 = vpop.xlane.xlu0 %6141
    %v6143 = vsel %vm1782, %v5417, -inf
    %6144 = vmax.xlane.f32.xlu0 %v6143
    %v6145 = vpop.xlane.xlu0 %6144
    %v6146 = vsel %vm1782, %v5420, -inf
    %6147 = vmax.xlane.f32.xlu0 %v6146
    %v6148 = vpop.xlane.xlu0 %6147
    %v6149 = vsel %vm1782, %v5468, -inf
    %6150 = vmax.xlane.f32.xlu0 %v6149
    %v6151 = vpop.xlane.xlu0 %6150
    %v6152 = vsel %vm1782, %v5471, -inf
    %6153 = vmax.xlane.f32.xlu0 %v6152
    %v6154 = vpop.xlane.xlu0 %6153
    %v6155 = vsel %vm1782, %v5519, -inf
    %6156 = vmax.xlane.f32.xlu0 %v6155
    %v6157 = vpop.xlane.xlu0 %6156
    %v6158 = vsel %vm1782, %v5522, -inf
    %6159 = vmax.xlane.f32.xlu0 %v6158
    %v6160 = vpop.xlane.xlu0 %6159
    %v6161 = vsel %vm1782, %v5570, -inf
    %6162 = vmax.xlane.f32.xlu0 %v6161
    %v6163 = vpop.xlane.xlu0 %6162
    %v6164 = vsel %vm1782, %v5573, -inf
    %6165 = vmax.xlane.f32.xlu0 %v6164
    %v6166 = vpop.xlane.xlu0 %6165
    %v6167 = vsel %vm1782, %v5621, -inf
    %6168 = vmax.xlane.f32.xlu0 %v6167
    %v6169 = vpop.xlane.xlu0 %6168
    %v6170 = vsel %vm1782, %v5624, -inf
    %6171 = vmax.xlane.f32.xlu0 %v6170
    %v6172 = vpop.xlane.xlu0 %6171
    %v6173 = vsel %vm1782, %v5672, -inf
    %6174 = vmax.xlane.f32.xlu0 %v6173
    %v6175 = vpop.xlane.xlu0 %6174
    %v6176 = vsel %vm1782, %v5675, -inf
    %6177 = vmax.xlane.f32.xlu0 %v6176
    %v6178 = vpop.xlane.xlu0 %6177
    %v6179 = vsel %vm1782, %v5723, -inf
    %6180 = vmax.xlane.f32.xlu0 %v6179
    %v6181 = vpop.xlane.xlu0 %6180
    %v6182 = vsel %vm1782, %v5726, -inf
    %6183 = vmax.xlane.f32.xlu0 %v6182
    %v6184 = vpop.xlane.xlu0 %6183
    %v6185 = vsel %vm1782, %v5774, -inf
    %6186 = vmax.xlane.f32.xlu0 %v6185
    %v6187 = vpop.xlane.xlu0 %6186
    %v6188 = vsel %vm1782, %v5777, -inf
    %6189 = vmax.xlane.f32.xlu0 %v6188
    %v6190 = vpop.xlane.xlu0 %6189
    %v6191 = vsel %vm1782, %v5825, -inf
    %6192 = vmax.xlane.f32.xlu0 %v6191
    %v6193 = vpop.xlane.xlu0 %6192
    %v6194 = vsel %vm1782, %v5828, -inf
    %6195 = vmax.xlane.f32.xlu0 %v6194
    %v6196 = vpop.xlane.xlu0 %6195
    %v6197 = vsel %vm1782, %v5876, -inf
    %6198 = vmax.xlane.f32.xlu0 %v6197
    %v6199 = vpop.xlane.xlu0 %6198
    %v6200 = vsel %vm1782, %v5879, -inf
    %6201 = vmax.xlane.f32.xlu0 %v6200
    %v6202 = vpop.xlane.xlu0 %6201
    %v6203 = vsel %vm1782, %v5927, -inf
    %6204 = vmax.xlane.f32.xlu0 %v6203
    %v6205 = vpop.xlane.xlu0 %6204
    %v6206 = vsel %vm1782, %v5930, -inf
    %6207 = vmax.xlane.f32.xlu0 %v6206
    %v6208 = vpop.xlane.xlu0 %6207
    %v6209 = vsel %vm1782, %v5978, -inf
    %6210 = vmax.xlane.f32.xlu0 %v6209
    %v6211 = vpop.xlane.xlu0 %6210
    %v6212 = vsel %vm1782, %v5981, -inf
    %6213 = vmax.xlane.f32.xlu0 %v6212
    %v6214 = vpop.xlane.xlu0 %6213
    %v6215 = vsel %vm1782, %v6029, -inf
    %6216 = vmax.xlane.f32.xlu0 %v6215
    %v6217 = vpop.xlane.xlu0 %6216
    %v6218 = vsel %vm1782, %v6032, -inf
    %6219 = vmax.xlane.f32.xlu0 %v6218
    %v6220 = vpop.xlane.xlu0 %6219
    %v6221 = vsel %vm1782, %v6080, -inf
    %6222 = vmax.xlane.f32.xlu0 %v6221
    %v6223 = vpop.xlane.xlu0 %6222
    %v6224 = vsel %vm1782, %v6083, -inf
    %6225 = vmax.xlane.f32.xlu0 %v6224
    %v6226 = vpop.xlane.xlu0 %6225
    %v6227 = vsel %vm1782, %v6131, -inf
    %6228 = vmax.xlane.f32.xlu0 %v6227
    %v6229 = vpop.xlane.xlu0 %6228
    %v6230 = vsel %vm1782, %v6134, -inf
    %6231 = vmax.xlane.f32.xlu0 %v6230
    %v6232 = vpop.xlane.xlu0 %6231
    %v6233 = vsub.f32 %v5366, %v6139
    %v6234 = vsub.f32 %v5369, %v6142
    %v6235 = vsub.f32 %v5417, %v6145
    %v6236 = vsub.f32 %v5420, %v6148
    %v6237 = vsub.f32 %v5468, %v6151
    %v6238 = vsub.f32 %v5471, %v6154
    %v6239 = vsub.f32 %v5519, %v6157
    %v6240 = vsub.f32 %v5522, %v6160
    %v6241 = vsub.f32 %v5570, %v6163
    %v6242 = vsub.f32 %v5573, %v6166
    %v6243 = vsub.f32 %v5621, %v6169
    %v6244 = vsub.f32 %v5624, %v6172
    %v6245 = vsub.f32 %v5672, %v6175
    %v6246 = vsub.f32 %v5675, %v6178
    %v6247 = vsub.f32 %v5723, %v6181
    %v6248 = vsub.f32 %v5726, %v6184
    %v6249 = vsub.f32 %v5774, %v6187
    %v6250 = vsub.f32 %v5777, %v6190
    %v6251 = vsub.f32 %v5825, %v6193
    %v6252 = vsub.f32 %v5828, %v6196
    %v6253 = vsub.f32 %v5876, %v6199
    %v6254 = vsub.f32 %v5879, %v6202
    %v6255 = vsub.f32 %v5927, %v6205
    %v6256 = vsub.f32 %v5930, %v6208
    %v6257 = vsub.f32 %v5978, %v6211
    %v6258 = vsub.f32 %v5981, %v6214
    %v6259 = vsub.f32 %v6029, %v6217
    %v6260 = vsub.f32 %v6032, %v6220
    %v6261 = vsub.f32 %v6080, %v6223
    %v6262 = vsub.f32 %v6083, %v6226
    %v6263 = vsub.f32 %v6131, %v6229
    %v6264 = vsub.f32 %v6134, %v6232
    %v6265 = vmul.f32 %v6233, 1.442695
    %v6266 = vpow.pop %v6265
    %v6267 = vmul.f32 %v6234, 1.442695
    %v6268 = vpow.pop %v6267
    %v6269 = vmul.f32 %v6235, 1.442695
    %v6270 = vpow.pop %v6269
    %v6271 = vmul.f32 %v6236, 1.442695
    %v6272 = vpow.pop %v6271
    %v6273 = vmul.f32 %v6237, 1.442695
    %v6274 = vpow.pop %v6273
    %v6275 = vmul.f32 %v6238, 1.442695
    %v6276 = vpow.pop %v6275
    %v6277 = vmul.f32 %v6239, 1.442695
    %v6278 = vpow.pop %v6277
    %v6279 = vmul.f32 %v6240, 1.442695
    %v6280 = vpow.pop %v6279
    %v6281 = vmul.f32 %v6241, 1.442695
    %v6282 = vpow.pop %v6281
    %v6283 = vmul.f32 %v6242, 1.442695
    %v6284 = vpow.pop %v6283
    %v6285 = vmul.f32 %v6243, 1.442695
    %v6286 = vpow.pop %v6285
    %v6287 = vmul.f32 %v6244, 1.442695
    %v6288 = vpow.pop %v6287
    %v6289 = vmul.f32 %v6245, 1.442695
    %v6290 = vpow.pop %v6289
    %v6291 = vmul.f32 %v6246, 1.442695
    %v6292 = vpow.pop %v6291
    %v6293 = vmul.f32 %v6247, 1.442695
    %v6294 = vpow.pop %v6293
    %v6295 = vmul.f32 %v6248, 1.442695
    %v6296 = vpow.pop %v6295
    %v6297 = vmul.f32 %v6249, 1.442695
    %v6298 = vpow.pop %v6297
    %v6299 = vmul.f32 %v6250, 1.442695
    %v6300 = vpow.pop %v6299
    %v6301 = vmul.f32 %v6251, 1.442695
    %v6302 = vpow.pop %v6301
    %v6303 = vmul.f32 %v6252, 1.442695
    %v6304 = vpow.pop %v6303
    %v6305 = vmul.f32 %v6253, 1.442695
    %v6306 = vpow.pop %v6305
    %v6307 = vmul.f32 %v6254, 1.442695
    %v6308 = vpow.pop %v6307
    %v6309 = vmul.f32 %v6255, 1.442695
    %v6310 = vpow.pop %v6309
    %v6311 = vmul.f32 %v6256, 1.442695
    %v6312 = vpow.pop %v6311
    %v6313 = vmul.f32 %v6257, 1.442695
    %v6314 = vpow.pop %v6313
    %v6315 = vmul.f32 %v6258, 1.442695
    %v6316 = vpow.pop %v6315
    %v6317 = vmul.f32 %v6259, 1.442695
    %v6318 = vpow.pop %v6317
    %v6319 = vmul.f32 %v6260, 1.442695
    %v6320 = vpow.pop %v6319
    %v6321 = vmul.f32 %v6261, 1.442695
    %v6322 = vpow.pop %v6321
    %v6323 = vmul.f32 %v6262, 1.442695
    %v6324 = vpow.pop %v6323
    %v6325 = vmul.f32 %v6263, 1.442695
    %v6326 = vpow.pop %v6325
    %v6327 = vmul.f32 %v6264, 1.442695
    %v6328 = vpow.pop %v6327
    %v6329 = vsel %vm1782, %v6266, 0.0
    %6330 = vadd.xlane.f32.xlu0 %v6329
    %v6331 = vpop.xlane.xlu0 %6330
    %v6332 = vsel %vm1782, %v6268, 0.0
    %6333 = vadd.xlane.f32.xlu0 %v6332
    %v6334 = vpop.xlane.xlu0 %6333
    %v6335 = vsel %vm1782, %v6270, 0.0
    %6336 = vadd.xlane.f32.xlu0 %v6335
    %v6337 = vpop.xlane.xlu0 %6336
    %v6338 = vsel %vm1782, %v6272, 0.0
    %6339 = vadd.xlane.f32.xlu0 %v6338
    %v6340 = vpop.xlane.xlu0 %6339
    %v6341 = vsel %vm1782, %v6274, 0.0
    %6342 = vadd.xlane.f32.xlu0 %v6341
    %v6343 = vpop.xlane.xlu0 %6342
    %v6344 = vsel %vm1782, %v6276, 0.0
    %6345 = vadd.xlane.f32.xlu0 %v6344
    %v6346 = vpop.xlane.xlu0 %6345
    %v6347 = vsel %vm1782, %v6278, 0.0
    %6348 = vadd.xlane.f32.xlu0 %v6347
    %v6349 = vpop.xlane.xlu0 %6348
    %v6350 = vsel %vm1782, %v6280, 0.0
    %6351 = vadd.xlane.f32.xlu0 %v6350
    %v6352 = vpop.xlane.xlu0 %6351
    %v6353 = vsel %vm1782, %v6282, 0.0
    %6354 = vadd.xlane.f32.xlu0 %v6353
    %v6355 = vpop.xlane.xlu0 %6354
    %v6356 = vsel %vm1782, %v6284, 0.0
    %6357 = vadd.xlane.f32.xlu0 %v6356
    %v6358 = vpop.xlane.xlu0 %6357
    %v6359 = vsel %vm1782, %v6286, 0.0
    %6360 = vadd.xlane.f32.xlu0 %v6359
    %v6361 = vpop.xlane.xlu0 %6360
    %v6362 = vsel %vm1782, %v6288, 0.0
    %6363 = vadd.xlane.f32.xlu0 %v6362
    %v6364 = vpop.xlane.xlu0 %6363
    %v6365 = vsel %vm1782, %v6290, 0.0
    %6366 = vadd.xlane.f32.xlu0 %v6365
    %v6367 = vpop.xlane.xlu0 %6366
    %v6368 = vsel %vm1782, %v6292, 0.0
    %6369 = vadd.xlane.f32.xlu0 %v6368
    %v6370 = vpop.xlane.xlu0 %6369
    %v6371 = vsel %vm1782, %v6294, 0.0
    %6372 = vadd.xlane.f32.xlu0 %v6371
    %v6373 = vpop.xlane.xlu0 %6372
    %v6374 = vsel %vm1782, %v6296, 0.0
    %6375 = vadd.xlane.f32.xlu0 %v6374
    %v6376 = vpop.xlane.xlu0 %6375
    %v6377 = vsel %vm1782, %v6298, 0.0
    %6378 = vadd.xlane.f32.xlu0 %v6377
    %v6379 = vpop.xlane.xlu0 %6378
    %v6380 = vsel %vm1782, %v6300, 0.0
    %6381 = vadd.xlane.f32.xlu0 %v6380
    %v6382 = vpop.xlane.xlu0 %6381
    %v6383 = vsel %vm1782, %v6302, 0.0
    %6384 = vadd.xlane.f32.xlu0 %v6383
    %v6385 = vpop.xlane.xlu0 %6384
    %v6386 = vsel %vm1782, %v6304, 0.0
    %6387 = vadd.xlane.f32.xlu0 %v6386
    %v6388 = vpop.xlane.xlu0 %6387
    %v6389 = vsel %vm1782, %v6306, 0.0
    %6390 = vadd.xlane.f32.xlu0 %v6389
    %v6391 = vpop.xlane.xlu0 %6390
    %v6392 = vsel %vm1782, %v6308, 0.0
    %6393 = vadd.xlane.f32.xlu0 %v6392
    %v6394 = vpop.xlane.xlu0 %6393
    %v6395 = vsel %vm1782, %v6310, 0.0
    %6396 = vadd.xlane.f32.xlu0 %v6395
    %v6397 = vpop.xlane.xlu0 %6396
    %v6398 = vsel %vm1782, %v6312, 0.0
    %6399 = vadd.xlane.f32.xlu0 %v6398
    %v6400 = vpop.xlane.xlu0 %6399
    %v6401 = vsel %vm1782, %v6314, 0.0
    %6402 = vadd.xlane.f32.xlu0 %v6401
    %v6403 = vpop.xlane.xlu0 %6402
    %v6404 = vsel %vm1782, %v6316, 0.0
    %6405 = vadd.xlane.f32.xlu0 %v6404
    %v6406 = vpop.xlane.xlu0 %6405
    %v6407 = vsel %vm1782, %v6318, 0.0
    %6408 = vadd.xlane.f32.xlu0 %v6407
    %v6409 = vpop.xlane.xlu0 %6408
    %v6410 = vsel %vm1782, %v6320, 0.0
    %6411 = vadd.xlane.f32.xlu0 %v6410
    %v6412 = vpop.xlane.xlu0 %6411
    %v6413 = vsel %vm1782, %v6322, 0.0
    %6414 = vadd.xlane.f32.xlu0 %v6413
    %v6415 = vpop.xlane.xlu0 %6414
    %v6416 = vsel %vm1782, %v6324, 0.0
    %6417 = vadd.xlane.f32.xlu0 %v6416
    %v6418 = vpop.xlane.xlu0 %6417
    %v6419 = vsel %vm1782, %v6326, 0.0
    %6420 = vadd.xlane.f32.xlu0 %v6419
    %v6421 = vpop.xlane.xlu0 %6420
    %v6422 = vsel %vm1782, %v6328, 0.0
    %6423 = vadd.xlane.f32.xlu0 %v6422
    %v6424 = vpop.xlane.xlu0 %6423
    %v6425 = vrcp.pop %v6331
    %v6426 = vrcp.pop %v6334
    %v6427 = vrcp.pop %v6337
    %v6428 = vrcp.pop %v6340
    %v6429 = vrcp.pop %v6343
    %v6430 = vrcp.pop %v6346
    %v6431 = vrcp.pop %v6349
    %v6432 = vrcp.pop %v6352
    %v6433 = vrcp.pop %v6355
    %v6434 = vrcp.pop %v6358
    %v6435 = vrcp.pop %v6361
    %v6436 = vrcp.pop %v6364
    %v6437 = vrcp.pop %v6367
    %v6438 = vrcp.pop %v6370
    %v6439 = vrcp.pop %v6373
    %v6440 = vrcp.pop %v6376
    %v6441 = vrcp.pop %v6379
    %v6442 = vrcp.pop %v6382
    %v6443 = vrcp.pop %v6385
    %v6444 = vrcp.pop %v6388
    %v6445 = vrcp.pop %v6391
    %v6446 = vrcp.pop %v6394
    %v6447 = vrcp.pop %v6397
    %v6448 = vrcp.pop %v6400
    %v6449 = vrcp.pop %v6403
    %v6450 = vrcp.pop %v6406
    %v6451 = vrcp.pop %v6409
    %v6452 = vrcp.pop %v6412
    %v6453 = vrcp.pop %v6415
    %v6454 = vrcp.pop %v6418
    %v6455 = vrcp.pop %v6421
    %v6456 = vrcp.pop %v6424
    %v6457 = vmul.f32 %v6266, %v6425
    %v6458 = vmul.f32 %v6268, %v6426
    %v6459 = vmul.f32 %v6270, %v6427
    %v6460 = vmul.f32 %v6272, %v6428
    %v6461 = vmul.f32 %v6274, %v6429
    %v6462 = vmul.f32 %v6276, %v6430
    %v6463 = vmul.f32 %v6278, %v6431
    %v6464 = vmul.f32 %v6280, %v6432
    %v6465 = vmul.f32 %v6282, %v6433
    %v6466 = vmul.f32 %v6284, %v6434
    %v6467 = vmul.f32 %v6286, %v6435
    %v6468 = vmul.f32 %v6288, %v6436
    %v6469 = vmul.f32 %v6290, %v6437
    %v6470 = vmul.f32 %v6292, %v6438
    %v6471 = vmul.f32 %v6294, %v6439
    %v6472 = vmul.f32 %v6296, %v6440
    %v6473 = vmul.f32 %v6298, %v6441
    %v6474 = vmul.f32 %v6300, %v6442
    %v6475 = vmul.f32 %v6302, %v6443
    %v6476 = vmul.f32 %v6304, %v6444
    %v6477 = vmul.f32 %v6306, %v6445
    %v6478 = vmul.f32 %v6308, %v6446
    %v6479 = vmul.f32 %v6310, %v6447
    %v6480 = vmul.f32 %v6312, %v6448
    %v6481 = vmul.f32 %v6314, %v6449
    %v6482 = vmul.f32 %v6316, %v6450
    %v6483 = vmul.f32 %v6318, %v6451
    %v6484 = vmul.f32 %v6320, %v6452
    %v6485 = vmul.f32 %v6322, %v6453
    %v6486 = vmul.f32 %v6324, %v6454
    %v6487 = vmul.f32 %v6326, %v6455
    %v6488 = vmul.f32 %v6328, %v6456
    %v6489 = vpack.c.bf16 %v6458, %v6457
    %v6490 = vpack.c.bf16 %v6460, %v6459
    %v6491 = vpack.c.bf16 %v6462, %v6461
    %v6492 = vpack.c.bf16 %v6464, %v6463
    %v6493 = vpack.c.bf16 %v6466, %v6465
    %v6494 = vpack.c.bf16 %v6468, %v6467
    %v6495 = vpack.c.bf16 %v6470, %v6469
    %v6496 = vpack.c.bf16 %v6472, %v6471
    %v6497 = vpack.c.bf16 %v6474, %v6473
    %v6498 = vpack.c.bf16 %v6476, %v6475
    %v6499 = vpack.c.bf16 %v6478, %v6477
    %v6500 = vpack.c.bf16 %v6480, %v6479
    %v6501 = vpack.c.bf16 %v6482, %v6481
    %v6502 = vpack.c.bf16 %v6484, %v6483
    %v6503 = vpack.c.bf16 %v6486, %v6485
    %v6504 = vpack.c.bf16 %v6488, %v6487
    %6505 = vrot.lane.b32.xlu0 %v1013, 64
    %v6506 = vpop.permute.xlu0 %6505
    %v6509 = vsel %vm1782, %v6489, 0
    %6511 = vmatprep.subr.bf16.mxu0 0
    %6512 = vmatpush1.bf16.msra.mxu0 0
    %6513 = vmatprep.subr.bf16.mxu0 0
    %6514 = vmatpush1.bf16.msra.mxu0 0
    %6515 = vmatprep.subr.bf16.mxu0 0
    %6516 = vmatpush1.bf16.msra.mxu0 0
    %6517 = vmatprep.subr.bf16.mxu0 0
    %6518 = vmatpush1.bf16.msra.mxu0 0
    %6519 = vmatprep.subr.bf16.mxu0 0
    %6520 = vmatpush1.bf16.msra.mxu0 0
    %6521 = vmatprep.subr.bf16.mxu0 0
    %6522 = vmatpush1.bf16.msra.mxu0 0
    %6523 = vmatprep.subr.bf16.mxu0 0
    %6524 = vmatpush1.bf16.msra.mxu0 0
    %6525 = vmatprep.subr.bf16.mxu0 0
    %6526 = vmatpush1.bf16.msra.mxu0 %v6506
    %6527 = vmatprep.subr.bf16.mxu0 0
    %6528 = vmatpush2.bf16.msra.mxu0 0
    %6529 = vmatprep.subr.bf16.mxu0 0
    %6530 = vmatpush2.bf16.msra.mxu0 0
    %6531 = vmatprep.subr.bf16.mxu0 0
    %6532 = vmatpush2.bf16.msra.mxu0 0
    %6533 = vmatprep.subr.bf16.mxu0 0
    %6534 = vmatpush2.bf16.msra.mxu0 0
    %6535 = vmatprep.subr.bf16.mxu0 0
    %6536 = vmatpush2.bf16.msra.mxu0 0
    %6537 = vmatprep.subr.bf16.mxu0 0
    %6538 = vmatpush2.bf16.msra.mxu0 0
    %6539 = vmatprep.subr.bf16.mxu0 0
    %6540 = vmatpush2.bf16.msra.mxu0 0
    %6541 = vmatprep.subr.bf16.mxu0 0
    %6542 = vmatpush2.bf16.msra.mxu0 0
    %6543 = vmatprep.mubr.bf16.mxu0 0
    %6544 = vmatmul.mubr.bf16.gmra.mxu0 %v6509
    %v6545 = vpop.f32.mrf.mxu0
    %v6546 = vadd.f32 0.0, %v6545
    %v6547 = vpop.f32.mrf.mxu0
    %v6548 = vpop.f32.mrf.mxu0
    %v6549 = vadd.f32 0.0, %v6548
    %v6550 = vpop.f32.mrf.mxu0
    %6551 = vdwg.mxu0
    %6552 = vrot.lane.b32.xlu0 %v1014, 64
    %v6553 = vpop.permute.xlu0 %6552
    %v6556 = vsel %vm1782, %v6490, 0
    %6558 = vmatprep.subr.bf16.mxu0 0
    %6559 = vmatpush1.bf16.msra.mxu0 0
    %6560 = vmatprep.subr.bf16.mxu0 0
    %6561 = vmatpush1.bf16.msra.mxu0 0
    %6562 = vmatprep.subr.bf16.mxu0 0
    %6563 = vmatpush1.bf16.msra.mxu0 0
    %6564 = vmatprep.subr.bf16.mxu0 0
    %6565 = vmatpush1.bf16.msra.mxu0 0
    %6566 = vmatprep.subr.bf16.mxu0 0
    %6567 = vmatpush1.bf16.msra.mxu0 0
    %6568 = vmatprep.subr.bf16.mxu0 0
    %6569 = vmatpush1.bf16.msra.mxu0 0
    %6570 = vmatprep.subr.bf16.mxu0 0
    %6571 = vmatpush1.bf16.msra.mxu0 0
    %6572 = vmatprep.subr.bf16.mxu0 0
    %6573 = vmatpush1.bf16.msra.mxu0 %v6553
    %6574 = vmatprep.subr.bf16.mxu0 0
    %6575 = vmatpush2.bf16.msra.mxu0 0
    %6576 = vmatprep.subr.bf16.mxu0 0
    %6577 = vmatpush2.bf16.msra.mxu0 0
    %6578 = vmatprep.subr.bf16.mxu0 0
    %6579 = vmatpush2.bf16.msra.mxu0 0
    %6580 = vmatprep.subr.bf16.mxu0 0
    %6581 = vmatpush2.bf16.msra.mxu0 0
    %6582 = vmatprep.subr.bf16.mxu0 0
    %6583 = vmatpush2.bf16.msra.mxu0 0
    %6584 = vmatprep.subr.bf16.mxu0 0
    %6585 = vmatpush2.bf16.msra.mxu0 0
    %6586 = vmatprep.subr.bf16.mxu0 0
    %6587 = vmatpush2.bf16.msra.mxu0 0
    %6588 = vmatprep.subr.bf16.mxu0 0
    %6589 = vmatpush2.bf16.msra.mxu0 0
    %6590 = vmatprep.mubr.bf16.mxu0 0
    %6591 = vmatmul.mubr.bf16.gmra.mxu0 %v6556
    %v6592 = vpop.f32.mrf.mxu0
    %v6593 = vadd.f32 0.0, %v6592
    %v6594 = vpop.f32.mrf.mxu0
    %v6595 = vpop.f32.mrf.mxu0
    %v6596 = vadd.f32 0.0, %v6595
    %v6597 = vpop.f32.mrf.mxu0
    %6598 = vdwg.mxu0
    %6599 = vrot.lane.b32.xlu0 %v1015, 64
    %v6600 = vpop.permute.xlu0 %6599
    %v6603 = vsel %vm1782, %v6491, 0
    %6605 = vmatprep.subr.bf16.mxu0 0
    %6606 = vmatpush1.bf16.msra.mxu0 0
    %6607 = vmatprep.subr.bf16.mxu0 0
    %6608 = vmatpush1.bf16.msra.mxu0 0
    %6609 = vmatprep.subr.bf16.mxu0 0
    %6610 = vmatpush1.bf16.msra.mxu0 0
    %6611 = vmatprep.subr.bf16.mxu0 0
    %6612 = vmatpush1.bf16.msra.mxu0 0
    %6613 = vmatprep.subr.bf16.mxu0 0
    %6614 = vmatpush1.bf16.msra.mxu0 0
    %6615 = vmatprep.subr.bf16.mxu0 0
    %6616 = vmatpush1.bf16.msra.mxu0 0
    %6617 = vmatprep.subr.bf16.mxu0 0
    %6618 = vmatpush1.bf16.msra.mxu0 0
    %6619 = vmatprep.subr.bf16.mxu0 0
    %6620 = vmatpush1.bf16.msra.mxu0 %v6600
    %6621 = vmatprep.subr.bf16.mxu0 0
    %6622 = vmatpush2.bf16.msra.mxu0 0
    %6623 = vmatprep.subr.bf16.mxu0 0
    %6624 = vmatpush2.bf16.msra.mxu0 0
    %6625 = vmatprep.subr.bf16.mxu0 0
    %6626 = vmatpush2.bf16.msra.mxu0 0
    %6627 = vmatprep.subr.bf16.mxu0 0
    %6628 = vmatpush2.bf16.msra.mxu0 0
    %6629 = vmatprep.subr.bf16.mxu0 0
    %6630 = vmatpush2.bf16.msra.mxu0 0
    %6631 = vmatprep.subr.bf16.mxu0 0
    %6632 = vmatpush2.bf16.msra.mxu0 0
    %6633 = vmatprep.subr.bf16.mxu0 0
    %6634 = vmatpush2.bf16.msra.mxu0 0
    %6635 = vmatprep.subr.bf16.mxu0 0
    %6636 = vmatpush2.bf16.msra.mxu0 0
    %6637 = vmatprep.mubr.bf16.mxu0 0
    %6638 = vmatmul.mubr.bf16.gmra.mxu0 %v6603
    %v6639 = vpop.f32.mrf.mxu0
    %v6640 = vadd.f32 0.0, %v6639
    %v6641 = vpop.f32.mrf.mxu0
    %v6642 = vpop.f32.mrf.mxu0
    %v6643 = vadd.f32 0.0, %v6642
    %v6644 = vpop.f32.mrf.mxu0
    %6645 = vdwg.mxu0
    %6646 = vrot.lane.b32.xlu0 %v1016, 64
    %v6647 = vpop.permute.xlu0 %6646
    %v6650 = vsel %vm1782, %v6492, 0
    %6652 = vmatprep.subr.bf16.mxu0 0
    %6653 = vmatpush1.bf16.msra.mxu0 0
    %6654 = vmatprep.subr.bf16.mxu0 0
    %6655 = vmatpush1.bf16.msra.mxu0 0
    %6656 = vmatprep.subr.bf16.mxu0 0
    %6657 = vmatpush1.bf16.msra.mxu0 0
    %6658 = vmatprep.subr.bf16.mxu0 0
    %6659 = vmatpush1.bf16.msra.mxu0 0
    %6660 = vmatprep.subr.bf16.mxu0 0
    %6661 = vmatpush1.bf16.msra.mxu0 0
    %6662 = vmatprep.subr.bf16.mxu0 0
    %6663 = vmatpush1.bf16.msra.mxu0 0
    %6664 = vmatprep.subr.bf16.mxu0 0
    %6665 = vmatpush1.bf16.msra.mxu0 0
    %6666 = vmatprep.subr.bf16.mxu0 0
    %6667 = vmatpush1.bf16.msra.mxu0 %v6647
    %6668 = vmatprep.subr.bf16.mxu0 0
    %6669 = vmatpush2.bf16.msra.mxu0 0
    %6670 = vmatprep.subr.bf16.mxu0 0
    %6671 = vmatpush2.bf16.msra.mxu0 0
    %6672 = vmatprep.subr.bf16.mxu0 0
    %6673 = vmatpush2.bf16.msra.mxu0 0
    %6674 = vmatprep.subr.bf16.mxu0 0
    %6675 = vmatpush2.bf16.msra.mxu0 0
    %6676 = vmatprep.subr.bf16.mxu0 0
    %6677 = vmatpush2.bf16.msra.mxu0 0
    %6678 = vmatprep.subr.bf16.mxu0 0
    %6679 = vmatpush2.bf16.msra.mxu0 0
    %6680 = vmatprep.subr.bf16.mxu0 0
    %6681 = vmatpush2.bf16.msra.mxu0 0
    %6682 = vmatprep.subr.bf16.mxu0 0
    %6683 = vmatpush2.bf16.msra.mxu0 0
    %6684 = vmatprep.mubr.bf16.mxu0 0
    %6685 = vmatmul.mubr.bf16.gmra.mxu0 %v6650
    %v6686 = vpop.f32.mrf.mxu0
    %v6687 = vadd.f32 0.0, %v6686
    %v6688 = vpop.f32.mrf.mxu0
    %v6689 = vpop.f32.mrf.mxu0
    %v6690 = vadd.f32 0.0, %v6689
    %v6691 = vpop.f32.mrf.mxu0
    %6692 = vdwg.mxu0
    %6693 = vrot.lane.b32.xlu0 %v1017, 64
    %v6694 = vpop.permute.xlu0 %6693
    %v6697 = vsel %vm1782, %v6493, 0
    %6699 = vmatprep.subr.bf16.mxu0 0
    %6700 = vmatpush1.bf16.msra.mxu0 0
    %6701 = vmatprep.subr.bf16.mxu0 0
    %6702 = vmatpush1.bf16.msra.mxu0 0
    %6703 = vmatprep.subr.bf16.mxu0 0
    %6704 = vmatpush1.bf16.msra.mxu0 0
    %6705 = vmatprep.subr.bf16.mxu0 0
    %6706 = vmatpush1.bf16.msra.mxu0 0
    %6707 = vmatprep.subr.bf16.mxu0 0
    %6708 = vmatpush1.bf16.msra.mxu0 0
    %6709 = vmatprep.subr.bf16.mxu0 0
    %6710 = vmatpush1.bf16.msra.mxu0 0
    %6711 = vmatprep.subr.bf16.mxu0 0
    %6712 = vmatpush1.bf16.msra.mxu0 0
    %6713 = vmatprep.subr.bf16.mxu0 0
    %6714 = vmatpush1.bf16.msra.mxu0 %v6694
    %6715 = vmatprep.subr.bf16.mxu0 0
    %6716 = vmatpush2.bf16.msra.mxu0 0
    %6717 = vmatprep.subr.bf16.mxu0 0
    %6718 = vmatpush2.bf16.msra.mxu0 0
    %6719 = vmatprep.subr.bf16.mxu0 0
    %6720 = vmatpush2.bf16.msra.mxu0 0
    %6721 = vmatprep.subr.bf16.mxu0 0
    %6722 = vmatpush2.bf16.msra.mxu0 0
    %6723 = vmatprep.subr.bf16.mxu0 0
    %6724 = vmatpush2.bf16.msra.mxu0 0
    %6725 = vmatprep.subr.bf16.mxu0 0
    %6726 = vmatpush2.bf16.msra.mxu0 0
    %6727 = vmatprep.subr.bf16.mxu0 0
    %6728 = vmatpush2.bf16.msra.mxu0 0
    %6729 = vmatprep.subr.bf16.mxu0 0
    %6730 = vmatpush2.bf16.msra.mxu0 0
    %6731 = vmatprep.mubr.bf16.mxu0 0
    %6732 = vmatmul.mubr.bf16.gmra.mxu0 %v6697
    %v6733 = vpop.f32.mrf.mxu0
    %v6734 = vadd.f32 0.0, %v6733
    %v6735 = vpop.f32.mrf.mxu0
    %v6736 = vpop.f32.mrf.mxu0
    %v6737 = vadd.f32 0.0, %v6736
    %v6738 = vpop.f32.mrf.mxu0
    %6739 = vdwg.mxu0
    %6740 = vrot.lane.b32.xlu0 %v1018, 64
    %v6741 = vpop.permute.xlu0 %6740
    %v6744 = vsel %vm1782, %v6494, 0
    %6746 = vmatprep.subr.bf16.mxu0 0
    %6747 = vmatpush1.bf16.msra.mxu0 0
    %6748 = vmatprep.subr.bf16.mxu0 0
    %6749 = vmatpush1.bf16.msra.mxu0 0
    %6750 = vmatprep.subr.bf16.mxu0 0
    %6751 = vmatpush1.bf16.msra.mxu0 0
    %6752 = vmatprep.subr.bf16.mxu0 0
    %6753 = vmatpush1.bf16.msra.mxu0 0
    %6754 = vmatprep.subr.bf16.mxu0 0
    %6755 = vmatpush1.bf16.msra.mxu0 0
    %6756 = vmatprep.subr.bf16.mxu0 0
    %6757 = vmatpush1.bf16.msra.mxu0 0
    %6758 = vmatprep.subr.bf16.mxu0 0
    %6759 = vmatpush1.bf16.msra.mxu0 0
    %6760 = vmatprep.subr.bf16.mxu0 0
    %6761 = vmatpush1.bf16.msra.mxu0 %v6741
    %6762 = vmatprep.subr.bf16.mxu0 0
    %6763 = vmatpush2.bf16.msra.mxu0 0
    %6764 = vmatprep.subr.bf16.mxu0 0
    %6765 = vmatpush2.bf16.msra.mxu0 0
    %6766 = vmatprep.subr.bf16.mxu0 0
    %6767 = vmatpush2.bf16.msra.mxu0 0
    %6768 = vmatprep.subr.bf16.mxu0 0
    %6769 = vmatpush2.bf16.msra.mxu0 0
    %6770 = vmatprep.subr.bf16.mxu0 0
    %6771 = vmatpush2.bf16.msra.mxu0 0
    %6772 = vmatprep.subr.bf16.mxu0 0
    %6773 = vmatpush2.bf16.msra.mxu0 0
    %6774 = vmatprep.subr.bf16.mxu0 0
    %6775 = vmatpush2.bf16.msra.mxu0 0
    %6776 = vmatprep.subr.bf16.mxu0 0
    %6777 = vmatpush2.bf16.msra.mxu0 0
    %6778 = vmatprep.mubr.bf16.mxu0 0
    %6779 = vmatmul.mubr.bf16.gmra.mxu0 %v6744
    %v6780 = vpop.f32.mrf.mxu0
    %v6781 = vadd.f32 0.0, %v6780
    %v6782 = vpop.f32.mrf.mxu0
    %v6783 = vpop.f32.mrf.mxu0
    %v6784 = vadd.f32 0.0, %v6783
    %v6785 = vpop.f32.mrf.mxu0
    %6786 = vdwg.mxu0
    %6787 = vrot.lane.b32.xlu0 %v1019, 64
    %v6788 = vpop.permute.xlu0 %6787
    %v6791 = vsel %vm1782, %v6495, 0
    %6793 = vmatprep.subr.bf16.mxu0 0
    %6794 = vmatpush1.bf16.msra.mxu0 0
    %6795 = vmatprep.subr.bf16.mxu0 0
    %6796 = vmatpush1.bf16.msra.mxu0 0
    %6797 = vmatprep.subr.bf16.mxu0 0
    %6798 = vmatpush1.bf16.msra.mxu0 0
    %6799 = vmatprep.subr.bf16.mxu0 0
    %6800 = vmatpush1.bf16.msra.mxu0 0
    %6801 = vmatprep.subr.bf16.mxu0 0
    %6802 = vmatpush1.bf16.msra.mxu0 0
    %6803 = vmatprep.subr.bf16.mxu0 0
    %6804 = vmatpush1.bf16.msra.mxu0 0
    %6805 = vmatprep.subr.bf16.mxu0 0
    %6806 = vmatpush1.bf16.msra.mxu0 0
    %6807 = vmatprep.subr.bf16.mxu0 0
    %6808 = vmatpush1.bf16.msra.mxu0 %v6788
    %6809 = vmatprep.subr.bf16.mxu0 0
    %6810 = vmatpush2.bf16.msra.mxu0 0
    %6811 = vmatprep.subr.bf16.mxu0 0
    %6812 = vmatpush2.bf16.msra.mxu0 0
    %6813 = vmatprep.subr.bf16.mxu0 0
    %6814 = vmatpush2.bf16.msra.mxu0 0
    %6815 = vmatprep.subr.bf16.mxu0 0
    %6816 = vmatpush2.bf16.msra.mxu0 0
    %6817 = vmatprep.subr.bf16.mxu0 0
    %6818 = vmatpush2.bf16.msra.mxu0 0
    %6819 = vmatprep.subr.bf16.mxu0 0
    %6820 = vmatpush2.bf16.msra.mxu0 0
    %6821 = vmatprep.subr.bf16.mxu0 0
    %6822 = vmatpush2.bf16.msra.mxu0 0
    %6823 = vmatprep.subr.bf16.mxu0 0
    %6824 = vmatpush2.bf16.msra.mxu0 0
    %6825 = vmatprep.mubr.bf16.mxu0 0
    %6826 = vmatmul.mubr.bf16.gmra.mxu0 %v6791
    %v6827 = vpop.f32.mrf.mxu0
    %v6828 = vadd.f32 0.0, %v6827
    %v6829 = vpop.f32.mrf.mxu0
    %v6830 = vpop.f32.mrf.mxu0
    %v6831 = vadd.f32 0.0, %v6830
    %v6832 = vpop.f32.mrf.mxu0
    %6833 = vdwg.mxu0
    %6834 = vrot.lane.b32.xlu0 %v1020, 64
    %v6835 = vpop.permute.xlu0 %6834
    %v6838 = vsel %vm1782, %v6496, 0
    %6840 = vmatprep.subr.bf16.mxu0 0
    %6841 = vmatpush1.bf16.msra.mxu0 0
    %6842 = vmatprep.subr.bf16.mxu0 0
    %6843 = vmatpush1.bf16.msra.mxu0 0
    %6844 = vmatprep.subr.bf16.mxu0 0
    %6845 = vmatpush1.bf16.msra.mxu0 0
    %6846 = vmatprep.subr.bf16.mxu0 0
    %6847 = vmatpush1.bf16.msra.mxu0 0
    %6848 = vmatprep.subr.bf16.mxu0 0
    %6849 = vmatpush1.bf16.msra.mxu0 0
    %6850 = vmatprep.subr.bf16.mxu0 0
    %6851 = vmatpush1.bf16.msra.mxu0 0
    %6852 = vmatprep.subr.bf16.mxu0 0
    %6853 = vmatpush1.bf16.msra.mxu0 0
    %6854 = vmatprep.subr.bf16.mxu0 0
    %6855 = vmatpush1.bf16.msra.mxu0 %v6835
    %6856 = vmatprep.subr.bf16.mxu0 0
    %6857 = vmatpush2.bf16.msra.mxu0 0
    %6858 = vmatprep.subr.bf16.mxu0 0
    %6859 = vmatpush2.bf16.msra.mxu0 0
    %6860 = vmatprep.subr.bf16.mxu0 0
    %6861 = vmatpush2.bf16.msra.mxu0 0
    %6862 = vmatprep.subr.bf16.mxu0 0
    %6863 = vmatpush2.bf16.msra.mxu0 0
    %6864 = vmatprep.subr.bf16.mxu0 0
    %6865 = vmatpush2.bf16.msra.mxu0 0
    %6866 = vmatprep.subr.bf16.mxu0 0
    %6867 = vmatpush2.bf16.msra.mxu0 0
    %6868 = vmatprep.subr.bf16.mxu0 0
    %6869 = vmatpush2.bf16.msra.mxu0 0
    %6870 = vmatprep.subr.bf16.mxu0 0
    %6871 = vmatpush2.bf16.msra.mxu0 0
    %6872 = vmatprep.mubr.bf16.mxu0 0
    %6873 = vmatmul.mubr.bf16.gmra.mxu0 %v6838
    %v6874 = vpop.f32.mrf.mxu0
    %v6875 = vadd.f32 0.0, %v6874
    %v6876 = vpop.f32.mrf.mxu0
    %v6877 = vpop.f32.mrf.mxu0
    %v6878 = vadd.f32 0.0, %v6877
    %v6879 = vpop.f32.mrf.mxu0
    %6880 = vdwg.mxu0
    %6881 = vrot.lane.b32.xlu0 %v1021, 64
    %v6882 = vpop.permute.xlu0 %6881
    %v6885 = vsel %vm1782, %v6497, 0
    %6887 = vmatprep.subr.bf16.mxu0 0
    %6888 = vmatpush1.bf16.msra.mxu0 0
    %6889 = vmatprep.subr.bf16.mxu0 0
    %6890 = vmatpush1.bf16.msra.mxu0 0
    %6891 = vmatprep.subr.bf16.mxu0 0
    %6892 = vmatpush1.bf16.msra.mxu0 0
    %6893 = vmatprep.subr.bf16.mxu0 0
    %6894 = vmatpush1.bf16.msra.mxu0 0
    %6895 = vmatprep.subr.bf16.mxu0 0
    %6896 = vmatpush1.bf16.msra.mxu0 0
    %6897 = vmatprep.subr.bf16.mxu0 0
    %6898 = vmatpush1.bf16.msra.mxu0 0
    %6899 = vmatprep.subr.bf16.mxu0 0
    %6900 = vmatpush1.bf16.msra.mxu0 0
    %6901 = vmatprep.subr.bf16.mxu0 0
    %6902 = vmatpush1.bf16.msra.mxu0 %v6882
    %6903 = vmatprep.subr.bf16.mxu0 0
    %6904 = vmatpush2.bf16.msra.mxu0 0
    %6905 = vmatprep.subr.bf16.mxu0 0
    %6906 = vmatpush2.bf16.msra.mxu0 0
    %6907 = vmatprep.subr.bf16.mxu0 0
    %6908 = vmatpush2.bf16.msra.mxu0 0
    %6909 = vmatprep.subr.bf16.mxu0 0
    %6910 = vmatpush2.bf16.msra.mxu0 0
    %6911 = vmatprep.subr.bf16.mxu0 0
    %6912 = vmatpush2.bf16.msra.mxu0 0
    %6913 = vmatprep.subr.bf16.mxu0 0
    %6914 = vmatpush2.bf16.msra.mxu0 0
    %6915 = vmatprep.subr.bf16.mxu0 0
    %6916 = vmatpush2.bf16.msra.mxu0 0
    %6917 = vmatprep.subr.bf16.mxu0 0
    %6918 = vmatpush2.bf16.msra.mxu0 0
    %6919 = vmatprep.mubr.bf16.mxu0 0
    %6920 = vmatmul.mubr.bf16.gmra.mxu0 %v6885
    %v6921 = vpop.f32.mrf.mxu0
    %v6922 = vadd.f32 0.0, %v6921
    %v6923 = vpop.f32.mrf.mxu0
    %v6924 = vpop.f32.mrf.mxu0
    %v6925 = vadd.f32 0.0, %v6924
    %v6926 = vpop.f32.mrf.mxu0
    %6927 = vdwg.mxu0
    %6928 = vrot.lane.b32.xlu0 %v1022, 64
    %v6929 = vpop.permute.xlu0 %6928
    %v6932 = vsel %vm1782, %v6498, 0
    %6934 = vmatprep.subr.bf16.mxu0 0
    %6935 = vmatpush1.bf16.msra.mxu0 0
    %6936 = vmatprep.subr.bf16.mxu0 0
    %6937 = vmatpush1.bf16.msra.mxu0 0
    %6938 = vmatprep.subr.bf16.mxu0 0
    %6939 = vmatpush1.bf16.msra.mxu0 0
    %6940 = vmatprep.subr.bf16.mxu0 0
    %6941 = vmatpush1.bf16.msra.mxu0 0
    %6942 = vmatprep.subr.bf16.mxu0 0
    %6943 = vmatpush1.bf16.msra.mxu0 0
    %6944 = vmatprep.subr.bf16.mxu0 0
    %6945 = vmatpush1.bf16.msra.mxu0 0
    %6946 = vmatprep.subr.bf16.mxu0 0
    %6947 = vmatpush1.bf16.msra.mxu0 0
    %6948 = vmatprep.subr.bf16.mxu0 0
    %6949 = vmatpush1.bf16.msra.mxu0 %v6929
    %6950 = vmatprep.subr.bf16.mxu0 0
    %6951 = vmatpush2.bf16.msra.mxu0 0
    %6952 = vmatprep.subr.bf16.mxu0 0
    %6953 = vmatpush2.bf16.msra.mxu0 0
    %6954 = vmatprep.subr.bf16.mxu0 0
    %6955 = vmatpush2.bf16.msra.mxu0 0
    %6956 = vmatprep.subr.bf16.mxu0 0
    %6957 = vmatpush2.bf16.msra.mxu0 0
    %6958 = vmatprep.subr.bf16.mxu0 0
    %6959 = vmatpush2.bf16.msra.mxu0 0
    %6960 = vmatprep.subr.bf16.mxu0 0
    %6961 = vmatpush2.bf16.msra.mxu0 0
    %6962 = vmatprep.subr.bf16.mxu0 0
    %6963 = vmatpush2.bf16.msra.mxu0 0
    %6964 = vmatprep.subr.bf16.mxu0 0
    %6965 = vmatpush2.bf16.msra.mxu0 0
    %6966 = vmatprep.mubr.bf16.mxu0 0
    %6967 = vmatmul.mubr.bf16.gmra.mxu0 %v6932
    %v6968 = vpop.f32.mrf.mxu0
    %v6969 = vadd.f32 0.0, %v6968
    %v6970 = vpop.f32.mrf.mxu0
    %v6971 = vpop.f32.mrf.mxu0
    %v6972 = vadd.f32 0.0, %v6971
    %v6973 = vpop.f32.mrf.mxu0
    %6974 = vdwg.mxu0
    %6975 = vrot.lane.b32.xlu0 %v1023, 64
    %v6976 = vpop.permute.xlu0 %6975
    %v6979 = vsel %vm1782, %v6499, 0
    %6981 = vmatprep.subr.bf16.mxu0 0
    %6982 = vmatpush1.bf16.msra.mxu0 0
    %6983 = vmatprep.subr.bf16.mxu0 0
    %6984 = vmatpush1.bf16.msra.mxu0 0
    %6985 = vmatprep.subr.bf16.mxu0 0
    %6986 = vmatpush1.bf16.msra.mxu0 0
    %6987 = vmatprep.subr.bf16.mxu0 0
    %6988 = vmatpush1.bf16.msra.mxu0 0
    %6989 = vmatprep.subr.bf16.mxu0 0
    %6990 = vmatpush1.bf16.msra.mxu0 0
    %6991 = vmatprep.subr.bf16.mxu0 0
    %6992 = vmatpush1.bf16.msra.mxu0 0
    %6993 = vmatprep.subr.bf16.mxu0 0
    %6994 = vmatpush1.bf16.msra.mxu0 0
    %6995 = vmatprep.subr.bf16.mxu0 0
    %6996 = vmatpush1.bf16.msra.mxu0 %v6976
    %6997 = vmatprep.subr.bf16.mxu0 0
    %6998 = vmatpush2.bf16.msra.mxu0 0
    %6999 = vmatprep.subr.bf16.mxu0 0
    %7000 = vmatpush2.bf16.msra.mxu0 0
    %7001 = vmatprep.subr.bf16.mxu0 0
    %7002 = vmatpush2.bf16.msra.mxu0 0
    %7003 = vmatprep.subr.bf16.mxu0 0
    %7004 = vmatpush2.bf16.msra.mxu0 0
    %7005 = vmatprep.subr.bf16.mxu0 0
    %7006 = vmatpush2.bf16.msra.mxu0 0
    %7007 = vmatprep.subr.bf16.mxu0 0
    %7008 = vmatpush2.bf16.msra.mxu0 0
    %7009 = vmatprep.subr.bf16.mxu0 0
    %7010 = vmatpush2.bf16.msra.mxu0 0
    %7011 = vmatprep.subr.bf16.mxu0 0
    %7012 = vmatpush2.bf16.msra.mxu0 0
    %7013 = vmatprep.mubr.bf16.mxu0 0
    %7014 = vmatmul.mubr.bf16.gmra.mxu0 %v6979
    %v7015 = vpop.f32.mrf.mxu0
    %v7016 = vadd.f32 0.0, %v7015
    %v7017 = vpop.f32.mrf.mxu0
    %v7018 = vpop.f32.mrf.mxu0
    %v7019 = vadd.f32 0.0, %v7018
    %v7020 = vpop.f32.mrf.mxu0
    %7021 = vdwg.mxu0
    %7022 = vrot.lane.b32.xlu0 %v1024, 64
    %v7023 = vpop.permute.xlu0 %7022
    %v7026 = vsel %vm1782, %v6500, 0
    %7028 = vmatprep.subr.bf16.mxu0 0
    %7029 = vmatpush1.bf16.msra.mxu0 0
    %7030 = vmatprep.subr.bf16.mxu0 0
    %7031 = vmatpush1.bf16.msra.mxu0 0
    %7032 = vmatprep.subr.bf16.mxu0 0
    %7033 = vmatpush1.bf16.msra.mxu0 0
    %7034 = vmatprep.subr.bf16.mxu0 0
    %7035 = vmatpush1.bf16.msra.mxu0 0
    %7036 = vmatprep.subr.bf16.mxu0 0
    %7037 = vmatpush1.bf16.msra.mxu0 0
    %7038 = vmatprep.subr.bf16.mxu0 0
    %7039 = vmatpush1.bf16.msra.mxu0 0
    %7040 = vmatprep.subr.bf16.mxu0 0
    %7041 = vmatpush1.bf16.msra.mxu0 0
    %7042 = vmatprep.subr.bf16.mxu0 0
    %7043 = vmatpush1.bf16.msra.mxu0 %v7023
    %7044 = vmatprep.subr.bf16.mxu0 0
    %7045 = vmatpush2.bf16.msra.mxu0 0
    %7046 = vmatprep.subr.bf16.mxu0 0
    %7047 = vmatpush2.bf16.msra.mxu0 0
    %7048 = vmatprep.subr.bf16.mxu0 0
    %7049 = vmatpush2.bf16.msra.mxu0 0
    %7050 = vmatprep.subr.bf16.mxu0 0
    %7051 = vmatpush2.bf16.msra.mxu0 0
    %7052 = vmatprep.subr.bf16.mxu0 0
    %7053 = vmatpush2.bf16.msra.mxu0 0
    %7054 = vmatprep.subr.bf16.mxu0 0
    %7055 = vmatpush2.bf16.msra.mxu0 0
    %7056 = vmatprep.subr.bf16.mxu0 0
    %7057 = vmatpush2.bf16.msra.mxu0 0
    %7058 = vmatprep.subr.bf16.mxu0 0
    %7059 = vmatpush2.bf16.msra.mxu0 0
    %7060 = vmatprep.mubr.bf16.mxu0 0
    %7061 = vmatmul.mubr.bf16.gmra.mxu0 %v7026
    %v7062 = vpop.f32.mrf.mxu0
    %v7063 = vadd.f32 0.0, %v7062
    %v7064 = vpop.f32.mrf.mxu0
    %v7065 = vpop.f32.mrf.mxu0
    %v7066 = vadd.f32 0.0, %v7065
    %v7067 = vpop.f32.mrf.mxu0
    %7068 = vdwg.mxu0
    %7069 = vrot.lane.b32.xlu0 %v1025, 64
    %v7070 = vpop.permute.xlu0 %7069
    %v7073 = vsel %vm1782, %v6501, 0
    %7075 = vmatprep.subr.bf16.mxu0 0
    %7076 = vmatpush1.bf16.msra.mxu0 0
    %7077 = vmatprep.subr.bf16.mxu0 0
    %7078 = vmatpush1.bf16.msra.mxu0 0
    %7079 = vmatprep.subr.bf16.mxu0 0
    %7080 = vmatpush1.bf16.msra.mxu0 0
    %7081 = vmatprep.subr.bf16.mxu0 0
    %7082 = vmatpush1.bf16.msra.mxu0 0
    %7083 = vmatprep.subr.bf16.mxu0 0
    %7084 = vmatpush1.bf16.msra.mxu0 0
    %7085 = vmatprep.subr.bf16.mxu0 0
    %7086 = vmatpush1.bf16.msra.mxu0 0
    %7087 = vmatprep.subr.bf16.mxu0 0
    %7088 = vmatpush1.bf16.msra.mxu0 0
    %7089 = vmatprep.subr.bf16.mxu0 0
    %7090 = vmatpush1.bf16.msra.mxu0 %v7070
    %7091 = vmatprep.subr.bf16.mxu0 0
    %7092 = vmatpush2.bf16.msra.mxu0 0
    %7093 = vmatprep.subr.bf16.mxu0 0
    %7094 = vmatpush2.bf16.msra.mxu0 0
    %7095 = vmatprep.subr.bf16.mxu0 0
    %7096 = vmatpush2.bf16.msra.mxu0 0
    %7097 = vmatprep.subr.bf16.mxu0 0
    %7098 = vmatpush2.bf16.msra.mxu0 0
    %7099 = vmatprep.subr.bf16.mxu0 0
    %7100 = vmatpush2.bf16.msra.mxu0 0
    %7101 = vmatprep.subr.bf16.mxu0 0
    %7102 = vmatpush2.bf16.msra.mxu0 0
    %7103 = vmatprep.subr.bf16.mxu0 0
    %7104 = vmatpush2.bf16.msra.mxu0 0
    %7105 = vmatprep.subr.bf16.mxu0 0
    %7106 = vmatpush2.bf16.msra.mxu0 0
    %7107 = vmatprep.mubr.bf16.mxu0 0
    %7108 = vmatmul.mubr.bf16.gmra.mxu0 %v7073
    %v7109 = vpop.f32.mrf.mxu0
    %v7110 = vadd.f32 0.0, %v7109
    %v7111 = vpop.f32.mrf.mxu0
    %v7112 = vpop.f32.mrf.mxu0
    %v7113 = vadd.f32 0.0, %v7112
    %v7114 = vpop.f32.mrf.mxu0
    %7115 = vdwg.mxu0
    %7116 = vrot.lane.b32.xlu0 %v1026, 64
    %v7117 = vpop.permute.xlu0 %7116
    %v7120 = vsel %vm1782, %v6502, 0
    %7122 = vmatprep.subr.bf16.mxu0 0
    %7123 = vmatpush1.bf16.msra.mxu0 0
    %7124 = vmatprep.subr.bf16.mxu0 0
    %7125 = vmatpush1.bf16.msra.mxu0 0
    %7126 = vmatprep.subr.bf16.mxu0 0
    %7127 = vmatpush1.bf16.msra.mxu0 0
    %7128 = vmatprep.subr.bf16.mxu0 0
    %7129 = vmatpush1.bf16.msra.mxu0 0
    %7130 = vmatprep.subr.bf16.mxu0 0
    %7131 = vmatpush1.bf16.msra.mxu0 0
    %7132 = vmatprep.subr.bf16.mxu0 0
    %7133 = vmatpush1.bf16.msra.mxu0 0
    %7134 = vmatprep.subr.bf16.mxu0 0
    %7135 = vmatpush1.bf16.msra.mxu0 0
    %7136 = vmatprep.subr.bf16.mxu0 0
    %7137 = vmatpush1.bf16.msra.mxu0 %v7117
    %7138 = vmatprep.subr.bf16.mxu0 0
    %7139 = vmatpush2.bf16.msra.mxu0 0
    %7140 = vmatprep.subr.bf16.mxu0 0
    %7141 = vmatpush2.bf16.msra.mxu0 0
    %7142 = vmatprep.subr.bf16.mxu0 0
    %7143 = vmatpush2.bf16.msra.mxu0 0
    %7144 = vmatprep.subr.bf16.mxu0 0
    %7145 = vmatpush2.bf16.msra.mxu0 0
    %7146 = vmatprep.subr.bf16.mxu0 0
    %7147 = vmatpush2.bf16.msra.mxu0 0
    %7148 = vmatprep.subr.bf16.mxu0 0
    %7149 = vmatpush2.bf16.msra.mxu0 0
    %7150 = vmatprep.subr.bf16.mxu0 0
    %7151 = vmatpush2.bf16.msra.mxu0 0
    %7152 = vmatprep.subr.bf16.mxu0 0
    %7153 = vmatpush2.bf16.msra.mxu0 0
    %7154 = vmatprep.mubr.bf16.mxu0 0
    %7155 = vmatmul.mubr.bf16.gmra.mxu0 %v7120
    %v7156 = vpop.f32.mrf.mxu0
    %v7157 = vadd.f32 0.0, %v7156
    %v7158 = vpop.f32.mrf.mxu0
    %v7159 = vpop.f32.mrf.mxu0
    %v7160 = vadd.f32 0.0, %v7159
    %v7161 = vpop.f32.mrf.mxu0
    %7162 = vdwg.mxu0
    %7163 = vrot.lane.b32.xlu0 %v1027, 64
    %v7164 = vpop.permute.xlu0 %7163
    %v7167 = vsel %vm1782, %v6503, 0
    %7169 = vmatprep.subr.bf16.mxu0 0
    %7170 = vmatpush1.bf16.msra.mxu0 0
    %7171 = vmatprep.subr.bf16.mxu0 0
    %7172 = vmatpush1.bf16.msra.mxu0 0
    %7173 = vmatprep.subr.bf16.mxu0 0
    %7174 = vmatpush1.bf16.msra.mxu0 0
    %7175 = vmatprep.subr.bf16.mxu0 0
    %7176 = vmatpush1.bf16.msra.mxu0 0
    %7177 = vmatprep.subr.bf16.mxu0 0
    %7178 = vmatpush1.bf16.msra.mxu0 0
    %7179 = vmatprep.subr.bf16.mxu0 0
    %7180 = vmatpush1.bf16.msra.mxu0 0
    %7181 = vmatprep.subr.bf16.mxu0 0
    %7182 = vmatpush1.bf16.msra.mxu0 0
    %7183 = vmatprep.subr.bf16.mxu0 0
    %7184 = vmatpush1.bf16.msra.mxu0 %v7164
    %7185 = vmatprep.subr.bf16.mxu0 0
    %7186 = vmatpush2.bf16.msra.mxu0 0
    %7187 = vmatprep.subr.bf16.mxu0 0
    %7188 = vmatpush2.bf16.msra.mxu0 0
    %7189 = vmatprep.subr.bf16.mxu0 0
    %7190 = vmatpush2.bf16.msra.mxu0 0
    %7191 = vmatprep.subr.bf16.mxu0 0
    %7192 = vmatpush2.bf16.msra.mxu0 0
    %7193 = vmatprep.subr.bf16.mxu0 0
    %7194 = vmatpush2.bf16.msra.mxu0 0
    %7195 = vmatprep.subr.bf16.mxu0 0
    %7196 = vmatpush2.bf16.msra.mxu0 0
    %7197 = vmatprep.subr.bf16.mxu0 0
    %7198 = vmatpush2.bf16.msra.mxu0 0
    %7199 = vmatprep.subr.bf16.mxu0 0
    %7200 = vmatpush2.bf16.msra.mxu0 0
    %7201 = vmatprep.mubr.bf16.mxu0 0
    %7202 = vmatmul.mubr.bf16.gmra.mxu0 %v7167
    %v7203 = vpop.f32.mrf.mxu0
    %v7204 = vadd.f32 0.0, %v7203
    %v7205 = vpop.f32.mrf.mxu0
    %v7206 = vpop.f32.mrf.mxu0
    %v7207 = vadd.f32 0.0, %v7206
    %v7208 = vpop.f32.mrf.mxu0
    %7209 = vdwg.mxu0
    %7210 = vrot.lane.b32.xlu0 %v1028, 64
    %v7211 = vpop.permute.xlu0 %7210
    %v7214 = vsel %vm1782, %v6504, 0
    %7216 = vmatprep.subr.bf16.mxu0 0
    %7217 = vmatpush1.bf16.msra.mxu0 0
    %7218 = vmatprep.subr.bf16.mxu0 0
    %7219 = vmatpush1.bf16.msra.mxu0 0
    %7220 = vmatprep.subr.bf16.mxu0 0
    %7221 = vmatpush1.bf16.msra.mxu0 0
    %7222 = vmatprep.subr.bf16.mxu0 0
    %7223 = vmatpush1.bf16.msra.mxu0 0
    %7224 = vmatprep.subr.bf16.mxu0 0
    %7225 = vmatpush1.bf16.msra.mxu0 0
    %7226 = vmatprep.subr.bf16.mxu0 0
    %7227 = vmatpush1.bf16.msra.mxu0 0
    %7228 = vmatprep.subr.bf16.mxu0 0
    %7229 = vmatpush1.bf16.msra.mxu0 0
    %7230 = vmatprep.subr.bf16.mxu0 0
    %7231 = vmatpush1.bf16.msra.mxu0 %v7211
    %7232 = vmatprep.subr.bf16.mxu0 0
    %7233 = vmatpush2.bf16.msra.mxu0 0
    %7234 = vmatprep.subr.bf16.mxu0 0
    %7235 = vmatpush2.bf16.msra.mxu0 0
    %7236 = vmatprep.subr.bf16.mxu0 0
    %7237 = vmatpush2.bf16.msra.mxu0 0
    %7238 = vmatprep.subr.bf16.mxu0 0
    %7239 = vmatpush2.bf16.msra.mxu0 0
    %7240 = vmatprep.subr.bf16.mxu0 0
    %7241 = vmatpush2.bf16.msra.mxu0 0
    %7242 = vmatprep.subr.bf16.mxu0 0
    %7243 = vmatpush2.bf16.msra.mxu0 0
    %7244 = vmatprep.subr.bf16.mxu0 0
    %7245 = vmatpush2.bf16.msra.mxu0 0
    %7246 = vmatprep.subr.bf16.mxu0 0
    %7247 = vmatpush2.bf16.msra.mxu0 0
    %7248 = vmatprep.mubr.bf16.mxu0 0
    %7249 = vmatmul.mubr.bf16.gmra.mxu0 %v7214
    %v7250 = vpop.f32.mrf.mxu0
    %v7251 = vadd.f32 0.0, %v7250
    %v7252 = vpop.f32.mrf.mxu0
    %v7253 = vpop.f32.mrf.mxu0
    %v7254 = vadd.f32 0.0, %v7253
    %v7255 = vpop.f32.mrf.mxu0
    %7256 = vdwg.mxu0
    %v7257 = vpack.c.bf16 %v6549, %v6546
    %v7258 = vpack.c.bf16 %v6596, %v6593
    %v7259 = vpack.c.bf16 %v6643, %v6640
    %v7260 = vpack.c.bf16 %v6690, %v6687
    %v7261 = vpack.c.bf16 %v6737, %v6734
    %v7262 = vpack.c.bf16 %v6784, %v6781
    %v7263 = vpack.c.bf16 %v6831, %v6828
    %v7264 = vpack.c.bf16 %v6878, %v6875
    %v7265 = vpack.c.bf16 %v6925, %v6922
    %v7266 = vpack.c.bf16 %v6972, %v6969
    %v7267 = vpack.c.bf16 %v7019, %v7016
    %v7268 = vpack.c.bf16 %v7066, %v7063
    %v7269 = vpack.c.bf16 %v7113, %v7110
    %v7270 = vpack.c.bf16 %v7160, %v7157
    %v7271 = vpack.c.bf16 %v7207, %v7204
    %v7272 = vpack.c.bf16 %v7254, %v7251
    %v7273 = vld [vmem:[#allocation11 + $0x20] sm:$0xf]
    %v7274 = vld [vmem:[#allocation11 + $0x24] sm:$0xf]
    %v7275 = vld [vmem:[#allocation11 + $0x28] sm:$0xf]
    %v7276 = vld [vmem:[#allocation11 + $0x2c] sm:$0xf]
    %v7281 = vunpack.c.l.b16 %v7273
    %v7282 = vunpack.c.l.b16 %v7274
    %v7283 = vunpack.c.l.b16 %v7275
    %v7284 = vunpack.c.l.b16 %v7276
    %v7285 = vpack.c.b16 %v7282, %v7281
    %v7286 = vpack.c.b16 %v7284, %v7283
    %v7290 = vsel %vm1029, %v7257, 0
    %v7293 = vsel %vm1029, %v7258, 0
    %v7296 = vsel %vm1029, %v7259, 0
    %v7299 = vsel %vm1029, %v7260, 0
    %v7302 = vsel %vm1029, %v7261, 0
    %v7305 = vsel %vm1029, %v7262, 0
    %v7308 = vsel %vm1029, %v7263, 0
    %v7311 = vsel %vm1029, %v7264, 0
    %v7314 = vsel %vm1029, %v7265, 0
    %v7317 = vsel %vm1029, %v7266, 0
    %v7320 = vsel %vm1029, %v7267, 0
    %v7323 = vsel %vm1029, %v7268, 0
    %v7326 = vsel %vm1029, %v7269, 0
    %v7329 = vsel %vm1029, %v7270, 0
    %v7332 = vsel %vm1029, %v7271, 0
    %v7335 = vsel %vm1029, %v7272, 0
    %7337 = vmatprep.subr.bf16.mxu0 0
    %7338 = vmatpush1.bf16.msra.mxu0 0
    %7339 = vmatprep.subr.bf16.mxu0 0
    %7340 = vmatpush1.bf16.msra.mxu0 0
    %7341 = vmatprep.subr.bf16.mxu0 0
    %7342 = vmatpush1.bf16.msra.mxu0 0
    %7343 = vmatprep.subr.bf16.mxu0 0
    %7344 = vmatpush1.bf16.msra.mxu0 0
    %7345 = vmatprep.subr.bf16.mxu0 0
    %7346 = vmatpush1.bf16.msra.mxu0 0
    %7347 = vmatprep.subr.bf16.mxu0 0
    %7348 = vmatpush1.bf16.msra.mxu0 0
    %7349 = vmatprep.subr.bf16.mxu0 0
    %7350 = vmatpush1.bf16.msra.mxu0 %v7286
    %7351 = vmatprep.subr.bf16.mxu0 0
    %7352 = vmatpush1.bf16.msra.mxu0 %v7285
    %7353 = vmatprep.subr.bf16.mxu0 0
    %7354 = vmatpush2.bf16.msra.mxu0 0
    %7355 = vmatprep.subr.bf16.mxu0 0
    %7356 = vmatpush2.bf16.msra.mxu0 0
    %7357 = vmatprep.subr.bf16.mxu0 0
    %7358 = vmatpush2.bf16.msra.mxu0 0
    %7359 = vmatprep.subr.bf16.mxu0 0
    %7360 = vmatpush2.bf16.msra.mxu0 0
    %7361 = vmatprep.subr.bf16.mxu0 0
    %7362 = vmatpush2.bf16.msra.mxu0 0
    %7363 = vmatprep.subr.bf16.mxu0 0
    %7364 = vmatpush2.bf16.msra.mxu0 0
    %7365 = vmatprep.subr.bf16.mxu0 0
    %7366 = vmatpush2.bf16.msra.mxu0 0
    %7367 = vmatprep.subr.bf16.mxu0 0
    %7368 = vmatpush2.bf16.msra.mxu0 0
    %7369 = vmatprep.mubr.bf16.mxu0 0
    %7370 = vmatmul.mubr.bf16.gmra.mxu0 %v7290
    %v7371 = vpop.f32.mrf.mxu0
    %v7372 = vadd.f32 0.0, %v7371
    %v7373 = vpop.f32.mrf.mxu0
    %v7374 = vpop.f32.mrf.mxu0
    %v7375 = vadd.f32 0.0, %v7374
    %v7376 = vpop.f32.mrf.mxu0
    %7377 = vmatprep.mubr.bf16.mxu0 0
    %7378 = vmatmul.mubr.bf16.gmra.mxu0 %v7293
    %v7379 = vpop.f32.mrf.mxu0
    %v7380 = vadd.f32 0.0, %v7379
    %v7381 = vpop.f32.mrf.mxu0
    %v7382 = vpop.f32.mrf.mxu0
    %v7383 = vadd.f32 0.0, %v7382
    %v7384 = vpop.f32.mrf.mxu0
    %7385 = vmatprep.mubr.bf16.mxu0 0
    %7386 = vmatmul.mubr.bf16.gmra.mxu0 %v7296
    %v7387 = vpop.f32.mrf.mxu0
    %v7388 = vadd.f32 0.0, %v7387
    %v7389 = vpop.f32.mrf.mxu0
    %v7390 = vpop.f32.mrf.mxu0
    %v7391 = vadd.f32 0.0, %v7390
    %v7392 = vpop.f32.mrf.mxu0
    %7393 = vmatprep.mubr.bf16.mxu0 0
    %7394 = vmatmul.mubr.bf16.gmra.mxu0 %v7299
    %v7395 = vpop.f32.mrf.mxu0
    %v7396 = vadd.f32 0.0, %v7395
    %v7397 = vpop.f32.mrf.mxu0
    %v7398 = vpop.f32.mrf.mxu0
    %v7399 = vadd.f32 0.0, %v7398
    %v7400 = vpop.f32.mrf.mxu0
    %7401 = vmatprep.mubr.bf16.mxu0 0
    %7402 = vmatmul.mubr.bf16.gmra.mxu0 %v7302
    %v7403 = vpop.f32.mrf.mxu0
    %v7404 = vadd.f32 0.0, %v7403
    %v7405 = vpop.f32.mrf.mxu0
    %v7406 = vpop.f32.mrf.mxu0
    %v7407 = vadd.f32 0.0, %v7406
    %v7408 = vpop.f32.mrf.mxu0
    %7409 = vmatprep.mubr.bf16.mxu0 0
    %7410 = vmatmul.mubr.bf16.gmra.mxu0 %v7305
    %v7411 = vpop.f32.mrf.mxu0
    %v7412 = vadd.f32 0.0, %v7411
    %v7413 = vpop.f32.mrf.mxu0
    %v7414 = vpop.f32.mrf.mxu0
    %v7415 = vadd.f32 0.0, %v7414
    %v7416 = vpop.f32.mrf.mxu0
    %7417 = vmatprep.mubr.bf16.mxu0 0
    %7418 = vmatmul.mubr.bf16.gmra.mxu0 %v7308
    %v7419 = vpop.f32.mrf.mxu0
    %v7420 = vadd.f32 0.0, %v7419
    %v7421 = vpop.f32.mrf.mxu0
    %v7422 = vpop.f32.mrf.mxu0
    %v7423 = vadd.f32 0.0, %v7422
    %v7424 = vpop.f32.mrf.mxu0
    %7425 = vmatprep.mubr.bf16.mxu0 0
    %7426 = vmatmul.mubr.bf16.gmra.mxu0 %v7311
    %v7427 = vpop.f32.mrf.mxu0
    %v7428 = vadd.f32 0.0, %v7427
    %v7429 = vpop.f32.mrf.mxu0
    %v7430 = vpop.f32.mrf.mxu0
    %v7431 = vadd.f32 0.0, %v7430
    %v7432 = vpop.f32.mrf.mxu0
    %7433 = vmatprep.mubr.bf16.mxu0 0
    %7434 = vmatmul.mubr.bf16.gmra.mxu0 %v7314
    %v7435 = vpop.f32.mrf.mxu0
    %v7436 = vadd.f32 0.0, %v7435
    %v7437 = vpop.f32.mrf.mxu0
    %v7438 = vpop.f32.mrf.mxu0
    %v7439 = vadd.f32 0.0, %v7438
    %v7440 = vpop.f32.mrf.mxu0
    %7441 = vmatprep.mubr.bf16.mxu0 0
    %7442 = vmatmul.mubr.bf16.gmra.mxu0 %v7317
    %v7443 = vpop.f32.mrf.mxu0
    %v7444 = vadd.f32 0.0, %v7443
    %v7445 = vpop.f32.mrf.mxu0
    %v7446 = vpop.f32.mrf.mxu0
    %v7447 = vadd.f32 0.0, %v7446
    %v7448 = vpop.f32.mrf.mxu0
    %7449 = vmatprep.mubr.bf16.mxu0 0
    %7450 = vmatmul.mubr.bf16.gmra.mxu0 %v7320
    %v7451 = vpop.f32.mrf.mxu0
    %v7452 = vadd.f32 0.0, %v7451
    %v7453 = vpop.f32.mrf.mxu0
    %v7454 = vpop.f32.mrf.mxu0
    %v7455 = vadd.f32 0.0, %v7454
    %v7456 = vpop.f32.mrf.mxu0
    %7457 = vmatprep.mubr.bf16.mxu0 0
    %7458 = vmatmul.mubr.bf16.gmra.mxu0 %v7323
    %v7459 = vpop.f32.mrf.mxu0
    %v7460 = vadd.f32 0.0, %v7459
    %v7461 = vpop.f32.mrf.mxu0
    %v7462 = vpop.f32.mrf.mxu0
    %v7463 = vadd.f32 0.0, %v7462
    %v7464 = vpop.f32.mrf.mxu0
    %7465 = vmatprep.mubr.bf16.mxu0 0
    %7466 = vmatmul.mubr.bf16.gmra.mxu0 %v7326
    %v7467 = vpop.f32.mrf.mxu0
    %v7468 = vadd.f32 0.0, %v7467
    %v7469 = vpop.f32.mrf.mxu0
    %v7470 = vpop.f32.mrf.mxu0
    %v7471 = vadd.f32 0.0, %v7470
    %v7472 = vpop.f32.mrf.mxu0
    %7473 = vmatprep.mubr.bf16.mxu0 0
    %7474 = vmatmul.mubr.bf16.gmra.mxu0 %v7329
    %v7475 = vpop.f32.mrf.mxu0
    %v7476 = vadd.f32 0.0, %v7475
    %v7477 = vpop.f32.mrf.mxu0
    %v7478 = vpop.f32.mrf.mxu0
    %v7479 = vadd.f32 0.0, %v7478
    %v7480 = vpop.f32.mrf.mxu0
    %7481 = vmatprep.mubr.bf16.mxu0 0
    %7482 = vmatmul.mubr.bf16.gmra.mxu0 %v7332
    %v7483 = vpop.f32.mrf.mxu0
    %v7484 = vadd.f32 0.0, %v7483
    %v7485 = vpop.f32.mrf.mxu0
    %v7486 = vpop.f32.mrf.mxu0
    %v7487 = vadd.f32 0.0, %v7486
    %v7488 = vpop.f32.mrf.mxu0
    %7489 = vmatprep.mubr.bf16.mxu0 0
    %7490 = vmatmul.mubr.bf16.gmra.mxu0 %v7335
    %v7491 = vpop.f32.mrf.mxu0
    %v7492 = vadd.f32 0.0, %v7491
    %v7493 = vpop.f32.mrf.mxu0
    %v7494 = vpop.f32.mrf.mxu0
    %v7495 = vadd.f32 0.0, %v7494
    %v7496 = vpop.f32.mrf.mxu0
    %7497 = vdwg.mxu0
    %v7498 = vadd.f32 %v5195, %v7372
    %v7499 = vadd.f32 %v5198, %v7375
    %v7500 = vadd.f32 %v5203, %v7380
    %v7501 = vadd.f32 %v5206, %v7383
    %v7502 = vadd.f32 %v5211, %v7388
    %v7503 = vadd.f32 %v5214, %v7391
    %v7504 = vadd.f32 %v5219, %v7396
    %v7505 = vadd.f32 %v5222, %v7399
    %v7506 = vadd.f32 %v5227, %v7404
    %v7507 = vadd.f32 %v5230, %v7407
    %v7508 = vadd.f32 %v5235, %v7412
    %v7509 = vadd.f32 %v5238, %v7415
    %v7510 = vadd.f32 %v5243, %v7420
    %v7511 = vadd.f32 %v5246, %v7423
    %v7512 = vadd.f32 %v5251, %v7428
    %v7513 = vadd.f32 %v5254, %v7431
    %v7514 = vadd.f32 %v5259, %v7436
    %v7515 = vadd.f32 %v5262, %v7439
    %v7516 = vadd.f32 %v5267, %v7444
    %v7517 = vadd.f32 %v5270, %v7447
    %v7518 = vadd.f32 %v5275, %v7452
    %v7519 = vadd.f32 %v5278, %v7455
    %v7520 = vadd.f32 %v5283, %v7460
    %v7521 = vadd.f32 %v5286, %v7463
    %v7522 = vadd.f32 %v5291, %v7468
    %v7523 = vadd.f32 %v5294, %v7471
    %v7524 = vadd.f32 %v5299, %v7476
    %v7525 = vadd.f32 %v5302, %v7479
    %v7526 = vadd.f32 %v5307, %v7484
    %v7527 = vadd.f32 %v5310, %v7487
    %v7528 = vadd.f32 %v5315, %v7492
    %v7529 = vadd.f32 %v5318, %v7495
    %7530 = vrot.lane.b32.xlu0 %v981, 32
    %v7531 = vpop.permute.xlu0 %7530
    %7532 = vrot.lane.b32.xlu0 %v997, 32
    %v7533 = vpop.permute.xlu0 %7532
    %v7535 = vsel %vm1029, %v7531, 0
    %v7538 = vsel %vm1029, %v7533, 0
    %7540 = vmatprep.subr.bf16.mxu0 0
    %7541 = vmatpush1.bf16.xpose.msra.mxu0 0
    %7542 = vmatprep.subr.bf16.mxu0 0
    %7543 = vmatpush1.bf16.xpose.msra.mxu0 0
    %7544 = vmatprep.subr.bf16.mxu0 0
    %7545 = vmatpush1.bf16.xpose.msra.mxu0 0
    %7546 = vmatprep.subr.bf16.mxu0 0
    %7547 = vmatpush1.bf16.xpose.msra.mxu0 0
    %7548 = vmatprep.subr.bf16.mxu0 0
    %7549 = vmatpush1.bf16.xpose.msra.mxu0 0
    %7550 = vmatprep.subr.bf16.mxu0 0
    %7551 = vmatpush1.bf16.xpose.msra.mxu0 0
    %7552 = vmatprep.subr.bf16.mxu0 0
    %7553 = vmatpush1.bf16.xpose.msra.mxu0 0
    %7554 = vmatprep.subr.bf16.mxu0 0
    %7555 = vmatpush1.bf16.xpose.msra.mxu0 %v7538
    %7556 = vmatprep.subr.bf16.mxu0 0
    %7557 = vmatpush2.bf16.xpose.msra.mxu0 0
    %7558 = vmatprep.subr.bf16.mxu0 0
    %7559 = vmatpush2.bf16.xpose.msra.mxu0 0
    %7560 = vmatprep.subr.bf16.mxu0 0
    %7561 = vmatpush2.bf16.xpose.msra.mxu0 0
    %7562 = vmatprep.subr.bf16.mxu0 0
    %7563 = vmatpush2.bf16.xpose.msra.mxu0 0
    %7564 = vmatprep.subr.bf16.mxu0 0
    %7565 = vmatpush2.bf16.xpose.msra.mxu0 0
    %7566 = vmatprep.subr.bf16.mxu0 0
    %7567 = vmatpush2.bf16.xpose.msra.mxu0 0
    %7568 = vmatprep.subr.bf16.mxu0 0
    %7569 = vmatpush2.bf16.xpose.msra.mxu0 0
    %7570 = vmatprep.subr.bf16.mxu0 0
    %7571 = vmatpush2.bf16.xpose.msra.mxu0 0
    %7572 = vmatprep.mubr.bf16.mxu0 0
    %7573 = vmatmul.mubr.bf16.gmra.mxu0 %v7535
    %v7574 = vpop.f32.mrf.mxu0
    %v7575 = vadd.f32 0.0, %v7574
    %v7576 = vpop.f32.mrf.mxu0
    %v7577 = vpop.f32.mrf.mxu0
    %v7578 = vadd.f32 0.0, %v7577
    %v7579 = vpop.f32.mrf.mxu0
    %7580 = vdwg.mxu0
    %7581 = vrot.lane.b32.xlu0 %v982, 32
    %v7582 = vpop.permute.xlu0 %7581
    %7583 = vrot.lane.b32.xlu0 %v998, 32
    %v7584 = vpop.permute.xlu0 %7583
    %v7586 = vsel %vm1029, %v7582, 0
    %v7589 = vsel %vm1029, %v7584, 0
    %7591 = vmatprep.subr.bf16.mxu0 0
    %7592 = vmatpush1.bf16.xpose.msra.mxu0 0
    %7593 = vmatprep.subr.bf16.mxu0 0
    %7594 = vmatpush1.bf16.xpose.msra.mxu0 0
    %7595 = vmatprep.subr.bf16.mxu0 0
    %7596 = vmatpush1.bf16.xpose.msra.mxu0 0
    %7597 = vmatprep.subr.bf16.mxu0 0
    %7598 = vmatpush1.bf16.xpose.msra.mxu0 0
    %7599 = vmatprep.subr.bf16.mxu0 0
    %7600 = vmatpush1.bf16.xpose.msra.mxu0 0
    %7601 = vmatprep.subr.bf16.mxu0 0
    %7602 = vmatpush1.bf16.xpose.msra.mxu0 0
    %7603 = vmatprep.subr.bf16.mxu0 0
    %7604 = vmatpush1.bf16.xpose.msra.mxu0 0
    %7605 = vmatprep.subr.bf16.mxu0 0
    %7606 = vmatpush1.bf16.xpose.msra.mxu0 %v7589
    %7607 = vmatprep.subr.bf16.mxu0 0
    %7608 = vmatpush2.bf16.xpose.msra.mxu0 0
    %7609 = vmatprep.subr.bf16.mxu0 0
    %7610 = vmatpush2.bf16.xpose.msra.mxu0 0
    %7611 = vmatprep.subr.bf16.mxu0 0
    %7612 = vmatpush2.bf16.xpose.msra.mxu0 0
    %7613 = vmatprep.subr.bf16.mxu0 0
    %7614 = vmatpush2.bf16.xpose.msra.mxu0 0
    %7615 = vmatprep.subr.bf16.mxu0 0
    %7616 = vmatpush2.bf16.xpose.msra.mxu0 0
    %7617 = vmatprep.subr.bf16.mxu0 0
    %7618 = vmatpush2.bf16.xpose.msra.mxu0 0
    %7619 = vmatprep.subr.bf16.mxu0 0
    %7620 = vmatpush2.bf16.xpose.msra.mxu0 0
    %7621 = vmatprep.subr.bf16.mxu0 0
    %7622 = vmatpush2.bf16.xpose.msra.mxu0 0
    %7623 = vmatprep.mubr.bf16.mxu0 0
    %7624 = vmatmul.mubr.bf16.gmra.mxu0 %v7586
    %v7625 = vpop.f32.mrf.mxu0
    %v7626 = vadd.f32 0.0, %v7625
    %v7627 = vpop.f32.mrf.mxu0
    %v7628 = vpop.f32.mrf.mxu0
    %v7629 = vadd.f32 0.0, %v7628
    %v7630 = vpop.f32.mrf.mxu0
    %7631 = vdwg.mxu0
    %7632 = vrot.lane.b32.xlu0 %v983, 32
    %v7633 = vpop.permute.xlu0 %7632
    %7634 = vrot.lane.b32.xlu0 %v999, 32
    %v7635 = vpop.permute.xlu0 %7634
    %v7637 = vsel %vm1029, %v7633, 0
    %v7640 = vsel %vm1029, %v7635, 0
    %7642 = vmatprep.subr.bf16.mxu0 0
    %7643 = vmatpush1.bf16.xpose.msra.mxu0 0
    %7644 = vmatprep.subr.bf16.mxu0 0
    %7645 = vmatpush1.bf16.xpose.msra.mxu0 0
    %7646 = vmatprep.subr.bf16.mxu0 0
    %7647 = vmatpush1.bf16.xpose.msra.mxu0 0
    %7648 = vmatprep.subr.bf16.mxu0 0
    %7649 = vmatpush1.bf16.xpose.msra.mxu0 0
    %7650 = vmatprep.subr.bf16.mxu0 0
    %7651 = vmatpush1.bf16.xpose.msra.mxu0 0
    %7652 = vmatprep.subr.bf16.mxu0 0
    %7653 = vmatpush1.bf16.xpose.msra.mxu0 0
    %7654 = vmatprep.subr.bf16.mxu0 0
    %7655 = vmatpush1.bf16.xpose.msra.mxu0 0
    %7656 = vmatprep.subr.bf16.mxu0 0
    %7657 = vmatpush1.bf16.xpose.msra.mxu0 %v7640
    %7658 = vmatprep.subr.bf16.mxu0 0
    %7659 = vmatpush2.bf16.xpose.msra.mxu0 0
    %7660 = vmatprep.subr.bf16.mxu0 0
    %7661 = vmatpush2.bf16.xpose.msra.mxu0 0
    %7662 = vmatprep.subr.bf16.mxu0 0
    %7663 = vmatpush2.bf16.xpose.msra.mxu0 0
    %7664 = vmatprep.subr.bf16.mxu0 0
    %7665 = vmatpush2.bf16.xpose.msra.mxu0 0
    %7666 = vmatprep.subr.bf16.mxu0 0
    %7667 = vmatpush2.bf16.xpose.msra.mxu0 0
    %7668 = vmatprep.subr.bf16.mxu0 0
    %7669 = vmatpush2.bf16.xpose.msra.mxu0 0
    %7670 = vmatprep.subr.bf16.mxu0 0
    %7671 = vmatpush2.bf16.xpose.msra.mxu0 0
    %7672 = vmatprep.subr.bf16.mxu0 0
    %7673 = vmatpush2.bf16.xpose.msra.mxu0 0
    %7674 = vmatprep.mubr.bf16.mxu0 0
    %7675 = vmatmul.mubr.bf16.gmra.mxu0 %v7637
    %v7676 = vpop.f32.mrf.mxu0
    %v7677 = vadd.f32 0.0, %v7676
    %v7678 = vpop.f32.mrf.mxu0
    %v7679 = vpop.f32.mrf.mxu0
    %v7680 = vadd.f32 0.0, %v7679
    %v7681 = vpop.f32.mrf.mxu0
    %7682 = vdwg.mxu0
    %7683 = vrot.lane.b32.xlu0 %v984, 32
    %v7684 = vpop.permute.xlu0 %7683
    %7685 = vrot.lane.b32.xlu0 %v1000, 32
    %v7686 = vpop.permute.xlu0 %7685
    %v7688 = vsel %vm1029, %v7684, 0
    %v7691 = vsel %vm1029, %v7686, 0
    %7693 = vmatprep.subr.bf16.mxu0 0
    %7694 = vmatpush1.bf16.xpose.msra.mxu0 0
    %7695 = vmatprep.subr.bf16.mxu0 0
    %7696 = vmatpush1.bf16.xpose.msra.mxu0 0
    %7697 = vmatprep.subr.bf16.mxu0 0
    %7698 = vmatpush1.bf16.xpose.msra.mxu0 0
    %7699 = vmatprep.subr.bf16.mxu0 0
    %7700 = vmatpush1.bf16.xpose.msra.mxu0 0
    %7701 = vmatprep.subr.bf16.mxu0 0
    %7702 = vmatpush1.bf16.xpose.msra.mxu0 0
    %7703 = vmatprep.subr.bf16.mxu0 0
    %7704 = vmatpush1.bf16.xpose.msra.mxu0 0
    %7705 = vmatprep.subr.bf16.mxu0 0
    %7706 = vmatpush1.bf16.xpose.msra.mxu0 0
    %7707 = vmatprep.subr.bf16.mxu0 0
    %7708 = vmatpush1.bf16.xpose.msra.mxu0 %v7691
    %7709 = vmatprep.subr.bf16.mxu0 0
    %7710 = vmatpush2.bf16.xpose.msra.mxu0 0
    %7711 = vmatprep.subr.bf16.mxu0 0
    %7712 = vmatpush2.bf16.xpose.msra.mxu0 0
    %7713 = vmatprep.subr.bf16.mxu0 0
    %7714 = vmatpush2.bf16.xpose.msra.mxu0 0
    %7715 = vmatprep.subr.bf16.mxu0 0
    %7716 = vmatpush2.bf16.xpose.msra.mxu0 0
    %7717 = vmatprep.subr.bf16.mxu0 0
    %7718 = vmatpush2.bf16.xpose.msra.mxu0 0
    %7719 = vmatprep.subr.bf16.mxu0 0
    %7720 = vmatpush2.bf16.xpose.msra.mxu0 0
    %7721 = vmatprep.subr.bf16.mxu0 0
    %7722 = vmatpush2.bf16.xpose.msra.mxu0 0
    %7723 = vmatprep.subr.bf16.mxu0 0
    %7724 = vmatpush2.bf16.xpose.msra.mxu0 0
    %7725 = vmatprep.mubr.bf16.mxu0 0
    %7726 = vmatmul.mubr.bf16.gmra.mxu0 %v7688
    %v7727 = vpop.f32.mrf.mxu0
    %v7728 = vadd.f32 0.0, %v7727
    %v7729 = vpop.f32.mrf.mxu0
    %v7730 = vpop.f32.mrf.mxu0
    %v7731 = vadd.f32 0.0, %v7730
    %v7732 = vpop.f32.mrf.mxu0
    %7733 = vdwg.mxu0
    %7734 = vrot.lane.b32.xlu0 %v985, 32
    %v7735 = vpop.permute.xlu0 %7734
    %7736 = vrot.lane.b32.xlu0 %v1001, 32
    %v7737 = vpop.permute.xlu0 %7736
    %v7739 = vsel %vm1029, %v7735, 0
    %v7742 = vsel %vm1029, %v7737, 0
    %7744 = vmatprep.subr.bf16.mxu0 0
    %7745 = vmatpush1.bf16.xpose.msra.mxu0 0
    %7746 = vmatprep.subr.bf16.mxu0 0
    %7747 = vmatpush1.bf16.xpose.msra.mxu0 0
    %7748 = vmatprep.subr.bf16.mxu0 0
    %7749 = vmatpush1.bf16.xpose.msra.mxu0 0
    %7750 = vmatprep.subr.bf16.mxu0 0
    %7751 = vmatpush1.bf16.xpose.msra.mxu0 0
    %7752 = vmatprep.subr.bf16.mxu0 0
    %7753 = vmatpush1.bf16.xpose.msra.mxu0 0
    %7754 = vmatprep.subr.bf16.mxu0 0
    %7755 = vmatpush1.bf16.xpose.msra.mxu0 0
    %7756 = vmatprep.subr.bf16.mxu0 0
    %7757 = vmatpush1.bf16.xpose.msra.mxu0 0
    %7758 = vmatprep.subr.bf16.mxu0 0
    %7759 = vmatpush1.bf16.xpose.msra.mxu0 %v7742
    %7760 = vmatprep.subr.bf16.mxu0 0
    %7761 = vmatpush2.bf16.xpose.msra.mxu0 0
    %7762 = vmatprep.subr.bf16.mxu0 0
    %7763 = vmatpush2.bf16.xpose.msra.mxu0 0
    %7764 = vmatprep.subr.bf16.mxu0 0
    %7765 = vmatpush2.bf16.xpose.msra.mxu0 0
    %7766 = vmatprep.subr.bf16.mxu0 0
    %7767 = vmatpush2.bf16.xpose.msra.mxu0 0
    %7768 = vmatprep.subr.bf16.mxu0 0
    %7769 = vmatpush2.bf16.xpose.msra.mxu0 0
    %7770 = vmatprep.subr.bf16.mxu0 0
    %7771 = vmatpush2.bf16.xpose.msra.mxu0 0
    %7772 = vmatprep.subr.bf16.mxu0 0
    %7773 = vmatpush2.bf16.xpose.msra.mxu0 0
    %7774 = vmatprep.subr.bf16.mxu0 0
    %7775 = vmatpush2.bf16.xpose.msra.mxu0 0
    %7776 = vmatprep.mubr.bf16.mxu0 0
    %7777 = vmatmul.mubr.bf16.gmra.mxu0 %v7739
    %v7778 = vpop.f32.mrf.mxu0
    %v7779 = vadd.f32 0.0, %v7778
    %v7780 = vpop.f32.mrf.mxu0
    %v7781 = vpop.f32.mrf.mxu0
    %v7782 = vadd.f32 0.0, %v7781
    %v7783 = vpop.f32.mrf.mxu0
    %7784 = vdwg.mxu0
    %7785 = vrot.lane.b32.xlu0 %v986, 32
    %v7786 = vpop.permute.xlu0 %7785
    %7787 = vrot.lane.b32.xlu0 %v1002, 32
    %v7788 = vpop.permute.xlu0 %7787
    %v7790 = vsel %vm1029, %v7786, 0
    %v7793 = vsel %vm1029, %v7788, 0
    %7795 = vmatprep.subr.bf16.mxu0 0
    %7796 = vmatpush1.bf16.xpose.msra.mxu0 0
    %7797 = vmatprep.subr.bf16.mxu0 0
    %7798 = vmatpush1.bf16.xpose.msra.mxu0 0
    %7799 = vmatprep.subr.bf16.mxu0 0
    %7800 = vmatpush1.bf16.xpose.msra.mxu0 0
    %7801 = vmatprep.subr.bf16.mxu0 0
    %7802 = vmatpush1.bf16.xpose.msra.mxu0 0
    %7803 = vmatprep.subr.bf16.mxu0 0
    %7804 = vmatpush1.bf16.xpose.msra.mxu0 0
    %7805 = vmatprep.subr.bf16.mxu0 0
    %7806 = vmatpush1.bf16.xpose.msra.mxu0 0
    %7807 = vmatprep.subr.bf16.mxu0 0
    %7808 = vmatpush1.bf16.xpose.msra.mxu0 0
    %7809 = vmatprep.subr.bf16.mxu0 0
    %7810 = vmatpush1.bf16.xpose.msra.mxu0 %v7793
    %7811 = vmatprep.subr.bf16.mxu0 0
    %7812 = vmatpush2.bf16.xpose.msra.mxu0 0
    %7813 = vmatprep.subr.bf16.mxu0 0
    %7814 = vmatpush2.bf16.xpose.msra.mxu0 0
    %7815 = vmatprep.subr.bf16.mxu0 0
    %7816 = vmatpush2.bf16.xpose.msra.mxu0 0
    %7817 = vmatprep.subr.bf16.mxu0 0
    %7818 = vmatpush2.bf16.xpose.msra.mxu0 0
    %7819 = vmatprep.subr.bf16.mxu0 0
    %7820 = vmatpush2.bf16.xpose.msra.mxu0 0
    %7821 = vmatprep.subr.bf16.mxu0 0
    %7822 = vmatpush2.bf16.xpose.msra.mxu0 0
    %7823 = vmatprep.subr.bf16.mxu0 0
    %7824 = vmatpush2.bf16.xpose.msra.mxu0 0
    %7825 = vmatprep.subr.bf16.mxu0 0
    %7826 = vmatpush2.bf16.xpose.msra.mxu0 0
    %7827 = vmatprep.mubr.bf16.mxu0 0
    %7828 = vmatmul.mubr.bf16.gmra.mxu0 %v7790
    %v7829 = vpop.f32.mrf.mxu0
    %v7830 = vadd.f32 0.0, %v7829
    %v7831 = vpop.f32.mrf.mxu0
    %v7832 = vpop.f32.mrf.mxu0
    %v7833 = vadd.f32 0.0, %v7832
    %v7834 = vpop.f32.mrf.mxu0
    %7835 = vdwg.mxu0
    %7836 = vrot.lane.b32.xlu0 %v987, 32
    %v7837 = vpop.permute.xlu0 %7836
    %7838 = vrot.lane.b32.xlu0 %v1003, 32
    %v7839 = vpop.permute.xlu0 %7838
    %v7841 = vsel %vm1029, %v7837, 0
    %v7844 = vsel %vm1029, %v7839, 0
    %7846 = vmatprep.subr.bf16.mxu0 0
    %7847 = vmatpush1.bf16.xpose.msra.mxu0 0
    %7848 = vmatprep.subr.bf16.mxu0 0
    %7849 = vmatpush1.bf16.xpose.msra.mxu0 0
    %7850 = vmatprep.subr.bf16.mxu0 0
    %7851 = vmatpush1.bf16.xpose.msra.mxu0 0
    %7852 = vmatprep.subr.bf16.mxu0 0
    %7853 = vmatpush1.bf16.xpose.msra.mxu0 0
    %7854 = vmatprep.subr.bf16.mxu0 0
    %7855 = vmatpush1.bf16.xpose.msra.mxu0 0
    %7856 = vmatprep.subr.bf16.mxu0 0
    %7857 = vmatpush1.bf16.xpose.msra.mxu0 0
    %7858 = vmatprep.subr.bf16.mxu0 0
    %7859 = vmatpush1.bf16.xpose.msra.mxu0 0
    %7860 = vmatprep.subr.bf16.mxu0 0
    %7861 = vmatpush1.bf16.xpose.msra.mxu0 %v7844
    %7862 = vmatprep.subr.bf16.mxu0 0
    %7863 = vmatpush2.bf16.xpose.msra.mxu0 0
    %7864 = vmatprep.subr.bf16.mxu0 0
    %7865 = vmatpush2.bf16.xpose.msra.mxu0 0
    %7866 = vmatprep.subr.bf16.mxu0 0
    %7867 = vmatpush2.bf16.xpose.msra.mxu0 0
    %7868 = vmatprep.subr.bf16.mxu0 0
    %7869 = vmatpush2.bf16.xpose.msra.mxu0 0
    %7870 = vmatprep.subr.bf16.mxu0 0
    %7871 = vmatpush2.bf16.xpose.msra.mxu0 0
    %7872 = vmatprep.subr.bf16.mxu0 0
    %7873 = vmatpush2.bf16.xpose.msra.mxu0 0
    %7874 = vmatprep.subr.bf16.mxu0 0
    %7875 = vmatpush2.bf16.xpose.msra.mxu0 0
    %7876 = vmatprep.subr.bf16.mxu0 0
    %7877 = vmatpush2.bf16.xpose.msra.mxu0 0
    %7878 = vmatprep.mubr.bf16.mxu0 0
    %7879 = vmatmul.mubr.bf16.gmra.mxu0 %v7841
    %v7880 = vpop.f32.mrf.mxu0
    %v7881 = vadd.f32 0.0, %v7880
    %v7882 = vpop.f32.mrf.mxu0
    %v7883 = vpop.f32.mrf.mxu0
    %v7884 = vadd.f32 0.0, %v7883
    %v7885 = vpop.f32.mrf.mxu0
    %7886 = vdwg.mxu0
    %7887 = vrot.lane.b32.xlu0 %v988, 32
    %v7888 = vpop.permute.xlu0 %7887
    %7889 = vrot.lane.b32.xlu0 %v1004, 32
    %v7890 = vpop.permute.xlu0 %7889
    %v7892 = vsel %vm1029, %v7888, 0
    %v7895 = vsel %vm1029, %v7890, 0
    %7897 = vmatprep.subr.bf16.mxu0 0
    %7898 = vmatpush1.bf16.xpose.msra.mxu0 0
    %7899 = vmatprep.subr.bf16.mxu0 0
    %7900 = vmatpush1.bf16.xpose.msra.mxu0 0
    %7901 = vmatprep.subr.bf16.mxu0 0
    %7902 = vmatpush1.bf16.xpose.msra.mxu0 0
    %7903 = vmatprep.subr.bf16.mxu0 0
    %7904 = vmatpush1.bf16.xpose.msra.mxu0 0
    %7905 = vmatprep.subr.bf16.mxu0 0
    %7906 = vmatpush1.bf16.xpose.msra.mxu0 0
    %7907 = vmatprep.subr.bf16.mxu0 0
    %7908 = vmatpush1.bf16.xpose.msra.mxu0 0
    %7909 = vmatprep.subr.bf16.mxu0 0
    %7910 = vmatpush1.bf16.xpose.msra.mxu0 0
    %7911 = vmatprep.subr.bf16.mxu0 0
    %7912 = vmatpush1.bf16.xpose.msra.mxu0 %v7895
    %7913 = vmatprep.subr.bf16.mxu0 0
    %7914 = vmatpush2.bf16.xpose.msra.mxu0 0
    %7915 = vmatprep.subr.bf16.mxu0 0
    %7916 = vmatpush2.bf16.xpose.msra.mxu0 0
    %7917 = vmatprep.subr.bf16.mxu0 0
    %7918 = vmatpush2.bf16.xpose.msra.mxu0 0
    %7919 = vmatprep.subr.bf16.mxu0 0
    %7920 = vmatpush2.bf16.xpose.msra.mxu0 0
    %7921 = vmatprep.subr.bf16.mxu0 0
    %7922 = vmatpush2.bf16.xpose.msra.mxu0 0
    %7923 = vmatprep.subr.bf16.mxu0 0
    %7924 = vmatpush2.bf16.xpose.msra.mxu0 0
    %7925 = vmatprep.subr.bf16.mxu0 0
    %7926 = vmatpush2.bf16.xpose.msra.mxu0 0
    %7927 = vmatprep.subr.bf16.mxu0 0
    %7928 = vmatpush2.bf16.xpose.msra.mxu0 0
    %7929 = vmatprep.mubr.bf16.mxu0 0
    %7930 = vmatmul.mubr.bf16.gmra.mxu0 %v7892
    %v7931 = vpop.f32.mrf.mxu0
    %v7932 = vadd.f32 0.0, %v7931
    %v7933 = vpop.f32.mrf.mxu0
    %v7934 = vpop.f32.mrf.mxu0
    %v7935 = vadd.f32 0.0, %v7934
    %v7936 = vpop.f32.mrf.mxu0
    %7937 = vdwg.mxu0
    %7938 = vrot.lane.b32.xlu0 %v989, 32
    %v7939 = vpop.permute.xlu0 %7938
    %7940 = vrot.lane.b32.xlu0 %v1005, 32
    %v7941 = vpop.permute.xlu0 %7940
    %v7943 = vsel %vm1029, %v7939, 0
    %v7946 = vsel %vm1029, %v7941, 0
    %7948 = vmatprep.subr.bf16.mxu0 0
    %7949 = vmatpush1.bf16.xpose.msra.mxu0 0
    %7950 = vmatprep.subr.bf16.mxu0 0
    %7951 = vmatpush1.bf16.xpose.msra.mxu0 0
    %7952 = vmatprep.subr.bf16.mxu0 0
    %7953 = vmatpush1.bf16.xpose.msra.mxu0 0
    %7954 = vmatprep.subr.bf16.mxu0 0
    %7955 = vmatpush1.bf16.xpose.msra.mxu0 0
    %7956 = vmatprep.subr.bf16.mxu0 0
    %7957 = vmatpush1.bf16.xpose.msra.mxu0 0
    %7958 = vmatprep.subr.bf16.mxu0 0
    %7959 = vmatpush1.bf16.xpose.msra.mxu0 0
    %7960 = vmatprep.subr.bf16.mxu0 0
    %7961 = vmatpush1.bf16.xpose.msra.mxu0 0
    %7962 = vmatprep.subr.bf16.mxu0 0
    %7963 = vmatpush1.bf16.xpose.msra.mxu0 %v7946
    %7964 = vmatprep.subr.bf16.mxu0 0
    %7965 = vmatpush2.bf16.xpose.msra.mxu0 0
    %7966 = vmatprep.subr.bf16.mxu0 0
    %7967 = vmatpush2.bf16.xpose.msra.mxu0 0
    %7968 = vmatprep.subr.bf16.mxu0 0
    %7969 = vmatpush2.bf16.xpose.msra.mxu0 0
    %7970 = vmatprep.subr.bf16.mxu0 0
    %7971 = vmatpush2.bf16.xpose.msra.mxu0 0
    %7972 = vmatprep.subr.bf16.mxu0 0
    %7973 = vmatpush2.bf16.xpose.msra.mxu0 0
    %7974 = vmatprep.subr.bf16.mxu0 0
    %7975 = vmatpush2.bf16.xpose.msra.mxu0 0
    %7976 = vmatprep.subr.bf16.mxu0 0
    %7977 = vmatpush2.bf16.xpose.msra.mxu0 0
    %7978 = vmatprep.subr.bf16.mxu0 0
    %7979 = vmatpush2.bf16.xpose.msra.mxu0 0
    %7980 = vmatprep.mubr.bf16.mxu0 0
    %7981 = vmatmul.mubr.bf16.gmra.mxu0 %v7943
    %v7982 = vpop.f32.mrf.mxu0
    %v7983 = vadd.f32 0.0, %v7982
    %v7984 = vpop.f32.mrf.mxu0
    %v7985 = vpop.f32.mrf.mxu0
    %v7986 = vadd.f32 0.0, %v7985
    %v7987 = vpop.f32.mrf.mxu0
    %7988 = vdwg.mxu0
    %7989 = vrot.lane.b32.xlu0 %v990, 32
    %v7990 = vpop.permute.xlu0 %7989
    %7991 = vrot.lane.b32.xlu0 %v1006, 32
    %v7992 = vpop.permute.xlu0 %7991
    %v7994 = vsel %vm1029, %v7990, 0
    %v7997 = vsel %vm1029, %v7992, 0
    %7999 = vmatprep.subr.bf16.mxu0 0
    %8000 = vmatpush1.bf16.xpose.msra.mxu0 0
    %8001 = vmatprep.subr.bf16.mxu0 0
    %8002 = vmatpush1.bf16.xpose.msra.mxu0 0
    %8003 = vmatprep.subr.bf16.mxu0 0
    %8004 = vmatpush1.bf16.xpose.msra.mxu0 0
    %8005 = vmatprep.subr.bf16.mxu0 0
    %8006 = vmatpush1.bf16.xpose.msra.mxu0 0
    %8007 = vmatprep.subr.bf16.mxu0 0
    %8008 = vmatpush1.bf16.xpose.msra.mxu0 0
    %8009 = vmatprep.subr.bf16.mxu0 0
    %8010 = vmatpush1.bf16.xpose.msra.mxu0 0
    %8011 = vmatprep.subr.bf16.mxu0 0
    %8012 = vmatpush1.bf16.xpose.msra.mxu0 0
    %8013 = vmatprep.subr.bf16.mxu0 0
    %8014 = vmatpush1.bf16.xpose.msra.mxu0 %v7997
    %8015 = vmatprep.subr.bf16.mxu0 0
    %8016 = vmatpush2.bf16.xpose.msra.mxu0 0
    %8017 = vmatprep.subr.bf16.mxu0 0
    %8018 = vmatpush2.bf16.xpose.msra.mxu0 0
    %8019 = vmatprep.subr.bf16.mxu0 0
    %8020 = vmatpush2.bf16.xpose.msra.mxu0 0
    %8021 = vmatprep.subr.bf16.mxu0 0
    %8022 = vmatpush2.bf16.xpose.msra.mxu0 0
    %8023 = vmatprep.subr.bf16.mxu0 0
    %8024 = vmatpush2.bf16.xpose.msra.mxu0 0
    %8025 = vmatprep.subr.bf16.mxu0 0
    %8026 = vmatpush2.bf16.xpose.msra.mxu0 0
    %8027 = vmatprep.subr.bf16.mxu0 0
    %8028 = vmatpush2.bf16.xpose.msra.mxu0 0
    %8029 = vmatprep.subr.bf16.mxu0 0
    %8030 = vmatpush2.bf16.xpose.msra.mxu0 0
    %8031 = vmatprep.mubr.bf16.mxu0 0
    %8032 = vmatmul.mubr.bf16.gmra.mxu0 %v7994
    %v8033 = vpop.f32.mrf.mxu0
    %v8034 = vadd.f32 0.0, %v8033
    %v8035 = vpop.f32.mrf.mxu0
    %v8036 = vpop.f32.mrf.mxu0
    %v8037 = vadd.f32 0.0, %v8036
    %v8038 = vpop.f32.mrf.mxu0
    %8039 = vdwg.mxu0
    %8040 = vrot.lane.b32.xlu0 %v991, 32
    %v8041 = vpop.permute.xlu0 %8040
    %8042 = vrot.lane.b32.xlu0 %v1007, 32
    %v8043 = vpop.permute.xlu0 %8042
    %v8045 = vsel %vm1029, %v8041, 0
    %v8048 = vsel %vm1029, %v8043, 0
    %8050 = vmatprep.subr.bf16.mxu0 0
    %8051 = vmatpush1.bf16.xpose.msra.mxu0 0
    %8052 = vmatprep.subr.bf16.mxu0 0
    %8053 = vmatpush1.bf16.xpose.msra.mxu0 0
    %8054 = vmatprep.subr.bf16.mxu0 0
    %8055 = vmatpush1.bf16.xpose.msra.mxu0 0
    %8056 = vmatprep.subr.bf16.mxu0 0
    %8057 = vmatpush1.bf16.xpose.msra.mxu0 0
    %8058 = vmatprep.subr.bf16.mxu0 0
    %8059 = vmatpush1.bf16.xpose.msra.mxu0 0
    %8060 = vmatprep.subr.bf16.mxu0 0
    %8061 = vmatpush1.bf16.xpose.msra.mxu0 0
    %8062 = vmatprep.subr.bf16.mxu0 0
    %8063 = vmatpush1.bf16.xpose.msra.mxu0 0
    %8064 = vmatprep.subr.bf16.mxu0 0
    %8065 = vmatpush1.bf16.xpose.msra.mxu0 %v8048
    %8066 = vmatprep.subr.bf16.mxu0 0
    %8067 = vmatpush2.bf16.xpose.msra.mxu0 0
    %8068 = vmatprep.subr.bf16.mxu0 0
    %8069 = vmatpush2.bf16.xpose.msra.mxu0 0
    %8070 = vmatprep.subr.bf16.mxu0 0
    %8071 = vmatpush2.bf16.xpose.msra.mxu0 0
    %8072 = vmatprep.subr.bf16.mxu0 0
    %8073 = vmatpush2.bf16.xpose.msra.mxu0 0
    %8074 = vmatprep.subr.bf16.mxu0 0
    %8075 = vmatpush2.bf16.xpose.msra.mxu0 0
    %8076 = vmatprep.subr.bf16.mxu0 0
    %8077 = vmatpush2.bf16.xpose.msra.mxu0 0
    %8078 = vmatprep.subr.bf16.mxu0 0
    %8079 = vmatpush2.bf16.xpose.msra.mxu0 0
    %8080 = vmatprep.subr.bf16.mxu0 0
    %8081 = vmatpush2.bf16.xpose.msra.mxu0 0
    %8082 = vmatprep.mubr.bf16.mxu0 0
    %8083 = vmatmul.mubr.bf16.gmra.mxu0 %v8045
    %v8084 = vpop.f32.mrf.mxu0
    %v8085 = vadd.f32 0.0, %v8084
    %v8086 = vpop.f32.mrf.mxu0
    %v8087 = vpop.f32.mrf.mxu0
    %v8088 = vadd.f32 0.0, %v8087
    %v8089 = vpop.f32.mrf.mxu0
    %8090 = vdwg.mxu0
    %8091 = vrot.lane.b32.xlu0 %v992, 32
    %v8092 = vpop.permute.xlu0 %8091
    %8093 = vrot.lane.b32.xlu0 %v1008, 32
    %v8094 = vpop.permute.xlu0 %8093
    %v8096 = vsel %vm1029, %v8092, 0
    %v8099 = vsel %vm1029, %v8094, 0
    %8101 = vmatprep.subr.bf16.mxu0 0
    %8102 = vmatpush1.bf16.xpose.msra.mxu0 0
    %8103 = vmatprep.subr.bf16.mxu0 0
    %8104 = vmatpush1.bf16.xpose.msra.mxu0 0
    %8105 = vmatprep.subr.bf16.mxu0 0
    %8106 = vmatpush1.bf16.xpose.msra.mxu0 0
    %8107 = vmatprep.subr.bf16.mxu0 0
    %8108 = vmatpush1.bf16.xpose.msra.mxu0 0
    %8109 = vmatprep.subr.bf16.mxu0 0
    %8110 = vmatpush1.bf16.xpose.msra.mxu0 0
    %8111 = vmatprep.subr.bf16.mxu0 0
    %8112 = vmatpush1.bf16.xpose.msra.mxu0 0
    %8113 = vmatprep.subr.bf16.mxu0 0
    %8114 = vmatpush1.bf16.xpose.msra.mxu0 0
    %8115 = vmatprep.subr.bf16.mxu0 0
    %8116 = vmatpush1.bf16.xpose.msra.mxu0 %v8099
    %8117 = vmatprep.subr.bf16.mxu0 0
    %8118 = vmatpush2.bf16.xpose.msra.mxu0 0
    %8119 = vmatprep.subr.bf16.mxu0 0
    %8120 = vmatpush2.bf16.xpose.msra.mxu0 0
    %8121 = vmatprep.subr.bf16.mxu0 0
    %8122 = vmatpush2.bf16.xpose.msra.mxu0 0
    %8123 = vmatprep.subr.bf16.mxu0 0
    %8124 = vmatpush2.bf16.xpose.msra.mxu0 0
    %8125 = vmatprep.subr.bf16.mxu0 0
    %8126 = vmatpush2.bf16.xpose.msra.mxu0 0
    %8127 = vmatprep.subr.bf16.mxu0 0
    %8128 = vmatpush2.bf16.xpose.msra.mxu0 0
    %8129 = vmatprep.subr.bf16.mxu0 0
    %8130 = vmatpush2.bf16.xpose.msra.mxu0 0
    %8131 = vmatprep.subr.bf16.mxu0 0
    %8132 = vmatpush2.bf16.xpose.msra.mxu0 0
    %8133 = vmatprep.mubr.bf16.mxu0 0
    %8134 = vmatmul.mubr.bf16.gmra.mxu0 %v8096
    %v8135 = vpop.f32.mrf.mxu0
    %v8136 = vadd.f32 0.0, %v8135
    %v8137 = vpop.f32.mrf.mxu0
    %v8138 = vpop.f32.mrf.mxu0
    %v8139 = vadd.f32 0.0, %v8138
    %v8140 = vpop.f32.mrf.mxu0
    %8141 = vdwg.mxu0
    %8142 = vrot.lane.b32.xlu0 %v993, 32
    %v8143 = vpop.permute.xlu0 %8142
    %8144 = vrot.lane.b32.xlu0 %v1009, 32
    %v8145 = vpop.permute.xlu0 %8144
    %v8147 = vsel %vm1029, %v8143, 0
    %v8150 = vsel %vm1029, %v8145, 0
    %8152 = vmatprep.subr.bf16.mxu0 0
    %8153 = vmatpush1.bf16.xpose.msra.mxu0 0
    %8154 = vmatprep.subr.bf16.mxu0 0
    %8155 = vmatpush1.bf16.xpose.msra.mxu0 0
    %8156 = vmatprep.subr.bf16.mxu0 0
    %8157 = vmatpush1.bf16.xpose.msra.mxu0 0
    %8158 = vmatprep.subr.bf16.mxu0 0
    %8159 = vmatpush1.bf16.xpose.msra.mxu0 0
    %8160 = vmatprep.subr.bf16.mxu0 0
    %8161 = vmatpush1.bf16.xpose.msra.mxu0 0
    %8162 = vmatprep.subr.bf16.mxu0 0
    %8163 = vmatpush1.bf16.xpose.msra.mxu0 0
    %8164 = vmatprep.subr.bf16.mxu0 0
    %8165 = vmatpush1.bf16.xpose.msra.mxu0 0
    %8166 = vmatprep.subr.bf16.mxu0 0
    %8167 = vmatpush1.bf16.xpose.msra.mxu0 %v8150
    %8168 = vmatprep.subr.bf16.mxu0 0
    %8169 = vmatpush2.bf16.xpose.msra.mxu0 0
    %8170 = vmatprep.subr.bf16.mxu0 0
    %8171 = vmatpush2.bf16.xpose.msra.mxu0 0
    %8172 = vmatprep.subr.bf16.mxu0 0
    %8173 = vmatpush2.bf16.xpose.msra.mxu0 0
    %8174 = vmatprep.subr.bf16.mxu0 0
    %8175 = vmatpush2.bf16.xpose.msra.mxu0 0
    %8176 = vmatprep.subr.bf16.mxu0 0
    %8177 = vmatpush2.bf16.xpose.msra.mxu0 0
    %8178 = vmatprep.subr.bf16.mxu0 0
    %8179 = vmatpush2.bf16.xpose.msra.mxu0 0
    %8180 = vmatprep.subr.bf16.mxu0 0
    %8181 = vmatpush2.bf16.xpose.msra.mxu0 0
    %8182 = vmatprep.subr.bf16.mxu0 0
    %8183 = vmatpush2.bf16.xpose.msra.mxu0 0
    %8184 = vmatprep.mubr.bf16.mxu0 0
    %8185 = vmatmul.mubr.bf16.gmra.mxu0 %v8147
    %v8186 = vpop.f32.mrf.mxu0
    %v8187 = vadd.f32 0.0, %v8186
    %v8188 = vpop.f32.mrf.mxu0
    %v8189 = vpop.f32.mrf.mxu0
    %v8190 = vadd.f32 0.0, %v8189
    %v8191 = vpop.f32.mrf.mxu0
    %8192 = vdwg.mxu0
    %8193 = vrot.lane.b32.xlu0 %v994, 32
    %v8194 = vpop.permute.xlu0 %8193
    %8195 = vrot.lane.b32.xlu0 %v1010, 32
    %v8196 = vpop.permute.xlu0 %8195
    %v8198 = vsel %vm1029, %v8194, 0
    %v8201 = vsel %vm1029, %v8196, 0
    %8203 = vmatprep.subr.bf16.mxu0 0
    %8204 = vmatpush1.bf16.xpose.msra.mxu0 0
    %8205 = vmatprep.subr.bf16.mxu0 0
    %8206 = vmatpush1.bf16.xpose.msra.mxu0 0
    %8207 = vmatprep.subr.bf16.mxu0 0
    %8208 = vmatpush1.bf16.xpose.msra.mxu0 0
    %8209 = vmatprep.subr.bf16.mxu0 0
    %8210 = vmatpush1.bf16.xpose.msra.mxu0 0
    %8211 = vmatprep.subr.bf16.mxu0 0
    %8212 = vmatpush1.bf16.xpose.msra.mxu0 0
    %8213 = vmatprep.subr.bf16.mxu0 0
    %8214 = vmatpush1.bf16.xpose.msra.mxu0 0
    %8215 = vmatprep.subr.bf16.mxu0 0
    %8216 = vmatpush1.bf16.xpose.msra.mxu0 0
    %8217 = vmatprep.subr.bf16.mxu0 0
    %8218 = vmatpush1.bf16.xpose.msra.mxu0 %v8201
    %8219 = vmatprep.subr.bf16.mxu0 0
    %8220 = vmatpush2.bf16.xpose.msra.mxu0 0
    %8221 = vmatprep.subr.bf16.mxu0 0
    %8222 = vmatpush2.bf16.xpose.msra.mxu0 0
    %8223 = vmatprep.subr.bf16.mxu0 0
    %8224 = vmatpush2.bf16.xpose.msra.mxu0 0
    %8225 = vmatprep.subr.bf16.mxu0 0
    %8226 = vmatpush2.bf16.xpose.msra.mxu0 0
    %8227 = vmatprep.subr.bf16.mxu0 0
    %8228 = vmatpush2.bf16.xpose.msra.mxu0 0
    %8229 = vmatprep.subr.bf16.mxu0 0
    %8230 = vmatpush2.bf16.xpose.msra.mxu0 0
    %8231 = vmatprep.subr.bf16.mxu0 0
    %8232 = vmatpush2.bf16.xpose.msra.mxu0 0
    %8233 = vmatprep.subr.bf16.mxu0 0
    %8234 = vmatpush2.bf16.xpose.msra.mxu0 0
    %8235 = vmatprep.mubr.bf16.mxu0 0
    %8236 = vmatmul.mubr.bf16.gmra.mxu0 %v8198
    %v8237 = vpop.f32.mrf.mxu0
    %v8238 = vadd.f32 0.0, %v8237
    %v8239 = vpop.f32.mrf.mxu0
    %v8240 = vpop.f32.mrf.mxu0
    %v8241 = vadd.f32 0.0, %v8240
    %v8242 = vpop.f32.mrf.mxu0
    %8243 = vdwg.mxu0
    %8244 = vrot.lane.b32.xlu0 %v995, 32
    %v8245 = vpop.permute.xlu0 %8244
    %8246 = vrot.lane.b32.xlu0 %v1011, 32
    %v8247 = vpop.permute.xlu0 %8246
    %v8249 = vsel %vm1029, %v8245, 0
    %v8252 = vsel %vm1029, %v8247, 0
    %8254 = vmatprep.subr.bf16.mxu0 0
    %8255 = vmatpush1.bf16.xpose.msra.mxu0 0
    %8256 = vmatprep.subr.bf16.mxu0 0
    %8257 = vmatpush1.bf16.xpose.msra.mxu0 0
    %8258 = vmatprep.subr.bf16.mxu0 0
    %8259 = vmatpush1.bf16.xpose.msra.mxu0 0
    %8260 = vmatprep.subr.bf16.mxu0 0
    %8261 = vmatpush1.bf16.xpose.msra.mxu0 0
    %8262 = vmatprep.subr.bf16.mxu0 0
    %8263 = vmatpush1.bf16.xpose.msra.mxu0 0
    %8264 = vmatprep.subr.bf16.mxu0 0
    %8265 = vmatpush1.bf16.xpose.msra.mxu0 0
    %8266 = vmatprep.subr.bf16.mxu0 0
    %8267 = vmatpush1.bf16.xpose.msra.mxu0 0
    %8268 = vmatprep.subr.bf16.mxu0 0
    %8269 = vmatpush1.bf16.xpose.msra.mxu0 %v8252
    %8270 = vmatprep.subr.bf16.mxu0 0
    %8271 = vmatpush2.bf16.xpose.msra.mxu0 0
    %8272 = vmatprep.subr.bf16.mxu0 0
    %8273 = vmatpush2.bf16.xpose.msra.mxu0 0
    %8274 = vmatprep.subr.bf16.mxu0 0
    %8275 = vmatpush2.bf16.xpose.msra.mxu0 0
    %8276 = vmatprep.subr.bf16.mxu0 0
    %8277 = vmatpush2.bf16.xpose.msra.mxu0 0
    %8278 = vmatprep.subr.bf16.mxu0 0
    %8279 = vmatpush2.bf16.xpose.msra.mxu0 0
    %8280 = vmatprep.subr.bf16.mxu0 0
    %8281 = vmatpush2.bf16.xpose.msra.mxu0 0
    %8282 = vmatprep.subr.bf16.mxu0 0
    %8283 = vmatpush2.bf16.xpose.msra.mxu0 0
    %8284 = vmatprep.subr.bf16.mxu0 0
    %8285 = vmatpush2.bf16.xpose.msra.mxu0 0
    %8286 = vmatprep.mubr.bf16.mxu0 0
    %8287 = vmatmul.mubr.bf16.gmra.mxu0 %v8249
    %v8288 = vpop.f32.mrf.mxu0
    %v8289 = vadd.f32 0.0, %v8288
    %v8290 = vpop.f32.mrf.mxu0
    %v8291 = vpop.f32.mrf.mxu0
    %v8292 = vadd.f32 0.0, %v8291
    %v8293 = vpop.f32.mrf.mxu0
    %8294 = vdwg.mxu0
    %8295 = vrot.lane.b32.xlu0 %v996, 32
    %v8296 = vpop.permute.xlu0 %8295
    %8297 = vrot.lane.b32.xlu0 %v1012, 32
    %v8298 = vpop.permute.xlu0 %8297
    %v8300 = vsel %vm1029, %v8296, 0
    %v8303 = vsel %vm1029, %v8298, 0
    %8305 = vmatprep.subr.bf16.mxu0 0
    %8306 = vmatpush1.bf16.xpose.msra.mxu0 0
    %8307 = vmatprep.subr.bf16.mxu0 0
    %8308 = vmatpush1.bf16.xpose.msra.mxu0 0
    %8309 = vmatprep.subr.bf16.mxu0 0
    %8310 = vmatpush1.bf16.xpose.msra.mxu0 0
    %8311 = vmatprep.subr.bf16.mxu0 0
    %8312 = vmatpush1.bf16.xpose.msra.mxu0 0
    %8313 = vmatprep.subr.bf16.mxu0 0
    %8314 = vmatpush1.bf16.xpose.msra.mxu0 0
    %8315 = vmatprep.subr.bf16.mxu0 0
    %8316 = vmatpush1.bf16.xpose.msra.mxu0 0
    %8317 = vmatprep.subr.bf16.mxu0 0
    %8318 = vmatpush1.bf16.xpose.msra.mxu0 0
    %8319 = vmatprep.subr.bf16.mxu0 0
    %8320 = vmatpush1.bf16.xpose.msra.mxu0 %v8303
    %8321 = vmatprep.subr.bf16.mxu0 0
    %8322 = vmatpush2.bf16.xpose.msra.mxu0 0
    %8323 = vmatprep.subr.bf16.mxu0 0
    %8324 = vmatpush2.bf16.xpose.msra.mxu0 0
    %8325 = vmatprep.subr.bf16.mxu0 0
    %8326 = vmatpush2.bf16.xpose.msra.mxu0 0
    %8327 = vmatprep.subr.bf16.mxu0 0
    %8328 = vmatpush2.bf16.xpose.msra.mxu0 0
    %8329 = vmatprep.subr.bf16.mxu0 0
    %8330 = vmatpush2.bf16.xpose.msra.mxu0 0
    %8331 = vmatprep.subr.bf16.mxu0 0
    %8332 = vmatpush2.bf16.xpose.msra.mxu0 0
    %8333 = vmatprep.subr.bf16.mxu0 0
    %8334 = vmatpush2.bf16.xpose.msra.mxu0 0
    %8335 = vmatprep.subr.bf16.mxu0 0
    %8336 = vmatpush2.bf16.xpose.msra.mxu0 0
    %8337 = vmatprep.mubr.bf16.mxu0 0
    %8338 = vmatmul.mubr.bf16.gmra.mxu0 %v8300
    %v8339 = vpop.f32.mrf.mxu0
    %v8340 = vadd.f32 0.0, %v8339
    %v8341 = vpop.f32.mrf.mxu0
    %v8342 = vpop.f32.mrf.mxu0
    %v8343 = vadd.f32 0.0, %v8342
    %v8344 = vpop.f32.mrf.mxu0
    %8345 = vdwg.mxu0
    %v8346 = vsel %vm1782, %v7575, -inf
    %8347 = vmax.xlane.f32.xlu0 %v8346
    %v8348 = vpop.xlane.xlu0 %8347
    %v8349 = vsel %vm1782, %v7578, -inf
    %8350 = vmax.xlane.f32.xlu0 %v8349
    %v8351 = vpop.xlane.xlu0 %8350
    %v8352 = vsel %vm1782, %v7626, -inf
    %8353 = vmax.xlane.f32.xlu0 %v8352
    %v8354 = vpop.xlane.xlu0 %8353
    %v8355 = vsel %vm1782, %v7629, -inf
    %8356 = vmax.xlane.f32.xlu0 %v8355
    %v8357 = vpop.xlane.xlu0 %8356
    %v8358 = vsel %vm1782, %v7677, -inf
    %8359 = vmax.xlane.f32.xlu0 %v8358
    %v8360 = vpop.xlane.xlu0 %8359
    %v8361 = vsel %vm1782, %v7680, -inf
    %8362 = vmax.xlane.f32.xlu0 %v8361
    %v8363 = vpop.xlane.xlu0 %8362
    %v8364 = vsel %vm1782, %v7728, -inf
    %8365 = vmax.xlane.f32.xlu0 %v8364
    %v8366 = vpop.xlane.xlu0 %8365
    %v8367 = vsel %vm1782, %v7731, -inf
    %8368 = vmax.xlane.f32.xlu0 %v8367
    %v8369 = vpop.xlane.xlu0 %8368
    %v8370 = vsel %vm1782, %v7779, -inf
    %8371 = vmax.xlane.f32.xlu0 %v8370
    %v8372 = vpop.xlane.xlu0 %8371
    %v8373 = vsel %vm1782, %v7782, -inf
    %8374 = vmax.xlane.f32.xlu0 %v8373
    %v8375 = vpop.xlane.xlu0 %8374
    %v8376 = vsel %vm1782, %v7830, -inf
    %8377 = vmax.xlane.f32.xlu0 %v8376
    %v8378 = vpop.xlane.xlu0 %8377
    %v8379 = vsel %vm1782, %v7833, -inf
    %8380 = vmax.xlane.f32.xlu0 %v8379
    %v8381 = vpop.xlane.xlu0 %8380
    %v8382 = vsel %vm1782, %v7881, -inf
    %8383 = vmax.xlane.f32.xlu0 %v8382
    %v8384 = vpop.xlane.xlu0 %8383
    %v8385 = vsel %vm1782, %v7884, -inf
    %8386 = vmax.xlane.f32.xlu0 %v8385
    %v8387 = vpop.xlane.xlu0 %8386
    %v8388 = vsel %vm1782, %v7932, -inf
    %8389 = vmax.xlane.f32.xlu0 %v8388
    %v8390 = vpop.xlane.xlu0 %8389
    %v8391 = vsel %vm1782, %v7935, -inf
    %8392 = vmax.xlane.f32.xlu0 %v8391
    %v8393 = vpop.xlane.xlu0 %8392
    %v8394 = vsel %vm1782, %v7983, -inf
    %8395 = vmax.xlane.f32.xlu0 %v8394
    %v8396 = vpop.xlane.xlu0 %8395
    %v8397 = vsel %vm1782, %v7986, -inf
    %8398 = vmax.xlane.f32.xlu0 %v8397
    %v8399 = vpop.xlane.xlu0 %8398
    %v8400 = vsel %vm1782, %v8034, -inf
    %8401 = vmax.xlane.f32.xlu0 %v8400
    %v8402 = vpop.xlane.xlu0 %8401
    %v8403 = vsel %vm1782, %v8037, -inf
    %8404 = vmax.xlane.f32.xlu0 %v8403
    %v8405 = vpop.xlane.xlu0 %8404
    %v8406 = vsel %vm1782, %v8085, -inf
    %8407 = vmax.xlane.f32.xlu0 %v8406
    %v8408 = vpop.xlane.xlu0 %8407
    %v8409 = vsel %vm1782, %v8088, -inf
    %8410 = vmax.xlane.f32.xlu0 %v8409
    %v8411 = vpop.xlane.xlu0 %8410
    %v8412 = vsel %vm1782, %v8136, -inf
    %8413 = vmax.xlane.f32.xlu0 %v8412
    %v8414 = vpop.xlane.xlu0 %8413
    %v8415 = vsel %vm1782, %v8139, -inf
    %8416 = vmax.xlane.f32.xlu0 %v8415
    %v8417 = vpop.xlane.xlu0 %8416
    %v8418 = vsel %vm1782, %v8187, -inf
    %8419 = vmax.xlane.f32.xlu0 %v8418
    %v8420 = vpop.xlane.xlu0 %8419
    %v8421 = vsel %vm1782, %v8190, -inf
    %8422 = vmax.xlane.f32.xlu0 %v8421
    %v8423 = vpop.xlane.xlu0 %8422
    %v8424 = vsel %vm1782, %v8238, -inf
    %8425 = vmax.xlane.f32.xlu0 %v8424
    %v8426 = vpop.xlane.xlu0 %8425
    %v8427 = vsel %vm1782, %v8241, -inf
    %8428 = vmax.xlane.f32.xlu0 %v8427
    %v8429 = vpop.xlane.xlu0 %8428
    %v8430 = vsel %vm1782, %v8289, -inf
    %8431 = vmax.xlane.f32.xlu0 %v8430
    %v8432 = vpop.xlane.xlu0 %8431
    %v8433 = vsel %vm1782, %v8292, -inf
    %8434 = vmax.xlane.f32.xlu0 %v8433
    %v8435 = vpop.xlane.xlu0 %8434
    %v8436 = vsel %vm1782, %v8340, -inf
    %8437 = vmax.xlane.f32.xlu0 %v8436
    %v8438 = vpop.xlane.xlu0 %8437
    %v8439 = vsel %vm1782, %v8343, -inf
    %8440 = vmax.xlane.f32.xlu0 %v8439
    %v8441 = vpop.xlane.xlu0 %8440
    %v8442 = vsub.f32 %v7575, %v8348
    %v8443 = vsub.f32 %v7578, %v8351
    %v8444 = vsub.f32 %v7626, %v8354
    %v8445 = vsub.f32 %v7629, %v8357
    %v8446 = vsub.f32 %v7677, %v8360
    %v8447 = vsub.f32 %v7680, %v8363
    %v8448 = vsub.f32 %v7728, %v8366
    %v8449 = vsub.f32 %v7731, %v8369
    %v8450 = vsub.f32 %v7779, %v8372
    %v8451 = vsub.f32 %v7782, %v8375
    %v8452 = vsub.f32 %v7830, %v8378
    %v8453 = vsub.f32 %v7833, %v8381
    %v8454 = vsub.f32 %v7881, %v8384
    %v8455 = vsub.f32 %v7884, %v8387
    %v8456 = vsub.f32 %v7932, %v8390
    %v8457 = vsub.f32 %v7935, %v8393
    %v8458 = vsub.f32 %v7983, %v8396
    %v8459 = vsub.f32 %v7986, %v8399
    %v8460 = vsub.f32 %v8034, %v8402
    %v8461 = vsub.f32 %v8037, %v8405
    %v8462 = vsub.f32 %v8085, %v8408
    %v8463 = vsub.f32 %v8088, %v8411
    %v8464 = vsub.f32 %v8136, %v8414
    %v8465 = vsub.f32 %v8139, %v8417
    %v8466 = vsub.f32 %v8187, %v8420
    %v8467 = vsub.f32 %v8190, %v8423
    %v8468 = vsub.f32 %v8238, %v8426
    %v8469 = vsub.f32 %v8241, %v8429
    %v8470 = vsub.f32 %v8289, %v8432
    %v8471 = vsub.f32 %v8292, %v8435
    %v8472 = vsub.f32 %v8340, %v8438
    %v8473 = vsub.f32 %v8343, %v8441
    %v8474 = vmul.f32 %v8442, 1.442695
    %v8475 = vpow.pop %v8474
    %v8476 = vmul.f32 %v8443, 1.442695
    %v8477 = vpow.pop %v8476
    %v8478 = vmul.f32 %v8444, 1.442695
    %v8479 = vpow.pop %v8478
    %v8480 = vmul.f32 %v8445, 1.442695
    %v8481 = vpow.pop %v8480
    %v8482 = vmul.f32 %v8446, 1.442695
    %v8483 = vpow.pop %v8482
    %v8484 = vmul.f32 %v8447, 1.442695
    %v8485 = vpow.pop %v8484
    %v8486 = vmul.f32 %v8448, 1.442695
    %v8487 = vpow.pop %v8486
    %v8488 = vmul.f32 %v8449, 1.442695
    %v8489 = vpow.pop %v8488
    %v8490 = vmul.f32 %v8450, 1.442695
    %v8491 = vpow.pop %v8490
    %v8492 = vmul.f32 %v8451, 1.442695
    %v8493 = vpow.pop %v8492
    %v8494 = vmul.f32 %v8452, 1.442695
    %v8495 = vpow.pop %v8494
    %v8496 = vmul.f32 %v8453, 1.442695
    %v8497 = vpow.pop %v8496
    %v8498 = vmul.f32 %v8454, 1.442695
    %v8499 = vpow.pop %v8498
    %v8500 = vmul.f32 %v8455, 1.442695
    %v8501 = vpow.pop %v8500
    %v8502 = vmul.f32 %v8456, 1.442695
    %v8503 = vpow.pop %v8502
    %v8504 = vmul.f32 %v8457, 1.442695
    %v8505 = vpow.pop %v8504
    %v8506 = vmul.f32 %v8458, 1.442695
    %v8507 = vpow.pop %v8506
    %v8508 = vmul.f32 %v8459, 1.442695
    %v8509 = vpow.pop %v8508
    %v8510 = vmul.f32 %v8460, 1.442695
    %v8511 = vpow.pop %v8510
    %v8512 = vmul.f32 %v8461, 1.442695
    %v8513 = vpow.pop %v8512
    %v8514 = vmul.f32 %v8462, 1.442695
    %v8515 = vpow.pop %v8514
    %v8516 = vmul.f32 %v8463, 1.442695
    %v8517 = vpow.pop %v8516
    %v8518 = vmul.f32 %v8464, 1.442695
    %v8519 = vpow.pop %v8518
    %v8520 = vmul.f32 %v8465, 1.442695
    %v8521 = vpow.pop %v8520
    %v8522 = vmul.f32 %v8466, 1.442695
    %v8523 = vpow.pop %v8522
    %v8524 = vmul.f32 %v8467, 1.442695
    %v8525 = vpow.pop %v8524
    %v8526 = vmul.f32 %v8468, 1.442695
    %v8527 = vpow.pop %v8526
    %v8528 = vmul.f32 %v8469, 1.442695
    %v8529 = vpow.pop %v8528
    %v8530 = vmul.f32 %v8470, 1.442695
    %v8531 = vpow.pop %v8530
    %v8532 = vmul.f32 %v8471, 1.442695
    %v8533 = vpow.pop %v8532
    %v8534 = vmul.f32 %v8472, 1.442695
    %v8535 = vpow.pop %v8534
    %v8536 = vmul.f32 %v8473, 1.442695
    %v8537 = vpow.pop %v8536
    %v8538 = vsel %vm1782, %v8475, 0.0
    %8539 = vadd.xlane.f32.xlu0 %v8538
    %v8540 = vpop.xlane.xlu0 %8539
    %v8541 = vsel %vm1782, %v8477, 0.0
    %8542 = vadd.xlane.f32.xlu0 %v8541
    %v8543 = vpop.xlane.xlu0 %8542
    %v8544 = vsel %vm1782, %v8479, 0.0
    %8545 = vadd.xlane.f32.xlu0 %v8544
    %v8546 = vpop.xlane.xlu0 %8545
    %v8547 = vsel %vm1782, %v8481, 0.0
    %8548 = vadd.xlane.f32.xlu0 %v8547
    %v8549 = vpop.xlane.xlu0 %8548
    %v8550 = vsel %vm1782, %v8483, 0.0
    %8551 = vadd.xlane.f32.xlu0 %v8550
    %v8552 = vpop.xlane.xlu0 %8551
    %v8553 = vsel %vm1782, %v8485, 0.0
    %8554 = vadd.xlane.f32.xlu0 %v8553
    %v8555 = vpop.xlane.xlu0 %8554
    %v8556 = vsel %vm1782, %v8487, 0.0
    %8557 = vadd.xlane.f32.xlu0 %v8556
    %v8558 = vpop.xlane.xlu0 %8557
    %v8559 = vsel %vm1782, %v8489, 0.0
    %8560 = vadd.xlane.f32.xlu0 %v8559
    %v8561 = vpop.xlane.xlu0 %8560
    %v8562 = vsel %vm1782, %v8491, 0.0
    %8563 = vadd.xlane.f32.xlu0 %v8562
    %v8564 = vpop.xlane.xlu0 %8563
    %v8565 = vsel %vm1782, %v8493, 0.0
    %8566 = vadd.xlane.f32.xlu0 %v8565
    %v8567 = vpop.xlane.xlu0 %8566
    %v8568 = vsel %vm1782, %v8495, 0.0
    %8569 = vadd.xlane.f32.xlu0 %v8568
    %v8570 = vpop.xlane.xlu0 %8569
    %v8571 = vsel %vm1782, %v8497, 0.0
    %8572 = vadd.xlane.f32.xlu0 %v8571
    %v8573 = vpop.xlane.xlu0 %8572
    %v8574 = vsel %vm1782, %v8499, 0.0
    %8575 = vadd.xlane.f32.xlu0 %v8574
    %v8576 = vpop.xlane.xlu0 %8575
    %v8577 = vsel %vm1782, %v8501, 0.0
    %8578 = vadd.xlane.f32.xlu0 %v8577
    %v8579 = vpop.xlane.xlu0 %8578
    %v8580 = vsel %vm1782, %v8503, 0.0
    %8581 = vadd.xlane.f32.xlu0 %v8580
    %v8582 = vpop.xlane.xlu0 %8581
    %v8583 = vsel %vm1782, %v8505, 0.0
    %8584 = vadd.xlane.f32.xlu0 %v8583
    %v8585 = vpop.xlane.xlu0 %8584
    %v8586 = vsel %vm1782, %v8507, 0.0
    %8587 = vadd.xlane.f32.xlu0 %v8586
    %v8588 = vpop.xlane.xlu0 %8587
    %v8589 = vsel %vm1782, %v8509, 0.0
    %8590 = vadd.xlane.f32.xlu0 %v8589
    %v8591 = vpop.xlane.xlu0 %8590
    %v8592 = vsel %vm1782, %v8511, 0.0
    %8593 = vadd.xlane.f32.xlu0 %v8592
    %v8594 = vpop.xlane.xlu0 %8593
    %v8595 = vsel %vm1782, %v8513, 0.0
    %8596 = vadd.xlane.f32.xlu0 %v8595
    %v8597 = vpop.xlane.xlu0 %8596
    %v8598 = vsel %vm1782, %v8515, 0.0
    %8599 = vadd.xlane.f32.xlu0 %v8598
    %v8600 = vpop.xlane.xlu0 %8599
    %v8601 = vsel %vm1782, %v8517, 0.0
    %8602 = vadd.xlane.f32.xlu0 %v8601
    %v8603 = vpop.xlane.xlu0 %8602
    %v8604 = vsel %vm1782, %v8519, 0.0
    %8605 = vadd.xlane.f32.xlu0 %v8604
    %v8606 = vpop.xlane.xlu0 %8605
    %v8607 = vsel %vm1782, %v8521, 0.0
    %8608 = vadd.xlane.f32.xlu0 %v8607
    %v8609 = vpop.xlane.xlu0 %8608
    %v8610 = vsel %vm1782, %v8523, 0.0
    %8611 = vadd.xlane.f32.xlu0 %v8610
    %v8612 = vpop.xlane.xlu0 %8611
    %v8613 = vsel %vm1782, %v8525, 0.0
    %8614 = vadd.xlane.f32.xlu0 %v8613
    %v8615 = vpop.xlane.xlu0 %8614
    %v8616 = vsel %vm1782, %v8527, 0.0
    %8617 = vadd.xlane.f32.xlu0 %v8616
    %v8618 = vpop.xlane.xlu0 %8617
    %v8619 = vsel %vm1782, %v8529, 0.0
    %8620 = vadd.xlane.f32.xlu0 %v8619
    %v8621 = vpop.xlane.xlu0 %8620
    %v8622 = vsel %vm1782, %v8531, 0.0
    %8623 = vadd.xlane.f32.xlu0 %v8622
    %v8624 = vpop.xlane.xlu0 %8623
    %v8625 = vsel %vm1782, %v8533, 0.0
    %8626 = vadd.xlane.f32.xlu0 %v8625
    %v8627 = vpop.xlane.xlu0 %8626
    %v8628 = vsel %vm1782, %v8535, 0.0
    %8629 = vadd.xlane.f32.xlu0 %v8628
    %v8630 = vpop.xlane.xlu0 %8629
    %v8631 = vsel %vm1782, %v8537, 0.0
    %8632 = vadd.xlane.f32.xlu0 %v8631
    %v8633 = vpop.xlane.xlu0 %8632
    %v8634 = vrcp.pop %v8540
    %v8635 = vrcp.pop %v8543
    %v8636 = vrcp.pop %v8546
    %v8637 = vrcp.pop %v8549
    %v8638 = vrcp.pop %v8552
    %v8639 = vrcp.pop %v8555
    %v8640 = vrcp.pop %v8558
    %v8641 = vrcp.pop %v8561
    %v8642 = vrcp.pop %v8564
    %v8643 = vrcp.pop %v8567
    %v8644 = vrcp.pop %v8570
    %v8645 = vrcp.pop %v8573
    %v8646 = vrcp.pop %v8576
    %v8647 = vrcp.pop %v8579
    %v8648 = vrcp.pop %v8582
    %v8649 = vrcp.pop %v8585
    %v8650 = vrcp.pop %v8588
    %v8651 = vrcp.pop %v8591
    %v8652 = vrcp.pop %v8594
    %v8653 = vrcp.pop %v8597
    %v8654 = vrcp.pop %v8600
    %v8655 = vrcp.pop %v8603
    %v8656 = vrcp.pop %v8606
    %v8657 = vrcp.pop %v8609
    %v8658 = vrcp.pop %v8612
    %v8659 = vrcp.pop %v8615
    %v8660 = vrcp.pop %v8618
    %v8661 = vrcp.pop %v8621
    %v8662 = vrcp.pop %v8624
    %v8663 = vrcp.pop %v8627
    %v8664 = vrcp.pop %v8630
    %v8665 = vrcp.pop %v8633
    %v8666 = vmul.f32 %v8475, %v8634
    %v8667 = vmul.f32 %v8477, %v8635
    %v8668 = vmul.f32 %v8479, %v8636
    %v8669 = vmul.f32 %v8481, %v8637
    %v8670 = vmul.f32 %v8483, %v8638
    %v8671 = vmul.f32 %v8485, %v8639
    %v8672 = vmul.f32 %v8487, %v8640
    %v8673 = vmul.f32 %v8489, %v8641
    %v8674 = vmul.f32 %v8491, %v8642
    %v8675 = vmul.f32 %v8493, %v8643
    %v8676 = vmul.f32 %v8495, %v8644
    %v8677 = vmul.f32 %v8497, %v8645
    %v8678 = vmul.f32 %v8499, %v8646
    %v8679 = vmul.f32 %v8501, %v8647
    %v8680 = vmul.f32 %v8503, %v8648
    %v8681 = vmul.f32 %v8505, %v8649
    %v8682 = vmul.f32 %v8507, %v8650
    %v8683 = vmul.f32 %v8509, %v8651
    %v8684 = vmul.f32 %v8511, %v8652
    %v8685 = vmul.f32 %v8513, %v8653
    %v8686 = vmul.f32 %v8515, %v8654
    %v8687 = vmul.f32 %v8517, %v8655
    %v8688 = vmul.f32 %v8519, %v8656
    %v8689 = vmul.f32 %v8521, %v8657
    %v8690 = vmul.f32 %v8523, %v8658
    %v8691 = vmul.f32 %v8525, %v8659
    %v8692 = vmul.f32 %v8527, %v8660
    %v8693 = vmul.f32 %v8529, %v8661
    %v8694 = vmul.f32 %v8531, %v8662
    %v8695 = vmul.f32 %v8533, %v8663
    %v8696 = vmul.f32 %v8535, %v8664
    %v8697 = vmul.f32 %v8537, %v8665
    %v8698 = vpack.c.bf16 %v8667, %v8666
    %v8699 = vpack.c.bf16 %v8669, %v8668
    %v8700 = vpack.c.bf16 %v8671, %v8670
    %v8701 = vpack.c.bf16 %v8673, %v8672
    %v8702 = vpack.c.bf16 %v8675, %v8674
    %v8703 = vpack.c.bf16 %v8677, %v8676
    %v8704 = vpack.c.bf16 %v8679, %v8678
    %v8705 = vpack.c.bf16 %v8681, %v8680
    %v8706 = vpack.c.bf16 %v8683, %v8682
    %v8707 = vpack.c.bf16 %v8685, %v8684
    %v8708 = vpack.c.bf16 %v8687, %v8686
    %v8709 = vpack.c.bf16 %v8689, %v8688
    %v8710 = vpack.c.bf16 %v8691, %v8690
    %v8711 = vpack.c.bf16 %v8693, %v8692
    %v8712 = vpack.c.bf16 %v8695, %v8694
    %v8713 = vpack.c.bf16 %v8697, %v8696
    %8714 = vrot.lane.b32.xlu0 %v1013, 32
    %v8715 = vpop.permute.xlu0 %8714
    %v8718 = vsel %vm1782, %v8698, 0
    %8720 = vmatprep.subr.bf16.mxu0 0
    %8721 = vmatpush1.bf16.msra.mxu0 0
    %8722 = vmatprep.subr.bf16.mxu0 0
    %8723 = vmatpush1.bf16.msra.mxu0 0
    %8724 = vmatprep.subr.bf16.mxu0 0
    %8725 = vmatpush1.bf16.msra.mxu0 0
    %8726 = vmatprep.subr.bf16.mxu0 0
    %8727 = vmatpush1.bf16.msra.mxu0 0
    %8728 = vmatprep.subr.bf16.mxu0 0
    %8729 = vmatpush1.bf16.msra.mxu0 0
    %8730 = vmatprep.subr.bf16.mxu0 0
    %8731 = vmatpush1.bf16.msra.mxu0 0
    %8732 = vmatprep.subr.bf16.mxu0 0
    %8733 = vmatpush1.bf16.msra.mxu0 0
    %8734 = vmatprep.subr.bf16.mxu0 0
    %8735 = vmatpush1.bf16.msra.mxu0 %v8715
    %8736 = vmatprep.subr.bf16.mxu0 0
    %8737 = vmatpush2.bf16.msra.mxu0 0
    %8738 = vmatprep.subr.bf16.mxu0 0
    %8739 = vmatpush2.bf16.msra.mxu0 0
    %8740 = vmatprep.subr.bf16.mxu0 0
    %8741 = vmatpush2.bf16.msra.mxu0 0
    %8742 = vmatprep.subr.bf16.mxu0 0
    %8743 = vmatpush2.bf16.msra.mxu0 0
    %8744 = vmatprep.subr.bf16.mxu0 0
    %8745 = vmatpush2.bf16.msra.mxu0 0
    %8746 = vmatprep.subr.bf16.mxu0 0
    %8747 = vmatpush2.bf16.msra.mxu0 0
    %8748 = vmatprep.subr.bf16.mxu0 0
    %8749 = vmatpush2.bf16.msra.mxu0 0
    %8750 = vmatprep.subr.bf16.mxu0 0
    %8751 = vmatpush2.bf16.msra.mxu0 0
    %8752 = vmatprep.mubr.bf16.mxu0 0
    %8753 = vmatmul.mubr.bf16.gmra.mxu0 %v8718
    %v8754 = vpop.f32.mrf.mxu0
    %v8755 = vadd.f32 0.0, %v8754
    %v8756 = vpop.f32.mrf.mxu0
    %v8757 = vpop.f32.mrf.mxu0
    %v8758 = vadd.f32 0.0, %v8757
    %v8759 = vpop.f32.mrf.mxu0
    %8760 = vdwg.mxu0
    %8761 = vrot.lane.b32.xlu0 %v1014, 32
    %v8762 = vpop.permute.xlu0 %8761
    %v8765 = vsel %vm1782, %v8699, 0
    %8767 = vmatprep.subr.bf16.mxu0 0
    %8768 = vmatpush1.bf16.msra.mxu0 0
    %8769 = vmatprep.subr.bf16.mxu0 0
    %8770 = vmatpush1.bf16.msra.mxu0 0
    %8771 = vmatprep.subr.bf16.mxu0 0
    %8772 = vmatpush1.bf16.msra.mxu0 0
    %8773 = vmatprep.subr.bf16.mxu0 0
    %8774 = vmatpush1.bf16.msra.mxu0 0
    %8775 = vmatprep.subr.bf16.mxu0 0
    %8776 = vmatpush1.bf16.msra.mxu0 0
    %8777 = vmatprep.subr.bf16.mxu0 0
    %8778 = vmatpush1.bf16.msra.mxu0 0
    %8779 = vmatprep.subr.bf16.mxu0 0
    %8780 = vmatpush1.bf16.msra.mxu0 0
    %8781 = vmatprep.subr.bf16.mxu0 0
    %8782 = vmatpush1.bf16.msra.mxu0 %v8762
    %8783 = vmatprep.subr.bf16.mxu0 0
    %8784 = vmatpush2.bf16.msra.mxu0 0
    %8785 = vmatprep.subr.bf16.mxu0 0
    %8786 = vmatpush2.bf16.msra.mxu0 0
    %8787 = vmatprep.subr.bf16.mxu0 0
    %8788 = vmatpush2.bf16.msra.mxu0 0
    %8789 = vmatprep.subr.bf16.mxu0 0
    %8790 = vmatpush2.bf16.msra.mxu0 0
    %8791 = vmatprep.subr.bf16.mxu0 0
    %8792 = vmatpush2.bf16.msra.mxu0 0
    %8793 = vmatprep.subr.bf16.mxu0 0
    %8794 = vmatpush2.bf16.msra.mxu0 0
    %8795 = vmatprep.subr.bf16.mxu0 0
    %8796 = vmatpush2.bf16.msra.mxu0 0
    %8797 = vmatprep.subr.bf16.mxu0 0
    %8798 = vmatpush2.bf16.msra.mxu0 0
    %8799 = vmatprep.mubr.bf16.mxu0 0
    %8800 = vmatmul.mubr.bf16.gmra.mxu0 %v8765
    %v8801 = vpop.f32.mrf.mxu0
    %v8802 = vadd.f32 0.0, %v8801
    %v8803 = vpop.f32.mrf.mxu0
    %v8804 = vpop.f32.mrf.mxu0
    %v8805 = vadd.f32 0.0, %v8804
    %v8806 = vpop.f32.mrf.mxu0
    %8807 = vdwg.mxu0
    %8808 = vrot.lane.b32.xlu0 %v1015, 32
    %v8809 = vpop.permute.xlu0 %8808
    %v8812 = vsel %vm1782, %v8700, 0
    %8814 = vmatprep.subr.bf16.mxu0 0
    %8815 = vmatpush1.bf16.msra.mxu0 0
    %8816 = vmatprep.subr.bf16.mxu0 0
    %8817 = vmatpush1.bf16.msra.mxu0 0
    %8818 = vmatprep.subr.bf16.mxu0 0
    %8819 = vmatpush1.bf16.msra.mxu0 0
    %8820 = vmatprep.subr.bf16.mxu0 0
    %8821 = vmatpush1.bf16.msra.mxu0 0
    %8822 = vmatprep.subr.bf16.mxu0 0
    %8823 = vmatpush1.bf16.msra.mxu0 0
    %8824 = vmatprep.subr.bf16.mxu0 0
    %8825 = vmatpush1.bf16.msra.mxu0 0
    %8826 = vmatprep.subr.bf16.mxu0 0
    %8827 = vmatpush1.bf16.msra.mxu0 0
    %8828 = vmatprep.subr.bf16.mxu0 0
    %8829 = vmatpush1.bf16.msra.mxu0 %v8809
    %8830 = vmatprep.subr.bf16.mxu0 0
    %8831 = vmatpush2.bf16.msra.mxu0 0
    %8832 = vmatprep.subr.bf16.mxu0 0
    %8833 = vmatpush2.bf16.msra.mxu0 0
    %8834 = vmatprep.subr.bf16.mxu0 0
    %8835 = vmatpush2.bf16.msra.mxu0 0
    %8836 = vmatprep.subr.bf16.mxu0 0
    %8837 = vmatpush2.bf16.msra.mxu0 0
    %8838 = vmatprep.subr.bf16.mxu0 0
    %8839 = vmatpush2.bf16.msra.mxu0 0
    %8840 = vmatprep.subr.bf16.mxu0 0
    %8841 = vmatpush2.bf16.msra.mxu0 0
    %8842 = vmatprep.subr.bf16.mxu0 0
    %8843 = vmatpush2.bf16.msra.mxu0 0
    %8844 = vmatprep.subr.bf16.mxu0 0
    %8845 = vmatpush2.bf16.msra.mxu0 0
    %8846 = vmatprep.mubr.bf16.mxu0 0
    %8847 = vmatmul.mubr.bf16.gmra.mxu0 %v8812
    %v8848 = vpop.f32.mrf.mxu0
    %v8849 = vadd.f32 0.0, %v8848
    %v8850 = vpop.f32.mrf.mxu0
    %v8851 = vpop.f32.mrf.mxu0
    %v8852 = vadd.f32 0.0, %v8851
    %v8853 = vpop.f32.mrf.mxu0
    %8854 = vdwg.mxu0
    %8855 = vrot.lane.b32.xlu0 %v1016, 32
    %v8856 = vpop.permute.xlu0 %8855
    %v8859 = vsel %vm1782, %v8701, 0
    %8861 = vmatprep.subr.bf16.mxu0 0
    %8862 = vmatpush1.bf16.msra.mxu0 0
    %8863 = vmatprep.subr.bf16.mxu0 0
    %8864 = vmatpush1.bf16.msra.mxu0 0
    %8865 = vmatprep.subr.bf16.mxu0 0
    %8866 = vmatpush1.bf16.msra.mxu0 0
    %8867 = vmatprep.subr.bf16.mxu0 0
    %8868 = vmatpush1.bf16.msra.mxu0 0
    %8869 = vmatprep.subr.bf16.mxu0 0
    %8870 = vmatpush1.bf16.msra.mxu0 0
    %8871 = vmatprep.subr.bf16.mxu0 0
    %8872 = vmatpush1.bf16.msra.mxu0 0
    %8873 = vmatprep.subr.bf16.mxu0 0
    %8874 = vmatpush1.bf16.msra.mxu0 0
    %8875 = vmatprep.subr.bf16.mxu0 0
    %8876 = vmatpush1.bf16.msra.mxu0 %v8856
    %8877 = vmatprep.subr.bf16.mxu0 0
    %8878 = vmatpush2.bf16.msra.mxu0 0
    %8879 = vmatprep.subr.bf16.mxu0 0
    %8880 = vmatpush2.bf16.msra.mxu0 0
    %8881 = vmatprep.subr.bf16.mxu0 0
    %8882 = vmatpush2.bf16.msra.mxu0 0
    %8883 = vmatprep.subr.bf16.mxu0 0
    %8884 = vmatpush2.bf16.msra.mxu0 0
    %8885 = vmatprep.subr.bf16.mxu0 0
    %8886 = vmatpush2.bf16.msra.mxu0 0
    %8887 = vmatprep.subr.bf16.mxu0 0
    %8888 = vmatpush2.bf16.msra.mxu0 0
    %8889 = vmatprep.subr.bf16.mxu0 0
    %8890 = vmatpush2.bf16.msra.mxu0 0
    %8891 = vmatprep.subr.bf16.mxu0 0
    %8892 = vmatpush2.bf16.msra.mxu0 0
    %8893 = vmatprep.mubr.bf16.mxu0 0
    %8894 = vmatmul.mubr.bf16.gmra.mxu0 %v8859
    %v8895 = vpop.f32.mrf.mxu0
    %v8896 = vadd.f32 0.0, %v8895
    %v8897 = vpop.f32.mrf.mxu0
    %v8898 = vpop.f32.mrf.mxu0
    %v8899 = vadd.f32 0.0, %v8898
    %v8900 = vpop.f32.mrf.mxu0
    %8901 = vdwg.mxu0
    %8902 = vrot.lane.b32.xlu0 %v1017, 32
    %v8903 = vpop.permute.xlu0 %8902
    %v8906 = vsel %vm1782, %v8702, 0
    %8908 = vmatprep.subr.bf16.mxu0 0
    %8909 = vmatpush1.bf16.msra.mxu0 0
    %8910 = vmatprep.subr.bf16.mxu0 0
    %8911 = vmatpush1.bf16.msra.mxu0 0
    %8912 = vmatprep.subr.bf16.mxu0 0
    %8913 = vmatpush1.bf16.msra.mxu0 0
    %8914 = vmatprep.subr.bf16.mxu0 0
    %8915 = vmatpush1.bf16.msra.mxu0 0
    %8916 = vmatprep.subr.bf16.mxu0 0
    %8917 = vmatpush1.bf16.msra.mxu0 0
    %8918 = vmatprep.subr.bf16.mxu0 0
    %8919 = vmatpush1.bf16.msra.mxu0 0
    %8920 = vmatprep.subr.bf16.mxu0 0
    %8921 = vmatpush1.bf16.msra.mxu0 0
    %8922 = vmatprep.subr.bf16.mxu0 0
    %8923 = vmatpush1.bf16.msra.mxu0 %v8903
    %8924 = vmatprep.subr.bf16.mxu0 0
    %8925 = vmatpush2.bf16.msra.mxu0 0
    %8926 = vmatprep.subr.bf16.mxu0 0
    %8927 = vmatpush2.bf16.msra.mxu0 0
    %8928 = vmatprep.subr.bf16.mxu0 0
    %8929 = vmatpush2.bf16.msra.mxu0 0
    %8930 = vmatprep.subr.bf16.mxu0 0
    %8931 = vmatpush2.bf16.msra.mxu0 0
    %8932 = vmatprep.subr.bf16.mxu0 0
    %8933 = vmatpush2.bf16.msra.mxu0 0
    %8934 = vmatprep.subr.bf16.mxu0 0
    %8935 = vmatpush2.bf16.msra.mxu0 0
    %8936 = vmatprep.subr.bf16.mxu0 0
    %8937 = vmatpush2.bf16.msra.mxu0 0
    %8938 = vmatprep.subr.bf16.mxu0 0
    %8939 = vmatpush2.bf16.msra.mxu0 0
    %8940 = vmatprep.mubr.bf16.mxu0 0
    %8941 = vmatmul.mubr.bf16.gmra.mxu0 %v8906
    %v8942 = vpop.f32.mrf.mxu0
    %v8943 = vadd.f32 0.0, %v8942
    %v8944 = vpop.f32.mrf.mxu0
    %v8945 = vpop.f32.mrf.mxu0
    %v8946 = vadd.f32 0.0, %v8945
    %v8947 = vpop.f32.mrf.mxu0
    %8948 = vdwg.mxu0
    %8949 = vrot.lane.b32.xlu0 %v1018, 32
    %v8950 = vpop.permute.xlu0 %8949
    %v8953 = vsel %vm1782, %v8703, 0
    %8955 = vmatprep.subr.bf16.mxu0 0
    %8956 = vmatpush1.bf16.msra.mxu0 0
    %8957 = vmatprep.subr.bf16.mxu0 0
    %8958 = vmatpush1.bf16.msra.mxu0 0
    %8959 = vmatprep.subr.bf16.mxu0 0
    %8960 = vmatpush1.bf16.msra.mxu0 0
    %8961 = vmatprep.subr.bf16.mxu0 0
    %8962 = vmatpush1.bf16.msra.mxu0 0
    %8963 = vmatprep.subr.bf16.mxu0 0
    %8964 = vmatpush1.bf16.msra.mxu0 0
    %8965 = vmatprep.subr.bf16.mxu0 0
    %8966 = vmatpush1.bf16.msra.mxu0 0
    %8967 = vmatprep.subr.bf16.mxu0 0
    %8968 = vmatpush1.bf16.msra.mxu0 0
    %8969 = vmatprep.subr.bf16.mxu0 0
    %8970 = vmatpush1.bf16.msra.mxu0 %v8950
    %8971 = vmatprep.subr.bf16.mxu0 0
    %8972 = vmatpush2.bf16.msra.mxu0 0
    %8973 = vmatprep.subr.bf16.mxu0 0
    %8974 = vmatpush2.bf16.msra.mxu0 0
    %8975 = vmatprep.subr.bf16.mxu0 0
    %8976 = vmatpush2.bf16.msra.mxu0 0
    %8977 = vmatprep.subr.bf16.mxu0 0
    %8978 = vmatpush2.bf16.msra.mxu0 0
    %8979 = vmatprep.subr.bf16.mxu0 0
    %8980 = vmatpush2.bf16.msra.mxu0 0
    %8981 = vmatprep.subr.bf16.mxu0 0
    %8982 = vmatpush2.bf16.msra.mxu0 0
    %8983 = vmatprep.subr.bf16.mxu0 0
    %8984 = vmatpush2.bf16.msra.mxu0 0
    %8985 = vmatprep.subr.bf16.mxu0 0
    %8986 = vmatpush2.bf16.msra.mxu0 0
    %8987 = vmatprep.mubr.bf16.mxu0 0
    %8988 = vmatmul.mubr.bf16.gmra.mxu0 %v8953
    %v8989 = vpop.f32.mrf.mxu0
    %v8990 = vadd.f32 0.0, %v8989
    %v8991 = vpop.f32.mrf.mxu0
    %v8992 = vpop.f32.mrf.mxu0
    %v8993 = vadd.f32 0.0, %v8992
    %v8994 = vpop.f32.mrf.mxu0
    %8995 = vdwg.mxu0
    %8996 = vrot.lane.b32.xlu0 %v1019, 32
    %v8997 = vpop.permute.xlu0 %8996
    %v9000 = vsel %vm1782, %v8704, 0
    %9002 = vmatprep.subr.bf16.mxu0 0
    %9003 = vmatpush1.bf16.msra.mxu0 0
    %9004 = vmatprep.subr.bf16.mxu0 0
    %9005 = vmatpush1.bf16.msra.mxu0 0
    %9006 = vmatprep.subr.bf16.mxu0 0
    %9007 = vmatpush1.bf16.msra.mxu0 0
    %9008 = vmatprep.subr.bf16.mxu0 0
    %9009 = vmatpush1.bf16.msra.mxu0 0
    %9010 = vmatprep.subr.bf16.mxu0 0
    %9011 = vmatpush1.bf16.msra.mxu0 0
    %9012 = vmatprep.subr.bf16.mxu0 0
    %9013 = vmatpush1.bf16.msra.mxu0 0
    %9014 = vmatprep.subr.bf16.mxu0 0
    %9015 = vmatpush1.bf16.msra.mxu0 0
    %9016 = vmatprep.subr.bf16.mxu0 0
    %9017 = vmatpush1.bf16.msra.mxu0 %v8997
    %9018 = vmatprep.subr.bf16.mxu0 0
    %9019 = vmatpush2.bf16.msra.mxu0 0
    %9020 = vmatprep.subr.bf16.mxu0 0
    %9021 = vmatpush2.bf16.msra.mxu0 0
    %9022 = vmatprep.subr.bf16.mxu0 0
    %9023 = vmatpush2.bf16.msra.mxu0 0
    %9024 = vmatprep.subr.bf16.mxu0 0
    %9025 = vmatpush2.bf16.msra.mxu0 0
    %9026 = vmatprep.subr.bf16.mxu0 0
    %9027 = vmatpush2.bf16.msra.mxu0 0
    %9028 = vmatprep.subr.bf16.mxu0 0
    %9029 = vmatpush2.bf16.msra.mxu0 0
    %9030 = vmatprep.subr.bf16.mxu0 0
    %9031 = vmatpush2.bf16.msra.mxu0 0
    %9032 = vmatprep.subr.bf16.mxu0 0
    %9033 = vmatpush2.bf16.msra.mxu0 0
    %9034 = vmatprep.mubr.bf16.mxu0 0
    %9035 = vmatmul.mubr.bf16.gmra.mxu0 %v9000
    %v9036 = vpop.f32.mrf.mxu0
    %v9037 = vadd.f32 0.0, %v9036
    %v9038 = vpop.f32.mrf.mxu0
    %v9039 = vpop.f32.mrf.mxu0
    %v9040 = vadd.f32 0.0, %v9039
    %v9041 = vpop.f32.mrf.mxu0
    %9042 = vdwg.mxu0
    %9043 = vrot.lane.b32.xlu0 %v1020, 32
    %v9044 = vpop.permute.xlu0 %9043
    %v9047 = vsel %vm1782, %v8705, 0
    %9049 = vmatprep.subr.bf16.mxu0 0
    %9050 = vmatpush1.bf16.msra.mxu0 0
    %9051 = vmatprep.subr.bf16.mxu0 0
    %9052 = vmatpush1.bf16.msra.mxu0 0
    %9053 = vmatprep.subr.bf16.mxu0 0
    %9054 = vmatpush1.bf16.msra.mxu0 0
    %9055 = vmatprep.subr.bf16.mxu0 0
    %9056 = vmatpush1.bf16.msra.mxu0 0
    %9057 = vmatprep.subr.bf16.mxu0 0
    %9058 = vmatpush1.bf16.msra.mxu0 0
    %9059 = vmatprep.subr.bf16.mxu0 0
    %9060 = vmatpush1.bf16.msra.mxu0 0
    %9061 = vmatprep.subr.bf16.mxu0 0
    %9062 = vmatpush1.bf16.msra.mxu0 0
    %9063 = vmatprep.subr.bf16.mxu0 0
    %9064 = vmatpush1.bf16.msra.mxu0 %v9044
    %9065 = vmatprep.subr.bf16.mxu0 0
    %9066 = vmatpush2.bf16.msra.mxu0 0
    %9067 = vmatprep.subr.bf16.mxu0 0
    %9068 = vmatpush2.bf16.msra.mxu0 0
    %9069 = vmatprep.subr.bf16.mxu0 0
    %9070 = vmatpush2.bf16.msra.mxu0 0
    %9071 = vmatprep.subr.bf16.mxu0 0
    %9072 = vmatpush2.bf16.msra.mxu0 0
    %9073 = vmatprep.subr.bf16.mxu0 0
    %9074 = vmatpush2.bf16.msra.mxu0 0
    %9075 = vmatprep.subr.bf16.mxu0 0
    %9076 = vmatpush2.bf16.msra.mxu0 0
    %9077 = vmatprep.subr.bf16.mxu0 0
    %9078 = vmatpush2.bf16.msra.mxu0 0
    %9079 = vmatprep.subr.bf16.mxu0 0
    %9080 = vmatpush2.bf16.msra.mxu0 0
    %9081 = vmatprep.mubr.bf16.mxu0 0
    %9082 = vmatmul.mubr.bf16.gmra.mxu0 %v9047
    %v9083 = vpop.f32.mrf.mxu0
    %v9084 = vadd.f32 0.0, %v9083
    %v9085 = vpop.f32.mrf.mxu0
    %v9086 = vpop.f32.mrf.mxu0
    %v9087 = vadd.f32 0.0, %v9086
    %v9088 = vpop.f32.mrf.mxu0
    %9089 = vdwg.mxu0
    %9090 = vrot.lane.b32.xlu0 %v1021, 32
    %v9091 = vpop.permute.xlu0 %9090
    %v9094 = vsel %vm1782, %v8706, 0
    %9096 = vmatprep.subr.bf16.mxu0 0
    %9097 = vmatpush1.bf16.msra.mxu0 0
    %9098 = vmatprep.subr.bf16.mxu0 0
    %9099 = vmatpush1.bf16.msra.mxu0 0
    %9100 = vmatprep.subr.bf16.mxu0 0
    %9101 = vmatpush1.bf16.msra.mxu0 0
    %9102 = vmatprep.subr.bf16.mxu0 0
    %9103 = vmatpush1.bf16.msra.mxu0 0
    %9104 = vmatprep.subr.bf16.mxu0 0
    %9105 = vmatpush1.bf16.msra.mxu0 0
    %9106 = vmatprep.subr.bf16.mxu0 0
    %9107 = vmatpush1.bf16.msra.mxu0 0
    %9108 = vmatprep.subr.bf16.mxu0 0
    %9109 = vmatpush1.bf16.msra.mxu0 0
    %9110 = vmatprep.subr.bf16.mxu0 0
    %9111 = vmatpush1.bf16.msra.mxu0 %v9091
    %9112 = vmatprep.subr.bf16.mxu0 0
    %9113 = vmatpush2.bf16.msra.mxu0 0
    %9114 = vmatprep.subr.bf16.mxu0 0
    %9115 = vmatpush2.bf16.msra.mxu0 0
    %9116 = vmatprep.subr.bf16.mxu0 0
    %9117 = vmatpush2.bf16.msra.mxu0 0
    %9118 = vmatprep.subr.bf16.mxu0 0
    %9119 = vmatpush2.bf16.msra.mxu0 0
    %9120 = vmatprep.subr.bf16.mxu0 0
    %9121 = vmatpush2.bf16.msra.mxu0 0
    %9122 = vmatprep.subr.bf16.mxu0 0
    %9123 = vmatpush2.bf16.msra.mxu0 0
    %9124 = vmatprep.subr.bf16.mxu0 0
    %9125 = vmatpush2.bf16.msra.mxu0 0
    %9126 = vmatprep.subr.bf16.mxu0 0
    %9127 = vmatpush2.bf16.msra.mxu0 0
    %9128 = vmatprep.mubr.bf16.mxu0 0
    %9129 = vmatmul.mubr.bf16.gmra.mxu0 %v9094
    %v9130 = vpop.f32.mrf.mxu0
    %v9131 = vadd.f32 0.0, %v9130
    %v9132 = vpop.f32.mrf.mxu0
    %v9133 = vpop.f32.mrf.mxu0
    %v9134 = vadd.f32 0.0, %v9133
    %v9135 = vpop.f32.mrf.mxu0
    %9136 = vdwg.mxu0
    %9137 = vrot.lane.b32.xlu0 %v1022, 32
    %v9138 = vpop.permute.xlu0 %9137
    %v9141 = vsel %vm1782, %v8707, 0
    %9143 = vmatprep.subr.bf16.mxu0 0
    %9144 = vmatpush1.bf16.msra.mxu0 0
    %9145 = vmatprep.subr.bf16.mxu0 0
    %9146 = vmatpush1.bf16.msra.mxu0 0
    %9147 = vmatprep.subr.bf16.mxu0 0
    %9148 = vmatpush1.bf16.msra.mxu0 0
    %9149 = vmatprep.subr.bf16.mxu0 0
    %9150 = vmatpush1.bf16.msra.mxu0 0
    %9151 = vmatprep.subr.bf16.mxu0 0
    %9152 = vmatpush1.bf16.msra.mxu0 0
    %9153 = vmatprep.subr.bf16.mxu0 0
    %9154 = vmatpush1.bf16.msra.mxu0 0
    %9155 = vmatprep.subr.bf16.mxu0 0
    %9156 = vmatpush1.bf16.msra.mxu0 0
    %9157 = vmatprep.subr.bf16.mxu0 0
    %9158 = vmatpush1.bf16.msra.mxu0 %v9138
    %9159 = vmatprep.subr.bf16.mxu0 0
    %9160 = vmatpush2.bf16.msra.mxu0 0
    %9161 = vmatprep.subr.bf16.mxu0 0
    %9162 = vmatpush2.bf16.msra.mxu0 0
    %9163 = vmatprep.subr.bf16.mxu0 0
    %9164 = vmatpush2.bf16.msra.mxu0 0
    %9165 = vmatprep.subr.bf16.mxu0 0
    %9166 = vmatpush2.bf16.msra.mxu0 0
    %9167 = vmatprep.subr.bf16.mxu0 0
    %9168 = vmatpush2.bf16.msra.mxu0 0
    %9169 = vmatprep.subr.bf16.mxu0 0
    %9170 = vmatpush2.bf16.msra.mxu0 0
    %9171 = vmatprep.subr.bf16.mxu0 0
    %9172 = vmatpush2.bf16.msra.mxu0 0
    %9173 = vmatprep.subr.bf16.mxu0 0
    %9174 = vmatpush2.bf16.msra.mxu0 0
    %9175 = vmatprep.mubr.bf16.mxu0 0
    %9176 = vmatmul.mubr.bf16.gmra.mxu0 %v9141
    %v9177 = vpop.f32.mrf.mxu0
    %v9178 = vadd.f32 0.0, %v9177
    %v9179 = vpop.f32.mrf.mxu0
    %v9180 = vpop.f32.mrf.mxu0
    %v9181 = vadd.f32 0.0, %v9180
    %v9182 = vpop.f32.mrf.mxu0
    %9183 = vdwg.mxu0
    %9184 = vrot.lane.b32.xlu0 %v1023, 32
    %v9185 = vpop.permute.xlu0 %9184
    %v9188 = vsel %vm1782, %v8708, 0
    %9190 = vmatprep.subr.bf16.mxu0 0
    %9191 = vmatpush1.bf16.msra.mxu0 0
    %9192 = vmatprep.subr.bf16.mxu0 0
    %9193 = vmatpush1.bf16.msra.mxu0 0
    %9194 = vmatprep.subr.bf16.mxu0 0
    %9195 = vmatpush1.bf16.msra.mxu0 0
    %9196 = vmatprep.subr.bf16.mxu0 0
    %9197 = vmatpush1.bf16.msra.mxu0 0
    %9198 = vmatprep.subr.bf16.mxu0 0
    %9199 = vmatpush1.bf16.msra.mxu0 0
    %9200 = vmatprep.subr.bf16.mxu0 0
    %9201 = vmatpush1.bf16.msra.mxu0 0
    %9202 = vmatprep.subr.bf16.mxu0 0
    %9203 = vmatpush1.bf16.msra.mxu0 0
    %9204 = vmatprep.subr.bf16.mxu0 0
    %9205 = vmatpush1.bf16.msra.mxu0 %v9185
    %9206 = vmatprep.subr.bf16.mxu0 0
    %9207 = vmatpush2.bf16.msra.mxu0 0
    %9208 = vmatprep.subr.bf16.mxu0 0
    %9209 = vmatpush2.bf16.msra.mxu0 0
    %9210 = vmatprep.subr.bf16.mxu0 0
    %9211 = vmatpush2.bf16.msra.mxu0 0
    %9212 = vmatprep.subr.bf16.mxu0 0
    %9213 = vmatpush2.bf16.msra.mxu0 0
    %9214 = vmatprep.subr.bf16.mxu0 0
    %9215 = vmatpush2.bf16.msra.mxu0 0
    %9216 = vmatprep.subr.bf16.mxu0 0
    %9217 = vmatpush2.bf16.msra.mxu0 0
    %9218 = vmatprep.subr.bf16.mxu0 0
    %9219 = vmatpush2.bf16.msra.mxu0 0
    %9220 = vmatprep.subr.bf16.mxu0 0
    %9221 = vmatpush2.bf16.msra.mxu0 0
    %9222 = vmatprep.mubr.bf16.mxu0 0
    %9223 = vmatmul.mubr.bf16.gmra.mxu0 %v9188
    %v9224 = vpop.f32.mrf.mxu0
    %v9225 = vadd.f32 0.0, %v9224
    %v9226 = vpop.f32.mrf.mxu0
    %v9227 = vpop.f32.mrf.mxu0
    %v9228 = vadd.f32 0.0, %v9227
    %v9229 = vpop.f32.mrf.mxu0
    %9230 = vdwg.mxu0
    %9231 = vrot.lane.b32.xlu0 %v1024, 32
    %v9232 = vpop.permute.xlu0 %9231
    %v9235 = vsel %vm1782, %v8709, 0
    %9237 = vmatprep.subr.bf16.mxu0 0
    %9238 = vmatpush1.bf16.msra.mxu0 0
    %9239 = vmatprep.subr.bf16.mxu0 0
    %9240 = vmatpush1.bf16.msra.mxu0 0
    %9241 = vmatprep.subr.bf16.mxu0 0
    %9242 = vmatpush1.bf16.msra.mxu0 0
    %9243 = vmatprep.subr.bf16.mxu0 0
    %9244 = vmatpush1.bf16.msra.mxu0 0
    %9245 = vmatprep.subr.bf16.mxu0 0
    %9246 = vmatpush1.bf16.msra.mxu0 0
    %9247 = vmatprep.subr.bf16.mxu0 0
    %9248 = vmatpush1.bf16.msra.mxu0 0
    %9249 = vmatprep.subr.bf16.mxu0 0
    %9250 = vmatpush1.bf16.msra.mxu0 0
    %9251 = vmatprep.subr.bf16.mxu0 0
    %9252 = vmatpush1.bf16.msra.mxu0 %v9232
    %9253 = vmatprep.subr.bf16.mxu0 0
    %9254 = vmatpush2.bf16.msra.mxu0 0
    %9255 = vmatprep.subr.bf16.mxu0 0
    %9256 = vmatpush2.bf16.msra.mxu0 0
    %9257 = vmatprep.subr.bf16.mxu0 0
    %9258 = vmatpush2.bf16.msra.mxu0 0
    %9259 = vmatprep.subr.bf16.mxu0 0
    %9260 = vmatpush2.bf16.msra.mxu0 0
    %9261 = vmatprep.subr.bf16.mxu0 0
    %9262 = vmatpush2.bf16.msra.mxu0 0
    %9263 = vmatprep.subr.bf16.mxu0 0
    %9264 = vmatpush2.bf16.msra.mxu0 0
    %9265 = vmatprep.subr.bf16.mxu0 0
    %9266 = vmatpush2.bf16.msra.mxu0 0
    %9267 = vmatprep.subr.bf16.mxu0 0
    %9268 = vmatpush2.bf16.msra.mxu0 0
    %9269 = vmatprep.mubr.bf16.mxu0 0
    %9270 = vmatmul.mubr.bf16.gmra.mxu0 %v9235
    %v9271 = vpop.f32.mrf.mxu0
    %v9272 = vadd.f32 0.0, %v9271
    %v9273 = vpop.f32.mrf.mxu0
    %v9274 = vpop.f32.mrf.mxu0
    %v9275 = vadd.f32 0.0, %v9274
    %v9276 = vpop.f32.mrf.mxu0
    %9277 = vdwg.mxu0
    %9278 = vrot.lane.b32.xlu0 %v1025, 32
    %v9279 = vpop.permute.xlu0 %9278
    %v9282 = vsel %vm1782, %v8710, 0
    %9284 = vmatprep.subr.bf16.mxu0 0
    %9285 = vmatpush1.bf16.msra.mxu0 0
    %9286 = vmatprep.subr.bf16.mxu0 0
    %9287 = vmatpush1.bf16.msra.mxu0 0
    %9288 = vmatprep.subr.bf16.mxu0 0
    %9289 = vmatpush1.bf16.msra.mxu0 0
    %9290 = vmatprep.subr.bf16.mxu0 0
    %9291 = vmatpush1.bf16.msra.mxu0 0
    %9292 = vmatprep.subr.bf16.mxu0 0
    %9293 = vmatpush1.bf16.msra.mxu0 0
    %9294 = vmatprep.subr.bf16.mxu0 0
    %9295 = vmatpush1.bf16.msra.mxu0 0
    %9296 = vmatprep.subr.bf16.mxu0 0
    %9297 = vmatpush1.bf16.msra.mxu0 0
    %9298 = vmatprep.subr.bf16.mxu0 0
    %9299 = vmatpush1.bf16.msra.mxu0 %v9279
    %9300 = vmatprep.subr.bf16.mxu0 0
    %9301 = vmatpush2.bf16.msra.mxu0 0
    %9302 = vmatprep.subr.bf16.mxu0 0
    %9303 = vmatpush2.bf16.msra.mxu0 0
    %9304 = vmatprep.subr.bf16.mxu0 0
    %9305 = vmatpush2.bf16.msra.mxu0 0
    %9306 = vmatprep.subr.bf16.mxu0 0
    %9307 = vmatpush2.bf16.msra.mxu0 0
    %9308 = vmatprep.subr.bf16.mxu0 0
    %9309 = vmatpush2.bf16.msra.mxu0 0
    %9310 = vmatprep.subr.bf16.mxu0 0
    %9311 = vmatpush2.bf16.msra.mxu0 0
    %9312 = vmatprep.subr.bf16.mxu0 0
    %9313 = vmatpush2.bf16.msra.mxu0 0
    %9314 = vmatprep.subr.bf16.mxu0 0
    %9315 = vmatpush2.bf16.msra.mxu0 0
    %9316 = vmatprep.mubr.bf16.mxu0 0
    %9317 = vmatmul.mubr.bf16.gmra.mxu0 %v9282
    %v9318 = vpop.f32.mrf.mxu0
    %v9319 = vadd.f32 0.0, %v9318
    %v9320 = vpop.f32.mrf.mxu0
    %v9321 = vpop.f32.mrf.mxu0
    %v9322 = vadd.f32 0.0, %v9321
    %v9323 = vpop.f32.mrf.mxu0
    %9324 = vdwg.mxu0
    %9325 = vrot.lane.b32.xlu0 %v1026, 32
    %v9326 = vpop.permute.xlu0 %9325
    %v9329 = vsel %vm1782, %v8711, 0
    %9331 = vmatprep.subr.bf16.mxu0 0
    %9332 = vmatpush1.bf16.msra.mxu0 0
    %9333 = vmatprep.subr.bf16.mxu0 0
    %9334 = vmatpush1.bf16.msra.mxu0 0
    %9335 = vmatprep.subr.bf16.mxu0 0
    %9336 = vmatpush1.bf16.msra.mxu0 0
    %9337 = vmatprep.subr.bf16.mxu0 0
    %9338 = vmatpush1.bf16.msra.mxu0 0
    %9339 = vmatprep.subr.bf16.mxu0 0
    %9340 = vmatpush1.bf16.msra.mxu0 0
    %9341 = vmatprep.subr.bf16.mxu0 0
    %9342 = vmatpush1.bf16.msra.mxu0 0
    %9343 = vmatprep.subr.bf16.mxu0 0
    %9344 = vmatpush1.bf16.msra.mxu0 0
    %9345 = vmatprep.subr.bf16.mxu0 0
    %9346 = vmatpush1.bf16.msra.mxu0 %v9326
    %9347 = vmatprep.subr.bf16.mxu0 0
    %9348 = vmatpush2.bf16.msra.mxu0 0
    %9349 = vmatprep.subr.bf16.mxu0 0
    %9350 = vmatpush2.bf16.msra.mxu0 0
    %9351 = vmatprep.subr.bf16.mxu0 0
    %9352 = vmatpush2.bf16.msra.mxu0 0
    %9353 = vmatprep.subr.bf16.mxu0 0
    %9354 = vmatpush2.bf16.msra.mxu0 0
    %9355 = vmatprep.subr.bf16.mxu0 0
    %9356 = vmatpush2.bf16.msra.mxu0 0
    %9357 = vmatprep.subr.bf16.mxu0 0
    %9358 = vmatpush2.bf16.msra.mxu0 0
    %9359 = vmatprep.subr.bf16.mxu0 0
    %9360 = vmatpush2.bf16.msra.mxu0 0
    %9361 = vmatprep.subr.bf16.mxu0 0
    %9362 = vmatpush2.bf16.msra.mxu0 0
    %9363 = vmatprep.mubr.bf16.mxu0 0
    %9364 = vmatmul.mubr.bf16.gmra.mxu0 %v9329
    %v9365 = vpop.f32.mrf.mxu0
    %v9366 = vadd.f32 0.0, %v9365
    %v9367 = vpop.f32.mrf.mxu0
    %v9368 = vpop.f32.mrf.mxu0
    %v9369 = vadd.f32 0.0, %v9368
    %v9370 = vpop.f32.mrf.mxu0
    %9371 = vdwg.mxu0
    %9372 = vrot.lane.b32.xlu0 %v1027, 32
    %v9373 = vpop.permute.xlu0 %9372
    %v9376 = vsel %vm1782, %v8712, 0
    %9378 = vmatprep.subr.bf16.mxu0 0
    %9379 = vmatpush1.bf16.msra.mxu0 0
    %9380 = vmatprep.subr.bf16.mxu0 0
    %9381 = vmatpush1.bf16.msra.mxu0 0
    %9382 = vmatprep.subr.bf16.mxu0 0
    %9383 = vmatpush1.bf16.msra.mxu0 0
    %9384 = vmatprep.subr.bf16.mxu0 0
    %9385 = vmatpush1.bf16.msra.mxu0 0
    %9386 = vmatprep.subr.bf16.mxu0 0
    %9387 = vmatpush1.bf16.msra.mxu0 0
    %9388 = vmatprep.subr.bf16.mxu0 0
    %9389 = vmatpush1.bf16.msra.mxu0 0
    %9390 = vmatprep.subr.bf16.mxu0 0
    %9391 = vmatpush1.bf16.msra.mxu0 0
    %9392 = vmatprep.subr.bf16.mxu0 0
    %9393 = vmatpush1.bf16.msra.mxu0 %v9373
    %9394 = vmatprep.subr.bf16.mxu0 0
    %9395 = vmatpush2.bf16.msra.mxu0 0
    %9396 = vmatprep.subr.bf16.mxu0 0
    %9397 = vmatpush2.bf16.msra.mxu0 0
    %9398 = vmatprep.subr.bf16.mxu0 0
    %9399 = vmatpush2.bf16.msra.mxu0 0
    %9400 = vmatprep.subr.bf16.mxu0 0
    %9401 = vmatpush2.bf16.msra.mxu0 0
    %9402 = vmatprep.subr.bf16.mxu0 0
    %9403 = vmatpush2.bf16.msra.mxu0 0
    %9404 = vmatprep.subr.bf16.mxu0 0
    %9405 = vmatpush2.bf16.msra.mxu0 0
    %9406 = vmatprep.subr.bf16.mxu0 0
    %9407 = vmatpush2.bf16.msra.mxu0 0
    %9408 = vmatprep.subr.bf16.mxu0 0
    %9409 = vmatpush2.bf16.msra.mxu0 0
    %9410 = vmatprep.mubr.bf16.mxu0 0
    %9411 = vmatmul.mubr.bf16.gmra.mxu0 %v9376
    %v9412 = vpop.f32.mrf.mxu0
    %v9413 = vadd.f32 0.0, %v9412
    %v9414 = vpop.f32.mrf.mxu0
    %v9415 = vpop.f32.mrf.mxu0
    %v9416 = vadd.f32 0.0, %v9415
    %v9417 = vpop.f32.mrf.mxu0
    %9418 = vdwg.mxu0
    %9419 = vrot.lane.b32.xlu0 %v1028, 32
    %v9420 = vpop.permute.xlu0 %9419
    %v9423 = vsel %vm1782, %v8713, 0
    %9425 = vmatprep.subr.bf16.mxu0 0
    %9426 = vmatpush1.bf16.msra.mxu0 0
    %9427 = vmatprep.subr.bf16.mxu0 0
    %9428 = vmatpush1.bf16.msra.mxu0 0
    %9429 = vmatprep.subr.bf16.mxu0 0
    %9430 = vmatpush1.bf16.msra.mxu0 0
    %9431 = vmatprep.subr.bf16.mxu0 0
    %9432 = vmatpush1.bf16.msra.mxu0 0
    %9433 = vmatprep.subr.bf16.mxu0 0
    %9434 = vmatpush1.bf16.msra.mxu0 0
    %9435 = vmatprep.subr.bf16.mxu0 0
    %9436 = vmatpush1.bf16.msra.mxu0 0
    %9437 = vmatprep.subr.bf16.mxu0 0
    %9438 = vmatpush1.bf16.msra.mxu0 0
    %9439 = vmatprep.subr.bf16.mxu0 0
    %9440 = vmatpush1.bf16.msra.mxu0 %v9420
    %9441 = vmatprep.subr.bf16.mxu0 0
    %9442 = vmatpush2.bf16.msra.mxu0 0
    %9443 = vmatprep.subr.bf16.mxu0 0
    %9444 = vmatpush2.bf16.msra.mxu0 0
    %9445 = vmatprep.subr.bf16.mxu0 0
    %9446 = vmatpush2.bf16.msra.mxu0 0
    %9447 = vmatprep.subr.bf16.mxu0 0
    %9448 = vmatpush2.bf16.msra.mxu0 0
    %9449 = vmatprep.subr.bf16.mxu0 0
    %9450 = vmatpush2.bf16.msra.mxu0 0
    %9451 = vmatprep.subr.bf16.mxu0 0
    %9452 = vmatpush2.bf16.msra.mxu0 0
    %9453 = vmatprep.subr.bf16.mxu0 0
    %9454 = vmatpush2.bf16.msra.mxu0 0
    %9455 = vmatprep.subr.bf16.mxu0 0
    %9456 = vmatpush2.bf16.msra.mxu0 0
    %9457 = vmatprep.mubr.bf16.mxu0 0
    %9458 = vmatmul.mubr.bf16.gmra.mxu0 %v9423
    %v9459 = vpop.f32.mrf.mxu0
    %v9460 = vadd.f32 0.0, %v9459
    %v9461 = vpop.f32.mrf.mxu0
    %v9462 = vpop.f32.mrf.mxu0
    %v9463 = vadd.f32 0.0, %v9462
    %v9464 = vpop.f32.mrf.mxu0
    %9465 = vdwg.mxu0
    %v9466 = vpack.c.bf16 %v8758, %v8755
    %v9467 = vpack.c.bf16 %v8805, %v8802
    %v9468 = vpack.c.bf16 %v8852, %v8849
    %v9469 = vpack.c.bf16 %v8899, %v8896
    %v9470 = vpack.c.bf16 %v8946, %v8943
    %v9471 = vpack.c.bf16 %v8993, %v8990
    %v9472 = vpack.c.bf16 %v9040, %v9037
    %v9473 = vpack.c.bf16 %v9087, %v9084
    %v9474 = vpack.c.bf16 %v9134, %v9131
    %v9475 = vpack.c.bf16 %v9181, %v9178
    %v9476 = vpack.c.bf16 %v9228, %v9225
    %v9477 = vpack.c.bf16 %v9275, %v9272
    %v9478 = vpack.c.bf16 %v9322, %v9319
    %v9479 = vpack.c.bf16 %v9369, %v9366
    %v9480 = vpack.c.bf16 %v9416, %v9413
    %v9481 = vpack.c.bf16 %v9463, %v9460
    %v9482 = vld [vmem:[#allocation11 + $0x30] sm:$0xf]
    %v9483 = vld [vmem:[#allocation11 + $0x34] sm:$0xf]
    %v9484 = vld [vmem:[#allocation11 + $0x38] sm:$0xf]
    %v9485 = vld [vmem:[#allocation11 + $0x3c] sm:$0xf]
    %v9490 = vunpack.c.l.b16 %v9482
    %v9491 = vunpack.c.l.b16 %v9483
    %v9492 = vunpack.c.l.b16 %v9484
    %v9493 = vunpack.c.l.b16 %v9485
    %v9494 = vpack.c.b16 %v9491, %v9490
    %v9495 = vpack.c.b16 %v9493, %v9492
    %v9499 = vsel %vm1029, %v9466, 0
    %v9502 = vsel %vm1029, %v9467, 0
    %v9505 = vsel %vm1029, %v9468, 0
    %v9508 = vsel %vm1029, %v9469, 0
    %v9511 = vsel %vm1029, %v9470, 0
    %v9514 = vsel %vm1029, %v9471, 0
    %v9517 = vsel %vm1029, %v9472, 0
    %v9520 = vsel %vm1029, %v9473, 0
    %v9523 = vsel %vm1029, %v9474, 0
    %v9526 = vsel %vm1029, %v9475, 0
    %v9529 = vsel %vm1029, %v9476, 0
    %v9532 = vsel %vm1029, %v9477, 0
    %v9535 = vsel %vm1029, %v9478, 0
    %v9538 = vsel %vm1029, %v9479, 0
    %v9541 = vsel %vm1029, %v9480, 0
    %v9544 = vsel %vm1029, %v9481, 0
    %9546 = vmatprep.subr.bf16.mxu0 0
    %9547 = vmatpush1.bf16.msra.mxu0 0
    %9548 = vmatprep.subr.bf16.mxu0 0
    %9549 = vmatpush1.bf16.msra.mxu0 0
    %9550 = vmatprep.subr.bf16.mxu0 0
    %9551 = vmatpush1.bf16.msra.mxu0 0
    %9552 = vmatprep.subr.bf16.mxu0 0
    %9553 = vmatpush1.bf16.msra.mxu0 0
    %9554 = vmatprep.subr.bf16.mxu0 0
    %9555 = vmatpush1.bf16.msra.mxu0 0
    %9556 = vmatprep.subr.bf16.mxu0 0
    %9557 = vmatpush1.bf16.msra.mxu0 0
    %9558 = vmatprep.subr.bf16.mxu0 0
    %9559 = vmatpush1.bf16.msra.mxu0 %v9495
    %9560 = vmatprep.subr.bf16.mxu0 0
    %9561 = vmatpush1.bf16.msra.mxu0 %v9494
    %9562 = vmatprep.subr.bf16.mxu0 0
    %9563 = vmatpush2.bf16.msra.mxu0 0
    %9564 = vmatprep.subr.bf16.mxu0 0
    %9565 = vmatpush2.bf16.msra.mxu0 0
    %9566 = vmatprep.subr.bf16.mxu0 0
    %9567 = vmatpush2.bf16.msra.mxu0 0
    %9568 = vmatprep.subr.bf16.mxu0 0
    %9569 = vmatpush2.bf16.msra.mxu0 0
    %9570 = vmatprep.subr.bf16.mxu0 0
    %9571 = vmatpush2.bf16.msra.mxu0 0
    %9572 = vmatprep.subr.bf16.mxu0 0
    %9573 = vmatpush2.bf16.msra.mxu0 0
    %9574 = vmatprep.subr.bf16.mxu0 0
    %9575 = vmatpush2.bf16.msra.mxu0 0
    %9576 = vmatprep.subr.bf16.mxu0 0
    %9577 = vmatpush2.bf16.msra.mxu0 0
    %9578 = vmatprep.mubr.bf16.mxu0 0
    %9579 = vmatmul.mubr.bf16.gmra.mxu0 %v9499
    %v9580 = vpop.f32.mrf.mxu0
    %v9581 = vadd.f32 0.0, %v9580
    %v9582 = vpop.f32.mrf.mxu0
    %v9583 = vpop.f32.mrf.mxu0
    %v9584 = vadd.f32 0.0, %v9583
    %v9585 = vpop.f32.mrf.mxu0
    %9586 = vmatprep.mubr.bf16.mxu0 0
    %9587 = vmatmul.mubr.bf16.gmra.mxu0 %v9502
    %v9588 = vpop.f32.mrf.mxu0
    %v9589 = vadd.f32 0.0, %v9588
    %v9590 = vpop.f32.mrf.mxu0
    %v9591 = vpop.f32.mrf.mxu0
    %v9592 = vadd.f32 0.0, %v9591
    %v9593 = vpop.f32.mrf.mxu0
    %9594 = vmatprep.mubr.bf16.mxu0 0
    %9595 = vmatmul.mubr.bf16.gmra.mxu0 %v9505
    %v9596 = vpop.f32.mrf.mxu0
    %v9597 = vadd.f32 0.0, %v9596
    %v9598 = vpop.f32.mrf.mxu0
    %v9599 = vpop.f32.mrf.mxu0
    %v9600 = vadd.f32 0.0, %v9599
    %v9601 = vpop.f32.mrf.mxu0
    %9602 = vmatprep.mubr.bf16.mxu0 0
    %9603 = vmatmul.mubr.bf16.gmra.mxu0 %v9508
    %v9604 = vpop.f32.mrf.mxu0
    %v9605 = vadd.f32 0.0, %v9604
    %v9606 = vpop.f32.mrf.mxu0
    %v9607 = vpop.f32.mrf.mxu0
    %v9608 = vadd.f32 0.0, %v9607
    %v9609 = vpop.f32.mrf.mxu0
    %9610 = vmatprep.mubr.bf16.mxu0 0
    %9611 = vmatmul.mubr.bf16.gmra.mxu0 %v9511
    %v9612 = vpop.f32.mrf.mxu0
    %v9613 = vadd.f32 0.0, %v9612
    %v9614 = vpop.f32.mrf.mxu0
    %v9615 = vpop.f32.mrf.mxu0
    %v9616 = vadd.f32 0.0, %v9615
    %v9617 = vpop.f32.mrf.mxu0
    %9618 = vmatprep.mubr.bf16.mxu0 0
    %9619 = vmatmul.mubr.bf16.gmra.mxu0 %v9514
    %v9620 = vpop.f32.mrf.mxu0
    %v9621 = vadd.f32 0.0, %v9620
    %v9622 = vpop.f32.mrf.mxu0
    %v9623 = vpop.f32.mrf.mxu0
    %v9624 = vadd.f32 0.0, %v9623
    %v9625 = vpop.f32.mrf.mxu0
    %9626 = vmatprep.mubr.bf16.mxu0 0
    %9627 = vmatmul.mubr.bf16.gmra.mxu0 %v9517
    %v9628 = vpop.f32.mrf.mxu0
    %v9629 = vadd.f32 0.0, %v9628
    %v9630 = vpop.f32.mrf.mxu0
    %v9631 = vpop.f32.mrf.mxu0
    %v9632 = vadd.f32 0.0, %v9631
    %v9633 = vpop.f32.mrf.mxu0
    %9634 = vmatprep.mubr.bf16.mxu0 0
    %9635 = vmatmul.mubr.bf16.gmra.mxu0 %v9520
    %v9636 = vpop.f32.mrf.mxu0
    %v9637 = vadd.f32 0.0, %v9636
    %v9638 = vpop.f32.mrf.mxu0
    %v9639 = vpop.f32.mrf.mxu0
    %v9640 = vadd.f32 0.0, %v9639
    %v9641 = vpop.f32.mrf.mxu0
    %9642 = vmatprep.mubr.bf16.mxu0 0
    %9643 = vmatmul.mubr.bf16.gmra.mxu0 %v9523
    %v9644 = vpop.f32.mrf.mxu0
    %v9645 = vadd.f32 0.0, %v9644
    %v9646 = vpop.f32.mrf.mxu0
    %v9647 = vpop.f32.mrf.mxu0
    %v9648 = vadd.f32 0.0, %v9647
    %v9649 = vpop.f32.mrf.mxu0
    %9650 = vmatprep.mubr.bf16.mxu0 0
    %9651 = vmatmul.mubr.bf16.gmra.mxu0 %v9526
    %v9652 = vpop.f32.mrf.mxu0
    %v9653 = vadd.f32 0.0, %v9652
    %v9654 = vpop.f32.mrf.mxu0
    %v9655 = vpop.f32.mrf.mxu0
    %v9656 = vadd.f32 0.0, %v9655
    %v9657 = vpop.f32.mrf.mxu0
    %9658 = vmatprep.mubr.bf16.mxu0 0
    %9659 = vmatmul.mubr.bf16.gmra.mxu0 %v9529
    %v9660 = vpop.f32.mrf.mxu0
    %v9661 = vadd.f32 0.0, %v9660
    %v9662 = vpop.f32.mrf.mxu0
    %v9663 = vpop.f32.mrf.mxu0
    %v9664 = vadd.f32 0.0, %v9663
    %v9665 = vpop.f32.mrf.mxu0
    %9666 = vmatprep.mubr.bf16.mxu0 0
    %9667 = vmatmul.mubr.bf16.gmra.mxu0 %v9532
    %v9668 = vpop.f32.mrf.mxu0
    %v9669 = vadd.f32 0.0, %v9668
    %v9670 = vpop.f32.mrf.mxu0
    %v9671 = vpop.f32.mrf.mxu0
    %v9672 = vadd.f32 0.0, %v9671
    %v9673 = vpop.f32.mrf.mxu0
    %9674 = vmatprep.mubr.bf16.mxu0 0
    %9675 = vmatmul.mubr.bf16.gmra.mxu0 %v9535
    %v9676 = vpop.f32.mrf.mxu0
    %v9677 = vadd.f32 0.0, %v9676
    %v9678 = vpop.f32.mrf.mxu0
    %v9679 = vpop.f32.mrf.mxu0
    %v9680 = vadd.f32 0.0, %v9679
    %v9681 = vpop.f32.mrf.mxu0
    %9682 = vmatprep.mubr.bf16.mxu0 0
    %9683 = vmatmul.mubr.bf16.gmra.mxu0 %v9538
    %v9684 = vpop.f32.mrf.mxu0
    %v9685 = vadd.f32 0.0, %v9684
    %v9686 = vpop.f32.mrf.mxu0
    %v9687 = vpop.f32.mrf.mxu0
    %v9688 = vadd.f32 0.0, %v9687
    %v9689 = vpop.f32.mrf.mxu0
    %9690 = vmatprep.mubr.bf16.mxu0 0
    %9691 = vmatmul.mubr.bf16.gmra.mxu0 %v9541
    %v9692 = vpop.f32.mrf.mxu0
    %v9693 = vadd.f32 0.0, %v9692
    %v9694 = vpop.f32.mrf.mxu0
    %v9695 = vpop.f32.mrf.mxu0
    %v9696 = vadd.f32 0.0, %v9695
    %v9697 = vpop.f32.mrf.mxu0
    %9698 = vmatprep.mubr.bf16.mxu0 0
    %9699 = vmatmul.mubr.bf16.gmra.mxu0 %v9544
    %v9700 = vpop.f32.mrf.mxu0
    %v9701 = vadd.f32 0.0, %v9700
    %v9702 = vpop.f32.mrf.mxu0
    %v9703 = vpop.f32.mrf.mxu0
    %v9704 = vadd.f32 0.0, %v9703
    %v9705 = vpop.f32.mrf.mxu0
    %9706 = vdwg.mxu0
    %v9707 = vadd.f32 %v7498, %v9581
    %v9708 = vadd.f32 %v7499, %v9584
    %v9709 = vadd.f32 %v7500, %v9589
    %v9710 = vadd.f32 %v7501, %v9592
    %v9711 = vadd.f32 %v7502, %v9597
    %v9712 = vadd.f32 %v7503, %v9600
    %v9713 = vadd.f32 %v7504, %v9605
    %v9714 = vadd.f32 %v7505, %v9608
    %v9715 = vadd.f32 %v7506, %v9613
    %v9716 = vadd.f32 %v7507, %v9616
    %v9717 = vadd.f32 %v7508, %v9621
    %v9718 = vadd.f32 %v7509, %v9624
    %v9719 = vadd.f32 %v7510, %v9629
    %v9720 = vadd.f32 %v7511, %v9632
    %v9721 = vadd.f32 %v7512, %v9637
    %v9722 = vadd.f32 %v7513, %v9640
    %v9723 = vadd.f32 %v7514, %v9645
    %v9724 = vadd.f32 %v7515, %v9648
    %v9725 = vadd.f32 %v7516, %v9653
    %v9726 = vadd.f32 %v7517, %v9656
    %v9727 = vadd.f32 %v7518, %v9661
    %v9728 = vadd.f32 %v7519, %v9664
    %v9729 = vadd.f32 %v7520, %v9669
    %v9730 = vadd.f32 %v7521, %v9672
    %v9731 = vadd.f32 %v7522, %v9677
    %v9732 = vadd.f32 %v7523, %v9680
    %v9733 = vadd.f32 %v7524, %v9685
    %v9734 = vadd.f32 %v7525, %v9688
    %v9735 = vadd.f32 %v7526, %v9693
    %v9736 = vadd.f32 %v7527, %v9696
    %v9737 = vadd.f32 %v7528, %v9701
    %v9738 = vadd.f32 %v7529, %v9704
    %v9739 = vadd.f32 %v166, %v9707
    %v9740 = vadd.f32 %v167, %v9708
    %v9741 = vadd.f32 %v168, %v9709
    %v9742 = vadd.f32 %v169, %v9710
    %v9743 = vadd.f32 %v170, %v9711
    %v9744 = vadd.f32 %v171, %v9712
    %v9745 = vadd.f32 %v172, %v9713
    %v9746 = vadd.f32 %v173, %v9714
    %v9747 = vadd.f32 %v174, %v9715
    %v9748 = vadd.f32 %v175, %v9716
    %v9749 = vadd.f32 %v176, %v9717
    %v9750 = vadd.f32 %v177, %v9718
    %v9751 = vadd.f32 %v178, %v9719
    %v9752 = vadd.f32 %v179, %v9720
    %v9753 = vadd.f32 %v180, %v9721
    %v9754 = vadd.f32 %v181, %v9722
    %v9755 = vadd.f32 %v182, %v9723
    %v9756 = vadd.f32 %v183, %v9724
    %v9757 = vadd.f32 %v184, %v9725
    %v9758 = vadd.f32 %v185, %v9726
    %v9759 = vadd.f32 %v186, %v9727
    %v9760 = vadd.f32 %v187, %v9728
    %v9761 = vadd.f32 %v188, %v9729
    %v9762 = vadd.f32 %v189, %v9730
    %v9763 = vadd.f32 %v190, %v9731
    %v9764 = vadd.f32 %v191, %v9732
    %v9765 = vadd.f32 %v192, %v9733
    %v9766 = vadd.f32 %v193, %v9734
    %v9767 = vadd.f32 %v194, %v9735
    %v9768 = vadd.f32 %v195, %v9736
    %v9769 = vadd.f32 %v196, %v9737
    %v9770 = vadd.f32 %v197, %v9738
    %v9771 = vlaneseq
    %v9772 = vshrl.u32 %v9771, 7
    %v9773 = vsub.s32 0, %v9772
    %v9774 = vrot.slane %v160, %v9773
    %v9775 = vadd.f32 %v9739, %v9774
    %v9776 = vadd.f32 %v9740, %v9774
    %v9777 = vadd.f32 %v9741, %v9774
    %v9778 = vadd.f32 %v9742, %v9774
    %v9779 = vadd.f32 %v9743, %v9774
    %v9780 = vadd.f32 %v9744, %v9774
    %v9781 = vadd.f32 %v9745, %v9774
    %v9782 = vadd.f32 %v9746, %v9774
    %v9783 = vadd.f32 %v9747, %v9774
    %v9784 = vadd.f32 %v9748, %v9774
    %v9785 = vadd.f32 %v9749, %v9774
    %v9786 = vadd.f32 %v9750, %v9774
    %v9787 = vadd.f32 %v9751, %v9774
    %v9788 = vadd.f32 %v9752, %v9774
    %v9789 = vadd.f32 %v9753, %v9774
    %v9790 = vadd.f32 %v9754, %v9774
    %v9791 = vadd.f32 %v9755, %v9774
    %v9792 = vadd.f32 %v9756, %v9774
    %v9793 = vadd.f32 %v9757, %v9774
    %v9794 = vadd.f32 %v9758, %v9774
    %v9795 = vadd.f32 %v9759, %v9774
    %v9796 = vadd.f32 %v9760, %v9774
    %v9797 = vadd.f32 %v9761, %v9774
    %v9798 = vadd.f32 %v9762, %v9774
    %v9799 = vadd.f32 %v9763, %v9774
    %v9800 = vadd.f32 %v9764, %v9774
    %v9801 = vadd.f32 %v9765, %v9774
    %v9802 = vadd.f32 %v9766, %v9774
    %v9803 = vadd.f32 %v9767, %v9774
    %v9804 = vadd.f32 %v9768, %v9774
    %v9805 = vadd.f32 %v9769, %v9774
    %v9806 = vadd.f32 %v9770, %v9774
    %9807 = vadd.xlane.f32.xlu0 %v9775
    %v9808 = vpop.xlane.xlu0 %9807
    %9809 = vadd.xlane.f32.xlu0 %v9776
    %v9810 = vpop.xlane.xlu0 %9809
    %9811 = vadd.xlane.f32.xlu0 %v9777
    %v9812 = vpop.xlane.xlu0 %9811
    %9813 = vadd.xlane.f32.xlu0 %v9778
    %v9814 = vpop.xlane.xlu0 %9813
    %9815 = vadd.xlane.f32.xlu0 %v9779
    %v9816 = vpop.xlane.xlu0 %9815
    %9817 = vadd.xlane.f32.xlu0 %v9780
    %v9818 = vpop.xlane.xlu0 %9817
    %9819 = vadd.xlane.f32.xlu0 %v9781
    %v9820 = vpop.xlane.xlu0 %9819
    %9821 = vadd.xlane.f32.xlu0 %v9782
    %v9822 = vpop.xlane.xlu0 %9821
    %9823 = vadd.xlane.f32.xlu0 %v9783
    %v9824 = vpop.xlane.xlu0 %9823
    %9825 = vadd.xlane.f32.xlu0 %v9784
    %v9826 = vpop.xlane.xlu0 %9825
    %9827 = vadd.xlane.f32.xlu0 %v9785
    %v9828 = vpop.xlane.xlu0 %9827
    %9829 = vadd.xlane.f32.xlu0 %v9786
    %v9830 = vpop.xlane.xlu0 %9829
    %9831 = vadd.xlane.f32.xlu0 %v9787
    %v9832 = vpop.xlane.xlu0 %9831
    %9833 = vadd.xlane.f32.xlu0 %v9788
    %v9834 = vpop.xlane.xlu0 %9833
    %9835 = vadd.xlane.f32.xlu0 %v9789
    %v9836 = vpop.xlane.xlu0 %9835
    %9837 = vadd.xlane.f32.xlu0 %v9790
    %v9838 = vpop.xlane.xlu0 %9837
    %9839 = vadd.xlane.f32.xlu0 %v9791
    %v9840 = vpop.xlane.xlu0 %9839
    %9841 = vadd.xlane.f32.xlu0 %v9792
    %v9842 = vpop.xlane.xlu0 %9841
    %9843 = vadd.xlane.f32.xlu0 %v9793
    %v9844 = vpop.xlane.xlu0 %9843
    %9845 = vadd.xlane.f32.xlu0 %v9794
    %v9846 = vpop.xlane.xlu0 %9845
    %9847 = vadd.xlane.f32.xlu0 %v9795
    %v9848 = vpop.xlane.xlu0 %9847
    %9849 = vadd.xlane.f32.xlu0 %v9796
    %v9850 = vpop.xlane.xlu0 %9849
    %9851 = vadd.xlane.f32.xlu0 %v9797
    %v9852 = vpop.xlane.xlu0 %9851
    %9853 = vadd.xlane.f32.xlu0 %v9798
    %v9854 = vpop.xlane.xlu0 %9853
    %9855 = vadd.xlane.f32.xlu0 %v9799
    %v9856 = vpop.xlane.xlu0 %9855
    %9857 = vadd.xlane.f32.xlu0 %v9800
    %v9858 = vpop.xlane.xlu0 %9857
    %9859 = vadd.xlane.f32.xlu0 %v9801
    %v9860 = vpop.xlane.xlu0 %9859
    %9861 = vadd.xlane.f32.xlu0 %v9802
    %v9862 = vpop.xlane.xlu0 %9861
    %9863 = vadd.xlane.f32.xlu0 %v9803
    %v9864 = vpop.xlane.xlu0 %9863
    %9865 = vadd.xlane.f32.xlu0 %v9804
    %v9866 = vpop.xlane.xlu0 %9865
    %9867 = vadd.xlane.f32.xlu0 %v9805
    %v9868 = vpop.xlane.xlu0 %9867
    %9869 = vadd.xlane.f32.xlu0 %v9806
    %v9870 = vpop.xlane.xlu0 %9869
    %v9871 = vrcp.pop 128.0
    %v9872 = vmul.f32 %v9808, %v9871
    %v9873 = vmul.f32 %v9810, %v9871
    %v9874 = vmul.f32 %v9812, %v9871
    %v9875 = vmul.f32 %v9814, %v9871
    %v9876 = vmul.f32 %v9816, %v9871
    %v9877 = vmul.f32 %v9818, %v9871
    %v9878 = vmul.f32 %v9820, %v9871
    %v9879 = vmul.f32 %v9822, %v9871
    %v9880 = vmul.f32 %v9824, %v9871
    %v9881 = vmul.f32 %v9826, %v9871
    %v9882 = vmul.f32 %v9828, %v9871
    %v9883 = vmul.f32 %v9830, %v9871
    %v9884 = vmul.f32 %v9832, %v9871
    %v9885 = vmul.f32 %v9834, %v9871
    %v9886 = vmul.f32 %v9836, %v9871
    %v9887 = vmul.f32 %v9838, %v9871
    %v9888 = vmul.f32 %v9840, %v9871
    %v9889 = vmul.f32 %v9842, %v9871
    %v9890 = vmul.f32 %v9844, %v9871
    %v9891 = vmul.f32 %v9846, %v9871
    %v9892 = vmul.f32 %v9848, %v9871
    %v9893 = vmul.f32 %v9850, %v9871
    %v9894 = vmul.f32 %v9852, %v9871
    %v9895 = vmul.f32 %v9854, %v9871
    %v9896 = vmul.f32 %v9856, %v9871
    %v9897 = vmul.f32 %v9858, %v9871
    %v9898 = vmul.f32 %v9860, %v9871
    %v9899 = vmul.f32 %v9862, %v9871
    %v9900 = vmul.f32 %v9864, %v9871
    %v9901 = vmul.f32 %v9866, %v9871
    %v9902 = vmul.f32 %v9868, %v9871
    %v9903 = vmul.f32 %v9870, %v9871
    %v9904 = vsub.f32 %v9775, %v9872
    %v9905 = vsub.f32 %v9776, %v9873
    %v9906 = vsub.f32 %v9777, %v9874
    %v9907 = vsub.f32 %v9778, %v9875
    %v9908 = vsub.f32 %v9779, %v9876
    %v9909 = vsub.f32 %v9780, %v9877
    %v9910 = vsub.f32 %v9781, %v9878
    %v9911 = vsub.f32 %v9782, %v9879
    %v9912 = vsub.f32 %v9783, %v9880
    %v9913 = vsub.f32 %v9784, %v9881
    %v9914 = vsub.f32 %v9785, %v9882
    %v9915 = vsub.f32 %v9786, %v9883
    %v9916 = vsub.f32 %v9787, %v9884
    %v9917 = vsub.f32 %v9788, %v9885
    %v9918 = vsub.f32 %v9789, %v9886
    %v9919 = vsub.f32 %v9790, %v9887
    %v9920 = vsub.f32 %v9791, %v9888
    %v9921 = vsub.f32 %v9792, %v9889
    %v9922 = vsub.f32 %v9793, %v9890
    %v9923 = vsub.f32 %v9794, %v9891
    %v9924 = vsub.f32 %v9795, %v9892
    %v9925 = vsub.f32 %v9796, %v9893
    %v9926 = vsub.f32 %v9797, %v9894
    %v9927 = vsub.f32 %v9798, %v9895
    %v9928 = vsub.f32 %v9799, %v9896
    %v9929 = vsub.f32 %v9800, %v9897
    %v9930 = vsub.f32 %v9801, %v9898
    %v9931 = vsub.f32 %v9802, %v9899
    %v9932 = vsub.f32 %v9803, %v9900
    %v9933 = vsub.f32 %v9804, %v9901
    %v9934 = vsub.f32 %v9805, %v9902
    %v9935 = vsub.f32 %v9806, %v9903
    %v9936 = vmul.f32 %v9904, %v9904
    %v9937 = vmul.f32 %v9905, %v9905
    %v9938 = vmul.f32 %v9906, %v9906
    %v9939 = vmul.f32 %v9907, %v9907
    %v9940 = vmul.f32 %v9908, %v9908
    %v9941 = vmul.f32 %v9909, %v9909
    %v9942 = vmul.f32 %v9910, %v9910
    %v9943 = vmul.f32 %v9911, %v9911
    %v9944 = vmul.f32 %v9912, %v9912
    %v9945 = vmul.f32 %v9913, %v9913
    %v9946 = vmul.f32 %v9914, %v9914
    %v9947 = vmul.f32 %v9915, %v9915
    %v9948 = vmul.f32 %v9916, %v9916
    %v9949 = vmul.f32 %v9917, %v9917
    %v9950 = vmul.f32 %v9918, %v9918
    %v9951 = vmul.f32 %v9919, %v9919
    %v9952 = vmul.f32 %v9920, %v9920
    %v9953 = vmul.f32 %v9921, %v9921
    %v9954 = vmul.f32 %v9922, %v9922
    %v9955 = vmul.f32 %v9923, %v9923
    %v9956 = vmul.f32 %v9924, %v9924
    %v9957 = vmul.f32 %v9925, %v9925
    %v9958 = vmul.f32 %v9926, %v9926
    %v9959 = vmul.f32 %v9927, %v9927
    %v9960 = vmul.f32 %v9928, %v9928
    %v9961 = vmul.f32 %v9929, %v9929
    %v9962 = vmul.f32 %v9930, %v9930
    %v9963 = vmul.f32 %v9931, %v9931
    %v9964 = vmul.f32 %v9932, %v9932
    %v9965 = vmul.f32 %v9933, %v9933
    %v9966 = vmul.f32 %v9934, %v9934
    %v9967 = vmul.f32 %v9935, %v9935
    %9968 = vadd.xlane.f32.xlu0 %v9936
    %v9969 = vpop.xlane.xlu0 %9968
    %9970 = vadd.xlane.f32.xlu0 %v9937
    %v9971 = vpop.xlane.xlu0 %9970
    %9972 = vadd.xlane.f32.xlu0 %v9938
    %v9973 = vpop.xlane.xlu0 %9972
    %9974 = vadd.xlane.f32.xlu0 %v9939
    %v9975 = vpop.xlane.xlu0 %9974
    %9976 = vadd.xlane.f32.xlu0 %v9940
    %v9977 = vpop.xlane.xlu0 %9976
    %9978 = vadd.xlane.f32.xlu0 %v9941
    %v9979 = vpop.xlane.xlu0 %9978
    %9980 = vadd.xlane.f32.xlu0 %v9942
    %v9981 = vpop.xlane.xlu0 %9980
    %9982 = vadd.xlane.f32.xlu0 %v9943
    %v9983 = vpop.xlane.xlu0 %9982
    %9984 = vadd.xlane.f32.xlu0 %v9944
    %v9985 = vpop.xlane.xlu0 %9984
    %9986 = vadd.xlane.f32.xlu0 %v9945
    %v9987 = vpop.xlane.xlu0 %9986
    %9988 = vadd.xlane.f32.xlu0 %v9946
    %v9989 = vpop.xlane.xlu0 %9988
    %9990 = vadd.xlane.f32.xlu0 %v9947
    %v9991 = vpop.xlane.xlu0 %9990
    %9992 = vadd.xlane.f32.xlu0 %v9948
    %v9993 = vpop.xlane.xlu0 %9992
    %9994 = vadd.xlane.f32.xlu0 %v9949
    %v9995 = vpop.xlane.xlu0 %9994
    %9996 = vadd.xlane.f32.xlu0 %v9950
    %v9997 = vpop.xlane.xlu0 %9996
    %9998 = vadd.xlane.f32.xlu0 %v9951
    %v9999 = vpop.xlane.xlu0 %9998
    %10000 = vadd.xlane.f32.xlu0 %v9952
    %v10001 = vpop.xlane.xlu0 %10000
    %10002 = vadd.xlane.f32.xlu0 %v9953
    %v10003 = vpop.xlane.xlu0 %10002
    %10004 = vadd.xlane.f32.xlu0 %v9954
    %v10005 = vpop.xlane.xlu0 %10004
    %10006 = vadd.xlane.f32.xlu0 %v9955
    %v10007 = vpop.xlane.xlu0 %10006
    %10008 = vadd.xlane.f32.xlu0 %v9956
    %v10009 = vpop.xlane.xlu0 %10008
    %10010 = vadd.xlane.f32.xlu0 %v9957
    %v10011 = vpop.xlane.xlu0 %10010
    %10012 = vadd.xlane.f32.xlu0 %v9958
    %v10013 = vpop.xlane.xlu0 %10012
    %10014 = vadd.xlane.f32.xlu0 %v9959
    %v10015 = vpop.xlane.xlu0 %10014
    %10016 = vadd.xlane.f32.xlu0 %v9960
    %v10017 = vpop.xlane.xlu0 %10016
    %10018 = vadd.xlane.f32.xlu0 %v9961
    %v10019 = vpop.xlane.xlu0 %10018
    %10020 = vadd.xlane.f32.xlu0 %v9962
    %v10021 = vpop.xlane.xlu0 %10020
    %10022 = vadd.xlane.f32.xlu0 %v9963
    %v10023 = vpop.xlane.xlu0 %10022
    %10024 = vadd.xlane.f32.xlu0 %v9964
    %v10025 = vpop.xlane.xlu0 %10024
    %10026 = vadd.xlane.f32.xlu0 %v9965
    %v10027 = vpop.xlane.xlu0 %10026
    %10028 = vadd.xlane.f32.xlu0 %v9966
    %v10029 = vpop.xlane.xlu0 %10028
    %10030 = vadd.xlane.f32.xlu0 %v9967
    %v10031 = vpop.xlane.xlu0 %10030
    %v10032 = vmul.f32 %v9969, %v9871
    %v10033 = vmul.f32 %v9971, %v9871
    %v10034 = vmul.f32 %v9973, %v9871
    %v10035 = vmul.f32 %v9975, %v9871
    %v10036 = vmul.f32 %v9977, %v9871
    %v10037 = vmul.f32 %v9979, %v9871
    %v10038 = vmul.f32 %v9981, %v9871
    %v10039 = vmul.f32 %v9983, %v9871
    %v10040 = vmul.f32 %v9985, %v9871
    %v10041 = vmul.f32 %v9987, %v9871
    %v10042 = vmul.f32 %v9989, %v9871
    %v10043 = vmul.f32 %v9991, %v9871
    %v10044 = vmul.f32 %v9993, %v9871
    %v10045 = vmul.f32 %v9995, %v9871
    %v10046 = vmul.f32 %v9997, %v9871
    %v10047 = vmul.f32 %v9999, %v9871
    %v10048 = vmul.f32 %v10001, %v9871
    %v10049 = vmul.f32 %v10003, %v9871
    %v10050 = vmul.f32 %v10005, %v9871
    %v10051 = vmul.f32 %v10007, %v9871
    %v10052 = vmul.f32 %v10009, %v9871
    %v10053 = vmul.f32 %v10011, %v9871
    %v10054 = vmul.f32 %v10013, %v9871
    %v10055 = vmul.f32 %v10015, %v9871
    %v10056 = vmul.f32 %v10017, %v9871
    %v10057 = vmul.f32 %v10019, %v9871
    %v10058 = vmul.f32 %v10021, %v9871
    %v10059 = vmul.f32 %v10023, %v9871
    %v10060 = vmul.f32 %v10025, %v9871
    %v10061 = vmul.f32 %v10027, %v9871
    %v10062 = vmul.f32 %v10029, %v9871
    %v10063 = vmul.f32 %v10031, %v9871
    %v10064 = vadd.f32 %v10032, 1e-05
    %v10065 = vadd.f32 %v10033, 1e-05
    %v10066 = vadd.f32 %v10034, 1e-05
    %v10067 = vadd.f32 %v10035, 1e-05
    %v10068 = vadd.f32 %v10036, 1e-05
    %v10069 = vadd.f32 %v10037, 1e-05
    %v10070 = vadd.f32 %v10038, 1e-05
    %v10071 = vadd.f32 %v10039, 1e-05
    %v10072 = vadd.f32 %v10040, 1e-05
    %v10073 = vadd.f32 %v10041, 1e-05
    %v10074 = vadd.f32 %v10042, 1e-05
    %v10075 = vadd.f32 %v10043, 1e-05
    %v10076 = vadd.f32 %v10044, 1e-05
    %v10077 = vadd.f32 %v10045, 1e-05
    %v10078 = vadd.f32 %v10046, 1e-05
    %v10079 = vadd.f32 %v10047, 1e-05
    %v10080 = vadd.f32 %v10048, 1e-05
    %v10081 = vadd.f32 %v10049, 1e-05
    %v10082 = vadd.f32 %v10050, 1e-05
    %v10083 = vadd.f32 %v10051, 1e-05
    %v10084 = vadd.f32 %v10052, 1e-05
    %v10085 = vadd.f32 %v10053, 1e-05
    %v10086 = vadd.f32 %v10054, 1e-05
    %v10087 = vadd.f32 %v10055, 1e-05
    %v10088 = vadd.f32 %v10056, 1e-05
    %v10089 = vadd.f32 %v10057, 1e-05
    %v10090 = vadd.f32 %v10058, 1e-05
    %v10091 = vadd.f32 %v10059, 1e-05
    %v10092 = vadd.f32 %v10060, 1e-05
    %v10093 = vadd.f32 %v10061, 1e-05
    %v10094 = vadd.f32 %v10062, 1e-05
    %v10095 = vadd.f32 %v10063, 1e-05
    %v10096 = vrsqrt.pop %v10064
    %v10097 = vrsqrt.pop %v10065
    %v10098 = vrsqrt.pop %v10066
    %v10099 = vrsqrt.pop %v10067
    %v10100 = vrsqrt.pop %v10068
    %v10101 = vrsqrt.pop %v10069
    %v10102 = vrsqrt.pop %v10070
    %v10103 = vrsqrt.pop %v10071
    %v10104 = vrsqrt.pop %v10072
    %v10105 = vrsqrt.pop %v10073
    %v10106 = vrsqrt.pop %v10074
    %v10107 = vrsqrt.pop %v10075
    %v10108 = vrsqrt.pop %v10076
    %v10109 = vrsqrt.pop %v10077
    %v10110 = vrsqrt.pop %v10078
    %v10111 = vrsqrt.pop %v10079
    %v10112 = vrsqrt.pop %v10080
    %v10113 = vrsqrt.pop %v10081
    %v10114 = vrsqrt.pop %v10082
    %v10115 = vrsqrt.pop %v10083
    %v10116 = vrsqrt.pop %v10084
    %v10117 = vrsqrt.pop %v10085
    %v10118 = vrsqrt.pop %v10086
    %v10119 = vrsqrt.pop %v10087
    %v10120 = vrsqrt.pop %v10088
    %v10121 = vrsqrt.pop %v10089
    %v10122 = vrsqrt.pop %v10090
    %v10123 = vrsqrt.pop %v10091
    %v10124 = vrsqrt.pop %v10092
    %v10125 = vrsqrt.pop %v10093
    %v10126 = vrsqrt.pop %v10094
    %v10127 = vrsqrt.pop %v10095
    %v10128 = vmul.f32 %v9904, %v10096
    %v10129 = vmul.f32 %v9905, %v10097
    %v10130 = vmul.f32 %v9906, %v10098
    %v10131 = vmul.f32 %v9907, %v10099
    %v10132 = vmul.f32 %v9908, %v10100
    %v10133 = vmul.f32 %v9909, %v10101
    %v10134 = vmul.f32 %v9910, %v10102
    %v10135 = vmul.f32 %v9911, %v10103
    %v10136 = vmul.f32 %v9912, %v10104
    %v10137 = vmul.f32 %v9913, %v10105
    %v10138 = vmul.f32 %v9914, %v10106
    %v10139 = vmul.f32 %v9915, %v10107
    %v10140 = vmul.f32 %v9916, %v10108
    %v10141 = vmul.f32 %v9917, %v10109
    %v10142 = vmul.f32 %v9918, %v10110
    %v10143 = vmul.f32 %v9919, %v10111
    %v10144 = vmul.f32 %v9920, %v10112
    %v10145 = vmul.f32 %v9921, %v10113
    %v10146 = vmul.f32 %v9922, %v10114
    %v10147 = vmul.f32 %v9923, %v10115
    %v10148 = vmul.f32 %v9924, %v10116
    %v10149 = vmul.f32 %v9925, %v10117
    %v10150 = vmul.f32 %v9926, %v10118
    %v10151 = vmul.f32 %v9927, %v10119
    %v10152 = vmul.f32 %v9928, %v10120
    %v10153 = vmul.f32 %v9929, %v10121
    %v10154 = vmul.f32 %v9930, %v10122
    %v10155 = vmul.f32 %v9931, %v10123
    %v10156 = vmul.f32 %v9932, %v10124
    %v10157 = vmul.f32 %v9933, %v10125
    %v10158 = vmul.f32 %v9934, %v10126
    %v10159 = vmul.f32 %v9935, %v10127
    %v10160 = vlaneseq
    %v10161 = vshrl.u32 %v10160, 7
    %v10162 = vsub.s32 0, %v10161
    %v10163 = vrot.slane %v162, %v10162
    %v10164 = vmul.f32 %v10128, %v10163
    %v10165 = vmul.f32 %v10129, %v10163
    %v10166 = vmul.f32 %v10130, %v10163
    %v10167 = vmul.f32 %v10131, %v10163
    %v10168 = vmul.f32 %v10132, %v10163
    %v10169 = vmul.f32 %v10133, %v10163
    %v10170 = vmul.f32 %v10134, %v10163
    %v10171 = vmul.f32 %v10135, %v10163
    %v10172 = vmul.f32 %v10136, %v10163
    %v10173 = vmul.f32 %v10137, %v10163
    %v10174 = vmul.f32 %v10138, %v10163
    %v10175 = vmul.f32 %v10139, %v10163
    %v10176 = vmul.f32 %v10140, %v10163
    %v10177 = vmul.f32 %v10141, %v10163
    %v10178 = vmul.f32 %v10142, %v10163
    %v10179 = vmul.f32 %v10143, %v10163
    %v10180 = vmul.f32 %v10144, %v10163
    %v10181 = vmul.f32 %v10145, %v10163
    %v10182 = vmul.f32 %v10146, %v10163
    %v10183 = vmul.f32 %v10147, %v10163
    %v10184 = vmul.f32 %v10148, %v10163
    %v10185 = vmul.f32 %v10149, %v10163
    %v10186 = vmul.f32 %v10150, %v10163
    %v10187 = vmul.f32 %v10151, %v10163
    %v10188 = vmul.f32 %v10152, %v10163
    %v10189 = vmul.f32 %v10153, %v10163
    %v10190 = vmul.f32 %v10154, %v10163
    %v10191 = vmul.f32 %v10155, %v10163
    %v10192 = vmul.f32 %v10156, %v10163
    %v10193 = vmul.f32 %v10157, %v10163
    %v10194 = vmul.f32 %v10158, %v10163
    %v10195 = vmul.f32 %v10159, %v10163
    %v10196 = vlaneseq
    %v10197 = vshrl.u32 %v10196, 7
    %v10198 = vsub.s32 0, %v10197
    %v10199 = vrot.slane %v163, %v10198
    %v10200 = vadd.f32 %v10164, %v10199
    %v10201 = vadd.f32 %v10165, %v10199
    %v10202 = vadd.f32 %v10166, %v10199
    %v10203 = vadd.f32 %v10167, %v10199
    %v10204 = vadd.f32 %v10168, %v10199
    %v10205 = vadd.f32 %v10169, %v10199
    %v10206 = vadd.f32 %v10170, %v10199
    %v10207 = vadd.f32 %v10171, %v10199
    %v10208 = vadd.f32 %v10172, %v10199
    %v10209 = vadd.f32 %v10173, %v10199
    %v10210 = vadd.f32 %v10174, %v10199
    %v10211 = vadd.f32 %v10175, %v10199
    %v10212 = vadd.f32 %v10176, %v10199
    %v10213 = vadd.f32 %v10177, %v10199
    %v10214 = vadd.f32 %v10178, %v10199
    %v10215 = vadd.f32 %v10179, %v10199
    %v10216 = vadd.f32 %v10180, %v10199
    %v10217 = vadd.f32 %v10181, %v10199
    %v10218 = vadd.f32 %v10182, %v10199
    %v10219 = vadd.f32 %v10183, %v10199
    %v10220 = vadd.f32 %v10184, %v10199
    %v10221 = vadd.f32 %v10185, %v10199
    %v10222 = vadd.f32 %v10186, %v10199
    %v10223 = vadd.f32 %v10187, %v10199
    %v10224 = vadd.f32 %v10188, %v10199
    %v10225 = vadd.f32 %v10189, %v10199
    %v10226 = vadd.f32 %v10190, %v10199
    %v10227 = vadd.f32 %v10191, %v10199
    %v10228 = vadd.f32 %v10192, %v10199
    %v10229 = vadd.f32 %v10193, %v10199
    %v10230 = vadd.f32 %v10194, %v10199
    %v10231 = vadd.f32 %v10195, %v10199
    %v10232 = vpack.c.bf16 %v10201, %v10200
    %v10233 = vpack.c.bf16 %v10203, %v10202
    %v10234 = vpack.c.bf16 %v10205, %v10204
    %v10235 = vpack.c.bf16 %v10207, %v10206
    %v10236 = vpack.c.bf16 %v10209, %v10208
    %v10237 = vpack.c.bf16 %v10211, %v10210
    %v10238 = vpack.c.bf16 %v10213, %v10212
    %v10239 = vpack.c.bf16 %v10215, %v10214
    %v10240 = vpack.c.bf16 %v10217, %v10216
    %v10241 = vpack.c.bf16 %v10219, %v10218
    %v10242 = vpack.c.bf16 %v10221, %v10220
    %v10243 = vpack.c.bf16 %v10223, %v10222
    %v10244 = vpack.c.bf16 %v10225, %v10224
    %v10245 = vpack.c.bf16 %v10227, %v10226
    %v10246 = vpack.c.bf16 %v10229, %v10228
    %v10247 = vpack.c.bf16 %v10231, %v10230
    %v10248 = vld [vmem:[#allocation13] sm:$0xff]
    %v10249 = vld [vmem:[#allocation13 + $0x8] sm:$0xff]
    %v10250 = vld [vmem:[#allocation13 + $0x10] sm:$0xff]
    %v10251 = vld [vmem:[#allocation13 + $0x18] sm:$0xff]
    %v10252 = vld [vmem:[#allocation13 + $0x20] sm:$0xff]
    %v10253 = vld [vmem:[#allocation13 + $0x28] sm:$0xff]
    %v10254 = vld [vmem:[#allocation13 + $0x30] sm:$0xff]
    %v10255 = vld [vmem:[#allocation13 + $0x38] sm:$0xff]
    %v10256 = vld [vmem:[#allocation13 + $0x40] sm:$0xff]
    %v10257 = vld [vmem:[#allocation13 + $0x48] sm:$0xff]
    %v10258 = vld [vmem:[#allocation13 + $0x50] sm:$0xff]
    %v10259 = vld [vmem:[#allocation13 + $0x58] sm:$0xff]
    %v10260 = vld [vmem:[#allocation13 + $0x60] sm:$0xff]
    %v10261 = vld [vmem:[#allocation13 + $0x68] sm:$0xff]
    %v10262 = vld [vmem:[#allocation13 + $0x70] sm:$0xff]
    %v10263 = vld [vmem:[#allocation13 + $0x78] sm:$0xff]
    %v10264 = vld [vmem:[#allocation16] sm:$0x3]
    %v10266 = vlaneseq
    %v10267 = vshrl.u32 %v10266, 7
    %v10268 = vsub.s32 0, %v10267
    %v10269 = vrot.slane %v10264, %v10268
    %v10270 = vlaneseq
    %v10271 = vshrl.u32 %v10270, 7
    %v10272 = vsub.s32 1, %v10271
    %v10273 = vrot.slane %v10264, %v10272
    %v10292 = vunpack.c.l.b16 %v10248
    %v10293 = vunpack.c.h.b16 %v10248
    %v10294 = vunpack.c.l.b16 %v10249
    %v10295 = vunpack.c.h.b16 %v10249
    %v10296 = vunpack.c.l.b16 %v10250
    %v10297 = vunpack.c.h.b16 %v10250
    %v10298 = vunpack.c.l.b16 %v10251
    %v10299 = vunpack.c.h.b16 %v10251
    %v10300 = vunpack.c.l.b16 %v10252
    %v10301 = vunpack.c.h.b16 %v10252
    %v10302 = vunpack.c.l.b16 %v10253
    %v10303 = vunpack.c.h.b16 %v10253
    %v10304 = vunpack.c.l.b16 %v10254
    %v10305 = vunpack.c.h.b16 %v10254
    %v10306 = vunpack.c.l.b16 %v10255
    %v10307 = vunpack.c.h.b16 %v10255
    %v10308 = vunpack.c.l.b16 %v10256
    %v10309 = vunpack.c.h.b16 %v10256
    %v10310 = vunpack.c.l.b16 %v10257
    %v10311 = vunpack.c.h.b16 %v10257
    %v10312 = vunpack.c.l.b16 %v10258
    %v10313 = vunpack.c.h.b16 %v10258
    %v10314 = vunpack.c.l.b16 %v10259
    %v10315 = vunpack.c.h.b16 %v10259
    %v10316 = vunpack.c.l.b16 %v10260
    %v10317 = vunpack.c.h.b16 %v10260
    %v10318 = vunpack.c.l.b16 %v10261
    %v10319 = vunpack.c.h.b16 %v10261
    %v10320 = vunpack.c.l.b16 %v10262
    %v10321 = vunpack.c.h.b16 %v10262
    %v10322 = vunpack.c.l.b16 %v10263
    %v10323 = vunpack.c.h.b16 %v10263
    %v10324 = vpack.c.b16 %v10294, %v10292
    %v10325 = vpack.c.b16 %v10295, %v10293
    %v10326 = vpack.c.b16 %v10298, %v10296
    %v10327 = vpack.c.b16 %v10299, %v10297
    %v10328 = vpack.c.b16 %v10302, %v10300
    %v10329 = vpack.c.b16 %v10303, %v10301
    %v10330 = vpack.c.b16 %v10306, %v10304
    %v10331 = vpack.c.b16 %v10307, %v10305
    %v10332 = vpack.c.b16 %v10310, %v10308
    %v10333 = vpack.c.b16 %v10311, %v10309
    %v10334 = vpack.c.b16 %v10314, %v10312
    %v10335 = vpack.c.b16 %v10315, %v10313
    %v10336 = vpack.c.b16 %v10318, %v10316
    %v10337 = vpack.c.b16 %v10319, %v10317
    %v10338 = vpack.c.b16 %v10322, %v10320
    %v10339 = vpack.c.b16 %v10323, %v10321
    %10356 = vmatprep.subr.bf16.mxu0 %v10339
    %10357 = vmatpush1.bf16.msra.mxu0 %v10338
    %10358 = vmatprep.subr.bf16.mxu0 %v10337
    %10359 = vmatpush1.bf16.msra.mxu0 %v10336
    %10360 = vmatprep.subr.bf16.mxu0 %v10335
    %10361 = vmatpush1.bf16.msra.mxu0 %v10334
    %10362 = vmatprep.subr.bf16.mxu0 %v10333
    %10363 = vmatpush1.bf16.msra.mxu0 %v10332
    %10364 = vmatprep.subr.bf16.mxu0 %v10331
    %10365 = vmatpush1.bf16.msra.mxu0 %v10330
    %10366 = vmatprep.subr.bf16.mxu0 %v10329
    %10367 = vmatpush1.bf16.msra.mxu0 %v10328
    %10368 = vmatprep.subr.bf16.mxu0 %v10327
    %10369 = vmatpush1.bf16.msra.mxu0 %v10326
    %10370 = vmatprep.subr.bf16.mxu0 %v10325
    %10371 = vmatpush1.bf16.msra.mxu0 %v10324
    %10372 = vmatprep.subr.bf16.mxu0 0
    %10373 = vmatpush2.bf16.msra.mxu0 0
    %10374 = vmatprep.subr.bf16.mxu0 0
    %10375 = vmatpush2.bf16.msra.mxu0 0
    %10376 = vmatprep.subr.bf16.mxu0 0
    %10377 = vmatpush2.bf16.msra.mxu0 0
    %10378 = vmatprep.subr.bf16.mxu0 0
    %10379 = vmatpush2.bf16.msra.mxu0 0
    %10380 = vmatprep.subr.bf16.mxu0 0
    %10381 = vmatpush2.bf16.msra.mxu0 0
    %10382 = vmatprep.subr.bf16.mxu0 0
    %10383 = vmatpush2.bf16.msra.mxu0 0
    %10384 = vmatprep.subr.bf16.mxu0 0
    %10385 = vmatpush2.bf16.msra.mxu0 0
    %10386 = vmatprep.subr.bf16.mxu0 0
    %10387 = vmatpush2.bf16.msra.mxu0 0
    %10388 = vmatprep.mubr.bf16.mxu0 0
    %10389 = vmatmul.mubr.bf16.gmra.mxu0 %v10232
    %v10390 = vpop.f32.mrf.mxu0
    %v10391 = vadd.f32 %v10269, %v10390
    %v10392 = vpop.f32.mrf.mxu0
    %v10393 = vadd.f32 %v10273, %v10392
    %v10394 = vpop.f32.mrf.mxu0
    %v10395 = vadd.f32 %v10269, %v10394
    %v10396 = vpop.f32.mrf.mxu0
    %v10397 = vadd.f32 %v10273, %v10396
    %10398 = vmatprep.mubr.bf16.mxu0 0
    %10399 = vmatmul.mubr.bf16.gmra.mxu0 %v10233
    %v10400 = vpop.f32.mrf.mxu0
    %v10401 = vadd.f32 %v10269, %v10400
    %v10402 = vpop.f32.mrf.mxu0
    %v10403 = vadd.f32 %v10273, %v10402
    %v10404 = vpop.f32.mrf.mxu0
    %v10405 = vadd.f32 %v10269, %v10404
    %v10406 = vpop.f32.mrf.mxu0
    %v10407 = vadd.f32 %v10273, %v10406
    %10408 = vmatprep.mubr.bf16.mxu0 0
    %10409 = vmatmul.mubr.bf16.gmra.mxu0 %v10234
    %v10410 = vpop.f32.mrf.mxu0
    %v10411 = vadd.f32 %v10269, %v10410
    %v10412 = vpop.f32.mrf.mxu0
    %v10413 = vadd.f32 %v10273, %v10412
    %v10414 = vpop.f32.mrf.mxu0
    %v10415 = vadd.f32 %v10269, %v10414
    %v10416 = vpop.f32.mrf.mxu0
    %v10417 = vadd.f32 %v10273, %v10416
    %10418 = vmatprep.mubr.bf16.mxu0 0
    %10419 = vmatmul.mubr.bf16.gmra.mxu0 %v10235
    %v10420 = vpop.f32.mrf.mxu0
    %v10421 = vadd.f32 %v10269, %v10420
    %v10422 = vpop.f32.mrf.mxu0
    %v10423 = vadd.f32 %v10273, %v10422
    %v10424 = vpop.f32.mrf.mxu0
    %v10425 = vadd.f32 %v10269, %v10424
    %v10426 = vpop.f32.mrf.mxu0
    %v10427 = vadd.f32 %v10273, %v10426
    %10428 = vmatprep.mubr.bf16.mxu0 0
    %10429 = vmatmul.mubr.bf16.gmra.mxu0 %v10236
    %v10430 = vpop.f32.mrf.mxu0
    %v10431 = vadd.f32 %v10269, %v10430
    %v10432 = vpop.f32.mrf.mxu0
    %v10433 = vadd.f32 %v10273, %v10432
    %v10434 = vpop.f32.mrf.mxu0
    %v10435 = vadd.f32 %v10269, %v10434
    %v10436 = vpop.f32.mrf.mxu0
    %v10437 = vadd.f32 %v10273, %v10436
    %10438 = vmatprep.mubr.bf16.mxu0 0
    %10439 = vmatmul.mubr.bf16.gmra.mxu0 %v10237
    %v10440 = vpop.f32.mrf.mxu0
    %v10441 = vadd.f32 %v10269, %v10440
    %v10442 = vpop.f32.mrf.mxu0
    %v10443 = vadd.f32 %v10273, %v10442
    %v10444 = vpop.f32.mrf.mxu0
    %v10445 = vadd.f32 %v10269, %v10444
    %v10446 = vpop.f32.mrf.mxu0
    %v10447 = vadd.f32 %v10273, %v10446
    %10448 = vmatprep.mubr.bf16.mxu0 0
    %10449 = vmatmul.mubr.bf16.gmra.mxu0 %v10238
    %v10450 = vpop.f32.mrf.mxu0
    %v10451 = vadd.f32 %v10269, %v10450
    %v10452 = vpop.f32.mrf.mxu0
    %v10453 = vadd.f32 %v10273, %v10452
    %v10454 = vpop.f32.mrf.mxu0
    %v10455 = vadd.f32 %v10269, %v10454
    %v10456 = vpop.f32.mrf.mxu0
    %v10457 = vadd.f32 %v10273, %v10456
    %10458 = vmatprep.mubr.bf16.mxu0 0
    %10459 = vmatmul.mubr.bf16.gmra.mxu0 %v10239
    %v10460 = vpop.f32.mrf.mxu0
    %v10461 = vadd.f32 %v10269, %v10460
    %v10462 = vpop.f32.mrf.mxu0
    %v10463 = vadd.f32 %v10273, %v10462
    %v10464 = vpop.f32.mrf.mxu0
    %v10465 = vadd.f32 %v10269, %v10464
    %v10466 = vpop.f32.mrf.mxu0
    %v10467 = vadd.f32 %v10273, %v10466
    %10468 = vmatprep.mubr.bf16.mxu0 0
    %10469 = vmatmul.mubr.bf16.gmra.mxu0 %v10240
    %v10470 = vpop.f32.mrf.mxu0
    %v10471 = vadd.f32 %v10269, %v10470
    %v10472 = vpop.f32.mrf.mxu0
    %v10473 = vadd.f32 %v10273, %v10472
    %v10474 = vpop.f32.mrf.mxu0
    %v10475 = vadd.f32 %v10269, %v10474
    %v10476 = vpop.f32.mrf.mxu0
    %v10477 = vadd.f32 %v10273, %v10476
    %10478 = vmatprep.mubr.bf16.mxu0 0
    %10479 = vmatmul.mubr.bf16.gmra.mxu0 %v10241
    %v10480 = vpop.f32.mrf.mxu0
    %v10481 = vadd.f32 %v10269, %v10480
    %v10482 = vpop.f32.mrf.mxu0
    %v10483 = vadd.f32 %v10273, %v10482
    %v10484 = vpop.f32.mrf.mxu0
    %v10485 = vadd.f32 %v10269, %v10484
    %v10486 = vpop.f32.mrf.mxu0
    %v10487 = vadd.f32 %v10273, %v10486
    %10488 = vmatprep.mubr.bf16.mxu0 0
    %10489 = vmatmul.mubr.bf16.gmra.mxu0 %v10242
    %v10490 = vpop.f32.mrf.mxu0
    %v10491 = vadd.f32 %v10269, %v10490
    %v10492 = vpop.f32.mrf.mxu0
    %v10493 = vadd.f32 %v10273, %v10492
    %v10494 = vpop.f32.mrf.mxu0
    %v10495 = vadd.f32 %v10269, %v10494
    %v10496 = vpop.f32.mrf.mxu0
    %v10497 = vadd.f32 %v10273, %v10496
    %10498 = vmatprep.mubr.bf16.mxu0 0
    %10499 = vmatmul.mubr.bf16.gmra.mxu0 %v10243
    %v10500 = vpop.f32.mrf.mxu0
    %v10501 = vadd.f32 %v10269, %v10500
    %v10502 = vpop.f32.mrf.mxu0
    %v10503 = vadd.f32 %v10273, %v10502
    %v10504 = vpop.f32.mrf.mxu0
    %v10505 = vadd.f32 %v10269, %v10504
    %v10506 = vpop.f32.mrf.mxu0
    %v10507 = vadd.f32 %v10273, %v10506
    %10508 = vmatprep.mubr.bf16.mxu0 0
    %10509 = vmatmul.mubr.bf16.gmra.mxu0 %v10244
    %v10510 = vpop.f32.mrf.mxu0
    %v10511 = vadd.f32 %v10269, %v10510
    %v10512 = vpop.f32.mrf.mxu0
    %v10513 = vadd.f32 %v10273, %v10512
    %v10514 = vpop.f32.mrf.mxu0
    %v10515 = vadd.f32 %v10269, %v10514
    %v10516 = vpop.f32.mrf.mxu0
    %v10517 = vadd.f32 %v10273, %v10516
    %10518 = vmatprep.mubr.bf16.mxu0 0
    %10519 = vmatmul.mubr.bf16.gmra.mxu0 %v10245
    %v10520 = vpop.f32.mrf.mxu0
    %v10521 = vadd.f32 %v10269, %v10520
    %v10522 = vpop.f32.mrf.mxu0
    %v10523 = vadd.f32 %v10273, %v10522
    %v10524 = vpop.f32.mrf.mxu0
    %v10525 = vadd.f32 %v10269, %v10524
    %v10526 = vpop.f32.mrf.mxu0
    %v10527 = vadd.f32 %v10273, %v10526
    %10528 = vmatprep.mubr.bf16.mxu0 0
    %10529 = vmatmul.mubr.bf16.gmra.mxu0 %v10246
    %v10530 = vpop.f32.mrf.mxu0
    %v10531 = vadd.f32 %v10269, %v10530
    %v10532 = vpop.f32.mrf.mxu0
    %v10533 = vadd.f32 %v10273, %v10532
    %v10534 = vpop.f32.mrf.mxu0
    %v10535 = vadd.f32 %v10269, %v10534
    %v10536 = vpop.f32.mrf.mxu0
    %v10537 = vadd.f32 %v10273, %v10536
    %10538 = vmatprep.mubr.bf16.mxu0 0
    %10539 = vmatmul.mubr.bf16.gmra.mxu0 %v10247
    %v10540 = vpop.f32.mrf.mxu0
    %v10541 = vadd.f32 %v10269, %v10540
    %v10542 = vpop.f32.mrf.mxu0
    %v10543 = vadd.f32 %v10273, %v10542
    %v10544 = vpop.f32.mrf.mxu0
    %v10545 = vadd.f32 %v10269, %v10544
    %v10546 = vpop.f32.mrf.mxu0
    %v10547 = vadd.f32 %v10273, %v10546
    %10548 = vdwg.mxu0
    %v10549 = vmax.f32 %v10391, 0.0
    %v10550 = vmax.f32 %v10393, 0.0
    %v10551 = vmax.f32 %v10395, 0.0
    %v10552 = vmax.f32 %v10397, 0.0
    %v10553 = vmax.f32 %v10401, 0.0
    %v10554 = vmax.f32 %v10403, 0.0
    %v10555 = vmax.f32 %v10405, 0.0
    %v10556 = vmax.f32 %v10407, 0.0
    %v10557 = vmax.f32 %v10411, 0.0
    %v10558 = vmax.f32 %v10413, 0.0
    %v10559 = vmax.f32 %v10415, 0.0
    %v10560 = vmax.f32 %v10417, 0.0
    %v10561 = vmax.f32 %v10421, 0.0
    %v10562 = vmax.f32 %v10423, 0.0
    %v10563 = vmax.f32 %v10425, 0.0
    %v10564 = vmax.f32 %v10427, 0.0
    %v10565 = vmax.f32 %v10431, 0.0
    %v10566 = vmax.f32 %v10433, 0.0
    %v10567 = vmax.f32 %v10435, 0.0
    %v10568 = vmax.f32 %v10437, 0.0
    %v10569 = vmax.f32 %v10441, 0.0
    %v10570 = vmax.f32 %v10443, 0.0
    %v10571 = vmax.f32 %v10445, 0.0
    %v10572 = vmax.f32 %v10447, 0.0
    %v10573 = vmax.f32 %v10451, 0.0
    %v10574 = vmax.f32 %v10453, 0.0
    %v10575 = vmax.f32 %v10455, 0.0
    %v10576 = vmax.f32 %v10457, 0.0
    %v10577 = vmax.f32 %v10461, 0.0
    %v10578 = vmax.f32 %v10463, 0.0
    %v10579 = vmax.f32 %v10465, 0.0
    %v10580 = vmax.f32 %v10467, 0.0
    %v10581 = vmax.f32 %v10471, 0.0
    %v10582 = vmax.f32 %v10473, 0.0
    %v10583 = vmax.f32 %v10475, 0.0
    %v10584 = vmax.f32 %v10477, 0.0
    %v10585 = vmax.f32 %v10481, 0.0
    %v10586 = vmax.f32 %v10483, 0.0
    %v10587 = vmax.f32 %v10485, 0.0
    %v10588 = vmax.f32 %v10487, 0.0
    %v10589 = vmax.f32 %v10491, 0.0
    %v10590 = vmax.f32 %v10493, 0.0
    %v10591 = vmax.f32 %v10495, 0.0
    %v10592 = vmax.f32 %v10497, 0.0
    %v10593 = vmax.f32 %v10501, 0.0
    %v10594 = vmax.f32 %v10503, 0.0
    %v10595 = vmax.f32 %v10505, 0.0
    %v10596 = vmax.f32 %v10507, 0.0
    %v10597 = vmax.f32 %v10511, 0.0
    %v10598 = vmax.f32 %v10513, 0.0
    %v10599 = vmax.f32 %v10515, 0.0
    %v10600 = vmax.f32 %v10517, 0.0
    %v10601 = vmax.f32 %v10521, 0.0
    %v10602 = vmax.f32 %v10523, 0.0
    %v10603 = vmax.f32 %v10525, 0.0
    %v10604 = vmax.f32 %v10527, 0.0
    %v10605 = vmax.f32 %v10531, 0.0
    %v10606 = vmax.f32 %v10533, 0.0
    %v10607 = vmax.f32 %v10535, 0.0
    %v10608 = vmax.f32 %v10537, 0.0
    %v10609 = vmax.f32 %v10541, 0.0
    %v10610 = vmax.f32 %v10543, 0.0
    %v10611 = vmax.f32 %v10545, 0.0
    %v10612 = vmax.f32 %v10547, 0.0
    %v10613 = vpack.c.bf16 %v10551, %v10549
    %v10614 = vpack.c.bf16 %v10552, %v10550
    %v10615 = vpack.c.bf16 %v10555, %v10553
    %v10616 = vpack.c.bf16 %v10556, %v10554
    %v10617 = vpack.c.bf16 %v10559, %v10557
    %v10618 = vpack.c.bf16 %v10560, %v10558
    %v10619 = vpack.c.bf16 %v10563, %v10561
    %v10620 = vpack.c.bf16 %v10564, %v10562
    %v10621 = vpack.c.bf16 %v10567, %v10565
    %v10622 = vpack.c.bf16 %v10568, %v10566
    %v10623 = vpack.c.bf16 %v10571, %v10569
    %v10624 = vpack.c.bf16 %v10572, %v10570
    %v10625 = vpack.c.bf16 %v10575, %v10573
    %v10626 = vpack.c.bf16 %v10576, %v10574
    %v10627 = vpack.c.bf16 %v10579, %v10577
    %v10628 = vpack.c.bf16 %v10580, %v10578
    %v10629 = vpack.c.bf16 %v10583, %v10581
    %v10630 = vpack.c.bf16 %v10584, %v10582
    %v10631 = vpack.c.bf16 %v10587, %v10585
    %v10632 = vpack.c.bf16 %v10588, %v10586
    %v10633 = vpack.c.bf16 %v10591, %v10589
    %v10634 = vpack.c.bf16 %v10592, %v10590
    %v10635 = vpack.c.bf16 %v10595, %v10593
    %v10636 = vpack.c.bf16 %v10596, %v10594
    %v10637 = vpack.c.bf16 %v10599, %v10597
    %v10638 = vpack.c.bf16 %v10600, %v10598
    %v10639 = vpack.c.bf16 %v10603, %v10601
    %v10640 = vpack.c.bf16 %v10604, %v10602
    %v10641 = vpack.c.bf16 %v10607, %v10605
    %v10642 = vpack.c.bf16 %v10608, %v10606
    %v10643 = vpack.c.bf16 %v10611, %v10609
    %v10644 = vpack.c.bf16 %v10612, %v10610
    %v10645 = vld [vmem:[#allocation14] sm:$0xf]
    %v10646 = vld [vmem:[#allocation14 + $0x4] sm:$0xf]
    %v10647 = vld [vmem:[#allocation14 + $0x8] sm:$0xf]
    %v10648 = vld [vmem:[#allocation14 + $0xc] sm:$0xf]
    %v10649 = vld [vmem:[#allocation14 + $0x10] sm:$0xf]
    %v10650 = vld [vmem:[#allocation14 + $0x14] sm:$0xf]
    %v10651 = vld [vmem:[#allocation14 + $0x18] sm:$0xf]
    %v10652 = vld [vmem:[#allocation14 + $0x1c] sm:$0xf]
    %v10653 = vld [vmem:[#allocation14 + $0x20] sm:$0xf]
    %v10654 = vld [vmem:[#allocation14 + $0x24] sm:$0xf]
    %v10655 = vld [vmem:[#allocation14 + $0x28] sm:$0xf]
    %v10656 = vld [vmem:[#allocation14 + $0x2c] sm:$0xf]
    %v10657 = vld [vmem:[#allocation14 + $0x30] sm:$0xf]
    %v10658 = vld [vmem:[#allocation14 + $0x34] sm:$0xf]
    %v10659 = vld [vmem:[#allocation14 + $0x38] sm:$0xf]
    %v10660 = vld [vmem:[#allocation14 + $0x3c] sm:$0xf]
    %v10661 = vld [vmem:[#allocation14 + $0x40] sm:$0xf]
    %v10662 = vld [vmem:[#allocation14 + $0x44] sm:$0xf]
    %v10663 = vld [vmem:[#allocation14 + $0x48] sm:$0xf]
    %v10664 = vld [vmem:[#allocation14 + $0x4c] sm:$0xf]
    %v10665 = vld [vmem:[#allocation14 + $0x50] sm:$0xf]
    %v10666 = vld [vmem:[#allocation14 + $0x54] sm:$0xf]
    %v10667 = vld [vmem:[#allocation14 + $0x58] sm:$0xf]
    %v10668 = vld [vmem:[#allocation14 + $0x5c] sm:$0xf]
    %v10669 = vld [vmem:[#allocation14 + $0x60] sm:$0xf]
    %v10670 = vld [vmem:[#allocation14 + $0x64] sm:$0xf]
    %v10671 = vld [vmem:[#allocation14 + $0x68] sm:$0xf]
    %v10672 = vld [vmem:[#allocation14 + $0x6c] sm:$0xf]
    %v10673 = vld [vmem:[#allocation14 + $0x70] sm:$0xf]
    %v10674 = vld [vmem:[#allocation14 + $0x74] sm:$0xf]
    %v10675 = vld [vmem:[#allocation14 + $0x78] sm:$0xf]
    %v10676 = vld [vmem:[#allocation14 + $0x7c] sm:$0xf]
    %v10709 = vunpack.c.l.b16 %v10645
    %v10710 = vunpack.c.l.b16 %v10646
    %v10711 = vunpack.c.l.b16 %v10647
    %v10712 = vunpack.c.l.b16 %v10648
    %v10713 = vunpack.c.l.b16 %v10649
    %v10714 = vunpack.c.l.b16 %v10650
    %v10715 = vunpack.c.l.b16 %v10651
    %v10716 = vunpack.c.l.b16 %v10652
    %v10717 = vunpack.c.l.b16 %v10653
    %v10718 = vunpack.c.l.b16 %v10654
    %v10719 = vunpack.c.l.b16 %v10655
    %v10720 = vunpack.c.l.b16 %v10656
    %v10721 = vunpack.c.l.b16 %v10657
    %v10722 = vunpack.c.l.b16 %v10658
    %v10723 = vunpack.c.l.b16 %v10659
    %v10724 = vunpack.c.l.b16 %v10660
    %v10725 = vunpack.c.l.b16 %v10661
    %v10726 = vunpack.c.l.b16 %v10662
    %v10727 = vunpack.c.l.b16 %v10663
    %v10728 = vunpack.c.l.b16 %v10664
    %v10729 = vunpack.c.l.b16 %v10665
    %v10730 = vunpack.c.l.b16 %v10666
    %v10731 = vunpack.c.l.b16 %v10667
    %v10732 = vunpack.c.l.b16 %v10668
    %v10733 = vunpack.c.l.b16 %v10669
    %v10734 = vunpack.c.l.b16 %v10670
    %v10735 = vunpack.c.l.b16 %v10671
    %v10736 = vunpack.c.l.b16 %v10672
    %v10737 = vunpack.c.l.b16 %v10673
    %v10738 = vunpack.c.l.b16 %v10674
    %v10739 = vunpack.c.l.b16 %v10675
    %v10740 = vunpack.c.l.b16 %v10676
    %v10741 = vpack.c.b16 %v10710, %v10709
    %v10742 = vpack.c.b16 %v10712, %v10711
    %v10743 = vpack.c.b16 %v10714, %v10713
    %v10744 = vpack.c.b16 %v10716, %v10715
    %v10745 = vpack.c.b16 %v10718, %v10717
    %v10746 = vpack.c.b16 %v10720, %v10719
    %v10747 = vpack.c.b16 %v10722, %v10721
    %v10748 = vpack.c.b16 %v10724, %v10723
    %v10749 = vpack.c.b16 %v10726, %v10725
    %v10750 = vpack.c.b16 %v10728, %v10727
    %v10751 = vpack.c.b16 %v10730, %v10729
    %v10752 = vpack.c.b16 %v10732, %v10731
    %v10753 = vpack.c.b16 %v10734, %v10733
    %v10754 = vpack.c.b16 %v10736, %v10735
    %v10755 = vpack.c.b16 %v10738, %v10737
    %v10756 = vpack.c.b16 %v10740, %v10739
    %10773 = vmatprep.subr.bf16.mxu0 0
    %10774 = vmatpush1.bf16.msra.mxu0 %v10748
    %10775 = vmatprep.subr.bf16.mxu0 0
    %10776 = vmatpush1.bf16.msra.mxu0 %v10747
    %10777 = vmatprep.subr.bf16.mxu0 0
    %10778 = vmatpush1.bf16.msra.mxu0 %v10746
    %10779 = vmatprep.subr.bf16.mxu0 0
    %10780 = vmatpush1.bf16.msra.mxu0 %v10745
    %10781 = vmatprep.subr.bf16.mxu0 0
    %10782 = vmatpush1.bf16.msra.mxu0 %v10744
    %10783 = vmatprep.subr.bf16.mxu0 0
    %10784 = vmatpush1.bf16.msra.mxu0 %v10743
    %10785 = vmatprep.subr.bf16.mxu0 0
    %10786 = vmatpush1.bf16.msra.mxu0 %v10742
    %10787 = vmatprep.subr.bf16.mxu0 0
    %10788 = vmatpush1.bf16.msra.mxu0 %v10741
    %10789 = vmatprep.subr.bf16.mxu0 0
    %10790 = vmatpush2.bf16.msra.mxu0 %v10756
    %10791 = vmatprep.subr.bf16.mxu0 0
    %10792 = vmatpush2.bf16.msra.mxu0 %v10755
    %10793 = vmatprep.subr.bf16.mxu0 0
    %10794 = vmatpush2.bf16.msra.mxu0 %v10754
    %10795 = vmatprep.subr.bf16.mxu0 0
    %10796 = vmatpush2.bf16.msra.mxu0 %v10753
    %10797 = vmatprep.subr.bf16.mxu0 0
    %10798 = vmatpush2.bf16.msra.mxu0 %v10752
    %10799 = vmatprep.subr.bf16.mxu0 0
    %10800 = vmatpush2.bf16.msra.mxu0 %v10751
    %10801 = vmatprep.subr.bf16.mxu0 0
    %10802 = vmatpush2.bf16.msra.mxu0 %v10750
    %10803 = vmatprep.subr.bf16.mxu0 0
    %10804 = vmatpush2.bf16.msra.mxu0 %v10749
    %10805 = vmatprep.mubr.bf16.mxu0 %v10614
    %10806 = vmatmul.mubr.bf16.gmra.mxu0 %v10613
    %v10807 = vpop.f32.mrf.mxu0
    %v10808 = vadd.f32 0.0, %v10807
    %v10809 = vpop.f32.mrf.mxu0
    %v10810 = vpop.f32.mrf.mxu0
    %v10811 = vadd.f32 0.0, %v10810
    %v10812 = vpop.f32.mrf.mxu0
    %10813 = vmatprep.mubr.bf16.mxu0 %v10616
    %10814 = vmatmul.mubr.bf16.gmra.mxu0 %v10615
    %v10815 = vpop.f32.mrf.mxu0
    %v10816 = vadd.f32 0.0, %v10815
    %v10817 = vpop.f32.mrf.mxu0
    %v10818 = vpop.f32.mrf.mxu0
    %v10819 = vadd.f32 0.0, %v10818
    %v10820 = vpop.f32.mrf.mxu0
    %10821 = vmatprep.mubr.bf16.mxu0 %v10618
    %10822 = vmatmul.mubr.bf16.gmra.mxu0 %v10617
    %v10823 = vpop.f32.mrf.mxu0
    %v10824 = vadd.f32 0.0, %v10823
    %v10825 = vpop.f32.mrf.mxu0
    %v10826 = vpop.f32.mrf.mxu0
    %v10827 = vadd.f32 0.0, %v10826
    %v10828 = vpop.f32.mrf.mxu0
    %10829 = vmatprep.mubr.bf16.mxu0 %v10620
    %10830 = vmatmul.mubr.bf16.gmra.mxu0 %v10619
    %v10831 = vpop.f32.mrf.mxu0
    %v10832 = vadd.f32 0.0, %v10831
    %v10833 = vpop.f32.mrf.mxu0
    %v10834 = vpop.f32.mrf.mxu0
    %v10835 = vadd.f32 0.0, %v10834
    %v10836 = vpop.f32.mrf.mxu0
    %10837 = vmatprep.mubr.bf16.mxu0 %v10622
    %10838 = vmatmul.mubr.bf16.gmra.mxu0 %v10621
    %v10839 = vpop.f32.mrf.mxu0
    %v10840 = vadd.f32 0.0, %v10839
    %v10841 = vpop.f32.mrf.mxu0
    %v10842 = vpop.f32.mrf.mxu0
    %v10843 = vadd.f32 0.0, %v10842
    %v10844 = vpop.f32.mrf.mxu0
    %10845 = vmatprep.mubr.bf16.mxu0 %v10624
    %10846 = vmatmul.mubr.bf16.gmra.mxu0 %v10623
    %v10847 = vpop.f32.mrf.mxu0
    %v10848 = vadd.f32 0.0, %v10847
    %v10849 = vpop.f32.mrf.mxu0
    %v10850 = vpop.f32.mrf.mxu0
    %v10851 = vadd.f32 0.0, %v10850
    %v10852 = vpop.f32.mrf.mxu0
    %10853 = vmatprep.mubr.bf16.mxu0 %v10626
    %10854 = vmatmul.mubr.bf16.gmra.mxu0 %v10625
    %v10855 = vpop.f32.mrf.mxu0
    %v10856 = vadd.f32 0.0, %v10855
    %v10857 = vpop.f32.mrf.mxu0
    %v10858 = vpop.f32.mrf.mxu0
    %v10859 = vadd.f32 0.0, %v10858
    %v10860 = vpop.f32.mrf.mxu0
    %10861 = vmatprep.mubr.bf16.mxu0 %v10628
    %10862 = vmatmul.mubr.bf16.gmra.mxu0 %v10627
    %v10863 = vpop.f32.mrf.mxu0
    %v10864 = vadd.f32 0.0, %v10863
    %v10865 = vpop.f32.mrf.mxu0
    %v10866 = vpop.f32.mrf.mxu0
    %v10867 = vadd.f32 0.0, %v10866
    %v10868 = vpop.f32.mrf.mxu0
    %10869 = vmatprep.mubr.bf16.mxu0 %v10630
    %10870 = vmatmul.mubr.bf16.gmra.mxu0 %v10629
    %v10871 = vpop.f32.mrf.mxu0
    %v10872 = vadd.f32 0.0, %v10871
    %v10873 = vpop.f32.mrf.mxu0
    %v10874 = vpop.f32.mrf.mxu0
    %v10875 = vadd.f32 0.0, %v10874
    %v10876 = vpop.f32.mrf.mxu0
    %10877 = vmatprep.mubr.bf16.mxu0 %v10632
    %10878 = vmatmul.mubr.bf16.gmra.mxu0 %v10631
    %v10879 = vpop.f32.mrf.mxu0
    %v10880 = vadd.f32 0.0, %v10879
    %v10881 = vpop.f32.mrf.mxu0
    %v10882 = vpop.f32.mrf.mxu0
    %v10883 = vadd.f32 0.0, %v10882
    %v10884 = vpop.f32.mrf.mxu0
    %10885 = vmatprep.mubr.bf16.mxu0 %v10634
    %10886 = vmatmul.mubr.bf16.gmra.mxu0 %v10633
    %v10887 = vpop.f32.mrf.mxu0
    %v10888 = vadd.f32 0.0, %v10887
    %v10889 = vpop.f32.mrf.mxu0
    %v10890 = vpop.f32.mrf.mxu0
    %v10891 = vadd.f32 0.0, %v10890
    %v10892 = vpop.f32.mrf.mxu0
    %10893 = vmatprep.mubr.bf16.mxu0 %v10636
    %10894 = vmatmul.mubr.bf16.gmra.mxu0 %v10635
    %v10895 = vpop.f32.mrf.mxu0
    %v10896 = vadd.f32 0.0, %v10895
    %v10897 = vpop.f32.mrf.mxu0
    %v10898 = vpop.f32.mrf.mxu0
    %v10899 = vadd.f32 0.0, %v10898
    %v10900 = vpop.f32.mrf.mxu0
    %10901 = vmatprep.mubr.bf16.mxu0 %v10638
    %10902 = vmatmul.mubr.bf16.gmra.mxu0 %v10637
    %v10903 = vpop.f32.mrf.mxu0
    %v10904 = vadd.f32 0.0, %v10903
    %v10905 = vpop.f32.mrf.mxu0
    %v10906 = vpop.f32.mrf.mxu0
    %v10907 = vadd.f32 0.0, %v10906
    %v10908 = vpop.f32.mrf.mxu0
    %10909 = vmatprep.mubr.bf16.mxu0 %v10640
    %10910 = vmatmul.mubr.bf16.gmra.mxu0 %v10639
    %v10911 = vpop.f32.mrf.mxu0
    %v10912 = vadd.f32 0.0, %v10911
    %v10913 = vpop.f32.mrf.mxu0
    %v10914 = vpop.f32.mrf.mxu0
    %v10915 = vadd.f32 0.0, %v10914
    %v10916 = vpop.f32.mrf.mxu0
    %10917 = vmatprep.mubr.bf16.mxu0 %v10642
    %10918 = vmatmul.mubr.bf16.gmra.mxu0 %v10641
    %v10919 = vpop.f32.mrf.mxu0
    %v10920 = vadd.f32 0.0, %v10919
    %v10921 = vpop.f32.mrf.mxu0
    %v10922 = vpop.f32.mrf.mxu0
    %v10923 = vadd.f32 0.0, %v10922
    %v10924 = vpop.f32.mrf.mxu0
    %10925 = vmatprep.mubr.bf16.mxu0 %v10644
    %10926 = vmatmul.mubr.bf16.gmra.mxu0 %v10643
    %v10927 = vpop.f32.mrf.mxu0
    %v10928 = vadd.f32 0.0, %v10927
    %v10929 = vpop.f32.mrf.mxu0
    %v10930 = vpop.f32.mrf.mxu0
    %v10931 = vadd.f32 0.0, %v10930
    %v10932 = vpop.f32.mrf.mxu0
    %10933 = vdwg.mxu0
    %v10934 = vadd.f32 %v10200, %v10808
    %v10935 = vadd.f32 %v10201, %v10811
    %v10936 = vadd.f32 %v10202, %v10816
    %v10937 = vadd.f32 %v10203, %v10819
    %v10938 = vadd.f32 %v10204, %v10824
    %v10939 = vadd.f32 %v10205, %v10827
    %v10940 = vadd.f32 %v10206, %v10832
    %v10941 = vadd.f32 %v10207, %v10835
    %v10942 = vadd.f32 %v10208, %v10840
    %v10943 = vadd.f32 %v10209, %v10843
    %v10944 = vadd.f32 %v10210, %v10848
    %v10945 = vadd.f32 %v10211, %v10851
    %v10946 = vadd.f32 %v10212, %v10856
    %v10947 = vadd.f32 %v10213, %v10859
    %v10948 = vadd.f32 %v10214, %v10864
    %v10949 = vadd.f32 %v10215, %v10867
    %v10950 = vadd.f32 %v10216, %v10872
    %v10951 = vadd.f32 %v10217, %v10875
    %v10952 = vadd.f32 %v10218, %v10880
    %v10953 = vadd.f32 %v10219, %v10883
    %v10954 = vadd.f32 %v10220, %v10888
    %v10955 = vadd.f32 %v10221, %v10891
    %v10956 = vadd.f32 %v10222, %v10896
    %v10957 = vadd.f32 %v10223, %v10899
    %v10958 = vadd.f32 %v10224, %v10904
    %v10959 = vadd.f32 %v10225, %v10907
    %v10960 = vadd.f32 %v10226, %v10912
    %v10961 = vadd.f32 %v10227, %v10915
    %v10962 = vadd.f32 %v10228, %v10920
    %v10963 = vadd.f32 %v10229, %v10923
    %v10964 = vadd.f32 %v10230, %v10928
    %v10965 = vadd.f32 %v10231, %v10931
    %v10966 = vlaneseq
    %v10967 = vshrl.u32 %v10966, 7
    %v10968 = vsub.s32 0, %v10967
    %v10969 = vrot.slane %v161, %v10968
    %v10970 = vadd.f32 %v10934, %v10969
    %v10971 = vadd.f32 %v10935, %v10969
    %v10972 = vadd.f32 %v10936, %v10969
    %v10973 = vadd.f32 %v10937, %v10969
    %v10974 = vadd.f32 %v10938, %v10969
    %v10975 = vadd.f32 %v10939, %v10969
    %v10976 = vadd.f32 %v10940, %v10969
    %v10977 = vadd.f32 %v10941, %v10969
    %v10978 = vadd.f32 %v10942, %v10969
    %v10979 = vadd.f32 %v10943, %v10969
    %v10980 = vadd.f32 %v10944, %v10969
    %v10981 = vadd.f32 %v10945, %v10969
    %v10982 = vadd.f32 %v10946, %v10969
    %v10983 = vadd.f32 %v10947, %v10969
    %v10984 = vadd.f32 %v10948, %v10969
    %v10985 = vadd.f32 %v10949, %v10969
    %v10986 = vadd.f32 %v10950, %v10969
    %v10987 = vadd.f32 %v10951, %v10969
    %v10988 = vadd.f32 %v10952, %v10969
    %v10989 = vadd.f32 %v10953, %v10969
    %v10990 = vadd.f32 %v10954, %v10969
    %v10991 = vadd.f32 %v10955, %v10969
    %v10992 = vadd.f32 %v10956, %v10969
    %v10993 = vadd.f32 %v10957, %v10969
    %v10994 = vadd.f32 %v10958, %v10969
    %v10995 = vadd.f32 %v10959, %v10969
    %v10996 = vadd.f32 %v10960, %v10969
    %v10997 = vadd.f32 %v10961, %v10969
    %v10998 = vadd.f32 %v10962, %v10969
    %v10999 = vadd.f32 %v10963, %v10969
    %v11000 = vadd.f32 %v10964, %v10969
    %v11001 = vadd.f32 %v10965, %v10969
    %11002 = vadd.xlane.f32.xlu0 %v10970
    %v11003 = vpop.xlane.xlu0 %11002
    %11004 = vadd.xlane.f32.xlu0 %v10971
    %v11005 = vpop.xlane.xlu0 %11004
    %11006 = vadd.xlane.f32.xlu0 %v10972
    %v11007 = vpop.xlane.xlu0 %11006
    %11008 = vadd.xlane.f32.xlu0 %v10973
    %v11009 = vpop.xlane.xlu0 %11008
    %11010 = vadd.xlane.f32.xlu0 %v10974
    %v11011 = vpop.xlane.xlu0 %11010
    %11012 = vadd.xlane.f32.xlu0 %v10975
    %v11013 = vpop.xlane.xlu0 %11012
    %11014 = vadd.xlane.f32.xlu0 %v10976
    %v11015 = vpop.xlane.xlu0 %11014
    %11016 = vadd.xlane.f32.xlu0 %v10977
    %v11017 = vpop.xlane.xlu0 %11016
    %11018 = vadd.xlane.f32.xlu0 %v10978
    %v11019 = vpop.xlane.xlu0 %11018
    %11020 = vadd.xlane.f32.xlu0 %v10979
    %v11021 = vpop.xlane.xlu0 %11020
    %11022 = vadd.xlane.f32.xlu0 %v10980
    %v11023 = vpop.xlane.xlu0 %11022
    %11024 = vadd.xlane.f32.xlu0 %v10981
    %v11025 = vpop.xlane.xlu0 %11024
    %11026 = vadd.xlane.f32.xlu0 %v10982
    %v11027 = vpop.xlane.xlu0 %11026
    %11028 = vadd.xlane.f32.xlu0 %v10983
    %v11029 = vpop.xlane.xlu0 %11028
    %11030 = vadd.xlane.f32.xlu0 %v10984
    %v11031 = vpop.xlane.xlu0 %11030
    %11032 = vadd.xlane.f32.xlu0 %v10985
    %v11033 = vpop.xlane.xlu0 %11032
    %11034 = vadd.xlane.f32.xlu0 %v10986
    %v11035 = vpop.xlane.xlu0 %11034
    %11036 = vadd.xlane.f32.xlu0 %v10987
    %v11037 = vpop.xlane.xlu0 %11036
    %11038 = vadd.xlane.f32.xlu0 %v10988
    %v11039 = vpop.xlane.xlu0 %11038
    %11040 = vadd.xlane.f32.xlu0 %v10989
    %v11041 = vpop.xlane.xlu0 %11040
    %11042 = vadd.xlane.f32.xlu0 %v10990
    %v11043 = vpop.xlane.xlu0 %11042
    %11044 = vadd.xlane.f32.xlu0 %v10991
    %v11045 = vpop.xlane.xlu0 %11044
    %11046 = vadd.xlane.f32.xlu0 %v10992
    %v11047 = vpop.xlane.xlu0 %11046
    %11048 = vadd.xlane.f32.xlu0 %v10993
    %v11049 = vpop.xlane.xlu0 %11048
    %11050 = vadd.xlane.f32.xlu0 %v10994
    %v11051 = vpop.xlane.xlu0 %11050
    %11052 = vadd.xlane.f32.xlu0 %v10995
    %v11053 = vpop.xlane.xlu0 %11052
    %11054 = vadd.xlane.f32.xlu0 %v10996
    %v11055 = vpop.xlane.xlu0 %11054
    %11056 = vadd.xlane.f32.xlu0 %v10997
    %v11057 = vpop.xlane.xlu0 %11056
    %11058 = vadd.xlane.f32.xlu0 %v10998
    %v11059 = vpop.xlane.xlu0 %11058
    %11060 = vadd.xlane.f32.xlu0 %v10999
    %v11061 = vpop.xlane.xlu0 %11060
    %11062 = vadd.xlane.f32.xlu0 %v11000
    %v11063 = vpop.xlane.xlu0 %11062
    %11064 = vadd.xlane.f32.xlu0 %v11001
    %v11065 = vpop.xlane.xlu0 %11064
    %v11066 = vmul.f32 %v11003, %v9871
    %v11067 = vmul.f32 %v11005, %v9871
    %v11068 = vmul.f32 %v11007, %v9871
    %v11069 = vmul.f32 %v11009, %v9871
    %v11070 = vmul.f32 %v11011, %v9871
    %v11071 = vmul.f32 %v11013, %v9871
    %v11072 = vmul.f32 %v11015, %v9871
    %v11073 = vmul.f32 %v11017, %v9871
    %v11074 = vmul.f32 %v11019, %v9871
    %v11075 = vmul.f32 %v11021, %v9871
    %v11076 = vmul.f32 %v11023, %v9871
    %v11077 = vmul.f32 %v11025, %v9871
    %v11078 = vmul.f32 %v11027, %v9871
    %v11079 = vmul.f32 %v11029, %v9871
    %v11080 = vmul.f32 %v11031, %v9871
    %v11081 = vmul.f32 %v11033, %v9871
    %v11082 = vmul.f32 %v11035, %v9871
    %v11083 = vmul.f32 %v11037, %v9871
    %v11084 = vmul.f32 %v11039, %v9871
    %v11085 = vmul.f32 %v11041, %v9871
    %v11086 = vmul.f32 %v11043, %v9871
    %v11087 = vmul.f32 %v11045, %v9871
    %v11088 = vmul.f32 %v11047, %v9871
    %v11089 = vmul.f32 %v11049, %v9871
    %v11090 = vmul.f32 %v11051, %v9871
    %v11091 = vmul.f32 %v11053, %v9871
    %v11092 = vmul.f32 %v11055, %v9871
    %v11093 = vmul.f32 %v11057, %v9871
    %v11094 = vmul.f32 %v11059, %v9871
    %v11095 = vmul.f32 %v11061, %v9871
    %v11096 = vmul.f32 %v11063, %v9871
    %v11097 = vmul.f32 %v11065, %v9871
    %v11098 = vsub.f32 %v10970, %v11066
    %v11099 = vsub.f32 %v10971, %v11067
    %v11100 = vsub.f32 %v10972, %v11068
    %v11101 = vsub.f32 %v10973, %v11069
    %v11102 = vsub.f32 %v10974, %v11070
    %v11103 = vsub.f32 %v10975, %v11071
    %v11104 = vsub.f32 %v10976, %v11072
    %v11105 = vsub.f32 %v10977, %v11073
    %v11106 = vsub.f32 %v10978, %v11074
    %v11107 = vsub.f32 %v10979, %v11075
    %v11108 = vsub.f32 %v10980, %v11076
    %v11109 = vsub.f32 %v10981, %v11077
    %v11110 = vsub.f32 %v10982, %v11078
    %v11111 = vsub.f32 %v10983, %v11079
    %v11112 = vsub.f32 %v10984, %v11080
    %v11113 = vsub.f32 %v10985, %v11081
    %v11114 = vsub.f32 %v10986, %v11082
    %v11115 = vsub.f32 %v10987, %v11083
    %v11116 = vsub.f32 %v10988, %v11084
    %v11117 = vsub.f32 %v10989, %v11085
    %v11118 = vsub.f32 %v10990, %v11086
    %v11119 = vsub.f32 %v10991, %v11087
    %v11120 = vsub.f32 %v10992, %v11088
    %v11121 = vsub.f32 %v10993, %v11089
    %v11122 = vsub.f32 %v10994, %v11090
    %v11123 = vsub.f32 %v10995, %v11091
    %v11124 = vsub.f32 %v10996, %v11092
    %v11125 = vsub.f32 %v10997, %v11093
    %v11126 = vsub.f32 %v10998, %v11094
    %v11127 = vsub.f32 %v10999, %v11095
    %v11128 = vsub.f32 %v11000, %v11096
    %v11129 = vsub.f32 %v11001, %v11097
    %v11130 = vmul.f32 %v11098, %v11098
    %v11131 = vmul.f32 %v11099, %v11099
    %v11132 = vmul.f32 %v11100, %v11100
    %v11133 = vmul.f32 %v11101, %v11101
    %v11134 = vmul.f32 %v11102, %v11102
    %v11135 = vmul.f32 %v11103, %v11103
    %v11136 = vmul.f32 %v11104, %v11104
    %v11137 = vmul.f32 %v11105, %v11105
    %v11138 = vmul.f32 %v11106, %v11106
    %v11139 = vmul.f32 %v11107, %v11107
    %v11140 = vmul.f32 %v11108, %v11108
    %v11141 = vmul.f32 %v11109, %v11109
    %v11142 = vmul.f32 %v11110, %v11110
    %v11143 = vmul.f32 %v11111, %v11111
    %v11144 = vmul.f32 %v11112, %v11112
    %v11145 = vmul.f32 %v11113, %v11113
    %v11146 = vmul.f32 %v11114, %v11114
    %v11147 = vmul.f32 %v11115, %v11115
    %v11148 = vmul.f32 %v11116, %v11116
    %v11149 = vmul.f32 %v11117, %v11117
    %v11150 = vmul.f32 %v11118, %v11118
    %v11151 = vmul.f32 %v11119, %v11119
    %v11152 = vmul.f32 %v11120, %v11120
    %v11153 = vmul.f32 %v11121, %v11121
    %v11154 = vmul.f32 %v11122, %v11122
    %v11155 = vmul.f32 %v11123, %v11123
    %v11156 = vmul.f32 %v11124, %v11124
    %v11157 = vmul.f32 %v11125, %v11125
    %v11158 = vmul.f32 %v11126, %v11126
    %v11159 = vmul.f32 %v11127, %v11127
    %v11160 = vmul.f32 %v11128, %v11128
    %v11161 = vmul.f32 %v11129, %v11129
    %11162 = vadd.xlane.f32.xlu0 %v11130
    %v11163 = vpop.xlane.xlu0 %11162
    %11164 = vadd.xlane.f32.xlu0 %v11131
    %v11165 = vpop.xlane.xlu0 %11164
    %11166 = vadd.xlane.f32.xlu0 %v11132
    %v11167 = vpop.xlane.xlu0 %11166
    %11168 = vadd.xlane.f32.xlu0 %v11133
    %v11169 = vpop.xlane.xlu0 %11168
    %11170 = vadd.xlane.f32.xlu0 %v11134
    %v11171 = vpop.xlane.xlu0 %11170
    %11172 = vadd.xlane.f32.xlu0 %v11135
    %v11173 = vpop.xlane.xlu0 %11172
    %11174 = vadd.xlane.f32.xlu0 %v11136
    %v11175 = vpop.xlane.xlu0 %11174
    %11176 = vadd.xlane.f32.xlu0 %v11137
    %v11177 = vpop.xlane.xlu0 %11176
    %11178 = vadd.xlane.f32.xlu0 %v11138
    %v11179 = vpop.xlane.xlu0 %11178
    %11180 = vadd.xlane.f32.xlu0 %v11139
    %v11181 = vpop.xlane.xlu0 %11180
    %11182 = vadd.xlane.f32.xlu0 %v11140
    %v11183 = vpop.xlane.xlu0 %11182
    %11184 = vadd.xlane.f32.xlu0 %v11141
    %v11185 = vpop.xlane.xlu0 %11184
    %11186 = vadd.xlane.f32.xlu0 %v11142
    %v11187 = vpop.xlane.xlu0 %11186
    %11188 = vadd.xlane.f32.xlu0 %v11143
    %v11189 = vpop.xlane.xlu0 %11188
    %11190 = vadd.xlane.f32.xlu0 %v11144
    %v11191 = vpop.xlane.xlu0 %11190
    %11192 = vadd.xlane.f32.xlu0 %v11145
    %v11193 = vpop.xlane.xlu0 %11192
    %11194 = vadd.xlane.f32.xlu0 %v11146
    %v11195 = vpop.xlane.xlu0 %11194
    %11196 = vadd.xlane.f32.xlu0 %v11147
    %v11197 = vpop.xlane.xlu0 %11196
    %11198 = vadd.xlane.f32.xlu0 %v11148
    %v11199 = vpop.xlane.xlu0 %11198
    %11200 = vadd.xlane.f32.xlu0 %v11149
    %v11201 = vpop.xlane.xlu0 %11200
    %11202 = vadd.xlane.f32.xlu0 %v11150
    %v11203 = vpop.xlane.xlu0 %11202
    %11204 = vadd.xlane.f32.xlu0 %v11151
    %v11205 = vpop.xlane.xlu0 %11204
    %11206 = vadd.xlane.f32.xlu0 %v11152
    %v11207 = vpop.xlane.xlu0 %11206
    %11208 = vadd.xlane.f32.xlu0 %v11153
    %v11209 = vpop.xlane.xlu0 %11208
    %11210 = vadd.xlane.f32.xlu0 %v11154
    %v11211 = vpop.xlane.xlu0 %11210
    %11212 = vadd.xlane.f32.xlu0 %v11155
    %v11213 = vpop.xlane.xlu0 %11212
    %11214 = vadd.xlane.f32.xlu0 %v11156
    %v11215 = vpop.xlane.xlu0 %11214
    %11216 = vadd.xlane.f32.xlu0 %v11157
    %v11217 = vpop.xlane.xlu0 %11216
    %11218 = vadd.xlane.f32.xlu0 %v11158
    %v11219 = vpop.xlane.xlu0 %11218
    %11220 = vadd.xlane.f32.xlu0 %v11159
    %v11221 = vpop.xlane.xlu0 %11220
    %11222 = vadd.xlane.f32.xlu0 %v11160
    %v11223 = vpop.xlane.xlu0 %11222
    %11224 = vadd.xlane.f32.xlu0 %v11161
    %v11225 = vpop.xlane.xlu0 %11224
    %v11226 = vmul.f32 %v11163, %v9871
    %v11227 = vmul.f32 %v11165, %v9871
    %v11228 = vmul.f32 %v11167, %v9871
    %v11229 = vmul.f32 %v11169, %v9871
    %v11230 = vmul.f32 %v11171, %v9871
    %v11231 = vmul.f32 %v11173, %v9871
    %v11232 = vmul.f32 %v11175, %v9871
    %v11233 = vmul.f32 %v11177, %v9871
    %v11234 = vmul.f32 %v11179, %v9871
    %v11235 = vmul.f32 %v11181, %v9871
    %v11236 = vmul.f32 %v11183, %v9871
    %v11237 = vmul.f32 %v11185, %v9871
    %v11238 = vmul.f32 %v11187, %v9871
    %v11239 = vmul.f32 %v11189, %v9871
    %v11240 = vmul.f32 %v11191, %v9871
    %v11241 = vmul.f32 %v11193, %v9871
    %v11242 = vmul.f32 %v11195, %v9871
    %v11243 = vmul.f32 %v11197, %v9871
    %v11244 = vmul.f32 %v11199, %v9871
    %v11245 = vmul.f32 %v11201, %v9871
    %v11246 = vmul.f32 %v11203, %v9871
    %v11247 = vmul.f32 %v11205, %v9871
    %v11248 = vmul.f32 %v11207, %v9871
    %v11249 = vmul.f32 %v11209, %v9871
    %v11250 = vmul.f32 %v11211, %v9871
    %v11251 = vmul.f32 %v11213, %v9871
    %v11252 = vmul.f32 %v11215, %v9871
    %v11253 = vmul.f32 %v11217, %v9871
    %v11254 = vmul.f32 %v11219, %v9871
    %v11255 = vmul.f32 %v11221, %v9871
    %v11256 = vmul.f32 %v11223, %v9871
    %v11257 = vmul.f32 %v11225, %v9871
    %v11258 = vadd.f32 %v11226, 1e-05
    %v11259 = vadd.f32 %v11227, 1e-05
    %v11260 = vadd.f32 %v11228, 1e-05
    %v11261 = vadd.f32 %v11229, 1e-05
    %v11262 = vadd.f32 %v11230, 1e-05
    %v11263 = vadd.f32 %v11231, 1e-05
    %v11264 = vadd.f32 %v11232, 1e-05
    %v11265 = vadd.f32 %v11233, 1e-05
    %v11266 = vadd.f32 %v11234, 1e-05
    %v11267 = vadd.f32 %v11235, 1e-05
    %v11268 = vadd.f32 %v11236, 1e-05
    %v11269 = vadd.f32 %v11237, 1e-05
    %v11270 = vadd.f32 %v11238, 1e-05
    %v11271 = vadd.f32 %v11239, 1e-05
    %v11272 = vadd.f32 %v11240, 1e-05
    %v11273 = vadd.f32 %v11241, 1e-05
    %v11274 = vadd.f32 %v11242, 1e-05
    %v11275 = vadd.f32 %v11243, 1e-05
    %v11276 = vadd.f32 %v11244, 1e-05
    %v11277 = vadd.f32 %v11245, 1e-05
    %v11278 = vadd.f32 %v11246, 1e-05
    %v11279 = vadd.f32 %v11247, 1e-05
    %v11280 = vadd.f32 %v11248, 1e-05
    %v11281 = vadd.f32 %v11249, 1e-05
    %v11282 = vadd.f32 %v11250, 1e-05
    %v11283 = vadd.f32 %v11251, 1e-05
    %v11284 = vadd.f32 %v11252, 1e-05
    %v11285 = vadd.f32 %v11253, 1e-05
    %v11286 = vadd.f32 %v11254, 1e-05
    %v11287 = vadd.f32 %v11255, 1e-05
    %v11288 = vadd.f32 %v11256, 1e-05
    %v11289 = vadd.f32 %v11257, 1e-05
    %v11290 = vrsqrt.pop %v11258
    %v11291 = vrsqrt.pop %v11259
    %v11292 = vrsqrt.pop %v11260
    %v11293 = vrsqrt.pop %v11261
    %v11294 = vrsqrt.pop %v11262
    %v11295 = vrsqrt.pop %v11263
    %v11296 = vrsqrt.pop %v11264
    %v11297 = vrsqrt.pop %v11265
    %v11298 = vrsqrt.pop %v11266
    %v11299 = vrsqrt.pop %v11267
    %v11300 = vrsqrt.pop %v11268
    %v11301 = vrsqrt.pop %v11269
    %v11302 = vrsqrt.pop %v11270
    %v11303 = vrsqrt.pop %v11271
    %v11304 = vrsqrt.pop %v11272
    %v11305 = vrsqrt.pop %v11273
    %v11306 = vrsqrt.pop %v11274
    %v11307 = vrsqrt.pop %v11275
    %v11308 = vrsqrt.pop %v11276
    %v11309 = vrsqrt.pop %v11277
    %v11310 = vrsqrt.pop %v11278
    %v11311 = vrsqrt.pop %v11279
    %v11312 = vrsqrt.pop %v11280
    %v11313 = vrsqrt.pop %v11281
    %v11314 = vrsqrt.pop %v11282
    %v11315 = vrsqrt.pop %v11283
    %v11316 = vrsqrt.pop %v11284
    %v11317 = vrsqrt.pop %v11285
    %v11318 = vrsqrt.pop %v11286
    %v11319 = vrsqrt.pop %v11287
    %v11320 = vrsqrt.pop %v11288
    %v11321 = vrsqrt.pop %v11289
    %v11322 = vmul.f32 %v11098, %v11290
    %v11323 = vmul.f32 %v11099, %v11291
    %v11324 = vmul.f32 %v11100, %v11292
    %v11325 = vmul.f32 %v11101, %v11293
    %v11326 = vmul.f32 %v11102, %v11294
    %v11327 = vmul.f32 %v11103, %v11295
    %v11328 = vmul.f32 %v11104, %v11296
    %v11329 = vmul.f32 %v11105, %v11297
    %v11330 = vmul.f32 %v11106, %v11298
    %v11331 = vmul.f32 %v11107, %v11299
    %v11332 = vmul.f32 %v11108, %v11300
    %v11333 = vmul.f32 %v11109, %v11301
    %v11334 = vmul.f32 %v11110, %v11302
    %v11335 = vmul.f32 %v11111, %v11303
    %v11336 = vmul.f32 %v11112, %v11304
    %v11337 = vmul.f32 %v11113, %v11305
    %v11338 = vmul.f32 %v11114, %v11306
    %v11339 = vmul.f32 %v11115, %v11307
    %v11340 = vmul.f32 %v11116, %v11308
    %v11341 = vmul.f32 %v11117, %v11309
    %v11342 = vmul.f32 %v11118, %v11310
    %v11343 = vmul.f32 %v11119, %v11311
    %v11344 = vmul.f32 %v11120, %v11312
    %v11345 = vmul.f32 %v11121, %v11313
    %v11346 = vmul.f32 %v11122, %v11314
    %v11347 = vmul.f32 %v11123, %v11315
    %v11348 = vmul.f32 %v11124, %v11316
    %v11349 = vmul.f32 %v11125, %v11317
    %v11350 = vmul.f32 %v11126, %v11318
    %v11351 = vmul.f32 %v11127, %v11319
    %v11352 = vmul.f32 %v11128, %v11320
    %v11353 = vmul.f32 %v11129, %v11321
    %v11354 = vlaneseq
    %v11355 = vshrl.u32 %v11354, 7
    %v11356 = vsub.s32 0, %v11355
    %v11357 = vrot.slane %v164, %v11356
    %v11358 = vmul.f32 %v11322, %v11357
    %v11359 = vmul.f32 %v11323, %v11357
    %v11360 = vmul.f32 %v11324, %v11357
    %v11361 = vmul.f32 %v11325, %v11357
    %v11362 = vmul.f32 %v11326, %v11357
    %v11363 = vmul.f32 %v11327, %v11357
    %v11364 = vmul.f32 %v11328, %v11357
    %v11365 = vmul.f32 %v11329, %v11357
    %v11366 = vmul.f32 %v11330, %v11357
    %v11367 = vmul.f32 %v11331, %v11357
    %v11368 = vmul.f32 %v11332, %v11357
    %v11369 = vmul.f32 %v11333, %v11357
    %v11370 = vmul.f32 %v11334, %v11357
    %v11371 = vmul.f32 %v11335, %v11357
    %v11372 = vmul.f32 %v11336, %v11357
    %v11373 = vmul.f32 %v11337, %v11357
    %v11374 = vmul.f32 %v11338, %v11357
    %v11375 = vmul.f32 %v11339, %v11357
    %v11376 = vmul.f32 %v11340, %v11357
    %v11377 = vmul.f32 %v11341, %v11357
    %v11378 = vmul.f32 %v11342, %v11357
    %v11379 = vmul.f32 %v11343, %v11357
    %v11380 = vmul.f32 %v11344, %v11357
    %v11381 = vmul.f32 %v11345, %v11357
    %v11382 = vmul.f32 %v11346, %v11357
    %v11383 = vmul.f32 %v11347, %v11357
    %v11384 = vmul.f32 %v11348, %v11357
    %v11385 = vmul.f32 %v11349, %v11357
    %v11386 = vmul.f32 %v11350, %v11357
    %v11387 = vmul.f32 %v11351, %v11357
    %v11388 = vmul.f32 %v11352, %v11357
    %v11389 = vmul.f32 %v11353, %v11357
    %v11390 = vlaneseq
    %v11391 = vshrl.u32 %v11390, 7
    %v11392 = vsub.s32 0, %v11391
    %v11393 = vrot.slane %v165, %v11392
    %v11394 = vadd.f32 %v11358, %v11393
    %v11395 = vadd.f32 %v11359, %v11393
    %v11396 = vadd.f32 %v11360, %v11393
    %v11397 = vadd.f32 %v11361, %v11393
    %v11398 = vadd.f32 %v11362, %v11393
    %v11399 = vadd.f32 %v11363, %v11393
    %v11400 = vadd.f32 %v11364, %v11393
    %v11401 = vadd.f32 %v11365, %v11393
    %v11402 = vadd.f32 %v11366, %v11393
    %v11403 = vadd.f32 %v11367, %v11393
    %v11404 = vadd.f32 %v11368, %v11393
    %v11405 = vadd.f32 %v11369, %v11393
    %v11406 = vadd.f32 %v11370, %v11393
    %v11407 = vadd.f32 %v11371, %v11393
    %v11408 = vadd.f32 %v11372, %v11393
    %v11409 = vadd.f32 %v11373, %v11393
    %v11410 = vadd.f32 %v11374, %v11393
    %v11411 = vadd.f32 %v11375, %v11393
    %v11412 = vadd.f32 %v11376, %v11393
    %v11413 = vadd.f32 %v11377, %v11393
    %v11414 = vadd.f32 %v11378, %v11393
    %v11415 = vadd.f32 %v11379, %v11393
    %v11416 = vadd.f32 %v11380, %v11393
    %v11417 = vadd.f32 %v11381, %v11393
    %v11418 = vadd.f32 %v11382, %v11393
    %v11419 = vadd.f32 %v11383, %v11393
    %v11420 = vadd.f32 %v11384, %v11393
    %v11421 = vadd.f32 %v11385, %v11393
    %v11422 = vadd.f32 %v11386, %v11393
    %v11423 = vadd.f32 %v11387, %v11393
    %v11424 = vadd.f32 %v11388, %v11393
    %v11425 = vadd.f32 %v11389, %v11393
    %11426 = vst [vmem:[#allocation17] sm:$0xff] %v11394
    %11427 = vst [vmem:[#allocation17 + $0x8] sm:$0xff] %v11395
    %11428 = vst [vmem:[#allocation17 + $0x10] sm:$0xff] %v11396
    %11429 = vst [vmem:[#allocation17 + $0x18] sm:$0xff] %v11397
    %11430 = vst [vmem:[#allocation17 + $0x20] sm:$0xff] %v11398
    %11431 = vst [vmem:[#allocation17 + $0x28] sm:$0xff] %v11399
    %11432 = vst [vmem:[#allocation17 + $0x30] sm:$0xff] %v11400
    %11433 = vst [vmem:[#allocation17 + $0x38] sm:$0xff] %v11401
    %11434 = vst [vmem:[#allocation17 + $0x40] sm:$0xff] %v11402
    %11435 = vst [vmem:[#allocation17 + $0x48] sm:$0xff] %v11403
    %11436 = vst [vmem:[#allocation17 + $0x50] sm:$0xff] %v11404
    %11437 = vst [vmem:[#allocation17 + $0x58] sm:$0xff] %v11405
    %11438 = vst [vmem:[#allocation17 + $0x60] sm:$0xff] %v11406
    %11439 = vst [vmem:[#allocation17 + $0x68] sm:$0xff] %v11407
    %11440 = vst [vmem:[#allocation17 + $0x70] sm:$0xff] %v11408
    %11441 = vst [vmem:[#allocation17 + $0x78] sm:$0xff] %v11409
    %11442 = vst [vmem:[#allocation17 + $0x80] sm:$0xff] %v11410
    %11443 = vst [vmem:[#allocation17 + $0x88] sm:$0xff] %v11411
    %11444 = vst [vmem:[#allocation17 + $0x90] sm:$0xff] %v11412
    %11445 = vst [vmem:[#allocation17 + $0x98] sm:$0xff] %v11413
    %11446 = vst [vmem:[#allocation17 + $0xa0] sm:$0xff] %v11414
    %11447 = vst [vmem:[#allocation17 + $0xa8] sm:$0xff] %v11415
    %11448 = vst [vmem:[#allocation17 + $0xb0] sm:$0xff] %v11416
    %11449 = vst [vmem:[#allocation17 + $0xb8] sm:$0xff] %v11417
    %11450 = vst [vmem:[#allocation17 + $0xc0] sm:$0xff] %v11418
    %11451 = vst [vmem:[#allocation17 + $0xc8] sm:$0xff] %v11419
    %11452 = vst [vmem:[#allocation17 + $0xd0] sm:$0xff] %v11420
    %11453 = vst [vmem:[#allocation17 + $0xd8] sm:$0xff] %v11421
    %11454 = vst [vmem:[#allocation17 + $0xe0] sm:$0xff] %v11422
    %11455 = vst [vmem:[#allocation17 + $0xe8] sm:$0xff] %v11423
    %11456 = vst [vmem:[#allocation17 + $0xf0] sm:$0xff] %v11424
    %11457 = vst [vmem:[#allocation17 + $0xf8] sm:$0xff] %v11425
    // Predicated region
    $region78: #{tpu_custom_call.1} parent=1 // pred_check
      _
    $region79: #{tpu_custom_call.1} parent=1 // pred_check_branch
      %11459 = sbr.rel (0) target = $region81
    $region80: #{tpu_custom_call.1} parent=1 // pred_region
      %s11461 = ssub.s32 4096, 4096
      %11462 = vsyncadd [#allocation4], %s11461
      %s11463 = sshll.u32 [#allocation17], 4
      %s11464 = int_to_ptr.vmem [resolvable:$true] %s11463
      %11469 = dma.vmem_to_hbm [thread:$0]  %s11464, 4096, %s10, [#allocation4], 128, 128, 8
    $region81: #{tpu_custom_call.1} parent=1 // pred_fallthru
      _
    // Predicated region
    $region82: #{tpu_custom_call.1} parent=1 // pred_check
      _
    $region83: #{tpu_custom_call.1} parent=1 // pred_check_branch
      %11471 = sbr.rel (0) target = $region85
    $region84: #{tpu_custom_call.1} parent=1 // pred_region
      %11472 = dma.done [#allocation4], 4096
    $region85: #{tpu_custom_call.1} parent=1 // pred_fallthru
      _
    %11473 = vsyncpa [#allocation3], 1
    %11474 = vsyncpa [#allocation6], 1
    %11475 = vsyncpa [#allocation9], 1
    %11476 = vsyncpa [#allocation12], 1
    %11477 = vsyncpa [#allocation15], 1
    %11478 = vsyncpa [#allocation4], 1

</llo_original>
